<compile_context>
chip_gen: v7x
topology: tpu7x:2x2x1
jax: 0.10.0
libtpu: 0.0.40
codegen_flags: <defaults>
</compile_context>

<pallas_src>
import functools
import math

import jax
import jax.numpy as jnp
from jax.experimental import pallas as pl

MAX_HAL_LENGTH = 20

# ---------------- small synthetic LXMERT-style config ----------------
VOCAB_SIZE = 64
HIDDEN = 32
NUM_HEADS = 2
HEAD_DIM = HIDDEN // NUM_HEADS
INTERMEDIATE = 64
TYPE_VOCAB = 2
VISUAL_FEAT_DIM = 16
VISUAL_POS_DIM = 4
NUM_L_LAYERS = 1
NUM_R_LAYERS = 1
NUM_X_LAYERS = 1
LN_EPS = 1e-12
NUM_ANSWERS = 2

MM_DTYPE = jnp.bfloat16  # MXU operand dtype; accumulation is always f32


# ---------------- in-kernel math helpers (pure jnp on VMEM-resident values) ----------------
def _mm(a, b):
    """(M,K) @ (K,N) -> f32 (M,N), bf16 MXU operands, f32 accumulation."""
    return jnp.dot(a.astype(MM_DTYPE), b.astype(MM_DTYPE),
                   preferred_element_type=jnp.float32)


def _mm_nt(a, b):
    """(M,K) @ (N,K)^T -> f32 (M,N) without an explicit transpose."""
    return jax.lax.dot_general(a.astype(MM_DTYPE), b.astype(MM_DTYPE),
                               (((1,), (1,)), ((), ())),
                               preferred_element_type=jnp.float32)


def _dense(x, wp, act="none"):
    y = _mm(x, wp["w"]) + wp["b"]
    if act == "gelu":
        # tanh approximation of BERT's erf-based GELU (tiny numerical divergence)
        c = math.sqrt(2.0 / math.pi)
        y = 0.5 * y * (1.0 + jnp.tanh(c * (y + 0.044715 * y * y * y)))
    elif act == "tanh":
        y = jnp.tanh(y)
    return y


def _layernorm(x, lp):
    mean = jnp.mean(x, axis=-1, keepdims=True)
    xc = x - mean
    var = jnp.mean(xc * xc, axis=-1, keepdims=True)
    return xc * jax.lax.rsqrt(var + LN_EPS) * lp["g"] + lp["b"]


def _mha(q2d, k2d, v2d, add_mask, B, Tq, Tk):
    """q2d: (B*Tq, H); k2d/v2d: (B*Tk, H); add_mask: (B, Tk) additive (0 / -1e4)."""
    scale = 1.0 / math.sqrt(HEAD_DIM)
    out_rows = []
    for b in range(B):                      # static unroll (tiny B)
        qb = q2d[b * Tq:(b + 1) * Tq, :]
        kb = k2d[b * Tk:(b + 1) * Tk, :]
        vb = v2d[b * Tk:(b + 1) * Tk, :]
        mb = add_mask[b:b + 1, :]           # (1, Tk)
        head_outs = []
        for h in range(NUM_HEADS):          # static unroll (tiny H)
            lo, hi = h * HEAD_DIM, (h + 1) * HEAD_DIM
            s = _mm_nt(qb[:, lo:hi], kb[:, lo:hi]) * scale + mb
            s = s - jnp.max(s, axis=-1, keepdims=True)
            p = jnp.exp(s)
            p = p * pl.reciprocal(jnp.sum(p, axis=-1, keepdims=True), approx=True)
            head_outs.append(_mm(p, vb[:, lo:hi]))
        out_rows.append(jnp.concatenate(head_outs, axis=-1))   # (Tq, H)
    return jnp.concatenate(out_rows, axis=0)                    # (B*Tq, H)


def _self_att_block(p, x, B, T, add_mask):
    # fused QKV: one (H, 3H) matmul instead of three (H, H) matmuls
    qkv = _dense(x, p["qkv"])                                   # (B*T, 3H)
    q = qkv[:, 0:HIDDEN]
    k = qkv[:, HIDDEN:2 * HIDDEN]
    v = qkv[:, 2 * HIDDEN:3 * HIDDEN]
    ctx = _mha(q, k, v, add_mask, B, T, T)
    out = _dense(ctx, p["out"])
    return _layernorm(out + x, p["ln"])


def _cross_att_block(p, lang, visn, B, T, O, lmask, vmask):
    # shared cross-attention weights: project [lang; visn] rows once (2x M for the MXU)
    allx = jnp.concatenate([lang, visn], axis=0)                # (B*T + B*O, H)
    qkv = _dense(allx, p["qkv"])
    nl = B * T
    ql, kl, vl = qkv[:nl, 0:HIDDEN], qkv[:nl, HIDDEN:2 * HIDDEN], qkv[:nl, 2 * HIDDEN:]
    qv, kv, vv = qkv[nl:, 0:HIDDEN], qkv[nl:, HIDDEN:2 * HIDDEN], qkv[nl:, 2 * HIDDEN:]
    lang_ctx = _mha(ql, kv, vv, vmask, B, T, O)                 # lang attends to visn
    visn_ctx = _mha(qv, kl, vl, lmask, B, O, T)                 # visn attends to lang
    both_ctx = jnp.concatenate([lang_ctx, visn_ctx], axis=0)
    both = _layernorm(_dense(both_ctx, p["out"]) + allx, p["ln"])
    return both[:nl, :], both[nl:, :]


def _ffn_block(x, inter_p, out_p, ln_p):
    return _layernorm(_dense(_dense(x, inter_p, "gelu"), out_p) + x, ln_p)


def _bert_layer(p, x, B, T, add_mask):
    att = _self_att_block(p["att"], x, B, T, add_mask)
    return _ffn_block(att, p["inter"], p["out_dense"], p["out_ln"])


def _x_layer(p, lang, visn, B, T, O, lmask, vmask):
    lang, visn = _cross_att_block(p["cross"], lang, visn, B, T, O, lmask, vmask)
    lang = _self_att_block(p["lang_self"], lang, B, T, lmask)
    visn = _self_att_block(p["visn_self"], visn, B, O, vmask)
    lang = _ffn_block(lang, p["lang_inter"], p["lang_out_dense"], p["lang_out_ln"])
    visn = _ffn_block(visn, p["visn_inter"], p["visn_out_dense"], p["visn_out_ln"])
    return lang, visn


# ---------------- the single fused kernel ----------------
def _hal_fused_kernel(*refs, treedef, n_weights, B, T, O):
    emb_ref, feat_ref, vpos_ref, lmask_ref, vmask_ref = refs[:5]
    w_refs = refs[5:5 + n_weights]
    out_ref = refs[5 + n_weights]

    # materialize all weights (VMEM -> vregs) as a nested dict of values
    p = jax.tree_util.tree_map(
        lambda r: r[...], jax.tree_util.tree_unflatten(treedef, list(w_refs)))

    lmask = lmask_ref[...]                                      # (B, T) additive
    vmask = vmask_ref[...]                                      # (B, O) additive (zeros)

    # BERT embeddings LayerNorm (lookups + sum already done in the wrapper)
    lang = _layernorm(emb_ref[...], p["emb_ln"])                # (B*T, H)

    # visual feature encoder
    ve = p["visn_enc"]
    visn = 0.5 * (_layernorm(_dense(feat_ref[...], ve["visn_fc"]), ve["visn_ln"]) +
                  _layernorm(_dense(vpos_ref[...], ve["box_fc"]), ve["box_ln"]))

    for lp in p["l_layers"]:
        lang = _bert_layer(lp, lang, B, T, lmask)
    for rp in p["r_layers"]:
        visn = _bert_layer(rp, visn, B, O, vmask)
    for xp in p["x_layers"]:
        lang, visn = _x_layer(xp, lang, visn, B, T, O, lmask, vmask)

    # pooler over the [CLS] token (row b*T for each batch element)
    cls = jnp.concatenate([lang[b * T:b * T + 1, :] for b in range(B)], axis=0)  # (B, H)
    pooled = _dense(cls, p["pooler"], act="tanh")
    out_ref[...] = _dense(pooled, p["logit_fc"]).astype(out_ref.dtype)


# ---------------- thin JAX glue ----------------
def _forward_core(params, feat, pos, word_embeds, mask, seg):
    B, T, _ = word_embeds.shape
    O = feat.shape[1]

    # embedding-table gathers + positional/segment sum (no clean fused-Pallas gather here)
    pos_e = params["emb"]["pos_emb"][:T][None]
    seg_e = jnp.take(params["emb"]["type_emb"], seg, axis=0)
    emb_sum = (word_embeds + pos_e + seg_e).reshape(B * T, HIDDEN)

    lang_add_mask = (1.0 - mask.astype(jnp.float32)) * -10000.0   # (B, T)
    visn_add_mask = jnp.zeros((B, O), jnp.float32)                # LXMERT: no visual mask

    kparams = {
        "emb_ln": params["emb"]["ln"],
        "visn_enc": params["visn_enc"],
        "l_layers": params["l_layers"],
        "r_layers": params["r_layers"],
        "x_layers": params["x_layers"],
        "pooler": params["pooler"],
        "logit_fc": params["logit_fc"],
    }
    flat_w, treedef = jax.tree_util.tree_flatten(kparams)

    kernel = functools.partial(_hal_fused_kernel, treedef=treedef,
                               n_weights=len(flat_w), B=B, T=T, O=O)
    # no grid / no BlockSpecs: every operand is a whole-array VMEM block, one dispatch total
    return pl.pallas_call(
        kernel,
        out_shape=jax.ShapeDtypeStruct((B, NUM_ANSWERS), jnp.float32),
    )(emb_sum,
      feat.reshape(B * O, VISUAL_FEAT_DIM),
      pos.reshape(B * O, VISUAL_POS_DIM),
      lang_add_mask, visn_add_mask,
      *flat_w)


_forward_core = jax.jit(_forward_core)


def hal_model_forward(params, feat, pos, sent_ids,
                      input_word_embeddings=None, mask=None, seg=None):
    """Mirrors HalModel.forward.  `sent_ids` are pre-tokenized int ids."""
    # TODO(synk): raw-string tokenization of `sent` (LXRT BertTokenizer) has no
    # Pallas/JAX equivalent; the kernel accepts pre-tokenized ids instead.
    B, T = sent_ids.shape
    if mask is None:
        mask = jnp.ones((B, T), jnp.float32)
    if seg is None:
        seg = jnp.zeros((B, T), jnp.int32)
    if input_word_embeddings is None:
        input_word_embeddings = jnp.take(params["emb"]["word_emb"], sent_ids, axis=0)
    return _forward_core(params, feat, pos, input_word_embeddings, mask, seg)


# ---------------- deterministic parameter init (init_bert_weights style) ----------------
def _dense_init(key, din, dout):
    return {"w": 0.02 * jax.random.normal(key, (din, dout), jnp.float32),
            "b": jnp.zeros((1, dout), jnp.float32)}


def _ln_init(d):
    return {"g": jnp.ones((1, d), jnp.float32), "b": jnp.zeros((1, d), jnp.float32)}


def _att_block_init(keys):
    return {"qkv": _dense_init(next(keys), HIDDEN, 3 * HIDDEN),   # fused Q/K/V
            "out": _dense_init(next(keys), HIDDEN, HIDDEN),
            "ln": _ln_init(HIDDEN)}


def _bert_layer_init(keys):
    return {"att": _att_block_init(keys),
            "inter": _dense_init(next(keys), HIDDEN, INTERMEDIATE),
            "out_dense": _dense_init(next(keys), INTERMEDIATE, HIDDEN),
            "out_ln": _ln_init(HIDDEN)}


def _x_layer_init(keys):
    return {"cross": _att_block_init(keys),
            "lang_self": _att_block_init(keys),
            "visn_self": _att_block_init(keys),
            "lang_inter": _dense_init(next(keys), HIDDEN, INTERMEDIATE),
            "lang_out_dense": _dense_init(next(keys), INTERMEDIATE, HIDDEN),
            "lang_out_ln": _ln_init(HIDDEN),
            "visn_inter": _dense_init(next(keys), HIDDEN, INTERMEDIATE),
            "visn_out_dense": _dense_init(next(keys), INTERMEDIATE, HIDDEN),
            "visn_out_ln": _ln_init(HIDDEN)}


def init_params(seed=0):
    keys = iter(jax.random.split(jax.random.PRNGKey(seed), 512))
    return {
        "emb": {
            "word_emb": 0.02 * jax.random.normal(next(keys), (VOCAB_SIZE, HIDDEN), jnp.float32),
            "pos_emb": 0.02 * jax.random.normal(next(keys), (MAX_HAL_LENGTH, HIDDEN), jnp.float32),
            "type_emb": 0.02 * jax.random.normal(next(keys), (TYPE_VOCAB, HIDDEN), jnp.float32),
            "ln": _ln_init(HIDDEN),
        },
        "visn_enc": {
            "visn_fc": _dense_init(next(keys), VISUAL_FEAT_DIM, HIDDEN),
            "visn_ln": _ln_init(HIDDEN),
            "box_fc": _dense_init(next(keys), VISUAL_POS_DIM, HIDDEN),
            "box_ln": _ln_init(HIDDEN),
        },
        "l_layers": [_bert_layer_init(keys) for _ in range(NUM_L_LAYERS)],
        "r_layers": [_bert_layer_init(keys) for _ in range(NUM_R_LAYERS)],
        "x_layers": [_x_layer_init(keys) for _ in range(NUM_X_LAYERS)],
        "pooler": _dense_init(next(keys), HIDDEN, HIDDEN),
        "logit_fc": _dense_init(next(keys), HIDDEN, NUM_ANSWERS),
    }


if __name__ == "__main__":
    B, O, T = 2, 8, 8  # batch, objects, sequence length (<= MAX_HAL_LENGTH)
    key = jax.random.PRNGKey(0)
    k1, k2, k3 = jax.random.split(key, 3)
    feat = jax.random.normal(k1, (B, O, VISUAL_FEAT_DIM), jnp.float32)      # (b, o, f)
    pos = jax.random.uniform(k2, (B, O, VISUAL_POS_DIM), jnp.float32)       # (b, o, 4)
    sent_ids = jax.random.randint(k3, (B, T), 0, VOCAB_SIZE)                # tokenized sent

    params = init_params(0)
    logits = hal_model_forward(params, feat, pos, sent_ids)
    logits = jax.block_until_ready(logits)
    assert logits.shape == (B, NUM_ANSWERS)
    assert bool(jnp.all(jnp.isfinite(logits)))
    print("KERNEL_OK")
</pallas_src>

<mosaic_0001>
module attributes {stable_mosaic.version = 11 : i64} {
  func.func @_hal_fused_kernel(%arg0: memref<16x32xf32, #tpu.memory_space<vmem>>, %arg1: memref<16x16xf32, #tpu.memory_space<vmem>>, %arg2: memref<16x4xf32, #tpu.memory_space<vmem>>, %arg3: memref<2x8xf32, #tpu.memory_space<vmem>>, %arg4: memref<2x8xf32, #tpu.memory_space<vmem>>, %arg5: memref<1x32xf32, #tpu.memory_space<vmem>>, %arg6: memref<1x32xf32, #tpu.memory_space<vmem>>, %arg7: memref<1x32xf32, #tpu.memory_space<vmem>>, %arg8: memref<1x32xf32, #tpu.memory_space<vmem>>, %arg9: memref<1x32xf32, #tpu.memory_space<vmem>>, %arg10: memref<32x32xf32, #tpu.memory_space<vmem>>, %arg11: memref<1x96xf32, #tpu.memory_space<vmem>>, %arg12: memref<32x96xf32, #tpu.memory_space<vmem>>, %arg13: memref<1x64xf32, #tpu.memory_space<vmem>>, %arg14: memref<32x64xf32, #tpu.memory_space<vmem>>, %arg15: memref<1x32xf32, #tpu.memory_space<vmem>>, %arg16: memref<64x32xf32, #tpu.memory_space<vmem>>, %arg17: memref<1x32xf32, #tpu.memory_space<vmem>>, %arg18: memref<1x32xf32, #tpu.memory_space<vmem>>, %arg19: memref<1x2xf32, #tpu.memory_space<vmem>>, %arg20: memref<32x2xf32, #tpu.memory_space<vmem>>, %arg21: memref<1x32xf32, #tpu.memory_space<vmem>>, %arg22: memref<32x32xf32, #tpu.memory_space<vmem>>, %arg23: memref<1x32xf32, #tpu.memory_space<vmem>>, %arg24: memref<1x32xf32, #tpu.memory_space<vmem>>, %arg25: memref<1x32xf32, #tpu.memory_space<vmem>>, %arg26: memref<32x32xf32, #tpu.memory_space<vmem>>, %arg27: memref<1x96xf32, #tpu.memory_space<vmem>>, %arg28: memref<32x96xf32, #tpu.memory_space<vmem>>, %arg29: memref<1x64xf32, #tpu.memory_space<vmem>>, %arg30: memref<32x64xf32, #tpu.memory_space<vmem>>, %arg31: memref<1x32xf32, #tpu.memory_space<vmem>>, %arg32: memref<64x32xf32, #tpu.memory_space<vmem>>, %arg33: memref<1x32xf32, #tpu.memory_space<vmem>>, %arg34: memref<1x32xf32, #tpu.memory_space<vmem>>, %arg35: memref<1x32xf32, #tpu.memory_space<vmem>>, %arg36: memref<4x32xf32, #tpu.memory_space<vmem>>, %arg37: memref<1x32xf32, #tpu.memory_space<vmem>>, %arg38: memref<1x32xf32, #tpu.memory_space<vmem>>, %arg39: memref<1x32xf32, #tpu.memory_space<vmem>>, %arg40: memref<16x32xf32, #tpu.memory_space<vmem>>, %arg41: memref<1x32xf32, #tpu.memory_space<vmem>>, %arg42: memref<1x32xf32, #tpu.memory_space<vmem>>, %arg43: memref<1x32xf32, #tpu.memory_space<vmem>>, %arg44: memref<1x32xf32, #tpu.memory_space<vmem>>, %arg45: memref<1x32xf32, #tpu.memory_space<vmem>>, %arg46: memref<32x32xf32, #tpu.memory_space<vmem>>, %arg47: memref<1x96xf32, #tpu.memory_space<vmem>>, %arg48: memref<32x96xf32, #tpu.memory_space<vmem>>, %arg49: memref<1x64xf32, #tpu.memory_space<vmem>>, %arg50: memref<32x64xf32, #tpu.memory_space<vmem>>, %arg51: memref<1x32xf32, #tpu.memory_space<vmem>>, %arg52: memref<64x32xf32, #tpu.memory_space<vmem>>, %arg53: memref<1x32xf32, #tpu.memory_space<vmem>>, %arg54: memref<1x32xf32, #tpu.memory_space<vmem>>, %arg55: memref<1x32xf32, #tpu.memory_space<vmem>>, %arg56: memref<1x32xf32, #tpu.memory_space<vmem>>, %arg57: memref<1x32xf32, #tpu.memory_space<vmem>>, %arg58: memref<32x32xf32, #tpu.memory_space<vmem>>, %arg59: memref<1x96xf32, #tpu.memory_space<vmem>>, %arg60: memref<32x96xf32, #tpu.memory_space<vmem>>, %arg61: memref<1x64xf32, #tpu.memory_space<vmem>>, %arg62: memref<32x64xf32, #tpu.memory_space<vmem>>, %arg63: memref<1x32xf32, #tpu.memory_space<vmem>>, %arg64: memref<64x32xf32, #tpu.memory_space<vmem>>, %arg65: memref<1x32xf32, #tpu.memory_space<vmem>>, %arg66: memref<1x32xf32, #tpu.memory_space<vmem>>, %arg67: memref<1x32xf32, #tpu.memory_space<vmem>>, %arg68: memref<1x32xf32, #tpu.memory_space<vmem>>, %arg69: memref<1x32xf32, #tpu.memory_space<vmem>>, %arg70: memref<32x32xf32, #tpu.memory_space<vmem>>, %arg71: memref<1x96xf32, #tpu.memory_space<vmem>>, %arg72: memref<32x96xf32, #tpu.memory_space<vmem>>, %arg73: memref<2x2xf32, #tpu.memory_space<vmem>>) attributes {dimension_semantics = [], scalar_prefetch = 0 : i64, scratch_operands = 0 : i64, tpu.core_type = #tpu.core_type<tc>} {
    %c0 = arith.constant 0 : index
    %c0_0 = arith.constant 0 : index
    %0 = vector.load %arg5[%c0, %c0_0] : memref<1x32xf32, #tpu.memory_space<vmem>>, vector<1x32xf32>
    %c0_1 = arith.constant 0 : index
    %c0_2 = arith.constant 0 : index
    %1 = vector.load %arg6[%c0_1, %c0_2] : memref<1x32xf32, #tpu.memory_space<vmem>>, vector<1x32xf32>
    %c0_3 = arith.constant 0 : index
    %c0_4 = arith.constant 0 : index
    %2 = vector.load %arg7[%c0_3, %c0_4] : memref<1x32xf32, #tpu.memory_space<vmem>>, vector<1x32xf32>
    %c0_5 = arith.constant 0 : index
    %c0_6 = arith.constant 0 : index
    %3 = vector.load %arg8[%c0_5, %c0_6] : memref<1x32xf32, #tpu.memory_space<vmem>>, vector<1x32xf32>
    %c0_7 = arith.constant 0 : index
    %c0_8 = arith.constant 0 : index
    %4 = vector.load %arg9[%c0_7, %c0_8] : memref<1x32xf32, #tpu.memory_space<vmem>>, vector<1x32xf32>
    %c0_9 = arith.constant 0 : index
    %c0_10 = arith.constant 0 : index
    %5 = vector.load %arg10[%c0_9, %c0_10] : memref<32x32xf32, #tpu.memory_space<vmem>>, vector<32x32xf32>
    %c0_11 = arith.constant 0 : index
    %c0_12 = arith.constant 0 : index
    %6 = vector.load %arg11[%c0_11, %c0_12] : memref<1x96xf32, #tpu.memory_space<vmem>>, vector<1x96xf32>
    %c0_13 = arith.constant 0 : index
    %c0_14 = arith.constant 0 : index
    %7 = vector.load %arg12[%c0_13, %c0_14] : memref<32x96xf32, #tpu.memory_space<vmem>>, vector<32x96xf32>
    %c0_15 = arith.constant 0 : index
    %c0_16 = arith.constant 0 : index
    %8 = vector.load %arg13[%c0_15, %c0_16] : memref<1x64xf32, #tpu.memory_space<vmem>>, vector<1x64xf32>
    %c0_17 = arith.constant 0 : index
    %c0_18 = arith.constant 0 : index
    %9 = vector.load %arg14[%c0_17, %c0_18] : memref<32x64xf32, #tpu.memory_space<vmem>>, vector<32x64xf32>
    %c0_19 = arith.constant 0 : index
    %c0_20 = arith.constant 0 : index
    %10 = vector.load %arg15[%c0_19, %c0_20] : memref<1x32xf32, #tpu.memory_space<vmem>>, vector<1x32xf32>
    %c0_21 = arith.constant 0 : index
    %c0_22 = arith.constant 0 : index
    %11 = vector.load %arg16[%c0_21, %c0_22] : memref<64x32xf32, #tpu.memory_space<vmem>>, vector<64x32xf32>
    %c0_23 = arith.constant 0 : index
    %c0_24 = arith.constant 0 : index
    %12 = vector.load %arg17[%c0_23, %c0_24] : memref<1x32xf32, #tpu.memory_space<vmem>>, vector<1x32xf32>
    %c0_25 = arith.constant 0 : index
    %c0_26 = arith.constant 0 : index
    %13 = vector.load %arg18[%c0_25, %c0_26] : memref<1x32xf32, #tpu.memory_space<vmem>>, vector<1x32xf32>
    %c0_27 = arith.constant 0 : index
    %c0_28 = arith.constant 0 : index
    %14 = vector.load %arg19[%c0_27, %c0_28] : memref<1x2xf32, #tpu.memory_space<vmem>>, vector<1x2xf32>
    %c0_29 = arith.constant 0 : index
    %c0_30 = arith.constant 0 : index
    %15 = vector.load %arg20[%c0_29, %c0_30] : memref<32x2xf32, #tpu.memory_space<vmem>>, vector<32x2xf32>
    %c0_31 = arith.constant 0 : index
    %c0_32 = arith.constant 0 : index
    %16 = vector.load %arg21[%c0_31, %c0_32] : memref<1x32xf32, #tpu.memory_space<vmem>>, vector<1x32xf32>
    %c0_33 = arith.constant 0 : index
    %c0_34 = arith.constant 0 : index
    %17 = vector.load %arg22[%c0_33, %c0_34] : memref<32x32xf32, #tpu.memory_space<vmem>>, vector<32x32xf32>
    %c0_35 = arith.constant 0 : index
    %c0_36 = arith.constant 0 : index
    %18 = vector.load %arg23[%c0_35, %c0_36] : memref<1x32xf32, #tpu.memory_space<vmem>>, vector<1x32xf32>
    %c0_37 = arith.constant 0 : index
    %c0_38 = arith.constant 0 : index
    %19 = vector.load %arg24[%c0_37, %c0_38] : memref<1x32xf32, #tpu.memory_space<vmem>>, vector<1x32xf32>
    %c0_39 = arith.constant 0 : index
    %c0_40 = arith.constant 0 : index
    %20 = vector.load %arg25[%c0_39, %c0_40] : memref<1x32xf32, #tpu.memory_space<vmem>>, vector<1x32xf32>
    %c0_41 = arith.constant 0 : index
    %c0_42 = arith.constant 0 : index
    %21 = vector.load %arg26[%c0_41, %c0_42] : memref<32x32xf32, #tpu.memory_space<vmem>>, vector<32x32xf32>
    %c0_43 = arith.constant 0 : index
    %c0_44 = arith.constant 0 : index
    %22 = vector.load %arg27[%c0_43, %c0_44] : memref<1x96xf32, #tpu.memory_space<vmem>>, vector<1x96xf32>
    %c0_45 = arith.constant 0 : index
    %c0_46 = arith.constant 0 : index
    %23 = vector.load %arg28[%c0_45, %c0_46] : memref<32x96xf32, #tpu.memory_space<vmem>>, vector<32x96xf32>
    %c0_47 = arith.constant 0 : index
    %c0_48 = arith.constant 0 : index
    %24 = vector.load %arg29[%c0_47, %c0_48] : memref<1x64xf32, #tpu.memory_space<vmem>>, vector<1x64xf32>
    %c0_49 = arith.constant 0 : index
    %c0_50 = arith.constant 0 : index
    %25 = vector.load %arg30[%c0_49, %c0_50] : memref<32x64xf32, #tpu.memory_space<vmem>>, vector<32x64xf32>
    %c0_51 = arith.constant 0 : index
    %c0_52 = arith.constant 0 : index
    %26 = vector.load %arg31[%c0_51, %c0_52] : memref<1x32xf32, #tpu.memory_space<vmem>>, vector<1x32xf32>
    %c0_53 = arith.constant 0 : index
    %c0_54 = arith.constant 0 : index
    %27 = vector.load %arg32[%c0_53, %c0_54] : memref<64x32xf32, #tpu.memory_space<vmem>>, vector<64x32xf32>
    %c0_55 = arith.constant 0 : index
    %c0_56 = arith.constant 0 : index
    %28 = vector.load %arg33[%c0_55, %c0_56] : memref<1x32xf32, #tpu.memory_space<vmem>>, vector<1x32xf32>
    %c0_57 = arith.constant 0 : index
    %c0_58 = arith.constant 0 : index
    %29 = vector.load %arg34[%c0_57, %c0_58] : memref<1x32xf32, #tpu.memory_space<vmem>>, vector<1x32xf32>
    %c0_59 = arith.constant 0 : index
    %c0_60 = arith.constant 0 : index
    %30 = vector.load %arg35[%c0_59, %c0_60] : memref<1x32xf32, #tpu.memory_space<vmem>>, vector<1x32xf32>
    %c0_61 = arith.constant 0 : index
    %c0_62 = arith.constant 0 : index
    %31 = vector.load %arg36[%c0_61, %c0_62] : memref<4x32xf32, #tpu.memory_space<vmem>>, vector<4x32xf32>
    %c0_63 = arith.constant 0 : index
    %c0_64 = arith.constant 0 : index
    %32 = vector.load %arg37[%c0_63, %c0_64] : memref<1x32xf32, #tpu.memory_space<vmem>>, vector<1x32xf32>
    %c0_65 = arith.constant 0 : index
    %c0_66 = arith.constant 0 : index
    %33 = vector.load %arg38[%c0_65, %c0_66] : memref<1x32xf32, #tpu.memory_space<vmem>>, vector<1x32xf32>
    %c0_67 = arith.constant 0 : index
    %c0_68 = arith.constant 0 : index
    %34 = vector.load %arg39[%c0_67, %c0_68] : memref<1x32xf32, #tpu.memory_space<vmem>>, vector<1x32xf32>
    %c0_69 = arith.constant 0 : index
    %c0_70 = arith.constant 0 : index
    %35 = vector.load %arg40[%c0_69, %c0_70] : memref<16x32xf32, #tpu.memory_space<vmem>>, vector<16x32xf32>
    %c0_71 = arith.constant 0 : index
    %c0_72 = arith.constant 0 : index
    %36 = vector.load %arg41[%c0_71, %c0_72] : memref<1x32xf32, #tpu.memory_space<vmem>>, vector<1x32xf32>
    %c0_73 = arith.constant 0 : index
    %c0_74 = arith.constant 0 : index
    %37 = vector.load %arg42[%c0_73, %c0_74] : memref<1x32xf32, #tpu.memory_space<vmem>>, vector<1x32xf32>
    %c0_75 = arith.constant 0 : index
    %c0_76 = arith.constant 0 : index
    %38 = vector.load %arg43[%c0_75, %c0_76] : memref<1x32xf32, #tpu.memory_space<vmem>>, vector<1x32xf32>
    %c0_77 = arith.constant 0 : index
    %c0_78 = arith.constant 0 : index
    %39 = vector.load %arg44[%c0_77, %c0_78] : memref<1x32xf32, #tpu.memory_space<vmem>>, vector<1x32xf32>
    %c0_79 = arith.constant 0 : index
    %c0_80 = arith.constant 0 : index
    %40 = vector.load %arg45[%c0_79, %c0_80] : memref<1x32xf32, #tpu.memory_space<vmem>>, vector<1x32xf32>
    %c0_81 = arith.constant 0 : index
    %c0_82 = arith.constant 0 : index
    %41 = vector.load %arg46[%c0_81, %c0_82] : memref<32x32xf32, #tpu.memory_space<vmem>>, vector<32x32xf32>
    %c0_83 = arith.constant 0 : index
    %c0_84 = arith.constant 0 : index
    %42 = vector.load %arg47[%c0_83, %c0_84] : memref<1x96xf32, #tpu.memory_space<vmem>>, vector<1x96xf32>
    %c0_85 = arith.constant 0 : index
    %c0_86 = arith.constant 0 : index
    %43 = vector.load %arg48[%c0_85, %c0_86] : memref<32x96xf32, #tpu.memory_space<vmem>>, vector<32x96xf32>
    %c0_87 = arith.constant 0 : index
    %c0_88 = arith.constant 0 : index
    %44 = vector.load %arg49[%c0_87, %c0_88] : memref<1x64xf32, #tpu.memory_space<vmem>>, vector<1x64xf32>
    %c0_89 = arith.constant 0 : index
    %c0_90 = arith.constant 0 : index
    %45 = vector.load %arg50[%c0_89, %c0_90] : memref<32x64xf32, #tpu.memory_space<vmem>>, vector<32x64xf32>
    %c0_91 = arith.constant 0 : index
    %c0_92 = arith.constant 0 : index
    %46 = vector.load %arg51[%c0_91, %c0_92] : memref<1x32xf32, #tpu.memory_space<vmem>>, vector<1x32xf32>
    %c0_93 = arith.constant 0 : index
    %c0_94 = arith.constant 0 : index
    %47 = vector.load %arg52[%c0_93, %c0_94] : memref<64x32xf32, #tpu.memory_space<vmem>>, vector<64x32xf32>
    %c0_95 = arith.constant 0 : index
    %c0_96 = arith.constant 0 : index
    %48 = vector.load %arg53[%c0_95, %c0_96] : memref<1x32xf32, #tpu.memory_space<vmem>>, vector<1x32xf32>
    %c0_97 = arith.constant 0 : index
    %c0_98 = arith.constant 0 : index
    %49 = vector.load %arg54[%c0_97, %c0_98] : memref<1x32xf32, #tpu.memory_space<vmem>>, vector<1x32xf32>
    %c0_99 = arith.constant 0 : index
    %c0_100 = arith.constant 0 : index
    %50 = vector.load %arg55[%c0_99, %c0_100] : memref<1x32xf32, #tpu.memory_space<vmem>>, vector<1x32xf32>
    %c0_101 = arith.constant 0 : index
    %c0_102 = arith.constant 0 : index
    %51 = vector.load %arg56[%c0_101, %c0_102] : memref<1x32xf32, #tpu.memory_space<vmem>>, vector<1x32xf32>
    %c0_103 = arith.constant 0 : index
    %c0_104 = arith.constant 0 : index
    %52 = vector.load %arg57[%c0_103, %c0_104] : memref<1x32xf32, #tpu.memory_space<vmem>>, vector<1x32xf32>
    %c0_105 = arith.constant 0 : index
    %c0_106 = arith.constant 0 : index
    %53 = vector.load %arg58[%c0_105, %c0_106] : memref<32x32xf32, #tpu.memory_space<vmem>>, vector<32x32xf32>
    %c0_107 = arith.constant 0 : index
    %c0_108 = arith.constant 0 : index
    %54 = vector.load %arg59[%c0_107, %c0_108] : memref<1x96xf32, #tpu.memory_space<vmem>>, vector<1x96xf32>
    %c0_109 = arith.constant 0 : index
    %c0_110 = arith.constant 0 : index
    %55 = vector.load %arg60[%c0_109, %c0_110] : memref<32x96xf32, #tpu.memory_space<vmem>>, vector<32x96xf32>
    %c0_111 = arith.constant 0 : index
    %c0_112 = arith.constant 0 : index
    %56 = vector.load %arg3[%c0_111, %c0_112] : memref<2x8xf32, #tpu.memory_space<vmem>>, vector<2x8xf32>
    %c0_113 = arith.constant 0 : index
    %c0_114 = arith.constant 0 : index
    %57 = vector.load %arg4[%c0_113, %c0_114] : memref<2x8xf32, #tpu.memory_space<vmem>>, vector<2x8xf32>
    %c0_115 = arith.constant 0 : index
    %c0_116 = arith.constant 0 : index
    %58 = vector.load %arg0[%c0_115, %c0_116] : memref<16x32xf32, #tpu.memory_space<vmem>>, vector<16x32xf32>
    %cst = arith.constant dense<0.000000e+00> : vector<16xf32>
    %59 = vector.multi_reduction <add>, %58, %cst [1] : vector<16x32xf32> to vector<16xf32>
    %60 = vector.shape_cast %59 : vector<16xf32> to vector<16x1xf32>
    %cst_117 = arith.constant 3.200000e+01 : f32
    %61 = vector.broadcast %cst_117 : f32 to vector<16x1xf32>
    %62 = arith.divf %60, %61 : vector<16x1xf32>
    %63 = vector.broadcast %62 : vector<16x1xf32> to vector<16x32xf32>
    %64 = arith.subf %58, %63 : vector<16x32xf32>
    %65 = arith.mulf %64, %64 : vector<16x32xf32>
    %cst_118 = arith.constant dense<0.000000e+00> : vector<16xf32>
    %66 = vector.multi_reduction <add>, %65, %cst_118 [1] : vector<16x32xf32> to vector<16xf32>
    %67 = vector.shape_cast %66 : vector<16xf32> to vector<16x1xf32>
    %cst_119 = arith.constant 3.200000e+01 : f32
    %68 = vector.broadcast %cst_119 : f32 to vector<16x1xf32>
    %69 = arith.divf %67, %68 : vector<16x1xf32>
    %cst_120 = arith.constant 9.99999996E-13 : f32
    %70 = vector.broadcast %cst_120 : f32 to vector<16x1xf32>
    %71 = arith.addf %69, %70 : vector<16x1xf32>
    %72 = math.rsqrt %71 : vector<16x1xf32>
    %73 = vector.broadcast %72 : vector<16x1xf32> to vector<16x32xf32>
    %74 = arith.mulf %64, %73 : vector<16x32xf32>
    %75 = vector.broadcast %1 : vector<1x32xf32> to vector<16x32xf32>
    %76 = arith.mulf %74, %75 : vector<16x32xf32>
    %77 = vector.broadcast %0 : vector<1x32xf32> to vector<16x32xf32>
    %78 = arith.addf %76, %77 : vector<16x32xf32>
    %c0_121 = arith.constant 0 : index
    %c0_122 = arith.constant 0 : index
    %79 = vector.load %arg1[%c0_121, %c0_122] : memref<16x16xf32, #tpu.memory_space<vmem>>, vector<16x16xf32>
    %80 = arith.truncf %79 : vector<16x16xf32> to vector<16x16xbf16>
    %81 = arith.truncf %35 : vector<16x32xf32> to vector<16x32xbf16>
    %cst_123 = arith.constant dense<0.000000e+00> : vector<16x32xf32>
    %82 = tpu.matmul %80, %81, %cst_123 {dimension_numbers = #tpu.dot_dimension_numbers<[1], [0], [0], [1], [0, 0, 1, 1], [], []>} : vector<16x16xbf16>, vector<16x32xbf16>, vector<16x32xf32> -> vector<16x32xf32>
    %83 = vector.broadcast %34 : vector<1x32xf32> to vector<16x32xf32>
    %84 = arith.addf %82, %83 : vector<16x32xf32>
    %cst_124 = arith.constant dense<0.000000e+00> : vector<16xf32>
    %85 = vector.multi_reduction <add>, %84, %cst_124 [1] : vector<16x32xf32> to vector<16xf32>
    %86 = vector.shape_cast %85 : vector<16xf32> to vector<16x1xf32>
    %cst_125 = arith.constant 3.200000e+01 : f32
    %87 = vector.broadcast %cst_125 : f32 to vector<16x1xf32>
    %88 = arith.divf %86, %87 : vector<16x1xf32>
    %89 = vector.broadcast %88 : vector<16x1xf32> to vector<16x32xf32>
    %90 = arith.subf %84, %89 : vector<16x32xf32>
    %91 = arith.mulf %90, %90 : vector<16x32xf32>
    %cst_126 = arith.constant dense<0.000000e+00> : vector<16xf32>
    %92 = vector.multi_reduction <add>, %91, %cst_126 [1] : vector<16x32xf32> to vector<16xf32>
    %93 = vector.shape_cast %92 : vector<16xf32> to vector<16x1xf32>
    %cst_127 = arith.constant 3.200000e+01 : f32
    %94 = vector.broadcast %cst_127 : f32 to vector<16x1xf32>
    %95 = arith.divf %93, %94 : vector<16x1xf32>
    %cst_128 = arith.constant 9.99999996E-13 : f32
    %96 = vector.broadcast %cst_128 : f32 to vector<16x1xf32>
    %97 = arith.addf %95, %96 : vector<16x1xf32>
    %98 = math.rsqrt %97 : vector<16x1xf32>
    %99 = vector.broadcast %98 : vector<16x1xf32> to vector<16x32xf32>
    %100 = arith.mulf %90, %99 : vector<16x32xf32>
    %101 = vector.broadcast %37 : vector<1x32xf32> to vector<16x32xf32>
    %102 = arith.mulf %100, %101 : vector<16x32xf32>
    %103 = vector.broadcast %36 : vector<1x32xf32> to vector<16x32xf32>
    %104 = arith.addf %102, %103 : vector<16x32xf32>
    %c0_129 = arith.constant 0 : index
    %c0_130 = arith.constant 0 : index
    %105 = vector.load %arg2[%c0_129, %c0_130] : memref<16x4xf32, #tpu.memory_space<vmem>>, vector<16x4xf32>
    %106 = arith.truncf %105 : vector<16x4xf32> to vector<16x4xbf16>
    %107 = arith.truncf %31 : vector<4x32xf32> to vector<4x32xbf16>
    %cst_131 = arith.constant dense<0.000000e+00> : vector<16x32xf32>
    %108 = tpu.matmul %106, %107, %cst_131 {dimension_numbers = #tpu.dot_dimension_numbers<[1], [0], [0], [1], [0, 0, 1, 1], [], []>} : vector<16x4xbf16>, vector<4x32xbf16>, vector<16x32xf32> -> vector<16x32xf32>
    %109 = vector.broadcast %30 : vector<1x32xf32> to vector<16x32xf32>
    %110 = arith.addf %108, %109 : vector<16x32xf32>
    %cst_132 = arith.constant dense<0.000000e+00> : vector<16xf32>
    %111 = vector.multi_reduction <add>, %110, %cst_132 [1] : vector<16x32xf32> to vector<16xf32>
    %112 = vector.shape_cast %111 : vector<16xf32> to vector<16x1xf32>
    %cst_133 = arith.constant 3.200000e+01 : f32
    %113 = vector.broadcast %cst_133 : f32 to vector<16x1xf32>
    %114 = arith.divf %112, %113 : vector<16x1xf32>
    %115 = vector.broadcast %114 : vector<16x1xf32> to vector<16x32xf32>
    %116 = arith.subf %110, %115 : vector<16x32xf32>
    %117 = arith.mulf %116, %116 : vector<16x32xf32>
    %cst_134 = arith.constant dense<0.000000e+00> : vector<16xf32>
    %118 = vector.multi_reduction <add>, %117, %cst_134 [1] : vector<16x32xf32> to vector<16xf32>
    %119 = vector.shape_cast %118 : vector<16xf32> to vector<16x1xf32>
    %cst_135 = arith.constant 3.200000e+01 : f32
    %120 = vector.broadcast %cst_135 : f32 to vector<16x1xf32>
    %121 = arith.divf %119, %120 : vector<16x1xf32>
    %cst_136 = arith.constant 9.99999996E-13 : f32
    %122 = vector.broadcast %cst_136 : f32 to vector<16x1xf32>
    %123 = arith.addf %121, %122 : vector<16x1xf32>
    %124 = math.rsqrt %123 : vector<16x1xf32>
    %125 = vector.broadcast %124 : vector<16x1xf32> to vector<16x32xf32>
    %126 = arith.mulf %116, %125 : vector<16x32xf32>
    %127 = vector.broadcast %33 : vector<1x32xf32> to vector<16x32xf32>
    %128 = arith.mulf %126, %127 : vector<16x32xf32>
    %129 = vector.broadcast %32 : vector<1x32xf32> to vector<16x32xf32>
    %130 = arith.addf %128, %129 : vector<16x32xf32>
    %131 = arith.addf %104, %130 : vector<16x32xf32>
    %cst_137 = arith.constant 5.000000e-01 : f32
    %132 = vector.broadcast %cst_137 : f32 to vector<16x32xf32>
    %133 = arith.mulf %132, %131 : vector<16x32xf32>
    %134 = arith.truncf %78 : vector<16x32xf32> to vector<16x32xbf16>
    %135 = arith.truncf %7 : vector<32x96xf32> to vector<32x96xbf16>
    %cst_138 = arith.constant dense<0.000000e+00> : vector<16x96xf32>
    %136 = tpu.matmul %134, %135, %cst_138 {dimension_numbers = #tpu.dot_dimension_numbers<[1], [0], [0], [1], [0, 0, 1, 1], [], []>} : vector<16x32xbf16>, vector<32x96xbf16>, vector<16x96xf32> -> vector<16x96xf32>
    %137 = vector.broadcast %6 : vector<1x96xf32> to vector<16x96xf32>
    %138 = arith.addf %136, %137 : vector<16x96xf32>
    %139 = vector.extract_strided_slice %138 {offsets = [0, 0], sizes = [16, 32], strides = [1, 1]} : vector<16x96xf32> to vector<16x32xf32>
    %140 = vector.extract_strided_slice %138 {offsets = [0, 32], sizes = [16, 32], strides = [1, 1]} : vector<16x96xf32> to vector<16x32xf32>
    %141 = vector.extract_strided_slice %138 {offsets = [0, 64], sizes = [16, 32], strides = [1, 1]} : vector<16x96xf32> to vector<16x32xf32>
    %142 = vector.extract_strided_slice %139 {offsets = [0, 0], sizes = [8, 32], strides = [1, 1]} : vector<16x32xf32> to vector<8x32xf32>
    %143 = vector.extract_strided_slice %140 {offsets = [0, 0], sizes = [8, 32], strides = [1, 1]} : vector<16x32xf32> to vector<8x32xf32>
    %144 = vector.extract_strided_slice %141 {offsets = [0, 0], sizes = [8, 32], strides = [1, 1]} : vector<16x32xf32> to vector<8x32xf32>
    %145 = vector.extract_strided_slice %56 {offsets = [0, 0], sizes = [1, 8], strides = [1, 1]} : vector<2x8xf32> to vector<1x8xf32>
    %146 = vector.extract_strided_slice %142 {offsets = [0, 0], sizes = [8, 16], strides = [1, 1]} : vector<8x32xf32> to vector<8x16xf32>
    %147 = vector.extract_strided_slice %143 {offsets = [0, 0], sizes = [8, 16], strides = [1, 1]} : vector<8x32xf32> to vector<8x16xf32>
    %148 = arith.truncf %146 : vector<8x16xf32> to vector<8x16xbf16>
    %149 = arith.truncf %147 : vector<8x16xf32> to vector<8x16xbf16>
    %cst_139 = arith.constant dense<0.000000e+00> : vector<8x8xf32>
    %150 = tpu.matmul %148, %149, %cst_139 {dimension_numbers = #tpu.dot_dimension_numbers<[1], [1], [0], [0], [0, 0, 1, 0], [], []>} : vector<8x16xbf16>, vector<8x16xbf16>, vector<8x8xf32> -> vector<8x8xf32>
    %cst_140 = arith.constant 2.500000e-01 : f32
    %151 = vector.broadcast %cst_140 : f32 to vector<8x8xf32>
    %152 = arith.mulf %150, %151 : vector<8x8xf32>
    %153 = vector.broadcast %145 : vector<1x8xf32> to vector<8x8xf32>
    %154 = arith.addf %152, %153 : vector<8x8xf32>
    %cst_141 = arith.constant dense<0xFF800000> : vector<8xf32>
    %155 = vector.multi_reduction <maximumf>, %154, %cst_141 [1] : vector<8x8xf32> to vector<8xf32>
    %156 = vector.shape_cast %155 : vector<8xf32> to vector<8x1xf32>
    %157 = vector.broadcast %156 : vector<8x1xf32> to vector<8x8xf32>
    %158 = arith.subf %154, %157 : vector<8x8xf32>
    %159 = math.exp %158 : vector<8x8xf32>
    %cst_142 = arith.constant dense<0.000000e+00> : vector<8xf32>
    %160 = vector.multi_reduction <add>, %159, %cst_142 [1] : vector<8x8xf32> to vector<8xf32>
    %161 = vector.shape_cast %160 : vector<8xf32> to vector<8x1xf32>
    %162 = tpu.reciprocal %161 {approx = true} : vector<8x1xf32> -> vector<8x1xf32>
    %163 = vector.broadcast %162 : vector<8x1xf32> to vector<8x8xf32>
    %164 = arith.mulf %159, %163 : vector<8x8xf32>
    %165 = vector.extract_strided_slice %144 {offsets = [0, 0], sizes = [8, 16], strides = [1, 1]} : vector<8x32xf32> to vector<8x16xf32>
    %166 = arith.truncf %164 : vector<8x8xf32> to vector<8x8xbf16>
    %167 = arith.truncf %165 : vector<8x16xf32> to vector<8x16xbf16>
    %cst_143 = arith.constant dense<0.000000e+00> : vector<8x16xf32>
    %168 = tpu.matmul %166, %167, %cst_143 {dimension_numbers = #tpu.dot_dimension_numbers<[1], [0], [0], [1], [0, 0, 1, 1], [], []>} : vector<8x8xbf16>, vector<8x16xbf16>, vector<8x16xf32> -> vector<8x16xf32>
    %169 = vector.extract_strided_slice %142 {offsets = [0, 16], sizes = [8, 16], strides = [1, 1]} : vector<8x32xf32> to vector<8x16xf32>
    %170 = vector.extract_strided_slice %143 {offsets = [0, 16], sizes = [8, 16], strides = [1, 1]} : vector<8x32xf32> to vector<8x16xf32>
    %171 = arith.truncf %169 : vector<8x16xf32> to vector<8x16xbf16>
    %172 = arith.truncf %170 : vector<8x16xf32> to vector<8x16xbf16>
    %cst_144 = arith.constant dense<0.000000e+00> : vector<8x8xf32>
    %173 = tpu.matmul %171, %172, %cst_144 {dimension_numbers = #tpu.dot_dimension_numbers<[1], [1], [0], [0], [0, 0, 1, 0], [], []>} : vector<8x16xbf16>, vector<8x16xbf16>, vector<8x8xf32> -> vector<8x8xf32>
    %cst_145 = arith.constant 2.500000e-01 : f32
    %174 = vector.broadcast %cst_145 : f32 to vector<8x8xf32>
    %175 = arith.mulf %173, %174 : vector<8x8xf32>
    %176 = vector.broadcast %145 : vector<1x8xf32> to vector<8x8xf32>
    %177 = arith.addf %175, %176 : vector<8x8xf32>
    %cst_146 = arith.constant dense<0xFF800000> : vector<8xf32>
    %178 = vector.multi_reduction <maximumf>, %177, %cst_146 [1] : vector<8x8xf32> to vector<8xf32>
    %179 = vector.shape_cast %178 : vector<8xf32> to vector<8x1xf32>
    %180 = vector.broadcast %179 : vector<8x1xf32> to vector<8x8xf32>
    %181 = arith.subf %177, %180 : vector<8x8xf32>
    %182 = math.exp %181 : vector<8x8xf32>
    %cst_147 = arith.constant dense<0.000000e+00> : vector<8xf32>
    %183 = vector.multi_reduction <add>, %182, %cst_147 [1] : vector<8x8xf32> to vector<8xf32>
    %184 = vector.shape_cast %183 : vector<8xf32> to vector<8x1xf32>
    %185 = tpu.reciprocal %184 {approx = true} : vector<8x1xf32> -> vector<8x1xf32>
    %186 = vector.broadcast %185 : vector<8x1xf32> to vector<8x8xf32>
    %187 = arith.mulf %182, %186 : vector<8x8xf32>
    %188 = vector.extract_strided_slice %144 {offsets = [0, 16], sizes = [8, 16], strides = [1, 1]} : vector<8x32xf32> to vector<8x16xf32>
    %189 = arith.truncf %187 : vector<8x8xf32> to vector<8x8xbf16>
    %190 = arith.truncf %188 : vector<8x16xf32> to vector<8x16xbf16>
    %cst_148 = arith.constant dense<0.000000e+00> : vector<8x16xf32>
    %191 = tpu.matmul %189, %190, %cst_148 {dimension_numbers = #tpu.dot_dimension_numbers<[1], [0], [0], [1], [0, 0, 1, 1], [], []>} : vector<8x8xbf16>, vector<8x16xbf16>, vector<8x16xf32> -> vector<8x16xf32>
    %192 = tpu.concatenate %168, %191 in 1 : vector<8x16xf32>, vector<8x16xf32> -> vector<8x32xf32>
    %193 = vector.extract_strided_slice %139 {offsets = [8, 0], sizes = [8, 32], strides = [1, 1]} : vector<16x32xf32> to vector<8x32xf32>
    %194 = vector.extract_strided_slice %140 {offsets = [8, 0], sizes = [8, 32], strides = [1, 1]} : vector<16x32xf32> to vector<8x32xf32>
    %195 = vector.extract_strided_slice %141 {offsets = [8, 0], sizes = [8, 32], strides = [1, 1]} : vector<16x32xf32> to vector<8x32xf32>
    %196 = vector.extract_strided_slice %56 {offsets = [1, 0], sizes = [1, 8], strides = [1, 1]} : vector<2x8xf32> to vector<1x8xf32>
    %197 = vector.extract_strided_slice %193 {offsets = [0, 0], sizes = [8, 16], strides = [1, 1]} : vector<8x32xf32> to vector<8x16xf32>
    %198 = vector.extract_strided_slice %194 {offsets = [0, 0], sizes = [8, 16], strides = [1, 1]} : vector<8x32xf32> to vector<8x16xf32>
    %199 = arith.truncf %197 : vector<8x16xf32> to vector<8x16xbf16>
    %200 = arith.truncf %198 : vector<8x16xf32> to vector<8x16xbf16>
    %cst_149 = arith.constant dense<0.000000e+00> : vector<8x8xf32>
    %201 = tpu.matmul %199, %200, %cst_149 {dimension_numbers = #tpu.dot_dimension_numbers<[1], [1], [0], [0], [0, 0, 1, 0], [], []>} : vector<8x16xbf16>, vector<8x16xbf16>, vector<8x8xf32> -> vector<8x8xf32>
    %cst_150 = arith.constant 2.500000e-01 : f32
    %202 = vector.broadcast %cst_150 : f32 to vector<8x8xf32>
    %203 = arith.mulf %201, %202 : vector<8x8xf32>
    %204 = vector.broadcast %196 : vector<1x8xf32> to vector<8x8xf32>
    %205 = arith.addf %203, %204 : vector<8x8xf32>
    %cst_151 = arith.constant dense<0xFF800000> : vector<8xf32>
    %206 = vector.multi_reduction <maximumf>, %205, %cst_151 [1] : vector<8x8xf32> to vector<8xf32>
    %207 = vector.shape_cast %206 : vector<8xf32> to vector<8x1xf32>
    %208 = vector.broadcast %207 : vector<8x1xf32> to vector<8x8xf32>
    %209 = arith.subf %205, %208 : vector<8x8xf32>
    %210 = math.exp %209 : vector<8x8xf32>
    %cst_152 = arith.constant dense<0.000000e+00> : vector<8xf32>
    %211 = vector.multi_reduction <add>, %210, %cst_152 [1] : vector<8x8xf32> to vector<8xf32>
    %212 = vector.shape_cast %211 : vector<8xf32> to vector<8x1xf32>
    %213 = tpu.reciprocal %212 {approx = true} : vector<8x1xf32> -> vector<8x1xf32>
    %214 = vector.broadcast %213 : vector<8x1xf32> to vector<8x8xf32>
    %215 = arith.mulf %210, %214 : vector<8x8xf32>
    %216 = vector.extract_strided_slice %195 {offsets = [0, 0], sizes = [8, 16], strides = [1, 1]} : vector<8x32xf32> to vector<8x16xf32>
    %217 = arith.truncf %215 : vector<8x8xf32> to vector<8x8xbf16>
    %218 = arith.truncf %216 : vector<8x16xf32> to vector<8x16xbf16>
    %cst_153 = arith.constant dense<0.000000e+00> : vector<8x16xf32>
    %219 = tpu.matmul %217, %218, %cst_153 {dimension_numbers = #tpu.dot_dimension_numbers<[1], [0], [0], [1], [0, 0, 1, 1], [], []>} : vector<8x8xbf16>, vector<8x16xbf16>, vector<8x16xf32> -> vector<8x16xf32>
    %220 = vector.extract_strided_slice %193 {offsets = [0, 16], sizes = [8, 16], strides = [1, 1]} : vector<8x32xf32> to vector<8x16xf32>
    %221 = vector.extract_strided_slice %194 {offsets = [0, 16], sizes = [8, 16], strides = [1, 1]} : vector<8x32xf32> to vector<8x16xf32>
    %222 = arith.truncf %220 : vector<8x16xf32> to vector<8x16xbf16>
    %223 = arith.truncf %221 : vector<8x16xf32> to vector<8x16xbf16>
    %cst_154 = arith.constant dense<0.000000e+00> : vector<8x8xf32>
    %224 = tpu.matmul %222, %223, %cst_154 {dimension_numbers = #tpu.dot_dimension_numbers<[1], [1], [0], [0], [0, 0, 1, 0], [], []>} : vector<8x16xbf16>, vector<8x16xbf16>, vector<8x8xf32> -> vector<8x8xf32>
    %cst_155 = arith.constant 2.500000e-01 : f32
    %225 = vector.broadcast %cst_155 : f32 to vector<8x8xf32>
    %226 = arith.mulf %224, %225 : vector<8x8xf32>
    %227 = vector.broadcast %196 : vector<1x8xf32> to vector<8x8xf32>
    %228 = arith.addf %226, %227 : vector<8x8xf32>
    %cst_156 = arith.constant dense<0xFF800000> : vector<8xf32>
    %229 = vector.multi_reduction <maximumf>, %228, %cst_156 [1] : vector<8x8xf32> to vector<8xf32>
    %230 = vector.shape_cast %229 : vector<8xf32> to vector<8x1xf32>
    %231 = vector.broadcast %230 : vector<8x1xf32> to vector<8x8xf32>
    %232 = arith.subf %228, %231 : vector<8x8xf32>
    %233 = math.exp %232 : vector<8x8xf32>
    %cst_157 = arith.constant dense<0.000000e+00> : vector<8xf32>
    %234 = vector.multi_reduction <add>, %233, %cst_157 [1] : vector<8x8xf32> to vector<8xf32>
    %235 = vector.shape_cast %234 : vector<8xf32> to vector<8x1xf32>
    %236 = tpu.reciprocal %235 {approx = true} : vector<8x1xf32> -> vector<8x1xf32>
    %237 = vector.broadcast %236 : vector<8x1xf32> to vector<8x8xf32>
    %238 = arith.mulf %233, %237 : vector<8x8xf32>
    %239 = vector.extract_strided_slice %195 {offsets = [0, 16], sizes = [8, 16], strides = [1, 1]} : vector<8x32xf32> to vector<8x16xf32>
    %240 = arith.truncf %238 : vector<8x8xf32> to vector<8x8xbf16>
    %241 = arith.truncf %239 : vector<8x16xf32> to vector<8x16xbf16>
    %cst_158 = arith.constant dense<0.000000e+00> : vector<8x16xf32>
    %242 = tpu.matmul %240, %241, %cst_158 {dimension_numbers = #tpu.dot_dimension_numbers<[1], [0], [0], [1], [0, 0, 1, 1], [], []>} : vector<8x8xbf16>, vector<8x16xbf16>, vector<8x16xf32> -> vector<8x16xf32>
    %243 = tpu.concatenate %219, %242 in 1 : vector<8x16xf32>, vector<8x16xf32> -> vector<8x32xf32>
    %244 = tpu.concatenate %192, %243 in 0 : vector<8x32xf32>, vector<8x32xf32> -> vector<16x32xf32>
    %245 = arith.truncf %244 : vector<16x32xf32> to vector<16x32xbf16>
    %246 = arith.truncf %5 : vector<32x32xf32> to vector<32x32xbf16>
    %cst_159 = arith.constant dense<0.000000e+00> : vector<16x32xf32>
    %247 = tpu.matmul %245, %246, %cst_159 {dimension_numbers = #tpu.dot_dimension_numbers<[1], [0], [0], [1], [0, 0, 1, 1], [], []>} : vector<16x32xbf16>, vector<32x32xbf16>, vector<16x32xf32> -> vector<16x32xf32>
    %248 = vector.broadcast %4 : vector<1x32xf32> to vector<16x32xf32>
    %249 = arith.addf %247, %248 : vector<16x32xf32>
    %250 = arith.addf %249, %78 : vector<16x32xf32>
    %cst_160 = arith.constant dense<0.000000e+00> : vector<16xf32>
    %251 = vector.multi_reduction <add>, %250, %cst_160 [1] : vector<16x32xf32> to vector<16xf32>
    %252 = vector.shape_cast %251 : vector<16xf32> to vector<16x1xf32>
    %cst_161 = arith.constant 3.200000e+01 : f32
    %253 = vector.broadcast %cst_161 : f32 to vector<16x1xf32>
    %254 = arith.divf %252, %253 : vector<16x1xf32>
    %255 = vector.broadcast %254 : vector<16x1xf32> to vector<16x32xf32>
    %256 = arith.subf %250, %255 : vector<16x32xf32>
    %257 = arith.mulf %256, %256 : vector<16x32xf32>
    %cst_162 = arith.constant dense<0.000000e+00> : vector<16xf32>
    %258 = vector.multi_reduction <add>, %257, %cst_162 [1] : vector<16x32xf32> to vector<16xf32>
    %259 = vector.shape_cast %258 : vector<16xf32> to vector<16x1xf32>
    %cst_163 = arith.constant 3.200000e+01 : f32
    %260 = vector.broadcast %cst_163 : f32 to vector<16x1xf32>
    %261 = arith.divf %259, %260 : vector<16x1xf32>
    %cst_164 = arith.constant 9.99999996E-13 : f32
    %262 = vector.broadcast %cst_164 : f32 to vector<16x1xf32>
    %263 = arith.addf %261, %262 : vector<16x1xf32>
    %264 = math.rsqrt %263 : vector<16x1xf32>
    %265 = vector.broadcast %264 : vector<16x1xf32> to vector<16x32xf32>
    %266 = arith.mulf %256, %265 : vector<16x32xf32>
    %267 = vector.broadcast %3 : vector<1x32xf32> to vector<16x32xf32>
    %268 = arith.mulf %266, %267 : vector<16x32xf32>
    %269 = vector.broadcast %2 : vector<1x32xf32> to vector<16x32xf32>
    %270 = arith.addf %268, %269 : vector<16x32xf32>
    %271 = arith.truncf %270 : vector<16x32xf32> to vector<16x32xbf16>
    %272 = arith.truncf %9 : vector<32x64xf32> to vector<32x64xbf16>
    %cst_165 = arith.constant dense<0.000000e+00> : vector<16x64xf32>
    %273 = tpu.matmul %271, %272, %cst_165 {dimension_numbers = #tpu.dot_dimension_numbers<[1], [0], [0], [1], [0, 0, 1, 1], [], []>} : vector<16x32xbf16>, vector<32x64xbf16>, vector<16x64xf32> -> vector<16x64xf32>
    %274 = vector.broadcast %8 : vector<1x64xf32> to vector<16x64xf32>
    %275 = arith.addf %273, %274 : vector<16x64xf32>
    %cst_166 = arith.constant 5.000000e-01 : f32
    %276 = vector.broadcast %cst_166 : f32 to vector<16x64xf32>
    %277 = arith.mulf %276, %275 : vector<16x64xf32>
    %cst_167 = arith.constant 4.471500e-02 : f32
    %278 = vector.broadcast %cst_167 : f32 to vector<16x64xf32>
    %279 = arith.mulf %278, %275 : vector<16x64xf32>
    %280 = arith.mulf %279, %275 : vector<16x64xf32>
    %281 = arith.mulf %280, %275 : vector<16x64xf32>
    %282 = arith.addf %275, %281 : vector<16x64xf32>
    %cst_168 = arith.constant 0.797884583 : f32
    %283 = vector.broadcast %cst_168 : f32 to vector<16x64xf32>
    %284 = arith.mulf %283, %282 : vector<16x64xf32>
    %285 = math.tanh %284 : vector<16x64xf32>
    %cst_169 = arith.constant 1.000000e+00 : f32
    %286 = vector.broadcast %cst_169 : f32 to vector<16x64xf32>
    %287 = arith.addf %286, %285 : vector<16x64xf32>
    %288 = arith.mulf %277, %287 : vector<16x64xf32>
    %289 = arith.truncf %288 : vector<16x64xf32> to vector<16x64xbf16>
    %290 = arith.truncf %11 : vector<64x32xf32> to vector<64x32xbf16>
    %cst_170 = arith.constant dense<0.000000e+00> : vector<16x32xf32>
    %291 = tpu.matmul %289, %290, %cst_170 {dimension_numbers = #tpu.dot_dimension_numbers<[1], [0], [0], [1], [0, 0, 1, 1], [], []>} : vector<16x64xbf16>, vector<64x32xbf16>, vector<16x32xf32> -> vector<16x32xf32>
    %292 = vector.broadcast %10 : vector<1x32xf32> to vector<16x32xf32>
    %293 = arith.addf %291, %292 : vector<16x32xf32>
    %294 = arith.addf %293, %270 : vector<16x32xf32>
    %cst_171 = arith.constant dense<0.000000e+00> : vector<16xf32>
    %295 = vector.multi_reduction <add>, %294, %cst_171 [1] : vector<16x32xf32> to vector<16xf32>
    %296 = vector.shape_cast %295 : vector<16xf32> to vector<16x1xf32>
    %cst_172 = arith.constant 3.200000e+01 : f32
    %297 = vector.broadcast %cst_172 : f32 to vector<16x1xf32>
    %298 = arith.divf %296, %297 : vector<16x1xf32>
    %299 = vector.broadcast %298 : vector<16x1xf32> to vector<16x32xf32>
    %300 = arith.subf %294, %299 : vector<16x32xf32>
    %301 = arith.mulf %300, %300 : vector<16x32xf32>
    %cst_173 = arith.constant dense<0.000000e+00> : vector<16xf32>
    %302 = vector.multi_reduction <add>, %301, %cst_173 [1] : vector<16x32xf32> to vector<16xf32>
    %303 = vector.shape_cast %302 : vector<16xf32> to vector<16x1xf32>
    %cst_174 = arith.constant 3.200000e+01 : f32
    %304 = vector.broadcast %cst_174 : f32 to vector<16x1xf32>
    %305 = arith.divf %303, %304 : vector<16x1xf32>
    %cst_175 = arith.constant 9.99999996E-13 : f32
    %306 = vector.broadcast %cst_175 : f32 to vector<16x1xf32>
    %307 = arith.addf %305, %306 : vector<16x1xf32>
    %308 = math.rsqrt %307 : vector<16x1xf32>
    %309 = vector.broadcast %308 : vector<16x1xf32> to vector<16x32xf32>
    %310 = arith.mulf %300, %309 : vector<16x32xf32>
    %311 = vector.broadcast %13 : vector<1x32xf32> to vector<16x32xf32>
    %312 = arith.mulf %310, %311 : vector<16x32xf32>
    %313 = vector.broadcast %12 : vector<1x32xf32> to vector<16x32xf32>
    %314 = arith.addf %312, %313 : vector<16x32xf32>
    %315 = arith.truncf %133 : vector<16x32xf32> to vector<16x32xbf16>
    %316 = arith.truncf %23 : vector<32x96xf32> to vector<32x96xbf16>
    %cst_176 = arith.constant dense<0.000000e+00> : vector<16x96xf32>
    %317 = tpu.matmul %315, %316, %cst_176 {dimension_numbers = #tpu.dot_dimension_numbers<[1], [0], [0], [1], [0, 0, 1, 1], [], []>} : vector<16x32xbf16>, vector<32x96xbf16>, vector<16x96xf32> -> vector<16x96xf32>
    %318 = vector.broadcast %22 : vector<1x96xf32> to vector<16x96xf32>
    %319 = arith.addf %317, %318 : vector<16x96xf32>
    %320 = vector.extract_strided_slice %319 {offsets = [0, 0], sizes = [16, 32], strides = [1, 1]} : vector<16x96xf32> to vector<16x32xf32>
    %321 = vector.extract_strided_slice %319 {offsets = [0, 32], sizes = [16, 32], strides = [1, 1]} : vector<16x96xf32> to vector<16x32xf32>
    %322 = vector.extract_strided_slice %319 {offsets = [0, 64], sizes = [16, 32], strides = [1, 1]} : vector<16x96xf32> to vector<16x32xf32>
    %323 = vector.extract_strided_slice %320 {offsets = [0, 0], sizes = [8, 32], strides = [1, 1]} : vector<16x32xf32> to vector<8x32xf32>
    %324 = vector.extract_strided_slice %321 {offsets = [0, 0], sizes = [8, 32], strides = [1, 1]} : vector<16x32xf32> to vector<8x32xf32>
    %325 = vector.extract_strided_slice %322 {offsets = [0, 0], sizes = [8, 32], strides = [1, 1]} : vector<16x32xf32> to vector<8x32xf32>
    %326 = vector.extract_strided_slice %57 {offsets = [0, 0], sizes = [1, 8], strides = [1, 1]} : vector<2x8xf32> to vector<1x8xf32>
    %327 = vector.extract_strided_slice %323 {offsets = [0, 0], sizes = [8, 16], strides = [1, 1]} : vector<8x32xf32> to vector<8x16xf32>
    %328 = vector.extract_strided_slice %324 {offsets = [0, 0], sizes = [8, 16], strides = [1, 1]} : vector<8x32xf32> to vector<8x16xf32>
    %329 = arith.truncf %327 : vector<8x16xf32> to vector<8x16xbf16>
    %330 = arith.truncf %328 : vector<8x16xf32> to vector<8x16xbf16>
    %cst_177 = arith.constant dense<0.000000e+00> : vector<8x8xf32>
    %331 = tpu.matmul %329, %330, %cst_177 {dimension_numbers = #tpu.dot_dimension_numbers<[1], [1], [0], [0], [0, 0, 1, 0], [], []>} : vector<8x16xbf16>, vector<8x16xbf16>, vector<8x8xf32> -> vector<8x8xf32>
    %cst_178 = arith.constant 2.500000e-01 : f32
    %332 = vector.broadcast %cst_178 : f32 to vector<8x8xf32>
    %333 = arith.mulf %331, %332 : vector<8x8xf32>
    %334 = vector.broadcast %326 : vector<1x8xf32> to vector<8x8xf32>
    %335 = arith.addf %333, %334 : vector<8x8xf32>
    %cst_179 = arith.constant dense<0xFF800000> : vector<8xf32>
    %336 = vector.multi_reduction <maximumf>, %335, %cst_179 [1] : vector<8x8xf32> to vector<8xf32>
    %337 = vector.shape_cast %336 : vector<8xf32> to vector<8x1xf32>
    %338 = vector.broadcast %337 : vector<8x1xf32> to vector<8x8xf32>
    %339 = arith.subf %335, %338 : vector<8x8xf32>
    %340 = math.exp %339 : vector<8x8xf32>
    %cst_180 = arith.constant dense<0.000000e+00> : vector<8xf32>
    %341 = vector.multi_reduction <add>, %340, %cst_180 [1] : vector<8x8xf32> to vector<8xf32>
    %342 = vector.shape_cast %341 : vector<8xf32> to vector<8x1xf32>
    %343 = tpu.reciprocal %342 {approx = true} : vector<8x1xf32> -> vector<8x1xf32>
    %344 = vector.broadcast %343 : vector<8x1xf32> to vector<8x8xf32>
    %345 = arith.mulf %340, %344 : vector<8x8xf32>
    %346 = vector.extract_strided_slice %325 {offsets = [0, 0], sizes = [8, 16], strides = [1, 1]} : vector<8x32xf32> to vector<8x16xf32>
    %347 = arith.truncf %345 : vector<8x8xf32> to vector<8x8xbf16>
    %348 = arith.truncf %346 : vector<8x16xf32> to vector<8x16xbf16>
    %cst_181 = arith.constant dense<0.000000e+00> : vector<8x16xf32>
    %349 = tpu.matmul %347, %348, %cst_181 {dimension_numbers = #tpu.dot_dimension_numbers<[1], [0], [0], [1], [0, 0, 1, 1], [], []>} : vector<8x8xbf16>, vector<8x16xbf16>, vector<8x16xf32> -> vector<8x16xf32>
    %350 = vector.extract_strided_slice %323 {offsets = [0, 16], sizes = [8, 16], strides = [1, 1]} : vector<8x32xf32> to vector<8x16xf32>
    %351 = vector.extract_strided_slice %324 {offsets = [0, 16], sizes = [8, 16], strides = [1, 1]} : vector<8x32xf32> to vector<8x16xf32>
    %352 = arith.truncf %350 : vector<8x16xf32> to vector<8x16xbf16>
    %353 = arith.truncf %351 : vector<8x16xf32> to vector<8x16xbf16>
    %cst_182 = arith.constant dense<0.000000e+00> : vector<8x8xf32>
    %354 = tpu.matmul %352, %353, %cst_182 {dimension_numbers = #tpu.dot_dimension_numbers<[1], [1], [0], [0], [0, 0, 1, 0], [], []>} : vector<8x16xbf16>, vector<8x16xbf16>, vector<8x8xf32> -> vector<8x8xf32>
    %cst_183 = arith.constant 2.500000e-01 : f32
    %355 = vector.broadcast %cst_183 : f32 to vector<8x8xf32>
    %356 = arith.mulf %354, %355 : vector<8x8xf32>
    %357 = vector.broadcast %326 : vector<1x8xf32> to vector<8x8xf32>
    %358 = arith.addf %356, %357 : vector<8x8xf32>
    %cst_184 = arith.constant dense<0xFF800000> : vector<8xf32>
    %359 = vector.multi_reduction <maximumf>, %358, %cst_184 [1] : vector<8x8xf32> to vector<8xf32>
    %360 = vector.shape_cast %359 : vector<8xf32> to vector<8x1xf32>
    %361 = vector.broadcast %360 : vector<8x1xf32> to vector<8x8xf32>
    %362 = arith.subf %358, %361 : vector<8x8xf32>
    %363 = math.exp %362 : vector<8x8xf32>
    %cst_185 = arith.constant dense<0.000000e+00> : vector<8xf32>
    %364 = vector.multi_reduction <add>, %363, %cst_185 [1] : vector<8x8xf32> to vector<8xf32>
    %365 = vector.shape_cast %364 : vector<8xf32> to vector<8x1xf32>
    %366 = tpu.reciprocal %365 {approx = true} : vector<8x1xf32> -> vector<8x1xf32>
    %367 = vector.broadcast %366 : vector<8x1xf32> to vector<8x8xf32>
    %368 = arith.mulf %363, %367 : vector<8x8xf32>
    %369 = vector.extract_strided_slice %325 {offsets = [0, 16], sizes = [8, 16], strides = [1, 1]} : vector<8x32xf32> to vector<8x16xf32>
    %370 = arith.truncf %368 : vector<8x8xf32> to vector<8x8xbf16>
    %371 = arith.truncf %369 : vector<8x16xf32> to vector<8x16xbf16>
    %cst_186 = arith.constant dense<0.000000e+00> : vector<8x16xf32>
    %372 = tpu.matmul %370, %371, %cst_186 {dimension_numbers = #tpu.dot_dimension_numbers<[1], [0], [0], [1], [0, 0, 1, 1], [], []>} : vector<8x8xbf16>, vector<8x16xbf16>, vector<8x16xf32> -> vector<8x16xf32>
    %373 = tpu.concatenate %349, %372 in 1 : vector<8x16xf32>, vector<8x16xf32> -> vector<8x32xf32>
    %374 = vector.extract_strided_slice %320 {offsets = [8, 0], sizes = [8, 32], strides = [1, 1]} : vector<16x32xf32> to vector<8x32xf32>
    %375 = vector.extract_strided_slice %321 {offsets = [8, 0], sizes = [8, 32], strides = [1, 1]} : vector<16x32xf32> to vector<8x32xf32>
    %376 = vector.extract_strided_slice %322 {offsets = [8, 0], sizes = [8, 32], strides = [1, 1]} : vector<16x32xf32> to vector<8x32xf32>
    %377 = vector.extract_strided_slice %57 {offsets = [1, 0], sizes = [1, 8], strides = [1, 1]} : vector<2x8xf32> to vector<1x8xf32>
    %378 = vector.extract_strided_slice %374 {offsets = [0, 0], sizes = [8, 16], strides = [1, 1]} : vector<8x32xf32> to vector<8x16xf32>
    %379 = vector.extract_strided_slice %375 {offsets = [0, 0], sizes = [8, 16], strides = [1, 1]} : vector<8x32xf32> to vector<8x16xf32>
    %380 = arith.truncf %378 : vector<8x16xf32> to vector<8x16xbf16>
    %381 = arith.truncf %379 : vector<8x16xf32> to vector<8x16xbf16>
    %cst_187 = arith.constant dense<0.000000e+00> : vector<8x8xf32>
    %382 = tpu.matmul %380, %381, %cst_187 {dimension_numbers = #tpu.dot_dimension_numbers<[1], [1], [0], [0], [0, 0, 1, 0], [], []>} : vector<8x16xbf16>, vector<8x16xbf16>, vector<8x8xf32> -> vector<8x8xf32>
    %cst_188 = arith.constant 2.500000e-01 : f32
    %383 = vector.broadcast %cst_188 : f32 to vector<8x8xf32>
    %384 = arith.mulf %382, %383 : vector<8x8xf32>
    %385 = vector.broadcast %377 : vector<1x8xf32> to vector<8x8xf32>
    %386 = arith.addf %384, %385 : vector<8x8xf32>
    %cst_189 = arith.constant dense<0xFF800000> : vector<8xf32>
    %387 = vector.multi_reduction <maximumf>, %386, %cst_189 [1] : vector<8x8xf32> to vector<8xf32>
    %388 = vector.shape_cast %387 : vector<8xf32> to vector<8x1xf32>
    %389 = vector.broadcast %388 : vector<8x1xf32> to vector<8x8xf32>
    %390 = arith.subf %386, %389 : vector<8x8xf32>
    %391 = math.exp %390 : vector<8x8xf32>
    %cst_190 = arith.constant dense<0.000000e+00> : vector<8xf32>
    %392 = vector.multi_reduction <add>, %391, %cst_190 [1] : vector<8x8xf32> to vector<8xf32>
    %393 = vector.shape_cast %392 : vector<8xf32> to vector<8x1xf32>
    %394 = tpu.reciprocal %393 {approx = true} : vector<8x1xf32> -> vector<8x1xf32>
    %395 = vector.broadcast %394 : vector<8x1xf32> to vector<8x8xf32>
    %396 = arith.mulf %391, %395 : vector<8x8xf32>
    %397 = vector.extract_strided_slice %376 {offsets = [0, 0], sizes = [8, 16], strides = [1, 1]} : vector<8x32xf32> to vector<8x16xf32>
    %398 = arith.truncf %396 : vector<8x8xf32> to vector<8x8xbf16>
    %399 = arith.truncf %397 : vector<8x16xf32> to vector<8x16xbf16>
    %cst_191 = arith.constant dense<0.000000e+00> : vector<8x16xf32>
    %400 = tpu.matmul %398, %399, %cst_191 {dimension_numbers = #tpu.dot_dimension_numbers<[1], [0], [0], [1], [0, 0, 1, 1], [], []>} : vector<8x8xbf16>, vector<8x16xbf16>, vector<8x16xf32> -> vector<8x16xf32>
    %401 = vector.extract_strided_slice %374 {offsets = [0, 16], sizes = [8, 16], strides = [1, 1]} : vector<8x32xf32> to vector<8x16xf32>
    %402 = vector.extract_strided_slice %375 {offsets = [0, 16], sizes = [8, 16], strides = [1, 1]} : vector<8x32xf32> to vector<8x16xf32>
    %403 = arith.truncf %401 : vector<8x16xf32> to vector<8x16xbf16>
    %404 = arith.truncf %402 : vector<8x16xf32> to vector<8x16xbf16>
    %cst_192 = arith.constant dense<0.000000e+00> : vector<8x8xf32>
    %405 = tpu.matmul %403, %404, %cst_192 {dimension_numbers = #tpu.dot_dimension_numbers<[1], [1], [0], [0], [0, 0, 1, 0], [], []>} : vector<8x16xbf16>, vector<8x16xbf16>, vector<8x8xf32> -> vector<8x8xf32>
    %cst_193 = arith.constant 2.500000e-01 : f32
    %406 = vector.broadcast %cst_193 : f32 to vector<8x8xf32>
    %407 = arith.mulf %405, %406 : vector<8x8xf32>
    %408 = vector.broadcast %377 : vector<1x8xf32> to vector<8x8xf32>
    %409 = arith.addf %407, %408 : vector<8x8xf32>
    %cst_194 = arith.constant dense<0xFF800000> : vector<8xf32>
    %410 = vector.multi_reduction <maximumf>, %409, %cst_194 [1] : vector<8x8xf32> to vector<8xf32>
    %411 = vector.shape_cast %410 : vector<8xf32> to vector<8x1xf32>
    %412 = vector.broadcast %411 : vector<8x1xf32> to vector<8x8xf32>
    %413 = arith.subf %409, %412 : vector<8x8xf32>
    %414 = math.exp %413 : vector<8x8xf32>
    %cst_195 = arith.constant dense<0.000000e+00> : vector<8xf32>
    %415 = vector.multi_reduction <add>, %414, %cst_195 [1] : vector<8x8xf32> to vector<8xf32>
    %416 = vector.shape_cast %415 : vector<8xf32> to vector<8x1xf32>
    %417 = tpu.reciprocal %416 {approx = true} : vector<8x1xf32> -> vector<8x1xf32>
    %418 = vector.broadcast %417 : vector<8x1xf32> to vector<8x8xf32>
    %419 = arith.mulf %414, %418 : vector<8x8xf32>
    %420 = vector.extract_strided_slice %376 {offsets = [0, 16], sizes = [8, 16], strides = [1, 1]} : vector<8x32xf32> to vector<8x16xf32>
    %421 = arith.truncf %419 : vector<8x8xf32> to vector<8x8xbf16>
    %422 = arith.truncf %420 : vector<8x16xf32> to vector<8x16xbf16>
    %cst_196 = arith.constant dense<0.000000e+00> : vector<8x16xf32>
    %423 = tpu.matmul %421, %422, %cst_196 {dimension_numbers = #tpu.dot_dimension_numbers<[1], [0], [0], [1], [0, 0, 1, 1], [], []>} : vector<8x8xbf16>, vector<8x16xbf16>, vector<8x16xf32> -> vector<8x16xf32>
    %424 = tpu.concatenate %400, %423 in 1 : vector<8x16xf32>, vector<8x16xf32> -> vector<8x32xf32>
    %425 = tpu.concatenate %373, %424 in 0 : vector<8x32xf32>, vector<8x32xf32> -> vector<16x32xf32>
    %426 = arith.truncf %425 : vector<16x32xf32> to vector<16x32xbf16>
    %427 = arith.truncf %21 : vector<32x32xf32> to vector<32x32xbf16>
    %cst_197 = arith.constant dense<0.000000e+00> : vector<16x32xf32>
    %428 = tpu.matmul %426, %427, %cst_197 {dimension_numbers = #tpu.dot_dimension_numbers<[1], [0], [0], [1], [0, 0, 1, 1], [], []>} : vector<16x32xbf16>, vector<32x32xbf16>, vector<16x32xf32> -> vector<16x32xf32>
    %429 = vector.broadcast %20 : vector<1x32xf32> to vector<16x32xf32>
    %430 = arith.addf %428, %429 : vector<16x32xf32>
    %431 = arith.addf %430, %133 : vector<16x32xf32>
    %cst_198 = arith.constant dense<0.000000e+00> : vector<16xf32>
    %432 = vector.multi_reduction <add>, %431, %cst_198 [1] : vector<16x32xf32> to vector<16xf32>
    %433 = vector.shape_cast %432 : vector<16xf32> to vector<16x1xf32>
    %cst_199 = arith.constant 3.200000e+01 : f32
    %434 = vector.broadcast %cst_199 : f32 to vector<16x1xf32>
    %435 = arith.divf %433, %434 : vector<16x1xf32>
    %436 = vector.broadcast %435 : vector<16x1xf32> to vector<16x32xf32>
    %437 = arith.subf %431, %436 : vector<16x32xf32>
    %438 = arith.mulf %437, %437 : vector<16x32xf32>
    %cst_200 = arith.constant dense<0.000000e+00> : vector<16xf32>
    %439 = vector.multi_reduction <add>, %438, %cst_200 [1] : vector<16x32xf32> to vector<16xf32>
    %440 = vector.shape_cast %439 : vector<16xf32> to vector<16x1xf32>
    %cst_201 = arith.constant 3.200000e+01 : f32
    %441 = vector.broadcast %cst_201 : f32 to vector<16x1xf32>
    %442 = arith.divf %440, %441 : vector<16x1xf32>
    %cst_202 = arith.constant 9.99999996E-13 : f32
    %443 = vector.broadcast %cst_202 : f32 to vector<16x1xf32>
    %444 = arith.addf %442, %443 : vector<16x1xf32>
    %445 = math.rsqrt %444 : vector<16x1xf32>
    %446 = vector.broadcast %445 : vector<16x1xf32> to vector<16x32xf32>
    %447 = arith.mulf %437, %446 : vector<16x32xf32>
    %448 = vector.broadcast %19 : vector<1x32xf32> to vector<16x32xf32>
    %449 = arith.mulf %447, %448 : vector<16x32xf32>
    %450 = vector.broadcast %18 : vector<1x32xf32> to vector<16x32xf32>
    %451 = arith.addf %449, %450 : vector<16x32xf32>
    %452 = arith.truncf %451 : vector<16x32xf32> to vector<16x32xbf16>
    %453 = arith.truncf %25 : vector<32x64xf32> to vector<32x64xbf16>
    %cst_203 = arith.constant dense<0.000000e+00> : vector<16x64xf32>
    %454 = tpu.matmul %452, %453, %cst_203 {dimension_numbers = #tpu.dot_dimension_numbers<[1], [0], [0], [1], [0, 0, 1, 1], [], []>} : vector<16x32xbf16>, vector<32x64xbf16>, vector<16x64xf32> -> vector<16x64xf32>
    %455 = vector.broadcast %24 : vector<1x64xf32> to vector<16x64xf32>
    %456 = arith.addf %454, %455 : vector<16x64xf32>
    %cst_204 = arith.constant 5.000000e-01 : f32
    %457 = vector.broadcast %cst_204 : f32 to vector<16x64xf32>
    %458 = arith.mulf %457, %456 : vector<16x64xf32>
    %cst_205 = arith.constant 4.471500e-02 : f32
    %459 = vector.broadcast %cst_205 : f32 to vector<16x64xf32>
    %460 = arith.mulf %459, %456 : vector<16x64xf32>
    %461 = arith.mulf %460, %456 : vector<16x64xf32>
    %462 = arith.mulf %461, %456 : vector<16x64xf32>
    %463 = arith.addf %456, %462 : vector<16x64xf32>
    %cst_206 = arith.constant 0.797884583 : f32
    %464 = vector.broadcast %cst_206 : f32 to vector<16x64xf32>
    %465 = arith.mulf %464, %463 : vector<16x64xf32>
    %466 = math.tanh %465 : vector<16x64xf32>
    %cst_207 = arith.constant 1.000000e+00 : f32
    %467 = vector.broadcast %cst_207 : f32 to vector<16x64xf32>
    %468 = arith.addf %467, %466 : vector<16x64xf32>
    %469 = arith.mulf %458, %468 : vector<16x64xf32>
    %470 = arith.truncf %469 : vector<16x64xf32> to vector<16x64xbf16>
    %471 = arith.truncf %27 : vector<64x32xf32> to vector<64x32xbf16>
    %cst_208 = arith.constant dense<0.000000e+00> : vector<16x32xf32>
    %472 = tpu.matmul %470, %471, %cst_208 {dimension_numbers = #tpu.dot_dimension_numbers<[1], [0], [0], [1], [0, 0, 1, 1], [], []>} : vector<16x64xbf16>, vector<64x32xbf16>, vector<16x32xf32> -> vector<16x32xf32>
    %473 = vector.broadcast %26 : vector<1x32xf32> to vector<16x32xf32>
    %474 = arith.addf %472, %473 : vector<16x32xf32>
    %475 = arith.addf %474, %451 : vector<16x32xf32>
    %cst_209 = arith.constant dense<0.000000e+00> : vector<16xf32>
    %476 = vector.multi_reduction <add>, %475, %cst_209 [1] : vector<16x32xf32> to vector<16xf32>
    %477 = vector.shape_cast %476 : vector<16xf32> to vector<16x1xf32>
    %cst_210 = arith.constant 3.200000e+01 : f32
    %478 = vector.broadcast %cst_210 : f32 to vector<16x1xf32>
    %479 = arith.divf %477, %478 : vector<16x1xf32>
    %480 = vector.broadcast %479 : vector<16x1xf32> to vector<16x32xf32>
    %481 = arith.subf %475, %480 : vector<16x32xf32>
    %482 = arith.mulf %481, %481 : vector<16x32xf32>
    %cst_211 = arith.constant dense<0.000000e+00> : vector<16xf32>
    %483 = vector.multi_reduction <add>, %482, %cst_211 [1] : vector<16x32xf32> to vector<16xf32>
    %484 = vector.shape_cast %483 : vector<16xf32> to vector<16x1xf32>
    %cst_212 = arith.constant 3.200000e+01 : f32
    %485 = vector.broadcast %cst_212 : f32 to vector<16x1xf32>
    %486 = arith.divf %484, %485 : vector<16x1xf32>
    %cst_213 = arith.constant 9.99999996E-13 : f32
    %487 = vector.broadcast %cst_213 : f32 to vector<16x1xf32>
    %488 = arith.addf %486, %487 : vector<16x1xf32>
    %489 = math.rsqrt %488 : vector<16x1xf32>
    %490 = vector.broadcast %489 : vector<16x1xf32> to vector<16x32xf32>
    %491 = arith.mulf %481, %490 : vector<16x32xf32>
    %492 = vector.broadcast %29 : vector<1x32xf32> to vector<16x32xf32>
    %493 = arith.mulf %491, %492 : vector<16x32xf32>
    %494 = vector.broadcast %28 : vector<1x32xf32> to vector<16x32xf32>
    %495 = arith.addf %493, %494 : vector<16x32xf32>
    %496 = tpu.concatenate %314, %495 in 0 : vector<16x32xf32>, vector<16x32xf32> -> vector<32x32xf32>
    %497 = arith.truncf %496 : vector<32x32xf32> to vector<32x32xbf16>
    %498 = arith.truncf %43 : vector<32x96xf32> to vector<32x96xbf16>
    %cst_214 = arith.constant dense<0.000000e+00> : vector<32x96xf32>
    %499 = tpu.matmul %497, %498, %cst_214 {dimension_numbers = #tpu.dot_dimension_numbers<[1], [0], [0], [1], [0, 0, 1, 1], [], []>} : vector<32x32xbf16>, vector<32x96xbf16>, vector<32x96xf32> -> vector<32x96xf32>
    %500 = vector.broadcast %42 : vector<1x96xf32> to vector<32x96xf32>
    %501 = arith.addf %499, %500 : vector<32x96xf32>
    %502 = vector.extract_strided_slice %501 {offsets = [0, 0], sizes = [16, 32], strides = [1, 1]} : vector<32x96xf32> to vector<16x32xf32>
    %503 = vector.extract_strided_slice %501 {offsets = [0, 32], sizes = [16, 32], strides = [1, 1]} : vector<32x96xf32> to vector<16x32xf32>
    %504 = vector.extract_strided_slice %501 {offsets = [0, 64], sizes = [16, 32], strides = [1, 1]} : vector<32x96xf32> to vector<16x32xf32>
    %505 = vector.extract_strided_slice %501 {offsets = [16, 0], sizes = [16, 32], strides = [1, 1]} : vector<32x96xf32> to vector<16x32xf32>
    %506 = vector.extract_strided_slice %501 {offsets = [16, 32], sizes = [16, 32], strides = [1, 1]} : vector<32x96xf32> to vector<16x32xf32>
    %507 = vector.extract_strided_slice %501 {offsets = [16, 64], sizes = [16, 32], strides = [1, 1]} : vector<32x96xf32> to vector<16x32xf32>
    %508 = vector.extract_strided_slice %502 {offsets = [0, 0], sizes = [8, 32], strides = [1, 1]} : vector<16x32xf32> to vector<8x32xf32>
    %509 = vector.extract_strided_slice %506 {offsets = [0, 0], sizes = [8, 32], strides = [1, 1]} : vector<16x32xf32> to vector<8x32xf32>
    %510 = vector.extract_strided_slice %507 {offsets = [0, 0], sizes = [8, 32], strides = [1, 1]} : vector<16x32xf32> to vector<8x32xf32>
    %511 = vector.extract_strided_slice %57 {offsets = [0, 0], sizes = [1, 8], strides = [1, 1]} : vector<2x8xf32> to vector<1x8xf32>
    %512 = vector.extract_strided_slice %508 {offsets = [0, 0], sizes = [8, 16], strides = [1, 1]} : vector<8x32xf32> to vector<8x16xf32>
    %513 = vector.extract_strided_slice %509 {offsets = [0, 0], sizes = [8, 16], strides = [1, 1]} : vector<8x32xf32> to vector<8x16xf32>
    %514 = arith.truncf %512 : vector<8x16xf32> to vector<8x16xbf16>
    %515 = arith.truncf %513 : vector<8x16xf32> to vector<8x16xbf16>
    %cst_215 = arith.constant dense<0.000000e+00> : vector<8x8xf32>
    %516 = tpu.matmul %514, %515, %cst_215 {dimension_numbers = #tpu.dot_dimension_numbers<[1], [1], [0], [0], [0, 0, 1, 0], [], []>} : vector<8x16xbf16>, vector<8x16xbf16>, vector<8x8xf32> -> vector<8x8xf32>
    %cst_216 = arith.constant 2.500000e-01 : f32
    %517 = vector.broadcast %cst_216 : f32 to vector<8x8xf32>
    %518 = arith.mulf %516, %517 : vector<8x8xf32>
    %519 = vector.broadcast %511 : vector<1x8xf32> to vector<8x8xf32>
    %520 = arith.addf %518, %519 : vector<8x8xf32>
    %cst_217 = arith.constant dense<0xFF800000> : vector<8xf32>
    %521 = vector.multi_reduction <maximumf>, %520, %cst_217 [1] : vector<8x8xf32> to vector<8xf32>
    %522 = vector.shape_cast %521 : vector<8xf32> to vector<8x1xf32>
    %523 = vector.broadcast %522 : vector<8x1xf32> to vector<8x8xf32>
    %524 = arith.subf %520, %523 : vector<8x8xf32>
    %525 = math.exp %524 : vector<8x8xf32>
    %cst_218 = arith.constant dense<0.000000e+00> : vector<8xf32>
    %526 = vector.multi_reduction <add>, %525, %cst_218 [1] : vector<8x8xf32> to vector<8xf32>
    %527 = vector.shape_cast %526 : vector<8xf32> to vector<8x1xf32>
    %528 = tpu.reciprocal %527 {approx = true} : vector<8x1xf32> -> vector<8x1xf32>
    %529 = vector.broadcast %528 : vector<8x1xf32> to vector<8x8xf32>
    %530 = arith.mulf %525, %529 : vector<8x8xf32>
    %531 = vector.extract_strided_slice %510 {offsets = [0, 0], sizes = [8, 16], strides = [1, 1]} : vector<8x32xf32> to vector<8x16xf32>
    %532 = arith.truncf %530 : vector<8x8xf32> to vector<8x8xbf16>
    %533 = arith.truncf %531 : vector<8x16xf32> to vector<8x16xbf16>
    %cst_219 = arith.constant dense<0.000000e+00> : vector<8x16xf32>
    %534 = tpu.matmul %532, %533, %cst_219 {dimension_numbers = #tpu.dot_dimension_numbers<[1], [0], [0], [1], [0, 0, 1, 1], [], []>} : vector<8x8xbf16>, vector<8x16xbf16>, vector<8x16xf32> -> vector<8x16xf32>
    %535 = vector.extract_strided_slice %508 {offsets = [0, 16], sizes = [8, 16], strides = [1, 1]} : vector<8x32xf32> to vector<8x16xf32>
    %536 = vector.extract_strided_slice %509 {offsets = [0, 16], sizes = [8, 16], strides = [1, 1]} : vector<8x32xf32> to vector<8x16xf32>
    %537 = arith.truncf %535 : vector<8x16xf32> to vector<8x16xbf16>
    %538 = arith.truncf %536 : vector<8x16xf32> to vector<8x16xbf16>
    %cst_220 = arith.constant dense<0.000000e+00> : vector<8x8xf32>
    %539 = tpu.matmul %537, %538, %cst_220 {dimension_numbers = #tpu.dot_dimension_numbers<[1], [1], [0], [0], [0, 0, 1, 0], [], []>} : vector<8x16xbf16>, vector<8x16xbf16>, vector<8x8xf32> -> vector<8x8xf32>
    %cst_221 = arith.constant 2.500000e-01 : f32
    %540 = vector.broadcast %cst_221 : f32 to vector<8x8xf32>
    %541 = arith.mulf %539, %540 : vector<8x8xf32>
    %542 = vector.broadcast %511 : vector<1x8xf32> to vector<8x8xf32>
    %543 = arith.addf %541, %542 : vector<8x8xf32>
    %cst_222 = arith.constant dense<0xFF800000> : vector<8xf32>
    %544 = vector.multi_reduction <maximumf>, %543, %cst_222 [1] : vector<8x8xf32> to vector<8xf32>
    %545 = vector.shape_cast %544 : vector<8xf32> to vector<8x1xf32>
    %546 = vector.broadcast %545 : vector<8x1xf32> to vector<8x8xf32>
    %547 = arith.subf %543, %546 : vector<8x8xf32>
    %548 = math.exp %547 : vector<8x8xf32>
    %cst_223 = arith.constant dense<0.000000e+00> : vector<8xf32>
    %549 = vector.multi_reduction <add>, %548, %cst_223 [1] : vector<8x8xf32> to vector<8xf32>
    %550 = vector.shape_cast %549 : vector<8xf32> to vector<8x1xf32>
    %551 = tpu.reciprocal %550 {approx = true} : vector<8x1xf32> -> vector<8x1xf32>
    %552 = vector.broadcast %551 : vector<8x1xf32> to vector<8x8xf32>
    %553 = arith.mulf %548, %552 : vector<8x8xf32>
    %554 = vector.extract_strided_slice %510 {offsets = [0, 16], sizes = [8, 16], strides = [1, 1]} : vector<8x32xf32> to vector<8x16xf32>
    %555 = arith.truncf %553 : vector<8x8xf32> to vector<8x8xbf16>
    %556 = arith.truncf %554 : vector<8x16xf32> to vector<8x16xbf16>
    %cst_224 = arith.constant dense<0.000000e+00> : vector<8x16xf32>
    %557 = tpu.matmul %555, %556, %cst_224 {dimension_numbers = #tpu.dot_dimension_numbers<[1], [0], [0], [1], [0, 0, 1, 1], [], []>} : vector<8x8xbf16>, vector<8x16xbf16>, vector<8x16xf32> -> vector<8x16xf32>
    %558 = tpu.concatenate %534, %557 in 1 : vector<8x16xf32>, vector<8x16xf32> -> vector<8x32xf32>
    %559 = vector.extract_strided_slice %502 {offsets = [8, 0], sizes = [8, 32], strides = [1, 1]} : vector<16x32xf32> to vector<8x32xf32>
    %560 = vector.extract_strided_slice %506 {offsets = [8, 0], sizes = [8, 32], strides = [1, 1]} : vector<16x32xf32> to vector<8x32xf32>
    %561 = vector.extract_strided_slice %507 {offsets = [8, 0], sizes = [8, 32], strides = [1, 1]} : vector<16x32xf32> to vector<8x32xf32>
    %562 = vector.extract_strided_slice %57 {offsets = [1, 0], sizes = [1, 8], strides = [1, 1]} : vector<2x8xf32> to vector<1x8xf32>
    %563 = vector.extract_strided_slice %559 {offsets = [0, 0], sizes = [8, 16], strides = [1, 1]} : vector<8x32xf32> to vector<8x16xf32>
    %564 = vector.extract_strided_slice %560 {offsets = [0, 0], sizes = [8, 16], strides = [1, 1]} : vector<8x32xf32> to vector<8x16xf32>
    %565 = arith.truncf %563 : vector<8x16xf32> to vector<8x16xbf16>
    %566 = arith.truncf %564 : vector<8x16xf32> to vector<8x16xbf16>
    %cst_225 = arith.constant dense<0.000000e+00> : vector<8x8xf32>
    %567 = tpu.matmul %565, %566, %cst_225 {dimension_numbers = #tpu.dot_dimension_numbers<[1], [1], [0], [0], [0, 0, 1, 0], [], []>} : vector<8x16xbf16>, vector<8x16xbf16>, vector<8x8xf32> -> vector<8x8xf32>
    %cst_226 = arith.constant 2.500000e-01 : f32
    %568 = vector.broadcast %cst_226 : f32 to vector<8x8xf32>
    %569 = arith.mulf %567, %568 : vector<8x8xf32>
    %570 = vector.broadcast %562 : vector<1x8xf32> to vector<8x8xf32>
    %571 = arith.addf %569, %570 : vector<8x8xf32>
    %cst_227 = arith.constant dense<0xFF800000> : vector<8xf32>
    %572 = vector.multi_reduction <maximumf>, %571, %cst_227 [1] : vector<8x8xf32> to vector<8xf32>
    %573 = vector.shape_cast %572 : vector<8xf32> to vector<8x1xf32>
    %574 = vector.broadcast %573 : vector<8x1xf32> to vector<8x8xf32>
    %575 = arith.subf %571, %574 : vector<8x8xf32>
    %576 = math.exp %575 : vector<8x8xf32>
    %cst_228 = arith.constant dense<0.000000e+00> : vector<8xf32>
    %577 = vector.multi_reduction <add>, %576, %cst_228 [1] : vector<8x8xf32> to vector<8xf32>
    %578 = vector.shape_cast %577 : vector<8xf32> to vector<8x1xf32>
    %579 = tpu.reciprocal %578 {approx = true} : vector<8x1xf32> -> vector<8x1xf32>
    %580 = vector.broadcast %579 : vector<8x1xf32> to vector<8x8xf32>
    %581 = arith.mulf %576, %580 : vector<8x8xf32>
    %582 = vector.extract_strided_slice %561 {offsets = [0, 0], sizes = [8, 16], strides = [1, 1]} : vector<8x32xf32> to vector<8x16xf32>
    %583 = arith.truncf %581 : vector<8x8xf32> to vector<8x8xbf16>
    %584 = arith.truncf %582 : vector<8x16xf32> to vector<8x16xbf16>
    %cst_229 = arith.constant dense<0.000000e+00> : vector<8x16xf32>
    %585 = tpu.matmul %583, %584, %cst_229 {dimension_numbers = #tpu.dot_dimension_numbers<[1], [0], [0], [1], [0, 0, 1, 1], [], []>} : vector<8x8xbf16>, vector<8x16xbf16>, vector<8x16xf32> -> vector<8x16xf32>
    %586 = vector.extract_strided_slice %559 {offsets = [0, 16], sizes = [8, 16], strides = [1, 1]} : vector<8x32xf32> to vector<8x16xf32>
    %587 = vector.extract_strided_slice %560 {offsets = [0, 16], sizes = [8, 16], strides = [1, 1]} : vector<8x32xf32> to vector<8x16xf32>
    %588 = arith.truncf %586 : vector<8x16xf32> to vector<8x16xbf16>
    %589 = arith.truncf %587 : vector<8x16xf32> to vector<8x16xbf16>
    %cst_230 = arith.constant dense<0.000000e+00> : vector<8x8xf32>
    %590 = tpu.matmul %588, %589, %cst_230 {dimension_numbers = #tpu.dot_dimension_numbers<[1], [1], [0], [0], [0, 0, 1, 0], [], []>} : vector<8x16xbf16>, vector<8x16xbf16>, vector<8x8xf32> -> vector<8x8xf32>
    %cst_231 = arith.constant 2.500000e-01 : f32
    %591 = vector.broadcast %cst_231 : f32 to vector<8x8xf32>
    %592 = arith.mulf %590, %591 : vector<8x8xf32>
    %593 = vector.broadcast %562 : vector<1x8xf32> to vector<8x8xf32>
    %594 = arith.addf %592, %593 : vector<8x8xf32>
    %cst_232 = arith.constant dense<0xFF800000> : vector<8xf32>
    %595 = vector.multi_reduction <maximumf>, %594, %cst_232 [1] : vector<8x8xf32> to vector<8xf32>
    %596 = vector.shape_cast %595 : vector<8xf32> to vector<8x1xf32>
    %597 = vector.broadcast %596 : vector<8x1xf32> to vector<8x8xf32>
    %598 = arith.subf %594, %597 : vector<8x8xf32>
    %599 = math.exp %598 : vector<8x8xf32>
    %cst_233 = arith.constant dense<0.000000e+00> : vector<8xf32>
    %600 = vector.multi_reduction <add>, %599, %cst_233 [1] : vector<8x8xf32> to vector<8xf32>
    %601 = vector.shape_cast %600 : vector<8xf32> to vector<8x1xf32>
    %602 = tpu.reciprocal %601 {approx = true} : vector<8x1xf32> -> vector<8x1xf32>
    %603 = vector.broadcast %602 : vector<8x1xf32> to vector<8x8xf32>
    %604 = arith.mulf %599, %603 : vector<8x8xf32>
    %605 = vector.extract_strided_slice %561 {offsets = [0, 16], sizes = [8, 16], strides = [1, 1]} : vector<8x32xf32> to vector<8x16xf32>
    %606 = arith.truncf %604 : vector<8x8xf32> to vector<8x8xbf16>
    %607 = arith.truncf %605 : vector<8x16xf32> to vector<8x16xbf16>
    %cst_234 = arith.constant dense<0.000000e+00> : vector<8x16xf32>
    %608 = tpu.matmul %606, %607, %cst_234 {dimension_numbers = #tpu.dot_dimension_numbers<[1], [0], [0], [1], [0, 0, 1, 1], [], []>} : vector<8x8xbf16>, vector<8x16xbf16>, vector<8x16xf32> -> vector<8x16xf32>
    %609 = tpu.concatenate %585, %608 in 1 : vector<8x16xf32>, vector<8x16xf32> -> vector<8x32xf32>
    %610 = tpu.concatenate %558, %609 in 0 : vector<8x32xf32>, vector<8x32xf32> -> vector<16x32xf32>
    %611 = vector.extract_strided_slice %505 {offsets = [0, 0], sizes = [8, 32], strides = [1, 1]} : vector<16x32xf32> to vector<8x32xf32>
    %612 = vector.extract_strided_slice %503 {offsets = [0, 0], sizes = [8, 32], strides = [1, 1]} : vector<16x32xf32> to vector<8x32xf32>
    %613 = vector.extract_strided_slice %504 {offsets = [0, 0], sizes = [8, 32], strides = [1, 1]} : vector<16x32xf32> to vector<8x32xf32>
    %614 = vector.extract_strided_slice %56 {offsets = [0, 0], sizes = [1, 8], strides = [1, 1]} : vector<2x8xf32> to vector<1x8xf32>
    %615 = vector.extract_strided_slice %611 {offsets = [0, 0], sizes = [8, 16], strides = [1, 1]} : vector<8x32xf32> to vector<8x16xf32>
    %616 = vector.extract_strided_slice %612 {offsets = [0, 0], sizes = [8, 16], strides = [1, 1]} : vector<8x32xf32> to vector<8x16xf32>
    %617 = arith.truncf %615 : vector<8x16xf32> to vector<8x16xbf16>
    %618 = arith.truncf %616 : vector<8x16xf32> to vector<8x16xbf16>
    %cst_235 = arith.constant dense<0.000000e+00> : vector<8x8xf32>
    %619 = tpu.matmul %617, %618, %cst_235 {dimension_numbers = #tpu.dot_dimension_numbers<[1], [1], [0], [0], [0, 0, 1, 0], [], []>} : vector<8x16xbf16>, vector<8x16xbf16>, vector<8x8xf32> -> vector<8x8xf32>
    %cst_236 = arith.constant 2.500000e-01 : f32
    %620 = vector.broadcast %cst_236 : f32 to vector<8x8xf32>
    %621 = arith.mulf %619, %620 : vector<8x8xf32>
    %622 = vector.broadcast %614 : vector<1x8xf32> to vector<8x8xf32>
    %623 = arith.addf %621, %622 : vector<8x8xf32>
    %cst_237 = arith.constant dense<0xFF800000> : vector<8xf32>
    %624 = vector.multi_reduction <maximumf>, %623, %cst_237 [1] : vector<8x8xf32> to vector<8xf32>
    %625 = vector.shape_cast %624 : vector<8xf32> to vector<8x1xf32>
    %626 = vector.broadcast %625 : vector<8x1xf32> to vector<8x8xf32>
    %627 = arith.subf %623, %626 : vector<8x8xf32>
    %628 = math.exp %627 : vector<8x8xf32>
    %cst_238 = arith.constant dense<0.000000e+00> : vector<8xf32>
    %629 = vector.multi_reduction <add>, %628, %cst_238 [1] : vector<8x8xf32> to vector<8xf32>
    %630 = vector.shape_cast %629 : vector<8xf32> to vector<8x1xf32>
    %631 = tpu.reciprocal %630 {approx = true} : vector<8x1xf32> -> vector<8x1xf32>
    %632 = vector.broadcast %631 : vector<8x1xf32> to vector<8x8xf32>
    %633 = arith.mulf %628, %632 : vector<8x8xf32>
    %634 = vector.extract_strided_slice %613 {offsets = [0, 0], sizes = [8, 16], strides = [1, 1]} : vector<8x32xf32> to vector<8x16xf32>
    %635 = arith.truncf %633 : vector<8x8xf32> to vector<8x8xbf16>
    %636 = arith.truncf %634 : vector<8x16xf32> to vector<8x16xbf16>
    %cst_239 = arith.constant dense<0.000000e+00> : vector<8x16xf32>
    %637 = tpu.matmul %635, %636, %cst_239 {dimension_numbers = #tpu.dot_dimension_numbers<[1], [0], [0], [1], [0, 0, 1, 1], [], []>} : vector<8x8xbf16>, vector<8x16xbf16>, vector<8x16xf32> -> vector<8x16xf32>
    %638 = vector.extract_strided_slice %611 {offsets = [0, 16], sizes = [8, 16], strides = [1, 1]} : vector<8x32xf32> to vector<8x16xf32>
    %639 = vector.extract_strided_slice %612 {offsets = [0, 16], sizes = [8, 16], strides = [1, 1]} : vector<8x32xf32> to vector<8x16xf32>
    %640 = arith.truncf %638 : vector<8x16xf32> to vector<8x16xbf16>
    %641 = arith.truncf %639 : vector<8x16xf32> to vector<8x16xbf16>
    %cst_240 = arith.constant dense<0.000000e+00> : vector<8x8xf32>
    %642 = tpu.matmul %640, %641, %cst_240 {dimension_numbers = #tpu.dot_dimension_numbers<[1], [1], [0], [0], [0, 0, 1, 0], [], []>} : vector<8x16xbf16>, vector<8x16xbf16>, vector<8x8xf32> -> vector<8x8xf32>
    %cst_241 = arith.constant 2.500000e-01 : f32
    %643 = vector.broadcast %cst_241 : f32 to vector<8x8xf32>
    %644 = arith.mulf %642, %643 : vector<8x8xf32>
    %645 = vector.broadcast %614 : vector<1x8xf32> to vector<8x8xf32>
    %646 = arith.addf %644, %645 : vector<8x8xf32>
    %cst_242 = arith.constant dense<0xFF800000> : vector<8xf32>
    %647 = vector.multi_reduction <maximumf>, %646, %cst_242 [1] : vector<8x8xf32> to vector<8xf32>
    %648 = vector.shape_cast %647 : vector<8xf32> to vector<8x1xf32>
    %649 = vector.broadcast %648 : vector<8x1xf32> to vector<8x8xf32>
    %650 = arith.subf %646, %649 : vector<8x8xf32>
    %651 = math.exp %650 : vector<8x8xf32>
    %cst_243 = arith.constant dense<0.000000e+00> : vector<8xf32>
    %652 = vector.multi_reduction <add>, %651, %cst_243 [1] : vector<8x8xf32> to vector<8xf32>
    %653 = vector.shape_cast %652 : vector<8xf32> to vector<8x1xf32>
    %654 = tpu.reciprocal %653 {approx = true} : vector<8x1xf32> -> vector<8x1xf32>
    %655 = vector.broadcast %654 : vector<8x1xf32> to vector<8x8xf32>
    %656 = arith.mulf %651, %655 : vector<8x8xf32>
    %657 = vector.extract_strided_slice %613 {offsets = [0, 16], sizes = [8, 16], strides = [1, 1]} : vector<8x32xf32> to vector<8x16xf32>
    %658 = arith.truncf %656 : vector<8x8xf32> to vector<8x8xbf16>
    %659 = arith.truncf %657 : vector<8x16xf32> to vector<8x16xbf16>
    %cst_244 = arith.constant dense<0.000000e+00> : vector<8x16xf32>
    %660 = tpu.matmul %658, %659, %cst_244 {dimension_numbers = #tpu.dot_dimension_numbers<[1], [0], [0], [1], [0, 0, 1, 1], [], []>} : vector<8x8xbf16>, vector<8x16xbf16>, vector<8x16xf32> -> vector<8x16xf32>
    %661 = tpu.concatenate %637, %660 in 1 : vector<8x16xf32>, vector<8x16xf32> -> vector<8x32xf32>
    %662 = vector.extract_strided_slice %505 {offsets = [8, 0], sizes = [8, 32], strides = [1, 1]} : vector<16x32xf32> to vector<8x32xf32>
    %663 = vector.extract_strided_slice %503 {offsets = [8, 0], sizes = [8, 32], strides = [1, 1]} : vector<16x32xf32> to vector<8x32xf32>
    %664 = vector.extract_strided_slice %504 {offsets = [8, 0], sizes = [8, 32], strides = [1, 1]} : vector<16x32xf32> to vector<8x32xf32>
    %665 = vector.extract_strided_slice %56 {offsets = [1, 0], sizes = [1, 8], strides = [1, 1]} : vector<2x8xf32> to vector<1x8xf32>
    %666 = vector.extract_strided_slice %662 {offsets = [0, 0], sizes = [8, 16], strides = [1, 1]} : vector<8x32xf32> to vector<8x16xf32>
    %667 = vector.extract_strided_slice %663 {offsets = [0, 0], sizes = [8, 16], strides = [1, 1]} : vector<8x32xf32> to vector<8x16xf32>
    %668 = arith.truncf %666 : vector<8x16xf32> to vector<8x16xbf16>
    %669 = arith.truncf %667 : vector<8x16xf32> to vector<8x16xbf16>
    %cst_245 = arith.constant dense<0.000000e+00> : vector<8x8xf32>
    %670 = tpu.matmul %668, %669, %cst_245 {dimension_numbers = #tpu.dot_dimension_numbers<[1], [1], [0], [0], [0, 0, 1, 0], [], []>} : vector<8x16xbf16>, vector<8x16xbf16>, vector<8x8xf32> -> vector<8x8xf32>
    %cst_246 = arith.constant 2.500000e-01 : f32
    %671 = vector.broadcast %cst_246 : f32 to vector<8x8xf32>
    %672 = arith.mulf %670, %671 : vector<8x8xf32>
    %673 = vector.broadcast %665 : vector<1x8xf32> to vector<8x8xf32>
    %674 = arith.addf %672, %673 : vector<8x8xf32>
    %cst_247 = arith.constant dense<0xFF800000> : vector<8xf32>
    %675 = vector.multi_reduction <maximumf>, %674, %cst_247 [1] : vector<8x8xf32> to vector<8xf32>
    %676 = vector.shape_cast %675 : vector<8xf32> to vector<8x1xf32>
    %677 = vector.broadcast %676 : vector<8x1xf32> to vector<8x8xf32>
    %678 = arith.subf %674, %677 : vector<8x8xf32>
    %679 = math.exp %678 : vector<8x8xf32>
    %cst_248 = arith.constant dense<0.000000e+00> : vector<8xf32>
    %680 = vector.multi_reduction <add>, %679, %cst_248 [1] : vector<8x8xf32> to vector<8xf32>
    %681 = vector.shape_cast %680 : vector<8xf32> to vector<8x1xf32>
    %682 = tpu.reciprocal %681 {approx = true} : vector<8x1xf32> -> vector<8x1xf32>
    %683 = vector.broadcast %682 : vector<8x1xf32> to vector<8x8xf32>
    %684 = arith.mulf %679, %683 : vector<8x8xf32>
    %685 = vector.extract_strided_slice %664 {offsets = [0, 0], sizes = [8, 16], strides = [1, 1]} : vector<8x32xf32> to vector<8x16xf32>
    %686 = arith.truncf %684 : vector<8x8xf32> to vector<8x8xbf16>
    %687 = arith.truncf %685 : vector<8x16xf32> to vector<8x16xbf16>
    %cst_249 = arith.constant dense<0.000000e+00> : vector<8x16xf32>
    %688 = tpu.matmul %686, %687, %cst_249 {dimension_numbers = #tpu.dot_dimension_numbers<[1], [0], [0], [1], [0, 0, 1, 1], [], []>} : vector<8x8xbf16>, vector<8x16xbf16>, vector<8x16xf32> -> vector<8x16xf32>
    %689 = vector.extract_strided_slice %662 {offsets = [0, 16], sizes = [8, 16], strides = [1, 1]} : vector<8x32xf32> to vector<8x16xf32>
    %690 = vector.extract_strided_slice %663 {offsets = [0, 16], sizes = [8, 16], strides = [1, 1]} : vector<8x32xf32> to vector<8x16xf32>
    %691 = arith.truncf %689 : vector<8x16xf32> to vector<8x16xbf16>
    %692 = arith.truncf %690 : vector<8x16xf32> to vector<8x16xbf16>
    %cst_250 = arith.constant dense<0.000000e+00> : vector<8x8xf32>
    %693 = tpu.matmul %691, %692, %cst_250 {dimension_numbers = #tpu.dot_dimension_numbers<[1], [1], [0], [0], [0, 0, 1, 0], [], []>} : vector<8x16xbf16>, vector<8x16xbf16>, vector<8x8xf32> -> vector<8x8xf32>
    %cst_251 = arith.constant 2.500000e-01 : f32
    %694 = vector.broadcast %cst_251 : f32 to vector<8x8xf32>
    %695 = arith.mulf %693, %694 : vector<8x8xf32>
    %696 = vector.broadcast %665 : vector<1x8xf32> to vector<8x8xf32>
    %697 = arith.addf %695, %696 : vector<8x8xf32>
    %cst_252 = arith.constant dense<0xFF800000> : vector<8xf32>
    %698 = vector.multi_reduction <maximumf>, %697, %cst_252 [1] : vector<8x8xf32> to vector<8xf32>
    %699 = vector.shape_cast %698 : vector<8xf32> to vector<8x1xf32>
    %700 = vector.broadcast %699 : vector<8x1xf32> to vector<8x8xf32>
    %701 = arith.subf %697, %700 : vector<8x8xf32>
    %702 = math.exp %701 : vector<8x8xf32>
    %cst_253 = arith.constant dense<0.000000e+00> : vector<8xf32>
    %703 = vector.multi_reduction <add>, %702, %cst_253 [1] : vector<8x8xf32> to vector<8xf32>
    %704 = vector.shape_cast %703 : vector<8xf32> to vector<8x1xf32>
    %705 = tpu.reciprocal %704 {approx = true} : vector<8x1xf32> -> vector<8x1xf32>
    %706 = vector.broadcast %705 : vector<8x1xf32> to vector<8x8xf32>
    %707 = arith.mulf %702, %706 : vector<8x8xf32>
    %708 = vector.extract_strided_slice %664 {offsets = [0, 16], sizes = [8, 16], strides = [1, 1]} : vector<8x32xf32> to vector<8x16xf32>
    %709 = arith.truncf %707 : vector<8x8xf32> to vector<8x8xbf16>
    %710 = arith.truncf %708 : vector<8x16xf32> to vector<8x16xbf16>
    %cst_254 = arith.constant dense<0.000000e+00> : vector<8x16xf32>
    %711 = tpu.matmul %709, %710, %cst_254 {dimension_numbers = #tpu.dot_dimension_numbers<[1], [0], [0], [1], [0, 0, 1, 1], [], []>} : vector<8x8xbf16>, vector<8x16xbf16>, vector<8x16xf32> -> vector<8x16xf32>
    %712 = tpu.concatenate %688, %711 in 1 : vector<8x16xf32>, vector<8x16xf32> -> vector<8x32xf32>
    %713 = tpu.concatenate %661, %712 in 0 : vector<8x32xf32>, vector<8x32xf32> -> vector<16x32xf32>
    %714 = tpu.concatenate %610, %713 in 0 : vector<16x32xf32>, vector<16x32xf32> -> vector<32x32xf32>
    %715 = arith.truncf %714 : vector<32x32xf32> to vector<32x32xbf16>
    %716 = arith.truncf %41 : vector<32x32xf32> to vector<32x32xbf16>
    %cst_255 = arith.constant dense<0.000000e+00> : vector<32x32xf32>
    %717 = tpu.matmul %715, %716, %cst_255 {dimension_numbers = #tpu.dot_dimension_numbers<[1], [0], [0], [1], [0, 0, 1, 1], [], []>} : vector<32x32xbf16>, vector<32x32xbf16>, vector<32x32xf32> -> vector<32x32xf32>
    %718 = vector.broadcast %40 : vector<1x32xf32> to vector<32x32xf32>
    %719 = arith.addf %717, %718 : vector<32x32xf32>
    %720 = arith.addf %719, %496 : vector<32x32xf32>
    %cst_256 = arith.constant dense<0.000000e+00> : vector<32xf32>
    %721 = vector.multi_reduction <add>, %720, %cst_256 [1] : vector<32x32xf32> to vector<32xf32>
    %722 = vector.shape_cast %721 : vector<32xf32> to vector<32x1xf32>
    %cst_257 = arith.constant 3.200000e+01 : f32
    %723 = vector.broadcast %cst_257 : f32 to vector<32x1xf32>
    %724 = arith.divf %722, %723 : vector<32x1xf32>
    %725 = vector.broadcast %724 : vector<32x1xf32> to vector<32x32xf32>
    %726 = arith.subf %720, %725 : vector<32x32xf32>
    %727 = arith.mulf %726, %726 : vector<32x32xf32>
    %cst_258 = arith.constant dense<0.000000e+00> : vector<32xf32>
    %728 = vector.multi_reduction <add>, %727, %cst_258 [1] : vector<32x32xf32> to vector<32xf32>
    %729 = vector.shape_cast %728 : vector<32xf32> to vector<32x1xf32>
    %cst_259 = arith.constant 3.200000e+01 : f32
    %730 = vector.broadcast %cst_259 : f32 to vector<32x1xf32>
    %731 = arith.divf %729, %730 : vector<32x1xf32>
    %cst_260 = arith.constant 9.99999996E-13 : f32
    %732 = vector.broadcast %cst_260 : f32 to vector<32x1xf32>
    %733 = arith.addf %731, %732 : vector<32x1xf32>
    %734 = math.rsqrt %733 : vector<32x1xf32>
    %735 = vector.broadcast %734 : vector<32x1xf32> to vector<32x32xf32>
    %736 = arith.mulf %726, %735 : vector<32x32xf32>
    %737 = vector.broadcast %39 : vector<1x32xf32> to vector<32x32xf32>
    %738 = arith.mulf %736, %737 : vector<32x32xf32>
    %739 = vector.broadcast %38 : vector<1x32xf32> to vector<32x32xf32>
    %740 = arith.addf %738, %739 : vector<32x32xf32>
    %741 = vector.extract_strided_slice %740 {offsets = [0, 0], sizes = [16, 32], strides = [1, 1]} : vector<32x32xf32> to vector<16x32xf32>
    %742 = arith.truncf %741 : vector<16x32xf32> to vector<16x32xbf16>
    %743 = arith.truncf %55 : vector<32x96xf32> to vector<32x96xbf16>
    %cst_261 = arith.constant dense<0.000000e+00> : vector<16x96xf32>
    %744 = tpu.matmul %742, %743, %cst_261 {dimension_numbers = #tpu.dot_dimension_numbers<[1], [0], [0], [1], [0, 0, 1, 1], [], []>} : vector<16x32xbf16>, vector<32x96xbf16>, vector<16x96xf32> -> vector<16x96xf32>
    %745 = vector.broadcast %54 : vector<1x96xf32> to vector<16x96xf32>
    %746 = arith.addf %744, %745 : vector<16x96xf32>
    %747 = vector.extract_strided_slice %746 {offsets = [0, 0], sizes = [16, 32], strides = [1, 1]} : vector<16x96xf32> to vector<16x32xf32>
    %748 = vector.extract_strided_slice %746 {offsets = [0, 32], sizes = [16, 32], strides = [1, 1]} : vector<16x96xf32> to vector<16x32xf32>
    %749 = vector.extract_strided_slice %746 {offsets = [0, 64], sizes = [16, 32], strides = [1, 1]} : vector<16x96xf32> to vector<16x32xf32>
    %750 = vector.extract_strided_slice %747 {offsets = [0, 0], sizes = [8, 32], strides = [1, 1]} : vector<16x32xf32> to vector<8x32xf32>
    %751 = vector.extract_strided_slice %748 {offsets = [0, 0], sizes = [8, 32], strides = [1, 1]} : vector<16x32xf32> to vector<8x32xf32>
    %752 = vector.extract_strided_slice %749 {offsets = [0, 0], sizes = [8, 32], strides = [1, 1]} : vector<16x32xf32> to vector<8x32xf32>
    %753 = vector.extract_strided_slice %56 {offsets = [0, 0], sizes = [1, 8], strides = [1, 1]} : vector<2x8xf32> to vector<1x8xf32>
    %754 = vector.extract_strided_slice %750 {offsets = [0, 0], sizes = [8, 16], strides = [1, 1]} : vector<8x32xf32> to vector<8x16xf32>
    %755 = vector.extract_strided_slice %751 {offsets = [0, 0], sizes = [8, 16], strides = [1, 1]} : vector<8x32xf32> to vector<8x16xf32>
    %756 = arith.truncf %754 : vector<8x16xf32> to vector<8x16xbf16>
    %757 = arith.truncf %755 : vector<8x16xf32> to vector<8x16xbf16>
    %cst_262 = arith.constant dense<0.000000e+00> : vector<8x8xf32>
    %758 = tpu.matmul %756, %757, %cst_262 {dimension_numbers = #tpu.dot_dimension_numbers<[1], [1], [0], [0], [0, 0, 1, 0], [], []>} : vector<8x16xbf16>, vector<8x16xbf16>, vector<8x8xf32> -> vector<8x8xf32>
    %cst_263 = arith.constant 2.500000e-01 : f32
    %759 = vector.broadcast %cst_263 : f32 to vector<8x8xf32>
    %760 = arith.mulf %758, %759 : vector<8x8xf32>
    %761 = vector.broadcast %753 : vector<1x8xf32> to vector<8x8xf32>
    %762 = arith.addf %760, %761 : vector<8x8xf32>
    %cst_264 = arith.constant dense<0xFF800000> : vector<8xf32>
    %763 = vector.multi_reduction <maximumf>, %762, %cst_264 [1] : vector<8x8xf32> to vector<8xf32>
    %764 = vector.shape_cast %763 : vector<8xf32> to vector<8x1xf32>
    %765 = vector.broadcast %764 : vector<8x1xf32> to vector<8x8xf32>
    %766 = arith.subf %762, %765 : vector<8x8xf32>
    %767 = math.exp %766 : vector<8x8xf32>
    %cst_265 = arith.constant dense<0.000000e+00> : vector<8xf32>
    %768 = vector.multi_reduction <add>, %767, %cst_265 [1] : vector<8x8xf32> to vector<8xf32>
    %769 = vector.shape_cast %768 : vector<8xf32> to vector<8x1xf32>
    %770 = tpu.reciprocal %769 {approx = true} : vector<8x1xf32> -> vector<8x1xf32>
    %771 = vector.broadcast %770 : vector<8x1xf32> to vector<8x8xf32>
    %772 = arith.mulf %767, %771 : vector<8x8xf32>
    %773 = vector.extract_strided_slice %752 {offsets = [0, 0], sizes = [8, 16], strides = [1, 1]} : vector<8x32xf32> to vector<8x16xf32>
    %774 = arith.truncf %772 : vector<8x8xf32> to vector<8x8xbf16>
    %775 = arith.truncf %773 : vector<8x16xf32> to vector<8x16xbf16>
    %cst_266 = arith.constant dense<0.000000e+00> : vector<8x16xf32>
    %776 = tpu.matmul %774, %775, %cst_266 {dimension_numbers = #tpu.dot_dimension_numbers<[1], [0], [0], [1], [0, 0, 1, 1], [], []>} : vector<8x8xbf16>, vector<8x16xbf16>, vector<8x16xf32> -> vector<8x16xf32>
    %777 = vector.extract_strided_slice %750 {offsets = [0, 16], sizes = [8, 16], strides = [1, 1]} : vector<8x32xf32> to vector<8x16xf32>
    %778 = vector.extract_strided_slice %751 {offsets = [0, 16], sizes = [8, 16], strides = [1, 1]} : vector<8x32xf32> to vector<8x16xf32>
    %779 = arith.truncf %777 : vector<8x16xf32> to vector<8x16xbf16>
    %780 = arith.truncf %778 : vector<8x16xf32> to vector<8x16xbf16>
    %cst_267 = arith.constant dense<0.000000e+00> : vector<8x8xf32>
    %781 = tpu.matmul %779, %780, %cst_267 {dimension_numbers = #tpu.dot_dimension_numbers<[1], [1], [0], [0], [0, 0, 1, 0], [], []>} : vector<8x16xbf16>, vector<8x16xbf16>, vector<8x8xf32> -> vector<8x8xf32>
    %cst_268 = arith.constant 2.500000e-01 : f32
    %782 = vector.broadcast %cst_268 : f32 to vector<8x8xf32>
    %783 = arith.mulf %781, %782 : vector<8x8xf32>
    %784 = vector.broadcast %753 : vector<1x8xf32> to vector<8x8xf32>
    %785 = arith.addf %783, %784 : vector<8x8xf32>
    %cst_269 = arith.constant dense<0xFF800000> : vector<8xf32>
    %786 = vector.multi_reduction <maximumf>, %785, %cst_269 [1] : vector<8x8xf32> to vector<8xf32>
    %787 = vector.shape_cast %786 : vector<8xf32> to vector<8x1xf32>
    %788 = vector.broadcast %787 : vector<8x1xf32> to vector<8x8xf32>
    %789 = arith.subf %785, %788 : vector<8x8xf32>
    %790 = math.exp %789 : vector<8x8xf32>
    %cst_270 = arith.constant dense<0.000000e+00> : vector<8xf32>
    %791 = vector.multi_reduction <add>, %790, %cst_270 [1] : vector<8x8xf32> to vector<8xf32>
    %792 = vector.shape_cast %791 : vector<8xf32> to vector<8x1xf32>
    %793 = tpu.reciprocal %792 {approx = true} : vector<8x1xf32> -> vector<8x1xf32>
    %794 = vector.broadcast %793 : vector<8x1xf32> to vector<8x8xf32>
    %795 = arith.mulf %790, %794 : vector<8x8xf32>
    %796 = vector.extract_strided_slice %752 {offsets = [0, 16], sizes = [8, 16], strides = [1, 1]} : vector<8x32xf32> to vector<8x16xf32>
    %797 = arith.truncf %795 : vector<8x8xf32> to vector<8x8xbf16>
    %798 = arith.truncf %796 : vector<8x16xf32> to vector<8x16xbf16>
    %cst_271 = arith.constant dense<0.000000e+00> : vector<8x16xf32>
    %799 = tpu.matmul %797, %798, %cst_271 {dimension_numbers = #tpu.dot_dimension_numbers<[1], [0], [0], [1], [0, 0, 1, 1], [], []>} : vector<8x8xbf16>, vector<8x16xbf16>, vector<8x16xf32> -> vector<8x16xf32>
    %800 = tpu.concatenate %776, %799 in 1 : vector<8x16xf32>, vector<8x16xf32> -> vector<8x32xf32>
    %801 = vector.extract_strided_slice %747 {offsets = [8, 0], sizes = [8, 32], strides = [1, 1]} : vector<16x32xf32> to vector<8x32xf32>
    %802 = vector.extract_strided_slice %748 {offsets = [8, 0], sizes = [8, 32], strides = [1, 1]} : vector<16x32xf32> to vector<8x32xf32>
    %803 = vector.extract_strided_slice %749 {offsets = [8, 0], sizes = [8, 32], strides = [1, 1]} : vector<16x32xf32> to vector<8x32xf32>
    %804 = vector.extract_strided_slice %56 {offsets = [1, 0], sizes = [1, 8], strides = [1, 1]} : vector<2x8xf32> to vector<1x8xf32>
    %805 = vector.extract_strided_slice %801 {offsets = [0, 0], sizes = [8, 16], strides = [1, 1]} : vector<8x32xf32> to vector<8x16xf32>
    %806 = vector.extract_strided_slice %802 {offsets = [0, 0], sizes = [8, 16], strides = [1, 1]} : vector<8x32xf32> to vector<8x16xf32>
    %807 = arith.truncf %805 : vector<8x16xf32> to vector<8x16xbf16>
    %808 = arith.truncf %806 : vector<8x16xf32> to vector<8x16xbf16>
    %cst_272 = arith.constant dense<0.000000e+00> : vector<8x8xf32>
    %809 = tpu.matmul %807, %808, %cst_272 {dimension_numbers = #tpu.dot_dimension_numbers<[1], [1], [0], [0], [0, 0, 1, 0], [], []>} : vector<8x16xbf16>, vector<8x16xbf16>, vector<8x8xf32> -> vector<8x8xf32>
    %cst_273 = arith.constant 2.500000e-01 : f32
    %810 = vector.broadcast %cst_273 : f32 to vector<8x8xf32>
    %811 = arith.mulf %809, %810 : vector<8x8xf32>
    %812 = vector.broadcast %804 : vector<1x8xf32> to vector<8x8xf32>
    %813 = arith.addf %811, %812 : vector<8x8xf32>
    %cst_274 = arith.constant dense<0xFF800000> : vector<8xf32>
    %814 = vector.multi_reduction <maximumf>, %813, %cst_274 [1] : vector<8x8xf32> to vector<8xf32>
    %815 = vector.shape_cast %814 : vector<8xf32> to vector<8x1xf32>
    %816 = vector.broadcast %815 : vector<8x1xf32> to vector<8x8xf32>
    %817 = arith.subf %813, %816 : vector<8x8xf32>
    %818 = math.exp %817 : vector<8x8xf32>
    %cst_275 = arith.constant dense<0.000000e+00> : vector<8xf32>
    %819 = vector.multi_reduction <add>, %818, %cst_275 [1] : vector<8x8xf32> to vector<8xf32>
    %820 = vector.shape_cast %819 : vector<8xf32> to vector<8x1xf32>
    %821 = tpu.reciprocal %820 {approx = true} : vector<8x1xf32> -> vector<8x1xf32>
    %822 = vector.broadcast %821 : vector<8x1xf32> to vector<8x8xf32>
    %823 = arith.mulf %818, %822 : vector<8x8xf32>
    %824 = vector.extract_strided_slice %803 {offsets = [0, 0], sizes = [8, 16], strides = [1, 1]} : vector<8x32xf32> to vector<8x16xf32>
    %825 = arith.truncf %823 : vector<8x8xf32> to vector<8x8xbf16>
    %826 = arith.truncf %824 : vector<8x16xf32> to vector<8x16xbf16>
    %cst_276 = arith.constant dense<0.000000e+00> : vector<8x16xf32>
    %827 = tpu.matmul %825, %826, %cst_276 {dimension_numbers = #tpu.dot_dimension_numbers<[1], [0], [0], [1], [0, 0, 1, 1], [], []>} : vector<8x8xbf16>, vector<8x16xbf16>, vector<8x16xf32> -> vector<8x16xf32>
    %828 = vector.extract_strided_slice %801 {offsets = [0, 16], sizes = [8, 16], strides = [1, 1]} : vector<8x32xf32> to vector<8x16xf32>
    %829 = vector.extract_strided_slice %802 {offsets = [0, 16], sizes = [8, 16], strides = [1, 1]} : vector<8x32xf32> to vector<8x16xf32>
    %830 = arith.truncf %828 : vector<8x16xf32> to vector<8x16xbf16>
    %831 = arith.truncf %829 : vector<8x16xf32> to vector<8x16xbf16>
    %cst_277 = arith.constant dense<0.000000e+00> : vector<8x8xf32>
    %832 = tpu.matmul %830, %831, %cst_277 {dimension_numbers = #tpu.dot_dimension_numbers<[1], [1], [0], [0], [0, 0, 1, 0], [], []>} : vector<8x16xbf16>, vector<8x16xbf16>, vector<8x8xf32> -> vector<8x8xf32>
    %cst_278 = arith.constant 2.500000e-01 : f32
    %833 = vector.broadcast %cst_278 : f32 to vector<8x8xf32>
    %834 = arith.mulf %832, %833 : vector<8x8xf32>
    %835 = vector.broadcast %804 : vector<1x8xf32> to vector<8x8xf32>
    %836 = arith.addf %834, %835 : vector<8x8xf32>
    %cst_279 = arith.constant dense<0xFF800000> : vector<8xf32>
    %837 = vector.multi_reduction <maximumf>, %836, %cst_279 [1] : vector<8x8xf32> to vector<8xf32>
    %838 = vector.shape_cast %837 : vector<8xf32> to vector<8x1xf32>
    %839 = vector.broadcast %838 : vector<8x1xf32> to vector<8x8xf32>
    %840 = arith.subf %836, %839 : vector<8x8xf32>
    %841 = math.exp %840 : vector<8x8xf32>
    %cst_280 = arith.constant dense<0.000000e+00> : vector<8xf32>
    %842 = vector.multi_reduction <add>, %841, %cst_280 [1] : vector<8x8xf32> to vector<8xf32>
    %843 = vector.shape_cast %842 : vector<8xf32> to vector<8x1xf32>
    %844 = tpu.reciprocal %843 {approx = true} : vector<8x1xf32> -> vector<8x1xf32>
    %845 = vector.broadcast %844 : vector<8x1xf32> to vector<8x8xf32>
    %846 = arith.mulf %841, %845 : vector<8x8xf32>
    %847 = vector.extract_strided_slice %803 {offsets = [0, 16], sizes = [8, 16], strides = [1, 1]} : vector<8x32xf32> to vector<8x16xf32>
    %848 = arith.truncf %846 : vector<8x8xf32> to vector<8x8xbf16>
    %849 = arith.truncf %847 : vector<8x16xf32> to vector<8x16xbf16>
    %cst_281 = arith.constant dense<0.000000e+00> : vector<8x16xf32>
    %850 = tpu.matmul %848, %849, %cst_281 {dimension_numbers = #tpu.dot_dimension_numbers<[1], [0], [0], [1], [0, 0, 1, 1], [], []>} : vector<8x8xbf16>, vector<8x16xbf16>, vector<8x16xf32> -> vector<8x16xf32>
    %851 = tpu.concatenate %827, %850 in 1 : vector<8x16xf32>, vector<8x16xf32> -> vector<8x32xf32>
    %852 = tpu.concatenate %800, %851 in 0 : vector<8x32xf32>, vector<8x32xf32> -> vector<16x32xf32>
    %853 = arith.truncf %852 : vector<16x32xf32> to vector<16x32xbf16>
    %854 = arith.truncf %53 : vector<32x32xf32> to vector<32x32xbf16>
    %cst_282 = arith.constant dense<0.000000e+00> : vector<16x32xf32>
    %855 = tpu.matmul %853, %854, %cst_282 {dimension_numbers = #tpu.dot_dimension_numbers<[1], [0], [0], [1], [0, 0, 1, 1], [], []>} : vector<16x32xbf16>, vector<32x32xbf16>, vector<16x32xf32> -> vector<16x32xf32>
    %856 = vector.broadcast %52 : vector<1x32xf32> to vector<16x32xf32>
    %857 = arith.addf %855, %856 : vector<16x32xf32>
    %858 = arith.addf %857, %741 : vector<16x32xf32>
    %cst_283 = arith.constant dense<0.000000e+00> : vector<16xf32>
    %859 = vector.multi_reduction <add>, %858, %cst_283 [1] : vector<16x32xf32> to vector<16xf32>
    %860 = vector.shape_cast %859 : vector<16xf32> to vector<16x1xf32>
    %cst_284 = arith.constant 3.200000e+01 : f32
    %861 = vector.broadcast %cst_284 : f32 to vector<16x1xf32>
    %862 = arith.divf %860, %861 : vector<16x1xf32>
    %863 = vector.broadcast %862 : vector<16x1xf32> to vector<16x32xf32>
    %864 = arith.subf %858, %863 : vector<16x32xf32>
    %865 = arith.mulf %864, %864 : vector<16x32xf32>
    %cst_285 = arith.constant dense<0.000000e+00> : vector<16xf32>
    %866 = vector.multi_reduction <add>, %865, %cst_285 [1] : vector<16x32xf32> to vector<16xf32>
    %867 = vector.shape_cast %866 : vector<16xf32> to vector<16x1xf32>
    %cst_286 = arith.constant 3.200000e+01 : f32
    %868 = vector.broadcast %cst_286 : f32 to vector<16x1xf32>
    %869 = arith.divf %867, %868 : vector<16x1xf32>
    %cst_287 = arith.constant 9.99999996E-13 : f32
    %870 = vector.broadcast %cst_287 : f32 to vector<16x1xf32>
    %871 = arith.addf %869, %870 : vector<16x1xf32>
    %872 = math.rsqrt %871 : vector<16x1xf32>
    %873 = vector.broadcast %872 : vector<16x1xf32> to vector<16x32xf32>
    %874 = arith.mulf %864, %873 : vector<16x32xf32>
    %875 = vector.broadcast %51 : vector<1x32xf32> to vector<16x32xf32>
    %876 = arith.mulf %874, %875 : vector<16x32xf32>
    %877 = vector.broadcast %50 : vector<1x32xf32> to vector<16x32xf32>
    %878 = arith.addf %876, %877 : vector<16x32xf32>
    %879 = arith.truncf %878 : vector<16x32xf32> to vector<16x32xbf16>
    %880 = arith.truncf %45 : vector<32x64xf32> to vector<32x64xbf16>
    %cst_288 = arith.constant dense<0.000000e+00> : vector<16x64xf32>
    %881 = tpu.matmul %879, %880, %cst_288 {dimension_numbers = #tpu.dot_dimension_numbers<[1], [0], [0], [1], [0, 0, 1, 1], [], []>} : vector<16x32xbf16>, vector<32x64xbf16>, vector<16x64xf32> -> vector<16x64xf32>
    %882 = vector.broadcast %44 : vector<1x64xf32> to vector<16x64xf32>
    %883 = arith.addf %881, %882 : vector<16x64xf32>
    %cst_289 = arith.constant 5.000000e-01 : f32
    %884 = vector.broadcast %cst_289 : f32 to vector<16x64xf32>
    %885 = arith.mulf %884, %883 : vector<16x64xf32>
    %cst_290 = arith.constant 4.471500e-02 : f32
    %886 = vector.broadcast %cst_290 : f32 to vector<16x64xf32>
    %887 = arith.mulf %886, %883 : vector<16x64xf32>
    %888 = arith.mulf %887, %883 : vector<16x64xf32>
    %889 = arith.mulf %888, %883 : vector<16x64xf32>
    %890 = arith.addf %883, %889 : vector<16x64xf32>
    %cst_291 = arith.constant 0.797884583 : f32
    %891 = vector.broadcast %cst_291 : f32 to vector<16x64xf32>
    %892 = arith.mulf %891, %890 : vector<16x64xf32>
    %893 = math.tanh %892 : vector<16x64xf32>
    %cst_292 = arith.constant 1.000000e+00 : f32
    %894 = vector.broadcast %cst_292 : f32 to vector<16x64xf32>
    %895 = arith.addf %894, %893 : vector<16x64xf32>
    %896 = arith.mulf %885, %895 : vector<16x64xf32>
    %897 = arith.truncf %896 : vector<16x64xf32> to vector<16x64xbf16>
    %898 = arith.truncf %47 : vector<64x32xf32> to vector<64x32xbf16>
    %cst_293 = arith.constant dense<0.000000e+00> : vector<16x32xf32>
    %899 = tpu.matmul %897, %898, %cst_293 {dimension_numbers = #tpu.dot_dimension_numbers<[1], [0], [0], [1], [0, 0, 1, 1], [], []>} : vector<16x64xbf16>, vector<64x32xbf16>, vector<16x32xf32> -> vector<16x32xf32>
    %900 = vector.broadcast %46 : vector<1x32xf32> to vector<16x32xf32>
    %901 = arith.addf %899, %900 : vector<16x32xf32>
    %902 = arith.addf %901, %878 : vector<16x32xf32>
    %cst_294 = arith.constant dense<0.000000e+00> : vector<16xf32>
    %903 = vector.multi_reduction <add>, %902, %cst_294 [1] : vector<16x32xf32> to vector<16xf32>
    %904 = vector.shape_cast %903 : vector<16xf32> to vector<16x1xf32>
    %cst_295 = arith.constant 3.200000e+01 : f32
    %905 = vector.broadcast %cst_295 : f32 to vector<16x1xf32>
    %906 = arith.divf %904, %905 : vector<16x1xf32>
    %907 = vector.broadcast %906 : vector<16x1xf32> to vector<16x32xf32>
    %908 = arith.subf %902, %907 : vector<16x32xf32>
    %909 = arith.mulf %908, %908 : vector<16x32xf32>
    %cst_296 = arith.constant dense<0.000000e+00> : vector<16xf32>
    %910 = vector.multi_reduction <add>, %909, %cst_296 [1] : vector<16x32xf32> to vector<16xf32>
    %911 = vector.shape_cast %910 : vector<16xf32> to vector<16x1xf32>
    %cst_297 = arith.constant 3.200000e+01 : f32
    %912 = vector.broadcast %cst_297 : f32 to vector<16x1xf32>
    %913 = arith.divf %911, %912 : vector<16x1xf32>
    %cst_298 = arith.constant 9.99999996E-13 : f32
    %914 = vector.broadcast %cst_298 : f32 to vector<16x1xf32>
    %915 = arith.addf %913, %914 : vector<16x1xf32>
    %916 = math.rsqrt %915 : vector<16x1xf32>
    %917 = vector.broadcast %916 : vector<16x1xf32> to vector<16x32xf32>
    %918 = arith.mulf %908, %917 : vector<16x32xf32>
    %919 = vector.broadcast %49 : vector<1x32xf32> to vector<16x32xf32>
    %920 = arith.mulf %918, %919 : vector<16x32xf32>
    %921 = vector.broadcast %48 : vector<1x32xf32> to vector<16x32xf32>
    %922 = arith.addf %920, %921 : vector<16x32xf32>
    %923 = vector.extract_strided_slice %922 {offsets = [0, 0], sizes = [1, 32], strides = [1, 1]} : vector<16x32xf32> to vector<1x32xf32>
    %924 = vector.extract_strided_slice %922 {offsets = [8, 0], sizes = [1, 32], strides = [1, 1]} : vector<16x32xf32> to vector<1x32xf32>
    %925 = tpu.concatenate %923, %924 in 0 : vector<1x32xf32>, vector<1x32xf32> -> vector<2x32xf32>
    %926 = arith.truncf %925 : vector<2x32xf32> to vector<2x32xbf16>
    %927 = arith.truncf %17 : vector<32x32xf32> to vector<32x32xbf16>
    %cst_299 = arith.constant dense<0.000000e+00> : vector<2x32xf32>
    %928 = tpu.matmul %926, %927, %cst_299 {dimension_numbers = #tpu.dot_dimension_numbers<[1], [0], [0], [1], [0, 0, 1, 1], [], []>} : vector<2x32xbf16>, vector<32x32xbf16>, vector<2x32xf32> -> vector<2x32xf32>
    %929 = vector.broadcast %16 : vector<1x32xf32> to vector<2x32xf32>
    %930 = arith.addf %928, %929 : vector<2x32xf32>
    %931 = math.tanh %930 : vector<2x32xf32>
    %932 = arith.truncf %931 : vector<2x32xf32> to vector<2x32xbf16>
    %933 = arith.truncf %15 : vector<32x2xf32> to vector<32x2xbf16>
    %cst_300 = arith.constant dense<0.000000e+00> : vector<2x2xf32>
    %934 = tpu.matmul %932, %933, %cst_300 {dimension_numbers = #tpu.dot_dimension_numbers<[1], [0], [0], [1], [0, 0, 1, 1], [], []>} : vector<2x32xbf16>, vector<32x2xbf16>, vector<2x2xf32> -> vector<2x2xf32>
    %935 = vector.broadcast %14 : vector<1x2xf32> to vector<2x2xf32>
    %936 = arith.addf %934, %935 : vector<2x2xf32>
    %c0_301 = arith.constant 0 : index
    %c0_302 = arith.constant 0 : index
    %937 = vector.load %arg73[%c0_301, %c0_302] : memref<2x2xf32, #tpu.memory_space<vmem>>, vector<2x2xf32>
    tpu.vector_store %arg73[%c0_301, %c0_302], %936 {strides = array<i32>} : memref<2x2xf32, #tpu.memory_space<vmem>>, vector<2x2xf32>,
    return
  }
}

</mosaic_0001>

<llo_original>
// kernel: _forward_core.1
$region0: #{_forward_core.1}
  #allocation0 [shape = 'u32[]', space=smem, size = 0x4, offset = 0x4, fixed_abs, tag = 'smem constant byte address 0x4 - core index']
  #allocation1 [shape = 'u32[144,128]{1,0:T(1,128)}', space=vmem, size = 0x12000, scoped, tag = 'internal scratch']
  %s0 = inlined_call_operand.smem [shape: u32[74], index: -1, kind: input, shape index: {}]
  %s1 = sld [smem:[%s0]]
  %s2 = scalar_lea.smem %s0, 1
  %s3 = sld [smem:[%s2]]
  %s4 = scalar_lea.smem %s0, 2
  %s5 = sld [smem:[%s4]]
  %s6 = scalar_lea.smem %s0, 3
  %s7 = sld [smem:[%s6]]
  %s8 = scalar_lea.smem %s0, 4
  %s9 = sld [smem:[%s8]]
  %s10 = scalar_lea.smem %s0, 5
  %s11 = sld [smem:[%s10]]
  %s12 = scalar_lea.smem %s0, 6
  %s13 = sld [smem:[%s12]]
  %s14 = scalar_lea.smem %s0, 7
  %s15 = sld [smem:[%s14]]
  %s16 = scalar_lea.smem %s0, 8
  %s17 = sld [smem:[%s16]]
  %s18 = scalar_lea.smem %s0, 9
  %s19 = sld [smem:[%s18]]
  %s20 = scalar_lea.smem %s0, 10
  %s21 = sld [smem:[%s20]]
  %s22 = scalar_lea.smem %s0, 11
  %s23 = sld [smem:[%s22]]
  %s24 = scalar_lea.smem %s0, 12
  %s25 = sld [smem:[%s24]]
  %s26 = scalar_lea.smem %s0, 13
  %s27 = sld [smem:[%s26]]
  %s28 = scalar_lea.smem %s0, 14
  %s29 = sld [smem:[%s28]]
  %s30 = scalar_lea.smem %s0, 15
  %s31 = sld [smem:[%s30]]
  %s32 = scalar_lea.smem %s0, 16
  %s33 = sld [smem:[%s32]]
  %s34 = scalar_lea.smem %s0, 17
  %s35 = sld [smem:[%s34]]
  %s36 = scalar_lea.smem %s0, 18
  %s37 = sld [smem:[%s36]]
  %s38 = scalar_lea.smem %s0, 19
  %s39 = sld [smem:[%s38]]
  %s40 = scalar_lea.smem %s0, 20
  %s41 = sld [smem:[%s40]]
  %s42 = scalar_lea.smem %s0, 21
  %s43 = sld [smem:[%s42]]
  %s44 = scalar_lea.smem %s0, 22
  %s45 = sld [smem:[%s44]]
  %s46 = scalar_lea.smem %s0, 23
  %s47 = sld [smem:[%s46]]
  %s48 = scalar_lea.smem %s0, 24
  %s49 = sld [smem:[%s48]]
  %s50 = scalar_lea.smem %s0, 25
  %s51 = sld [smem:[%s50]]
  %s52 = scalar_lea.smem %s0, 26
  %s53 = sld [smem:[%s52]]
  %s54 = scalar_lea.smem %s0, 27
  %s55 = sld [smem:[%s54]]
  %s56 = scalar_lea.smem %s0, 28
  %s57 = sld [smem:[%s56]]
  %s58 = scalar_lea.smem %s0, 29
  %s59 = sld [smem:[%s58]]
  %s60 = scalar_lea.smem %s0, 30
  %s61 = sld [smem:[%s60]]
  %s62 = scalar_lea.smem %s0, 31
  %s63 = sld [smem:[%s62]]
  %s64 = scalar_lea.smem %s0, 32
  %s65 = sld [smem:[%s64]]
  %s66 = scalar_lea.smem %s0, 33
  %s67 = sld [smem:[%s66]]
  %s68 = scalar_lea.smem %s0, 34
  %s69 = sld [smem:[%s68]]
  %s70 = scalar_lea.smem %s0, 35
  %s71 = sld [smem:[%s70]]
  %s72 = scalar_lea.smem %s0, 36
  %s73 = sld [smem:[%s72]]
  %s74 = scalar_lea.smem %s0, 37
  %s75 = sld [smem:[%s74]]
  %s76 = scalar_lea.smem %s0, 38
  %s77 = sld [smem:[%s76]]
  %s78 = scalar_lea.smem %s0, 39
  %s79 = sld [smem:[%s78]]
  %s80 = scalar_lea.smem %s0, 40
  %s81 = sld [smem:[%s80]]
  %s82 = scalar_lea.smem %s0, 41
  %s83 = sld [smem:[%s82]]
  %s84 = scalar_lea.smem %s0, 42
  %s85 = sld [smem:[%s84]]
  %s86 = scalar_lea.smem %s0, 43
  %s87 = sld [smem:[%s86]]
  %s88 = scalar_lea.smem %s0, 44
  %s89 = sld [smem:[%s88]]
  %s90 = scalar_lea.smem %s0, 45
  %s91 = sld [smem:[%s90]]
  %s92 = scalar_lea.smem %s0, 46
  %s93 = sld [smem:[%s92]]
  %s94 = scalar_lea.smem %s0, 47
  %s95 = sld [smem:[%s94]]
  %s96 = scalar_lea.smem %s0, 48
  %s97 = sld [smem:[%s96]]
  %s98 = scalar_lea.smem %s0, 49
  %s99 = sld [smem:[%s98]]
  %s100 = scalar_lea.smem %s0, 50
  %s101 = sld [smem:[%s100]]
  %s102 = scalar_lea.smem %s0, 51
  %s103 = sld [smem:[%s102]]
  %s104 = scalar_lea.smem %s0, 52
  %s105 = sld [smem:[%s104]]
  %s106 = scalar_lea.smem %s0, 53
  %s107 = sld [smem:[%s106]]
  %s108 = scalar_lea.smem %s0, 54
  %s109 = sld [smem:[%s108]]
  %s110 = scalar_lea.smem %s0, 55
  %s111 = sld [smem:[%s110]]
  %s112 = scalar_lea.smem %s0, 56
  %s113 = sld [smem:[%s112]]
  %s114 = scalar_lea.smem %s0, 57
  %s115 = sld [smem:[%s114]]
  %s116 = scalar_lea.smem %s0, 58
  %s117 = sld [smem:[%s116]]
  %s118 = scalar_lea.smem %s0, 59
  %s119 = sld [smem:[%s118]]
  %s120 = scalar_lea.smem %s0, 60
  %s121 = sld [smem:[%s120]]
  %s122 = scalar_lea.smem %s0, 61
  %s123 = sld [smem:[%s122]]
  %s124 = scalar_lea.smem %s0, 62
  %s125 = sld [smem:[%s124]]
  %s126 = scalar_lea.smem %s0, 63
  %s127 = sld [smem:[%s126]]
  %s128 = scalar_lea.smem %s0, 64
  %s129 = sld [smem:[%s128]]
  %s130 = scalar_lea.smem %s0, 65
  %s131 = sld [smem:[%s130]]
  %s132 = scalar_lea.smem %s0, 66
  %s133 = sld [smem:[%s132]]
  %s134 = scalar_lea.smem %s0, 67
  %s135 = sld [smem:[%s134]]
  %s136 = scalar_lea.smem %s0, 68
  %s137 = sld [smem:[%s136]]
  %s138 = scalar_lea.smem %s0, 69
  %s139 = sld [smem:[%s138]]
  %s140 = scalar_lea.smem %s0, 70
  %s141 = sld [smem:[%s140]]
  %s142 = scalar_lea.smem %s0, 71
  %s143 = sld [smem:[%s142]]
  %s144 = scalar_lea.smem %s0, 72
  %s145 = sld [smem:[%s144]]
  %s146 = scalar_lea.smem %s0, 73
  %s147 = sld [smem:[%s146]]
  %s148 = sld [smem:[#allocation0]]
  $region442: #{_forward_core.1} parent=0
    _
  %s150 = ssub.s32 1, %s148
  %s151 = scalar_select 0, %s150, %s148
  $region1: #{_forward_core.1} parent=0
    #allocation2 [shape = 'u8[512]{0}', space=vmem, size = 0x400, scoped, tag = 'input window, operand 21, single buffered']
    #allocation3 [shape = 's32[1]{0}', space=sflag, size = 0x4, scoped, tag = 'scoped memory for _forward_core.1']
    #allocation4 [shape = 's32[1]{0}', space=sflag, size = 0x4, scoped, tag = 'scoped memory for _forward_core.1']
    #allocation5 [shape = 'u8[512]{0}', space=vmem, size = 0x400, scoped, tag = 'input window, operand 23, single buffered']
    #allocation6 [shape = 's32[1]{0}', space=sflag, size = 0x4, scoped, tag = 'scoped memory for _forward_core.1']
    #allocation7 [shape = 'u8[512]{0}', space=vmem, size = 0x400, scoped, tag = 'input window, operand 24, single buffered']
    #allocation8 [shape = 'u8[512]{0}', space=vmem, size = 0x400, scoped, tag = 'input window, operand 25, single buffered']
    #allocation9 [shape = 's32[1]{0}', space=sflag, size = 0x4, scoped, tag = 'scoped memory for _forward_core.1']
    #allocation10 [shape = 'u8[512]{0}', space=vmem, size = 0x400, scoped, tag = 'input window, operand 27, single buffered']
    #allocation11 [shape = 'u8[512]{0}', space=vmem, size = 0x400, scoped, tag = 'input window, operand 29, single buffered']
    #allocation12 [shape = 's32[1]{0}', space=sflag, size = 0x4, scoped, tag = 'scoped memory for _forward_core.1']
    #allocation13 [shape = 'u8[512]{0}', space=vmem, size = 0x400, scoped, tag = 'input window, operand 31, single buffered']
    #allocation14 [shape = 'u8[512]{0}', space=vmem, size = 0x400, scoped, tag = 'input window, operand 33, single buffered']
    #allocation15 [shape = 's32[1]{0}', space=sflag, size = 0x4, scoped, tag = 'scoped memory for _forward_core.1']
    #allocation16 [shape = 'u8[512]{0}', space=vmem, size = 0x400, scoped, tag = 'input window, operand 34, single buffered']
    #allocation17 [shape = 'u8[512]{0}', space=vmem, size = 0x400, scoped, tag = 'input window, operand 35, single buffered']
    #allocation18 [shape = 's32[1]{0}', space=sflag, size = 0x4, scoped, tag = 'scoped memory for _forward_core.1']
    #allocation19 [shape = 'u8[512]{0}', space=vmem, size = 0x400, scoped, tag = 'input window, operand 37, single buffered']
    #allocation20 [shape = 'u8[512]{0}', space=vmem, size = 0x400, scoped, tag = 'input window, operand 38, single buffered']
    #allocation21 [shape = 's32[1]{0}', space=sflag, size = 0x4, scoped, tag = 'scoped memory for _forward_core.1']
    #allocation22 [shape = 'u8[512]{0}', space=vmem, size = 0x400, scoped, tag = 'input window, operand 39, single buffered']
    #allocation23 [shape = 'u8[512]{0}', space=vmem, size = 0x400, scoped, tag = 'input window, operand 41, single buffered']
    #allocation24 [shape = 's32[1]{0}', space=sflag, size = 0x4, scoped, tag = 'scoped memory for _forward_core.1']
    #allocation25 [shape = 'u8[512]{0}', space=vmem, size = 0x400, scoped, tag = 'input window, operand 42, single buffered']
    #allocation26 [shape = 'u8[512]{0}', space=vmem, size = 0x400, scoped, tag = 'input window, operand 43, single buffered']
    #allocation27 [shape = 's32[1]{0}', space=sflag, size = 0x4, scoped, tag = 'scoped memory for _forward_core.1']
    #allocation28 [shape = 'u8[512]{0}', space=vmem, size = 0x400, scoped, tag = 'input window, operand 44, single buffered']
    #allocation29 [shape = 'u8[512]{0}', space=vmem, size = 0x400, scoped, tag = 'input window, operand 45, single buffered']
    #allocation30 [shape = 's32[1]{0}', space=sflag, size = 0x4, scoped, tag = 'scoped memory for _forward_core.1']
    #allocation31 [shape = 'u8[512]{0}', space=vmem, size = 0x400, scoped, tag = 'input window, operand 47, single buffered']
    #allocation32 [shape = 'u8[512]{0}', space=vmem, size = 0x400, scoped, tag = 'input window, operand 49, single buffered']
    #allocation33 [shape = 's32[1]{0}', space=sflag, size = 0x4, scoped, tag = 'scoped memory for _forward_core.1']
    #allocation34 [shape = 'u8[512]{0}', space=vmem, size = 0x400, scoped, tag = 'input window, operand 51, single buffered']
    #allocation35 [shape = 'u8[512]{0}', space=vmem, size = 0x400, scoped, tag = 'input window, operand 53, single buffered']
    #allocation36 [shape = 's32[1]{0}', space=sflag, size = 0x4, scoped, tag = 'scoped memory for _forward_core.1']
    #allocation37 [shape = 'u8[512]{0}', space=vmem, size = 0x400, scoped, tag = 'input window, operand 54, single buffered']
    #allocation38 [shape = 'u8[512]{0}', space=vmem, size = 0x400, scoped, tag = 'input window, operand 55, single buffered']
    #allocation39 [shape = 's32[1]{0}', space=sflag, size = 0x4, scoped, tag = 'scoped memory for _forward_core.1']
    #allocation40 [shape = 'u8[512]{0}', space=vmem, size = 0x400, scoped, tag = 'input window, operand 56, single buffered']
    #allocation41 [shape = 'u8[512]{0}', space=vmem, size = 0x400, scoped, tag = 'input window, operand 57, single buffered']
    #allocation42 [shape = 's32[1]{0}', space=sflag, size = 0x4, scoped, tag = 'scoped memory for _forward_core.1']
    #allocation43 [shape = 'u8[512]{0}', space=vmem, size = 0x400, scoped, tag = 'input window, operand 59, single buffered']
    #allocation44 [shape = 'u8[512]{0}', space=vmem, size = 0x400, scoped, tag = 'input window, operand 61, single buffered']
    #allocation45 [shape = 's32[1]{0}', space=sflag, size = 0x4, scoped, tag = 'scoped memory for _forward_core.1']
    #allocation46 [shape = 'u8[512]{0}', space=vmem, size = 0x400, scoped, tag = 'input window, operand 63, single buffered']
    #allocation47 [shape = 'u8[512]{0}', space=vmem, size = 0x400, scoped, tag = 'input window, operand 65, single buffered']
    #allocation48 [shape = 's32[1]{0}', space=sflag, size = 0x4, scoped, tag = 'scoped memory for _forward_core.1']
    #allocation49 [shape = 'u8[512]{0}', space=vmem, size = 0x400, scoped, tag = 'input window, operand 66, single buffered']
    #allocation50 [shape = 'u8[512]{0}', space=vmem, size = 0x400, scoped, tag = 'input window, operand 67, single buffered']
    #allocation51 [shape = 's32[1]{0}', space=sflag, size = 0x4, scoped, tag = 'scoped memory for _forward_core.1']
    #allocation52 [shape = 'u8[512]{0}', space=vmem, size = 0x400, scoped, tag = 'input window, operand 68, single buffered']
    #allocation53 [shape = 'u8[512]{0}', space=vmem, size = 0x400, scoped, tag = 'input window, operand 69, single buffered']
    #allocation54 [shape = 's32[1]{0}', space=sflag, size = 0x4, scoped, tag = 'scoped memory for _forward_core.1']
    #allocation55 [shape = 'u8[512]{0}', space=vmem, size = 0x400, scoped, tag = 'input window, operand 71, single buffered']
    #allocation56 [shape = 'u8[1024]{0}', space=vmem, size = 0x400, scoped, tag = 'output window, operand 0, single buffered']
    %152 = vsyncpa [#allocation3], 0
    %153 = vsyncpa [#allocation6], 0
    %154 = vsyncpa [#allocation9], 0
    %155 = vsyncpa [#allocation12], 0
    %156 = vsyncpa [#allocation15], 0
    %157 = vsyncpa [#allocation18], 0
    %158 = vsyncpa [#allocation21], 0
    %159 = vsyncpa [#allocation24], 0
    %160 = vsyncpa [#allocation27], 0
    %161 = vsyncpa [#allocation30], 0
    %162 = vsyncpa [#allocation33], 0
    %163 = vsyncpa [#allocation36], 0
    %164 = vsyncpa [#allocation39], 0
    %165 = vsyncpa [#allocation42], 0
    %166 = vsyncpa [#allocation45], 0
    %167 = vsyncpa [#allocation48], 0
    %168 = vsyncpa [#allocation51], 0
    %169 = vsyncpa [#allocation54], 0
    %170 = vsyncpa [#allocation4], 0
    // Predicated region
    $region2: #{_forward_core.1} parent=1 // pred_check
      _
    $region3: #{_forward_core.1} parent=1 // pred_check_branch
      %172 = sbr.rel (0) target = $region5
    $region4: #{_forward_core.1} parent=1 // pred_region
      _
    $region5: #{_forward_core.1} parent=1 // pred_fallthru
      _
    // Predicated region
    $region6: #{_forward_core.1} parent=1 // pred_check
      _
    $region7: #{_forward_core.1} parent=1 // pred_check_branch
      %174 = sbr.rel (0) target = $region9
    $region8: #{_forward_core.1} parent=1 // pred_region
      _
    $region9: #{_forward_core.1} parent=1 // pred_fallthru
      _
    // Predicated region
    $region10: #{_forward_core.1} parent=1 // pred_check
      _
    $region11: #{_forward_core.1} parent=1 // pred_check_branch
      %176 = sbr.rel (0) target = $region13
    $region12: #{_forward_core.1} parent=1 // pred_region
      _
    $region13: #{_forward_core.1} parent=1 // pred_fallthru
      _
    // Predicated region
    $region14: #{_forward_core.1} parent=1 // pred_check
      _
    $region15: #{_forward_core.1} parent=1 // pred_check_branch
      %178 = sbr.rel (0) target = $region17
    $region16: #{_forward_core.1} parent=1 // pred_region
      _
    $region17: #{_forward_core.1} parent=1 // pred_fallthru
      _
    // Predicated region
    $region18: #{_forward_core.1} parent=1 // pred_check
      _
    $region19: #{_forward_core.1} parent=1 // pred_check_branch
      %180 = sbr.rel (0) target = $region21
    $region20: #{_forward_core.1} parent=1 // pred_region
      _
    $region21: #{_forward_core.1} parent=1 // pred_fallthru
      _
    // Predicated region
    $region22: #{_forward_core.1} parent=1 // pred_check
      _
    $region23: #{_forward_core.1} parent=1 // pred_check_branch
      %182 = sbr.rel (0) target = $region25
    $region24: #{_forward_core.1} parent=1 // pred_region
      _
    $region25: #{_forward_core.1} parent=1 // pred_fallthru
      _
    // Predicated region
    $region26: #{_forward_core.1} parent=1 // pred_check
      _
    $region27: #{_forward_core.1} parent=1 // pred_check_branch
      %184 = sbr.rel (0) target = $region29
    $region28: #{_forward_core.1} parent=1 // pred_region
      _
    $region29: #{_forward_core.1} parent=1 // pred_fallthru
      _
    // Predicated region
    $region30: #{_forward_core.1} parent=1 // pred_check
      _
    $region31: #{_forward_core.1} parent=1 // pred_check_branch
      %186 = sbr.rel (0) target = $region33
    $region32: #{_forward_core.1} parent=1 // pred_region
      _
    $region33: #{_forward_core.1} parent=1 // pred_fallthru
      _
    // Predicated region
    $region34: #{_forward_core.1} parent=1 // pred_check
      _
    $region35: #{_forward_core.1} parent=1 // pred_check_branch
      %188 = sbr.rel (0) target = $region37
    $region36: #{_forward_core.1} parent=1 // pred_region
      _
    $region37: #{_forward_core.1} parent=1 // pred_fallthru
      _
    // Predicated region
    $region38: #{_forward_core.1} parent=1 // pred_check
      _
    $region39: #{_forward_core.1} parent=1 // pred_check_branch
      %190 = sbr.rel (0) target = $region41
    $region40: #{_forward_core.1} parent=1 // pred_region
      _
    $region41: #{_forward_core.1} parent=1 // pred_fallthru
      _
    // Predicated region
    $region42: #{_forward_core.1} parent=1 // pred_check
      _
    $region43: #{_forward_core.1} parent=1 // pred_check_branch
      %192 = sbr.rel (0) target = $region45
    $region44: #{_forward_core.1} parent=1 // pred_region
      _
    $region45: #{_forward_core.1} parent=1 // pred_fallthru
      _
    // Predicated region
    $region46: #{_forward_core.1} parent=1 // pred_check
      _
    $region47: #{_forward_core.1} parent=1 // pred_check_branch
      %194 = sbr.rel (0) target = $region49
    $region48: #{_forward_core.1} parent=1 // pred_region
      _
    $region49: #{_forward_core.1} parent=1 // pred_fallthru
      _
    // Predicated region
    $region50: #{_forward_core.1} parent=1 // pred_check
      _
    $region51: #{_forward_core.1} parent=1 // pred_check_branch
      %196 = sbr.rel (0) target = $region53
    $region52: #{_forward_core.1} parent=1 // pred_region
      _
    $region53: #{_forward_core.1} parent=1 // pred_fallthru
      _
    // Predicated region
    $region54: #{_forward_core.1} parent=1 // pred_check
      _
    $region55: #{_forward_core.1} parent=1 // pred_check_branch
      %198 = sbr.rel (0) target = $region57
    $region56: #{_forward_core.1} parent=1 // pred_region
      _
    $region57: #{_forward_core.1} parent=1 // pred_fallthru
      _
    // Predicated region
    $region58: #{_forward_core.1} parent=1 // pred_check
      _
    $region59: #{_forward_core.1} parent=1 // pred_check_branch
      %200 = sbr.rel (0) target = $region61
    $region60: #{_forward_core.1} parent=1 // pred_region
      _
    $region61: #{_forward_core.1} parent=1 // pred_fallthru
      _
    // Predicated region
    $region62: #{_forward_core.1} parent=1 // pred_check
      _
    $region63: #{_forward_core.1} parent=1 // pred_check_branch
      %202 = sbr.rel (0) target = $region65
    $region64: #{_forward_core.1} parent=1 // pred_region
      _
    $region65: #{_forward_core.1} parent=1 // pred_fallthru
      _
    // Predicated region
    $region66: #{_forward_core.1} parent=1 // pred_check
      _
    $region67: #{_forward_core.1} parent=1 // pred_check_branch
      %204 = sbr.rel (0) target = $region69
    $region68: #{_forward_core.1} parent=1 // pred_region
      _
    $region69: #{_forward_core.1} parent=1 // pred_fallthru
      _
    // Predicated region
    $region70: #{_forward_core.1} parent=1 // pred_check
      _
    $region71: #{_forward_core.1} parent=1 // pred_check_branch
      %206 = sbr.rel (0) target = $region73
    $region72: #{_forward_core.1} parent=1 // pred_region
      _
    $region73: #{_forward_core.1} parent=1 // pred_fallthru
      _
    // Predicated region
    $region74: #{_forward_core.1} parent=1 // pred_check
      _
    $region75: #{_forward_core.1} parent=1 // pred_check_branch
      %208 = sbr.rel (0) target = $region77
    $region76: #{_forward_core.1} parent=1 // pred_region
      _
    $region77: #{_forward_core.1} parent=1 // pred_fallthru
      _
    // Predicated region
    $region78: #{_forward_core.1} parent=1 // pred_check
      _
    $region79: #{_forward_core.1} parent=1 // pred_check_branch
      %210 = sbr.rel (0) target = $region81
    $region80: #{_forward_core.1} parent=1 // pred_region
      _
    $region81: #{_forward_core.1} parent=1 // pred_fallthru
      _
    // Predicated region
    $region82: #{_forward_core.1} parent=1 // pred_check
      _
    $region83: #{_forward_core.1} parent=1 // pred_check_branch
      %212 = sbr.rel (0) target = $region85
    $region84: #{_forward_core.1} parent=1 // pred_region
      _
    $region85: #{_forward_core.1} parent=1 // pred_fallthru
      _
    // Predicated region
    $region86: #{_forward_core.1} parent=1 // pred_check
      _
    $region87: #{_forward_core.1} parent=1 // pred_check_branch
      %214 = sbr.rel (0) target = $region89
    $region88: #{_forward_core.1} parent=1 // pred_region
      %s216 = ssub.s32 16, 16
      %217 = vsyncadd [#allocation3], %s216
      %s219 = sshll.u32 [#allocation2], 4
      %s220 = int_to_ptr.vmem [resolvable:$true] %s219
      %222 = dma.hbm_to_vmem [thread:$0]  %s43, 16, %s220, [#allocation3]
    $region89: #{_forward_core.1} parent=1 // pred_fallthru
      _
    // Predicated region
    $region90: #{_forward_core.1} parent=1 // pred_check
      _
    $region91: #{_forward_core.1} parent=1 // pred_check_branch
      %224 = sbr.rel (0) target = $region93
    $region92: #{_forward_core.1} parent=1 // pred_region
      _
    $region93: #{_forward_core.1} parent=1 // pred_fallthru
      _
    // Predicated region
    $region94: #{_forward_core.1} parent=1 // pred_check
      _
    $region95: #{_forward_core.1} parent=1 // pred_check_branch
      %226 = sbr.rel (0) target = $region97
    $region96: #{_forward_core.1} parent=1 // pred_region
      %s228 = ssub.s32 16, 16
      %229 = vsyncadd [#allocation6], %s228
      %s231 = sshll.u32 [#allocation5], 4
      %s232 = int_to_ptr.vmem [resolvable:$true] %s231
      %234 = dma.hbm_to_vmem [thread:$0]  %s47, 16, %s232, [#allocation6]
    $region97: #{_forward_core.1} parent=1 // pred_fallthru
      _
    // Predicated region
    $region98: #{_forward_core.1} parent=1 // pred_check
      _
    $region99: #{_forward_core.1} parent=1 // pred_check_branch
      %236 = sbr.rel (0) target = $region101
    $region100: #{_forward_core.1} parent=1 // pred_region
      %s238 = ssub.s32 16, 16
      %239 = vsyncadd [#allocation6], %s238
      %s241 = sshll.u32 [#allocation7], 4
      %s242 = int_to_ptr.vmem [resolvable:$true] %s241
      %244 = dma.hbm_to_vmem [thread:$0]  %s49, 16, %s242, [#allocation6]
    $region101: #{_forward_core.1} parent=1 // pred_fallthru
      _
    // Predicated region
    $region102: #{_forward_core.1} parent=1 // pred_check
      _
    $region103: #{_forward_core.1} parent=1 // pred_check_branch
      %246 = sbr.rel (0) target = $region105
    $region104: #{_forward_core.1} parent=1 // pred_region
      %s248 = ssub.s32 16, 16
      %249 = vsyncadd [#allocation9], %s248
      %s251 = sshll.u32 [#allocation8], 4
      %s252 = int_to_ptr.vmem [resolvable:$true] %s251
      %254 = dma.hbm_to_vmem [thread:$0]  %s51, 16, %s252, [#allocation9]
    $region105: #{_forward_core.1} parent=1 // pred_fallthru
      _
    // Predicated region
    $region106: #{_forward_core.1} parent=1 // pred_check
      _
    $region107: #{_forward_core.1} parent=1 // pred_check_branch
      %256 = sbr.rel (0) target = $region109
    $region108: #{_forward_core.1} parent=1 // pred_region
      _
    $region109: #{_forward_core.1} parent=1 // pred_fallthru
      _
    // Predicated region
    $region110: #{_forward_core.1} parent=1 // pred_check
      _
    $region111: #{_forward_core.1} parent=1 // pred_check_branch
      %258 = sbr.rel (0) target = $region113
    $region112: #{_forward_core.1} parent=1 // pred_region
      %s260 = ssub.s32 16, 16
      %261 = vsyncadd [#allocation9], %s260
      %s263 = sshll.u32 [#allocation10], 4
      %s264 = int_to_ptr.vmem [resolvable:$true] %s263
      %266 = dma.hbm_to_vmem [thread:$0]  %s55, 16, %s264, [#allocation9]
    $region113: #{_forward_core.1} parent=1 // pred_fallthru
      _
    // Predicated region
    $region114: #{_forward_core.1} parent=1 // pred_check
      _
    $region115: #{_forward_core.1} parent=1 // pred_check_branch
      %268 = sbr.rel (0) target = $region117
    $region116: #{_forward_core.1} parent=1 // pred_region
      _
    $region117: #{_forward_core.1} parent=1 // pred_fallthru
      _
    // Predicated region
    $region118: #{_forward_core.1} parent=1 // pred_check
      _
    $region119: #{_forward_core.1} parent=1 // pred_check_branch
      %270 = sbr.rel (0) target = $region121
    $region120: #{_forward_core.1} parent=1 // pred_region
      %s272 = ssub.s32 16, 16
      %273 = vsyncadd [#allocation12], %s272
      %s275 = sshll.u32 [#allocation11], 4
      %s276 = int_to_ptr.vmem [resolvable:$true] %s275
      %278 = dma.hbm_to_vmem [thread:$0]  %s59, 16, %s276, [#allocation12]
    $region121: #{_forward_core.1} parent=1 // pred_fallthru
      _
    // Predicated region
    $region122: #{_forward_core.1} parent=1 // pred_check
      _
    $region123: #{_forward_core.1} parent=1 // pred_check_branch
      %280 = sbr.rel (0) target = $region125
    $region124: #{_forward_core.1} parent=1 // pred_region
      _
    $region125: #{_forward_core.1} parent=1 // pred_fallthru
      _
    // Predicated region
    $region126: #{_forward_core.1} parent=1 // pred_check
      _
    $region127: #{_forward_core.1} parent=1 // pred_check_branch
      %282 = sbr.rel (0) target = $region129
    $region128: #{_forward_core.1} parent=1 // pred_region
      %s284 = ssub.s32 16, 16
      %285 = vsyncadd [#allocation12], %s284
      %s287 = sshll.u32 [#allocation13], 4
      %s288 = int_to_ptr.vmem [resolvable:$true] %s287
      %290 = dma.hbm_to_vmem [thread:$0]  %s63, 16, %s288, [#allocation12]
    $region129: #{_forward_core.1} parent=1 // pred_fallthru
      _
    // Predicated region
    $region130: #{_forward_core.1} parent=1 // pred_check
      _
    $region131: #{_forward_core.1} parent=1 // pred_check_branch
      %292 = sbr.rel (0) target = $region133
    $region132: #{_forward_core.1} parent=1 // pred_region
      _
    $region133: #{_forward_core.1} parent=1 // pred_fallthru
      _
    // Predicated region
    $region134: #{_forward_core.1} parent=1 // pred_check
      _
    $region135: #{_forward_core.1} parent=1 // pred_check_branch
      %294 = sbr.rel (0) target = $region137
    $region136: #{_forward_core.1} parent=1 // pred_region
      %s296 = ssub.s32 16, 16
      %297 = vsyncadd [#allocation15], %s296
      %s299 = sshll.u32 [#allocation14], 4
      %s300 = int_to_ptr.vmem [resolvable:$true] %s299
      %302 = dma.hbm_to_vmem [thread:$0]  %s67, 16, %s300, [#allocation15]
    $region137: #{_forward_core.1} parent=1 // pred_fallthru
      _
    // Predicated region
    $region138: #{_forward_core.1} parent=1 // pred_check
      _
    $region139: #{_forward_core.1} parent=1 // pred_check_branch
      %304 = sbr.rel (0) target = $region141
    $region140: #{_forward_core.1} parent=1 // pred_region
      %s306 = ssub.s32 16, 16
      %307 = vsyncadd [#allocation15], %s306
      %s309 = sshll.u32 [#allocation16], 4
      %s310 = int_to_ptr.vmem [resolvable:$true] %s309
      %312 = dma.hbm_to_vmem [thread:$0]  %s69, 16, %s310, [#allocation15]
    $region141: #{_forward_core.1} parent=1 // pred_fallthru
      _
    // Predicated region
    $region142: #{_forward_core.1} parent=1 // pred_check
      _
    $region143: #{_forward_core.1} parent=1 // pred_check_branch
      %314 = sbr.rel (0) target = $region145
    $region144: #{_forward_core.1} parent=1 // pred_region
      %s316 = ssub.s32 16, 16
      %317 = vsyncadd [#allocation18], %s316
      %s319 = sshll.u32 [#allocation17], 4
      %s320 = int_to_ptr.vmem [resolvable:$true] %s319
      %322 = dma.hbm_to_vmem [thread:$0]  %s71, 16, %s320, [#allocation18]
    $region145: #{_forward_core.1} parent=1 // pred_fallthru
      _
    // Predicated region
    $region146: #{_forward_core.1} parent=1 // pred_check
      _
    $region147: #{_forward_core.1} parent=1 // pred_check_branch
      %324 = sbr.rel (0) target = $region149
    $region148: #{_forward_core.1} parent=1 // pred_region
      _
    $region149: #{_forward_core.1} parent=1 // pred_fallthru
      _
    // Predicated region
    $region150: #{_forward_core.1} parent=1 // pred_check
      _
    $region151: #{_forward_core.1} parent=1 // pred_check_branch
      %326 = sbr.rel (0) target = $region153
    $region152: #{_forward_core.1} parent=1 // pred_region
      %s328 = ssub.s32 16, 16
      %329 = vsyncadd [#allocation18], %s328
      %s331 = sshll.u32 [#allocation19], 4
      %s332 = int_to_ptr.vmem [resolvable:$true] %s331
      %334 = dma.hbm_to_vmem [thread:$0]  %s75, 16, %s332, [#allocation18]
    $region153: #{_forward_core.1} parent=1 // pred_fallthru
      _
    // Predicated region
    $region154: #{_forward_core.1} parent=1 // pred_check
      _
    $region155: #{_forward_core.1} parent=1 // pred_check_branch
      %336 = sbr.rel (0) target = $region157
    $region156: #{_forward_core.1} parent=1 // pred_region
      %s338 = ssub.s32 16, 16
      %339 = vsyncadd [#allocation21], %s338
      %s341 = sshll.u32 [#allocation20], 4
      %s342 = int_to_ptr.vmem [resolvable:$true] %s341
      %344 = dma.hbm_to_vmem [thread:$0]  %s77, 16, %s342, [#allocation21]
    $region157: #{_forward_core.1} parent=1 // pred_fallthru
      _
    // Predicated region
    $region158: #{_forward_core.1} parent=1 // pred_check
      _
    $region159: #{_forward_core.1} parent=1 // pred_check_branch
      %346 = sbr.rel (0) target = $region161
    $region160: #{_forward_core.1} parent=1 // pred_region
      %s348 = ssub.s32 16, 16
      %349 = vsyncadd [#allocation21], %s348
      %s351 = sshll.u32 [#allocation22], 4
      %s352 = int_to_ptr.vmem [resolvable:$true] %s351
      %354 = dma.hbm_to_vmem [thread:$0]  %s79, 16, %s352, [#allocation21]
    $region161: #{_forward_core.1} parent=1 // pred_fallthru
      _
    // Predicated region
    $region162: #{_forward_core.1} parent=1 // pred_check
      _
    $region163: #{_forward_core.1} parent=1 // pred_check_branch
      %356 = sbr.rel (0) target = $region165
    $region164: #{_forward_core.1} parent=1 // pred_region
      _
    $region165: #{_forward_core.1} parent=1 // pred_fallthru
      _
    // Predicated region
    $region166: #{_forward_core.1} parent=1 // pred_check
      _
    $region167: #{_forward_core.1} parent=1 // pred_check_branch
      %358 = sbr.rel (0) target = $region169
    $region168: #{_forward_core.1} parent=1 // pred_region
      %s360 = ssub.s32 16, 16
      %361 = vsyncadd [#allocation24], %s360
      %s363 = sshll.u32 [#allocation23], 4
      %s364 = int_to_ptr.vmem [resolvable:$true] %s363
      %366 = dma.hbm_to_vmem [thread:$0]  %s83, 16, %s364, [#allocation24]
    $region169: #{_forward_core.1} parent=1 // pred_fallthru
      _
    // Predicated region
    $region170: #{_forward_core.1} parent=1 // pred_check
      _
    $region171: #{_forward_core.1} parent=1 // pred_check_branch
      %368 = sbr.rel (0) target = $region173
    $region172: #{_forward_core.1} parent=1 // pred_region
      %s370 = ssub.s32 16, 16
      %371 = vsyncadd [#allocation24], %s370
      %s373 = sshll.u32 [#allocation25], 4
      %s374 = int_to_ptr.vmem [resolvable:$true] %s373
      %376 = dma.hbm_to_vmem [thread:$0]  %s85, 16, %s374, [#allocation24]
    $region173: #{_forward_core.1} parent=1 // pred_fallthru
      _
    // Predicated region
    $region174: #{_forward_core.1} parent=1 // pred_check
      _
    $region175: #{_forward_core.1} parent=1 // pred_check_branch
      %378 = sbr.rel (0) target = $region177
    $region176: #{_forward_core.1} parent=1 // pred_region
      %s380 = ssub.s32 16, 16
      %381 = vsyncadd [#allocation27], %s380
      %s383 = sshll.u32 [#allocation26], 4
      %s384 = int_to_ptr.vmem [resolvable:$true] %s383
      %386 = dma.hbm_to_vmem [thread:$0]  %s87, 16, %s384, [#allocation27]
    $region177: #{_forward_core.1} parent=1 // pred_fallthru
      _
    // Predicated region
    $region178: #{_forward_core.1} parent=1 // pred_check
      _
    $region179: #{_forward_core.1} parent=1 // pred_check_branch
      %388 = sbr.rel (0) target = $region181
    $region180: #{_forward_core.1} parent=1 // pred_region
      %s390 = ssub.s32 16, 16
      %391 = vsyncadd [#allocation27], %s390
      %s393 = sshll.u32 [#allocation28], 4
      %s394 = int_to_ptr.vmem [resolvable:$true] %s393
      %396 = dma.hbm_to_vmem [thread:$0]  %s89, 16, %s394, [#allocation27]
    $region181: #{_forward_core.1} parent=1 // pred_fallthru
      _
    // Predicated region
    $region182: #{_forward_core.1} parent=1 // pred_check
      _
    $region183: #{_forward_core.1} parent=1 // pred_check_branch
      %398 = sbr.rel (0) target = $region185
    $region184: #{_forward_core.1} parent=1 // pred_region
      %s400 = ssub.s32 16, 16
      %401 = vsyncadd [#allocation30], %s400
      %s403 = sshll.u32 [#allocation29], 4
      %s404 = int_to_ptr.vmem [resolvable:$true] %s403
      %406 = dma.hbm_to_vmem [thread:$0]  %s91, 16, %s404, [#allocation30]
    $region185: #{_forward_core.1} parent=1 // pred_fallthru
      _
    // Predicated region
    $region186: #{_forward_core.1} parent=1 // pred_check
      _
    $region187: #{_forward_core.1} parent=1 // pred_check_branch
      %408 = sbr.rel (0) target = $region189
    $region188: #{_forward_core.1} parent=1 // pred_region
      _
    $region189: #{_forward_core.1} parent=1 // pred_fallthru
      _
    // Predicated region
    $region190: #{_forward_core.1} parent=1 // pred_check
      _
    $region191: #{_forward_core.1} parent=1 // pred_check_branch
      %410 = sbr.rel (0) target = $region193
    $region192: #{_forward_core.1} parent=1 // pred_region
      %s412 = ssub.s32 16, 16
      %413 = vsyncadd [#allocation30], %s412
      %s415 = sshll.u32 [#allocation31], 4
      %s416 = int_to_ptr.vmem [resolvable:$true] %s415
      %418 = dma.hbm_to_vmem [thread:$0]  %s95, 16, %s416, [#allocation30]
    $region193: #{_forward_core.1} parent=1 // pred_fallthru
      _
    // Predicated region
    $region194: #{_forward_core.1} parent=1 // pred_check
      _
    $region195: #{_forward_core.1} parent=1 // pred_check_branch
      %420 = sbr.rel (0) target = $region197
    $region196: #{_forward_core.1} parent=1 // pred_region
      _
    $region197: #{_forward_core.1} parent=1 // pred_fallthru
      _
    // Predicated region
    $region198: #{_forward_core.1} parent=1 // pred_check
      _
    $region199: #{_forward_core.1} parent=1 // pred_check_branch
      %422 = sbr.rel (0) target = $region201
    $region200: #{_forward_core.1} parent=1 // pred_region
      %s424 = ssub.s32 16, 16
      %425 = vsyncadd [#allocation33], %s424
      %s427 = sshll.u32 [#allocation32], 4
      %s428 = int_to_ptr.vmem [resolvable:$true] %s427
      %430 = dma.hbm_to_vmem [thread:$0]  %s99, 16, %s428, [#allocation33]
    $region201: #{_forward_core.1} parent=1 // pred_fallthru
      _
    // Predicated region
    $region202: #{_forward_core.1} parent=1 // pred_check
      _
    $region203: #{_forward_core.1} parent=1 // pred_check_branch
      %432 = sbr.rel (0) target = $region205
    $region204: #{_forward_core.1} parent=1 // pred_region
      _
    $region205: #{_forward_core.1} parent=1 // pred_fallthru
      _
    // Predicated region
    $region206: #{_forward_core.1} parent=1 // pred_check
      _
    $region207: #{_forward_core.1} parent=1 // pred_check_branch
      %434 = sbr.rel (0) target = $region209
    $region208: #{_forward_core.1} parent=1 // pred_region
      %s436 = ssub.s32 16, 16
      %437 = vsyncadd [#allocation33], %s436
      %s439 = sshll.u32 [#allocation34], 4
      %s440 = int_to_ptr.vmem [resolvable:$true] %s439
      %442 = dma.hbm_to_vmem [thread:$0]  %s103, 16, %s440, [#allocation33]
    $region209: #{_forward_core.1} parent=1 // pred_fallthru
      _
    // Predicated region
    $region210: #{_forward_core.1} parent=1 // pred_check
      _
    $region211: #{_forward_core.1} parent=1 // pred_check_branch
      %444 = sbr.rel (0) target = $region213
    $region212: #{_forward_core.1} parent=1 // pred_region
      _
    $region213: #{_forward_core.1} parent=1 // pred_fallthru
      _
    // Predicated region
    $region214: #{_forward_core.1} parent=1 // pred_check
      _
    $region215: #{_forward_core.1} parent=1 // pred_check_branch
      %446 = sbr.rel (0) target = $region217
    $region216: #{_forward_core.1} parent=1 // pred_region
      %s448 = ssub.s32 16, 16
      %449 = vsyncadd [#allocation36], %s448
      %s451 = sshll.u32 [#allocation35], 4
      %s452 = int_to_ptr.vmem [resolvable:$true] %s451
      %454 = dma.hbm_to_vmem [thread:$0]  %s107, 16, %s452, [#allocation36]
    $region217: #{_forward_core.1} parent=1 // pred_fallthru
      _
    // Predicated region
    $region218: #{_forward_core.1} parent=1 // pred_check
      _
    $region219: #{_forward_core.1} parent=1 // pred_check_branch
      %456 = sbr.rel (0) target = $region221
    $region220: #{_forward_core.1} parent=1 // pred_region
      %s458 = ssub.s32 16, 16
      %459 = vsyncadd [#allocation36], %s458
      %s461 = sshll.u32 [#allocation37], 4
      %s462 = int_to_ptr.vmem [resolvable:$true] %s461
      %464 = dma.hbm_to_vmem [thread:$0]  %s109, 16, %s462, [#allocation36]
    $region221: #{_forward_core.1} parent=1 // pred_fallthru
      _
    // Predicated region
    $region222: #{_forward_core.1} parent=1 // pred_check
      _
    $region223: #{_forward_core.1} parent=1 // pred_check_branch
      %466 = sbr.rel (0) target = $region225
    $region224: #{_forward_core.1} parent=1 // pred_region
      %s468 = ssub.s32 16, 16
      %469 = vsyncadd [#allocation39], %s468
      %s471 = sshll.u32 [#allocation38], 4
      %s472 = int_to_ptr.vmem [resolvable:$true] %s471
      %474 = dma.hbm_to_vmem [thread:$0]  %s111, 16, %s472, [#allocation39]
    $region225: #{_forward_core.1} parent=1 // pred_fallthru
      _
    // Predicated region
    $region226: #{_forward_core.1} parent=1 // pred_check
      _
    $region227: #{_forward_core.1} parent=1 // pred_check_branch
      %476 = sbr.rel (0) target = $region229
    $region228: #{_forward_core.1} parent=1 // pred_region
      %s478 = ssub.s32 16, 16
      %479 = vsyncadd [#allocation39], %s478
      %s481 = sshll.u32 [#allocation40], 4
      %s482 = int_to_ptr.vmem [resolvable:$true] %s481
      %484 = dma.hbm_to_vmem [thread:$0]  %s113, 16, %s482, [#allocation39]
    $region229: #{_forward_core.1} parent=1 // pred_fallthru
      _
    // Predicated region
    $region230: #{_forward_core.1} parent=1 // pred_check
      _
    $region231: #{_forward_core.1} parent=1 // pred_check_branch
      %486 = sbr.rel (0) target = $region233
    $region232: #{_forward_core.1} parent=1 // pred_region
      %s488 = ssub.s32 16, 16
      %489 = vsyncadd [#allocation42], %s488
      %s491 = sshll.u32 [#allocation41], 4
      %s492 = int_to_ptr.vmem [resolvable:$true] %s491
      %494 = dma.hbm_to_vmem [thread:$0]  %s115, 16, %s492, [#allocation42]
    $region233: #{_forward_core.1} parent=1 // pred_fallthru
      _
    // Predicated region
    $region234: #{_forward_core.1} parent=1 // pred_check
      _
    $region235: #{_forward_core.1} parent=1 // pred_check_branch
      %496 = sbr.rel (0) target = $region237
    $region236: #{_forward_core.1} parent=1 // pred_region
      _
    $region237: #{_forward_core.1} parent=1 // pred_fallthru
      _
    // Predicated region
    $region238: #{_forward_core.1} parent=1 // pred_check
      _
    $region239: #{_forward_core.1} parent=1 // pred_check_branch
      %498 = sbr.rel (0) target = $region241
    $region240: #{_forward_core.1} parent=1 // pred_region
      %s500 = ssub.s32 16, 16
      %501 = vsyncadd [#allocation42], %s500
      %s503 = sshll.u32 [#allocation43], 4
      %s504 = int_to_ptr.vmem [resolvable:$true] %s503
      %506 = dma.hbm_to_vmem [thread:$0]  %s119, 16, %s504, [#allocation42]
    $region241: #{_forward_core.1} parent=1 // pred_fallthru
      _
    // Predicated region
    $region242: #{_forward_core.1} parent=1 // pred_check
      _
    $region243: #{_forward_core.1} parent=1 // pred_check_branch
      %508 = sbr.rel (0) target = $region245
    $region244: #{_forward_core.1} parent=1 // pred_region
      _
    $region245: #{_forward_core.1} parent=1 // pred_fallthru
      _
    // Predicated region
    $region246: #{_forward_core.1} parent=1 // pred_check
      _
    $region247: #{_forward_core.1} parent=1 // pred_check_branch
      %510 = sbr.rel (0) target = $region249
    $region248: #{_forward_core.1} parent=1 // pred_region
      %s512 = ssub.s32 16, 16
      %513 = vsyncadd [#allocation45], %s512
      %s515 = sshll.u32 [#allocation44], 4
      %s516 = int_to_ptr.vmem [resolvable:$true] %s515
      %518 = dma.hbm_to_vmem [thread:$0]  %s123, 16, %s516, [#allocation45]
    $region249: #{_forward_core.1} parent=1 // pred_fallthru
      _
    // Predicated region
    $region250: #{_forward_core.1} parent=1 // pred_check
      _
    $region251: #{_forward_core.1} parent=1 // pred_check_branch
      %520 = sbr.rel (0) target = $region253
    $region252: #{_forward_core.1} parent=1 // pred_region
      _
    $region253: #{_forward_core.1} parent=1 // pred_fallthru
      _
    // Predicated region
    $region254: #{_forward_core.1} parent=1 // pred_check
      _
    $region255: #{_forward_core.1} parent=1 // pred_check_branch
      %522 = sbr.rel (0) target = $region257
    $region256: #{_forward_core.1} parent=1 // pred_region
      %s524 = ssub.s32 16, 16
      %525 = vsyncadd [#allocation45], %s524
      %s527 = sshll.u32 [#allocation46], 4
      %s528 = int_to_ptr.vmem [resolvable:$true] %s527
      %530 = dma.hbm_to_vmem [thread:$0]  %s127, 16, %s528, [#allocation45]
    $region257: #{_forward_core.1} parent=1 // pred_fallthru
      _
    // Predicated region
    $region258: #{_forward_core.1} parent=1 // pred_check
      _
    $region259: #{_forward_core.1} parent=1 // pred_check_branch
      %532 = sbr.rel (0) target = $region261
    $region260: #{_forward_core.1} parent=1 // pred_region
      _
    $region261: #{_forward_core.1} parent=1 // pred_fallthru
      _
    // Predicated region
    $region262: #{_forward_core.1} parent=1 // pred_check
      _
    $region263: #{_forward_core.1} parent=1 // pred_check_branch
      %534 = sbr.rel (0) target = $region265
    $region264: #{_forward_core.1} parent=1 // pred_region
      %s536 = ssub.s32 16, 16
      %537 = vsyncadd [#allocation48], %s536
      %s539 = sshll.u32 [#allocation47], 4
      %s540 = int_to_ptr.vmem [resolvable:$true] %s539
      %542 = dma.hbm_to_vmem [thread:$0]  %s131, 16, %s540, [#allocation48]
    $region265: #{_forward_core.1} parent=1 // pred_fallthru
      _
    // Predicated region
    $region266: #{_forward_core.1} parent=1 // pred_check
      _
    $region267: #{_forward_core.1} parent=1 // pred_check_branch
      %544 = sbr.rel (0) target = $region269
    $region268: #{_forward_core.1} parent=1 // pred_region
      %s546 = ssub.s32 16, 16
      %547 = vsyncadd [#allocation48], %s546
      %s549 = sshll.u32 [#allocation49], 4
      %s550 = int_to_ptr.vmem [resolvable:$true] %s549
      %552 = dma.hbm_to_vmem [thread:$0]  %s133, 16, %s550, [#allocation48]
    $region269: #{_forward_core.1} parent=1 // pred_fallthru
      _
    // Predicated region
    $region270: #{_forward_core.1} parent=1 // pred_check
      _
    $region271: #{_forward_core.1} parent=1 // pred_check_branch
      %554 = sbr.rel (0) target = $region273
    $region272: #{_forward_core.1} parent=1 // pred_region
      %s556 = ssub.s32 16, 16
      %557 = vsyncadd [#allocation51], %s556
      %s559 = sshll.u32 [#allocation50], 4
      %s560 = int_to_ptr.vmem [resolvable:$true] %s559
      %562 = dma.hbm_to_vmem [thread:$0]  %s135, 16, %s560, [#allocation51]
    $region273: #{_forward_core.1} parent=1 // pred_fallthru
      _
    // Predicated region
    $region274: #{_forward_core.1} parent=1 // pred_check
      _
    $region275: #{_forward_core.1} parent=1 // pred_check_branch
      %564 = sbr.rel (0) target = $region277
    $region276: #{_forward_core.1} parent=1 // pred_region
      %s566 = ssub.s32 16, 16
      %567 = vsyncadd [#allocation51], %s566
      %s569 = sshll.u32 [#allocation52], 4
      %s570 = int_to_ptr.vmem [resolvable:$true] %s569
      %572 = dma.hbm_to_vmem [thread:$0]  %s137, 16, %s570, [#allocation51]
    $region277: #{_forward_core.1} parent=1 // pred_fallthru
      _
    // Predicated region
    $region278: #{_forward_core.1} parent=1 // pred_check
      _
    $region279: #{_forward_core.1} parent=1 // pred_check_branch
      %574 = sbr.rel (0) target = $region281
    $region280: #{_forward_core.1} parent=1 // pred_region
      %s576 = ssub.s32 16, 16
      %577 = vsyncadd [#allocation54], %s576
      %s579 = sshll.u32 [#allocation53], 4
      %s580 = int_to_ptr.vmem [resolvable:$true] %s579
      %582 = dma.hbm_to_vmem [thread:$0]  %s139, 16, %s580, [#allocation54]
    $region281: #{_forward_core.1} parent=1 // pred_fallthru
      _
    // Predicated region
    $region282: #{_forward_core.1} parent=1 // pred_check
      _
    $region283: #{_forward_core.1} parent=1 // pred_check_branch
      %584 = sbr.rel (0) target = $region285
    $region284: #{_forward_core.1} parent=1 // pred_region
      _
    $region285: #{_forward_core.1} parent=1 // pred_fallthru
      _
    // Predicated region
    $region286: #{_forward_core.1} parent=1 // pred_check
      _
    $region287: #{_forward_core.1} parent=1 // pred_check_branch
      %586 = sbr.rel (0) target = $region289
    $region288: #{_forward_core.1} parent=1 // pred_region
      %s588 = ssub.s32 16, 16
      %589 = vsyncadd [#allocation54], %s588
      %s591 = sshll.u32 [#allocation55], 4
      %s592 = int_to_ptr.vmem [resolvable:$true] %s591
      %594 = dma.hbm_to_vmem [thread:$0]  %s143, 16, %s592, [#allocation54]
    $region289: #{_forward_core.1} parent=1 // pred_fallthru
      _
    // Predicated region
    $region290: #{_forward_core.1} parent=1 // pred_check
      _
    $region291: #{_forward_core.1} parent=1 // pred_check_branch
      %596 = sbr.rel (0) target = $region293
    $region292: #{_forward_core.1} parent=1 // pred_region
      _
    $region293: #{_forward_core.1} parent=1 // pred_fallthru
      _
    // Predicated region
    $region294: #{_forward_core.1} parent=1 // pred_check
      _
    $region295: #{_forward_core.1} parent=1 // pred_check_branch
      %598 = sbr.rel (0) target = $region297
    $region296: #{_forward_core.1} parent=1 // pred_region
      %599 = dma.done [#allocation3], 16
    $region297: #{_forward_core.1} parent=1 // pred_fallthru
      _
    // Predicated region
    $region298: #{_forward_core.1} parent=1 // pred_check
      _
    $region299: #{_forward_core.1} parent=1 // pred_check_branch
      %601 = sbr.rel (0) target = $region301
    $region300: #{_forward_core.1} parent=1 // pred_region
      %602 = dma.done [#allocation6], 16
    $region301: #{_forward_core.1} parent=1 // pred_fallthru
      _
    // Predicated region
    $region302: #{_forward_core.1} parent=1 // pred_check
      _
    $region303: #{_forward_core.1} parent=1 // pred_check_branch
      %604 = sbr.rel (0) target = $region305
    $region304: #{_forward_core.1} parent=1 // pred_region
      %605 = dma.done [#allocation6], 16
    $region305: #{_forward_core.1} parent=1 // pred_fallthru
      _
    // Predicated region
    $region306: #{_forward_core.1} parent=1 // pred_check
      _
    $region307: #{_forward_core.1} parent=1 // pred_check_branch
      %607 = sbr.rel (0) target = $region309
    $region308: #{_forward_core.1} parent=1 // pred_region
      %608 = dma.done [#allocation9], 16
    $region309: #{_forward_core.1} parent=1 // pred_fallthru
      _
    // Predicated region
    $region310: #{_forward_core.1} parent=1 // pred_check
      _
    $region311: #{_forward_core.1} parent=1 // pred_check_branch
      %610 = sbr.rel (0) target = $region313
    $region312: #{_forward_core.1} parent=1 // pred_region
      %611 = dma.done [#allocation9], 16
    $region313: #{_forward_core.1} parent=1 // pred_fallthru
      _
    // Predicated region
    $region314: #{_forward_core.1} parent=1 // pred_check
      _
    $region315: #{_forward_core.1} parent=1 // pred_check_branch
      %613 = sbr.rel (0) target = $region317
    $region316: #{_forward_core.1} parent=1 // pred_region
      %614 = dma.done [#allocation12], 16
    $region317: #{_forward_core.1} parent=1 // pred_fallthru
      _
    // Predicated region
    $region318: #{_forward_core.1} parent=1 // pred_check
      _
    $region319: #{_forward_core.1} parent=1 // pred_check_branch
      %616 = sbr.rel (0) target = $region321
    $region320: #{_forward_core.1} parent=1 // pred_region
      %617 = dma.done [#allocation12], 16
    $region321: #{_forward_core.1} parent=1 // pred_fallthru
      _
    // Predicated region
    $region322: #{_forward_core.1} parent=1 // pred_check
      _
    $region323: #{_forward_core.1} parent=1 // pred_check_branch
      %619 = sbr.rel (0) target = $region325
    $region324: #{_forward_core.1} parent=1 // pred_region
      %620 = dma.done [#allocation15], 16
    $region325: #{_forward_core.1} parent=1 // pred_fallthru
      _
    // Predicated region
    $region326: #{_forward_core.1} parent=1 // pred_check
      _
    $region327: #{_forward_core.1} parent=1 // pred_check_branch
      %622 = sbr.rel (0) target = $region329
    $region328: #{_forward_core.1} parent=1 // pred_region
      %623 = dma.done [#allocation15], 16
    $region329: #{_forward_core.1} parent=1 // pred_fallthru
      _
    // Predicated region
    $region330: #{_forward_core.1} parent=1 // pred_check
      _
    $region331: #{_forward_core.1} parent=1 // pred_check_branch
      %625 = sbr.rel (0) target = $region333
    $region332: #{_forward_core.1} parent=1 // pred_region
      %626 = dma.done [#allocation18], 16
    $region333: #{_forward_core.1} parent=1 // pred_fallthru
      _
    // Predicated region
    $region334: #{_forward_core.1} parent=1 // pred_check
      _
    $region335: #{_forward_core.1} parent=1 // pred_check_branch
      %628 = sbr.rel (0) target = $region337
    $region336: #{_forward_core.1} parent=1 // pred_region
      %629 = dma.done [#allocation18], 16
    $region337: #{_forward_core.1} parent=1 // pred_fallthru
      _
    // Predicated region
    $region338: #{_forward_core.1} parent=1 // pred_check
      _
    $region339: #{_forward_core.1} parent=1 // pred_check_branch
      %631 = sbr.rel (0) target = $region341
    $region340: #{_forward_core.1} parent=1 // pred_region
      %632 = dma.done [#allocation21], 16
    $region341: #{_forward_core.1} parent=1 // pred_fallthru
      _
    // Predicated region
    $region342: #{_forward_core.1} parent=1 // pred_check
      _
    $region343: #{_forward_core.1} parent=1 // pred_check_branch
      %634 = sbr.rel (0) target = $region345
    $region344: #{_forward_core.1} parent=1 // pred_region
      %635 = dma.done [#allocation21], 16
    $region345: #{_forward_core.1} parent=1 // pred_fallthru
      _
    // Predicated region
    $region346: #{_forward_core.1} parent=1 // pred_check
      _
    $region347: #{_forward_core.1} parent=1 // pred_check_branch
      %637 = sbr.rel (0) target = $region349
    $region348: #{_forward_core.1} parent=1 // pred_region
      %638 = dma.done [#allocation24], 16
    $region349: #{_forward_core.1} parent=1 // pred_fallthru
      _
    // Predicated region
    $region350: #{_forward_core.1} parent=1 // pred_check
      _
    $region351: #{_forward_core.1} parent=1 // pred_check_branch
      %640 = sbr.rel (0) target = $region353
    $region352: #{_forward_core.1} parent=1 // pred_region
      %641 = dma.done [#allocation24], 16
    $region353: #{_forward_core.1} parent=1 // pred_fallthru
      _
    // Predicated region
    $region354: #{_forward_core.1} parent=1 // pred_check
      _
    $region355: #{_forward_core.1} parent=1 // pred_check_branch
      %643 = sbr.rel (0) target = $region357
    $region356: #{_forward_core.1} parent=1 // pred_region
      %644 = dma.done [#allocation27], 16
    $region357: #{_forward_core.1} parent=1 // pred_fallthru
      _
    // Predicated region
    $region358: #{_forward_core.1} parent=1 // pred_check
      _
    $region359: #{_forward_core.1} parent=1 // pred_check_branch
      %646 = sbr.rel (0) target = $region361
    $region360: #{_forward_core.1} parent=1 // pred_region
      %647 = dma.done [#allocation27], 16
    $region361: #{_forward_core.1} parent=1 // pred_fallthru
      _
    // Predicated region
    $region362: #{_forward_core.1} parent=1 // pred_check
      _
    $region363: #{_forward_core.1} parent=1 // pred_check_branch
      %649 = sbr.rel (0) target = $region365
    $region364: #{_forward_core.1} parent=1 // pred_region
      %650 = dma.done [#allocation30], 16
    $region365: #{_forward_core.1} parent=1 // pred_fallthru
      _
    // Predicated region
    $region366: #{_forward_core.1} parent=1 // pred_check
      _
    $region367: #{_forward_core.1} parent=1 // pred_check_branch
      %652 = sbr.rel (0) target = $region369
    $region368: #{_forward_core.1} parent=1 // pred_region
      %653 = dma.done [#allocation30], 16
    $region369: #{_forward_core.1} parent=1 // pred_fallthru
      _
    // Predicated region
    $region370: #{_forward_core.1} parent=1 // pred_check
      _
    $region371: #{_forward_core.1} parent=1 // pred_check_branch
      %655 = sbr.rel (0) target = $region373
    $region372: #{_forward_core.1} parent=1 // pred_region
      %656 = dma.done [#allocation33], 16
    $region373: #{_forward_core.1} parent=1 // pred_fallthru
      _
    // Predicated region
    $region374: #{_forward_core.1} parent=1 // pred_check
      _
    $region375: #{_forward_core.1} parent=1 // pred_check_branch
      %658 = sbr.rel (0) target = $region377
    $region376: #{_forward_core.1} parent=1 // pred_region
      %659 = dma.done [#allocation33], 16
    $region377: #{_forward_core.1} parent=1 // pred_fallthru
      _
    // Predicated region
    $region378: #{_forward_core.1} parent=1 // pred_check
      _
    $region379: #{_forward_core.1} parent=1 // pred_check_branch
      %661 = sbr.rel (0) target = $region381
    $region380: #{_forward_core.1} parent=1 // pred_region
      %662 = dma.done [#allocation36], 16
    $region381: #{_forward_core.1} parent=1 // pred_fallthru
      _
    // Predicated region
    $region382: #{_forward_core.1} parent=1 // pred_check
      _
    $region383: #{_forward_core.1} parent=1 // pred_check_branch
      %664 = sbr.rel (0) target = $region385
    $region384: #{_forward_core.1} parent=1 // pred_region
      %665 = dma.done [#allocation36], 16
    $region385: #{_forward_core.1} parent=1 // pred_fallthru
      _
    // Predicated region
    $region386: #{_forward_core.1} parent=1 // pred_check
      _
    $region387: #{_forward_core.1} parent=1 // pred_check_branch
      %667 = sbr.rel (0) target = $region389
    $region388: #{_forward_core.1} parent=1 // pred_region
      %668 = dma.done [#allocation39], 16
    $region389: #{_forward_core.1} parent=1 // pred_fallthru
      _
    // Predicated region
    $region390: #{_forward_core.1} parent=1 // pred_check
      _
    $region391: #{_forward_core.1} parent=1 // pred_check_branch
      %670 = sbr.rel (0) target = $region393
    $region392: #{_forward_core.1} parent=1 // pred_region
      %671 = dma.done [#allocation39], 16
    $region393: #{_forward_core.1} parent=1 // pred_fallthru
      _
    // Predicated region
    $region394: #{_forward_core.1} parent=1 // pred_check
      _
    $region395: #{_forward_core.1} parent=1 // pred_check_branch
      %673 = sbr.rel (0) target = $region397
    $region396: #{_forward_core.1} parent=1 // pred_region
      %674 = dma.done [#allocation42], 16
    $region397: #{_forward_core.1} parent=1 // pred_fallthru
      _
    // Predicated region
    $region398: #{_forward_core.1} parent=1 // pred_check
      _
    $region399: #{_forward_core.1} parent=1 // pred_check_branch
      %676 = sbr.rel (0) target = $region401
    $region400: #{_forward_core.1} parent=1 // pred_region
      %677 = dma.done [#allocation42], 16
    $region401: #{_forward_core.1} parent=1 // pred_fallthru
      _
    // Predicated region
    $region402: #{_forward_core.1} parent=1 // pred_check
      _
    $region403: #{_forward_core.1} parent=1 // pred_check_branch
      %679 = sbr.rel (0) target = $region405
    $region404: #{_forward_core.1} parent=1 // pred_region
      %680 = dma.done [#allocation45], 16
    $region405: #{_forward_core.1} parent=1 // pred_fallthru
      _
    // Predicated region
    $region406: #{_forward_core.1} parent=1 // pred_check
      _
    $region407: #{_forward_core.1} parent=1 // pred_check_branch
      %682 = sbr.rel (0) target = $region409
    $region408: #{_forward_core.1} parent=1 // pred_region
      %683 = dma.done [#allocation45], 16
    $region409: #{_forward_core.1} parent=1 // pred_fallthru
      _
    // Predicated region
    $region410: #{_forward_core.1} parent=1 // pred_check
      _
    $region411: #{_forward_core.1} parent=1 // pred_check_branch
      %685 = sbr.rel (0) target = $region413
    $region412: #{_forward_core.1} parent=1 // pred_region
      %686 = dma.done [#allocation48], 16
    $region413: #{_forward_core.1} parent=1 // pred_fallthru
      _
    // Predicated region
    $region414: #{_forward_core.1} parent=1 // pred_check
      _
    $region415: #{_forward_core.1} parent=1 // pred_check_branch
      %688 = sbr.rel (0) target = $region417
    $region416: #{_forward_core.1} parent=1 // pred_region
      %689 = dma.done [#allocation48], 16
    $region417: #{_forward_core.1} parent=1 // pred_fallthru
      _
    // Predicated region
    $region418: #{_forward_core.1} parent=1 // pred_check
      _
    $region419: #{_forward_core.1} parent=1 // pred_check_branch
      %691 = sbr.rel (0) target = $region421
    $region420: #{_forward_core.1} parent=1 // pred_region
      %692 = dma.done [#allocation51], 16
    $region421: #{_forward_core.1} parent=1 // pred_fallthru
      _
    // Predicated region
    $region422: #{_forward_core.1} parent=1 // pred_check
      _
    $region423: #{_forward_core.1} parent=1 // pred_check_branch
      %694 = sbr.rel (0) target = $region425
    $region424: #{_forward_core.1} parent=1 // pred_region
      %695 = dma.done [#allocation51], 16
    $region425: #{_forward_core.1} parent=1 // pred_fallthru
      _
    // Predicated region
    $region426: #{_forward_core.1} parent=1 // pred_check
      _
    $region427: #{_forward_core.1} parent=1 // pred_check_branch
      %697 = sbr.rel (0) target = $region429
    $region428: #{_forward_core.1} parent=1 // pred_region
      %698 = dma.done [#allocation54], 16
    $region429: #{_forward_core.1} parent=1 // pred_fallthru
      _
    // Predicated region
    $region430: #{_forward_core.1} parent=1 // pred_check
      _
    $region431: #{_forward_core.1} parent=1 // pred_check_branch
      %700 = sbr.rel (0) target = $region433
    $region432: #{_forward_core.1} parent=1 // pred_region
      %701 = dma.done [#allocation54], 16
    $region433: #{_forward_core.1} parent=1 // pred_fallthru
      _
    %v703 = vld [vmem:[%s11] sm:$0x1]
    %v704 = vld [vmem:[%s13] sm:$0x1]
    %v705 = vld [vmem:[%s15] sm:$0x1]
    %v706 = vld [vmem:[%s17] sm:$0x1]
    %v707 = vld [vmem:[%s19] sm:$0x1]
    %v708 = vld [vmem:[%s21] sm:$0xff]
    %v709 = vld [vmem:[%s21 + $0x8] sm:$0xff]
    %v710 = vld [vmem:[%s21 + $0x10] sm:$0xff]
    %v711 = vld [vmem:[%s21 + $0x18] sm:$0xff]
    %v712 = vld [vmem:[%s23] sm:$0x1]
    %v713 = vld [vmem:[%s25] sm:$0xff]
    %v714 = vld [vmem:[%s25 + $0x8] sm:$0xff]
    %v715 = vld [vmem:[%s25 + $0x10] sm:$0xff]
    %v716 = vld [vmem:[%s25 + $0x18] sm:$0xff]
    %v717 = vld [vmem:[%s27] sm:$0x1]
    %v718 = vld [vmem:[%s29] sm:$0xff]
    %v719 = vld [vmem:[%s29 + $0x8] sm:$0xff]
    %v720 = vld [vmem:[%s29 + $0x10] sm:$0xff]
    %v721 = vld [vmem:[%s29 + $0x18] sm:$0xff]
    %v722 = vld [vmem:[%s31] sm:$0x1]
    %v723 = vld [vmem:[%s33] sm:$0xff]
    %v724 = vld [vmem:[%s33 + $0x8] sm:$0xff]
    %v725 = vld [vmem:[%s33 + $0x10] sm:$0xff]
    %v726 = vld [vmem:[%s33 + $0x18] sm:$0xff]
    %v727 = vld [vmem:[%s33 + $0x20] sm:$0xff]
    %v728 = vld [vmem:[%s33 + $0x28] sm:$0xff]
    %v729 = vld [vmem:[%s33 + $0x30] sm:$0xff]
    %v730 = vld [vmem:[%s33 + $0x38] sm:$0xff]
    %v731 = vld [vmem:[%s35] sm:$0x1]
    %v732 = vld [vmem:[%s37] sm:$0x1]
    %v733 = vld [vmem:[%s39] sm:$0x1]
    %v734 = vld [vmem:[%s41] sm:$0xff]
    %v735 = vld [vmem:[%s41 + $0x8] sm:$0xff]
    %v736 = vld [vmem:[%s41 + $0x10] sm:$0xff]
    %v737 = vld [vmem:[%s41 + $0x18] sm:$0xff]
    %v738 = vld [vmem:[#allocation2] sm:$0x1]
    %v739 = vld [vmem:[%s45] sm:$0xff]
    %v740 = vld [vmem:[%s45 + $0x8] sm:$0xff]
    %v741 = vld [vmem:[%s45 + $0x10] sm:$0xff]
    %v742 = vld [vmem:[%s45 + $0x18] sm:$0xff]
    %v743 = vld [vmem:[#allocation5] sm:$0x1]
    %v744 = vld [vmem:[#allocation7] sm:$0x1]
    %v745 = vld [vmem:[#allocation8] sm:$0x1]
    %v746 = vld [vmem:[%s53] sm:$0xff]
    %v747 = vld [vmem:[%s53 + $0x8] sm:$0xff]
    %v748 = vld [vmem:[%s53 + $0x10] sm:$0xff]
    %v749 = vld [vmem:[%s53 + $0x18] sm:$0xff]
    %v750 = vld [vmem:[#allocation10] sm:$0x1]
    %v751 = vld [vmem:[%s57] sm:$0xff]
    %v752 = vld [vmem:[%s57 + $0x8] sm:$0xff]
    %v753 = vld [vmem:[%s57 + $0x10] sm:$0xff]
    %v754 = vld [vmem:[%s57 + $0x18] sm:$0xff]
    %v755 = vld [vmem:[#allocation11] sm:$0x1]
    %v756 = vld [vmem:[%s61] sm:$0xff]
    %v757 = vld [vmem:[%s61 + $0x8] sm:$0xff]
    %v758 = vld [vmem:[%s61 + $0x10] sm:$0xff]
    %v759 = vld [vmem:[%s61 + $0x18] sm:$0xff]
    %v760 = vld [vmem:[#allocation13] sm:$0x1]
    %v761 = vld [vmem:[%s65] sm:$0xff]
    %v762 = vld [vmem:[%s65 + $0x8] sm:$0xff]
    %v763 = vld [vmem:[%s65 + $0x10] sm:$0xff]
    %v764 = vld [vmem:[%s65 + $0x18] sm:$0xff]
    %v765 = vld [vmem:[%s65 + $0x20] sm:$0xff]
    %v766 = vld [vmem:[%s65 + $0x28] sm:$0xff]
    %v767 = vld [vmem:[%s65 + $0x30] sm:$0xff]
    %v768 = vld [vmem:[%s65 + $0x38] sm:$0xff]
    %v769 = vld [vmem:[#allocation14] sm:$0x1]
    %v770 = vld [vmem:[#allocation16] sm:$0x1]
    %v771 = vld [vmem:[#allocation17] sm:$0x1]
    %v772 = vld [vmem:[%s73] sm:$0xf]
    %v773 = vld [vmem:[#allocation19] sm:$0x1]
    %v774 = vld [vmem:[#allocation20] sm:$0x1]
    %v775 = vld [vmem:[#allocation22] sm:$0x1]
    %v776 = vld [vmem:[%s81] sm:$0xff]
    %v777 = vld [vmem:[%s81 + $0x8] sm:$0xff]
    %v778 = vld [vmem:[#allocation23] sm:$0x1]
    %v779 = vld [vmem:[#allocation25] sm:$0x1]
    %v780 = vld [vmem:[#allocation26] sm:$0x1]
    %v781 = vld [vmem:[#allocation28] sm:$0x1]
    %v782 = vld [vmem:[#allocation29] sm:$0x1]
    %v783 = vld [vmem:[%s93] sm:$0xff]
    %v784 = vld [vmem:[%s93 + $0x8] sm:$0xff]
    %v785 = vld [vmem:[%s93 + $0x10] sm:$0xff]
    %v786 = vld [vmem:[%s93 + $0x18] sm:$0xff]
    %v787 = vld [vmem:[#allocation31] sm:$0x1]
    %v788 = vld [vmem:[%s97] sm:$0xff]
    %v789 = vld [vmem:[%s97 + $0x8] sm:$0xff]
    %v790 = vld [vmem:[%s97 + $0x10] sm:$0xff]
    %v791 = vld [vmem:[%s97 + $0x18] sm:$0xff]
    %v792 = vld [vmem:[#allocation32] sm:$0x1]
    %v793 = vld [vmem:[%s101] sm:$0xff]
    %v794 = vld [vmem:[%s101 + $0x8] sm:$0xff]
    %v795 = vld [vmem:[%s101 + $0x10] sm:$0xff]
    %v796 = vld [vmem:[%s101 + $0x18] sm:$0xff]
    %v797 = vld [vmem:[#allocation34] sm:$0x1]
    %v798 = vld [vmem:[%s105] sm:$0xff]
    %v799 = vld [vmem:[%s105 + $0x8] sm:$0xff]
    %v800 = vld [vmem:[%s105 + $0x10] sm:$0xff]
    %v801 = vld [vmem:[%s105 + $0x18] sm:$0xff]
    %v802 = vld [vmem:[%s105 + $0x20] sm:$0xff]
    %v803 = vld [vmem:[%s105 + $0x28] sm:$0xff]
    %v804 = vld [vmem:[%s105 + $0x30] sm:$0xff]
    %v805 = vld [vmem:[%s105 + $0x38] sm:$0xff]
    %v806 = vld [vmem:[#allocation35] sm:$0x1]
    %v807 = vld [vmem:[#allocation37] sm:$0x1]
    %v808 = vld [vmem:[#allocation38] sm:$0x1]
    %v809 = vld [vmem:[#allocation40] sm:$0x1]
    %v810 = vld [vmem:[#allocation41] sm:$0x1]
    %v811 = vld [vmem:[%s117] sm:$0xff]
    %v812 = vld [vmem:[%s117 + $0x8] sm:$0xff]
    %v813 = vld [vmem:[%s117 + $0x10] sm:$0xff]
    %v814 = vld [vmem:[%s117 + $0x18] sm:$0xff]
    %v815 = vld [vmem:[#allocation43] sm:$0x1]
    %v816 = vld [vmem:[%s121] sm:$0xff]
    %v817 = vld [vmem:[%s121 + $0x8] sm:$0xff]
    %v818 = vld [vmem:[%s121 + $0x10] sm:$0xff]
    %v819 = vld [vmem:[%s121 + $0x18] sm:$0xff]
    %v820 = vld [vmem:[%s7] sm:$0x3]
    %v821 = vld [vmem:[%s9] sm:$0x3]
    %v822 = vld [vmem:[%s1] sm:$0xff]
    %v823 = vld [vmem:[%s1 + $0x8] sm:$0xff]
    %vm824 = vcmask 261120
    %v825 = vsel %vm824, %v822, 0.0
    %826 = vadd.xlane.f32.xlu0 %v825
    %v827 = vpop.xlane.xlu0 %826
    %v828 = vsel %vm824, %v823, 0.0
    %829 = vadd.xlane.f32.xlu0 %v828
    %v830 = vpop.xlane.xlu0 %829
    %v831 = vrcp.pop 32.0
    %v832 = vmul.f32 %v827, %v831
    %v833 = vmul.f32 %v830, %v831
    %v834 = vsub.f32 %v822, %v832
    %v835 = vsub.f32 %v823, %v833
    %v836 = vmul.f32 %v834, %v834
    %v837 = vmul.f32 %v835, %v835
    %v838 = vsel %vm824, %v836, 0.0
    %839 = vadd.xlane.f32.xlu0 %v838
    %v840 = vpop.xlane.xlu0 %839
    %v841 = vsel %vm824, %v837, 0.0
    %842 = vadd.xlane.f32.xlu0 %v841
    %v843 = vpop.xlane.xlu0 %842
    %v844 = vmul.f32 %v840, %v831
    %v845 = vmul.f32 %v843, %v831
    %v846 = vadd.f32 %v844, 1e-12
    %v847 = vadd.f32 %v845, 1e-12
    %v848 = vrsqrt.pop %v846
    %v849 = vrsqrt.pop %v847
    %v850 = vmul.f32 %v834, %v848
    %v851 = vmul.f32 %v835, %v849
    %v853 = vlaneseq
    %v854 = vshrl.u32 %v853, 7
    %v855 = vsub.s32 0, %v854
    %v856 = vrot.slane %v704, %v855
    %v858 = vmul.f32 %v850, %v856
    %v859 = vmul.f32 %v851, %v856
    %v861 = vlaneseq
    %v862 = vshrl.u32 %v861, 7
    %v863 = vsub.s32 0, %v862
    %v864 = vrot.slane %v703, %v863
    %v866 = vadd.f32 %v858, %v864
    %v867 = vadd.f32 %v859, %v864
    %v868 = vld [vmem:[%s3] sm:$0xff]
    %v869 = vld [vmem:[%s3 + $0x8] sm:$0xff]
    %v870 = vpack.c.bf16 %v869, %v868
    %v871 = vpack.c.bf16 %v777, %v776
    %v873 = vlaneseq
    %v874 = vshrl.u32 %v873, 7
    %v875 = vsub.s32 0, %v874
    %v876 = vrot.slane %v775, %v875
    %vm878 = vcmask 130048
    %v880 = vsel %vm878, %v870, 0
    %882 = vmatprep.subr.bf16.mxu0 0
    %883 = vmatpush1.bf16.msra.mxu0 %v871
    %884 = vmatprep.subr.bf16.mxu0 0
    %885 = vmatpush1.bf16.msra.mxu0 0
    %886 = vmatprep.subr.bf16.mxu0 0
    %887 = vmatpush1.bf16.msra.mxu0 0
    %888 = vmatprep.subr.bf16.mxu0 0
    %889 = vmatpush1.bf16.msra.mxu0 0
    %890 = vmatprep.subr.bf16.mxu0 0
    %891 = vmatpush1.bf16.msra.mxu0 0
    %892 = vmatprep.subr.bf16.mxu0 0
    %893 = vmatpush1.bf16.msra.mxu0 0
    %894 = vmatprep.subr.bf16.mxu0 0
    %895 = vmatpush1.bf16.msra.mxu0 0
    %896 = vmatprep.subr.bf16.mxu0 0
    %897 = vmatpush1.bf16.msra.mxu0 0
    %898 = vmatprep.subr.bf16.mxu0 0
    %899 = vmatpush1.bf16.msra.mxu0 0
    %900 = vmatprep.subr.bf16.mxu0 0
    %901 = vmatpush1.bf16.msra.mxu0 0
    %902 = vmatprep.subr.bf16.mxu0 0
    %903 = vmatpush1.bf16.msra.mxu0 0
    %904 = vmatprep.subr.bf16.mxu0 0
    %905 = vmatpush1.bf16.msra.mxu0 0
    %906 = vmatprep.subr.bf16.mxu0 0
    %907 = vmatpush1.bf16.msra.mxu0 0
    %908 = vmatprep.subr.bf16.mxu0 0
    %909 = vmatpush1.bf16.msra.mxu0 0
    %910 = vmatprep.subr.bf16.mxu0 0
    %911 = vmatpush1.bf16.msra.mxu0 0
    %912 = vmatprep.subr.bf16.mxu0 0
    %913 = vmatpush1.bf16.msra.mxu0 0
    %914 = vmatprep.mubr.bf16.mxu0 0
    %915 = vmatmul.mubr.bf16.gmra.mrb[0].mxu0 %v880
    %v916 = vpop.f32.mrb[0].mxu0
    %v917 = vadd.f32 %v876, %v916
    %v918 = vpop.f32.mrb[0].mxu0
    %v919 = vpop.f32.mrb[0].mxu0
    %v920 = vadd.f32 %v876, %v919
    %v921 = vpop.f32.mrb[0].mxu0
    %922 = vdwg.mxu0
    %v923 = vsel %vm824, %v917, 0.0
    %924 = vadd.xlane.f32.xlu0 %v923
    %v925 = vpop.xlane.xlu0 %924
    %v926 = vsel %vm824, %v920, 0.0
    %927 = vadd.xlane.f32.xlu0 %v926
    %v928 = vpop.xlane.xlu0 %927
    %v929 = vmul.f32 %v925, %v831
    %v930 = vmul.f32 %v928, %v831
    %v931 = vsub.f32 %v917, %v929
    %v932 = vsub.f32 %v920, %v930
    %v933 = vmul.f32 %v931, %v931
    %v934 = vmul.f32 %v932, %v932
    %v935 = vsel %vm824, %v933, 0.0
    %936 = vadd.xlane.f32.xlu0 %v935
    %v937 = vpop.xlane.xlu0 %936
    %v938 = vsel %vm824, %v934, 0.0
    %939 = vadd.xlane.f32.xlu0 %v938
    %v940 = vpop.xlane.xlu0 %939
    %v941 = vmul.f32 %v937, %v831
    %v942 = vmul.f32 %v940, %v831
    %v943 = vadd.f32 %v941, 1e-12
    %v944 = vadd.f32 %v942, 1e-12
    %v945 = vrsqrt.pop %v943
    %v946 = vrsqrt.pop %v944
    %v947 = vmul.f32 %v931, %v945
    %v948 = vmul.f32 %v932, %v946
    %v950 = vlaneseq
    %v951 = vshrl.u32 %v950, 7
    %v952 = vsub.s32 0, %v951
    %v953 = vrot.slane %v779, %v952
    %v955 = vmul.f32 %v947, %v953
    %v956 = vmul.f32 %v948, %v953
    %v958 = vlaneseq
    %v959 = vshrl.u32 %v958, 7
    %v960 = vsub.s32 0, %v959
    %v961 = vrot.slane %v778, %v960
    %v963 = vadd.f32 %v955, %v961
    %v964 = vadd.f32 %v956, %v961
    %v965 = vld [vmem:[%s5] sm:$0xff]
    %v966 = vld [vmem:[%s5 + $0x8] sm:$0xff]
    %v967 = vpack.c.bf16 %v966, %v965
    %v968 = vpack.c.bf16 %v772, %v772
    %v970 = vlaneseq
    %v971 = vshrl.u32 %v970, 7
    %v972 = vsub.s32 0, %v971
    %v973 = vrot.slane %v771, %v972
    %vm975 = vcmask 31744
    %v977 = vsel %vm975, %v967, 0
    %vm979 = vcmask 1041408
    %v981 = vsel %vm979, %v968, 0
    %983 = vmatprep.subr.bf16.mxu0 0
    %984 = vmatpush1.bf16.msra.mxu0 %v981
    %985 = vmatprep.subr.bf16.mxu0 0
    %986 = vmatpush1.bf16.msra.mxu0 0
    %987 = vmatprep.subr.bf16.mxu0 0
    %988 = vmatpush1.bf16.msra.mxu0 0
    %989 = vmatprep.subr.bf16.mxu0 0
    %990 = vmatpush1.bf16.msra.mxu0 0
    %991 = vmatprep.subr.bf16.mxu0 0
    %992 = vmatpush1.bf16.msra.mxu0 0
    %993 = vmatprep.subr.bf16.mxu0 0
    %994 = vmatpush1.bf16.msra.mxu0 0
    %995 = vmatprep.subr.bf16.mxu0 0
    %996 = vmatpush1.bf16.msra.mxu0 0
    %997 = vmatprep.subr.bf16.mxu0 0
    %998 = vmatpush1.bf16.msra.mxu0 0
    %999 = vmatprep.subr.bf16.mxu0 0
    %1000 = vmatpush1.bf16.msra.mxu0 0
    %1001 = vmatprep.subr.bf16.mxu0 0
    %1002 = vmatpush1.bf16.msra.mxu0 0
    %1003 = vmatprep.subr.bf16.mxu0 0
    %1004 = vmatpush1.bf16.msra.mxu0 0
    %1005 = vmatprep.subr.bf16.mxu0 0
    %1006 = vmatpush1.bf16.msra.mxu0 0
    %1007 = vmatprep.subr.bf16.mxu0 0
    %1008 = vmatpush1.bf16.msra.mxu0 0
    %1009 = vmatprep.subr.bf16.mxu0 0
    %1010 = vmatpush1.bf16.msra.mxu0 0
    %1011 = vmatprep.subr.bf16.mxu0 0
    %1012 = vmatpush1.bf16.msra.mxu0 0
    %1013 = vmatprep.subr.bf16.mxu0 0
    %1014 = vmatpush1.bf16.msra.mxu0 0
    %1015 = vmatprep.mubr.bf16.mxu0 0
    %1016 = vmatmul.mubr.bf16.gmra.mrb[0].mxu0 %v977
    %v1017 = vpop.f32.mrb[0].mxu0
    %v1018 = vadd.f32 %v973, %v1017
    %v1019 = vpop.f32.mrb[0].mxu0
    %v1020 = vpop.f32.mrb[0].mxu0
    %v1021 = vadd.f32 %v973, %v1020
    %v1022 = vpop.f32.mrb[0].mxu0
    %1023 = vdwg.mxu0
    %v1024 = vsel %vm824, %v1018, 0.0
    %1025 = vadd.xlane.f32.xlu0 %v1024
    %v1026 = vpop.xlane.xlu0 %1025
    %v1027 = vsel %vm824, %v1021, 0.0
    %1028 = vadd.xlane.f32.xlu0 %v1027
    %v1029 = vpop.xlane.xlu0 %1028
    %v1030 = vmul.f32 %v1026, %v831
    %v1031 = vmul.f32 %v1029, %v831
    %v1032 = vsub.f32 %v1018, %v1030
    %v1033 = vsub.f32 %v1021, %v1031
    %v1034 = vmul.f32 %v1032, %v1032
    %v1035 = vmul.f32 %v1033, %v1033
    %v1036 = vsel %vm824, %v1034, 0.0
    %1037 = vadd.xlane.f32.xlu0 %v1036
    %v1038 = vpop.xlane.xlu0 %1037
    %v1039 = vsel %vm824, %v1035, 0.0
    %1040 = vadd.xlane.f32.xlu0 %v1039
    %v1041 = vpop.xlane.xlu0 %1040
    %v1042 = vmul.f32 %v1038, %v831
    %v1043 = vmul.f32 %v1041, %v831
    %v1044 = vadd.f32 %v1042, 1e-12
    %v1045 = vadd.f32 %v1043, 1e-12
    %v1046 = vrsqrt.pop %v1044
    %v1047 = vrsqrt.pop %v1045
    %v1048 = vmul.f32 %v1032, %v1046
    %v1049 = vmul.f32 %v1033, %v1047
    %v1051 = vlaneseq
    %v1052 = vshrl.u32 %v1051, 7
    %v1053 = vsub.s32 0, %v1052
    %v1054 = vrot.slane %v774, %v1053
    %v1056 = vmul.f32 %v1048, %v1054
    %v1057 = vmul.f32 %v1049, %v1054
    %v1059 = vlaneseq
    %v1060 = vshrl.u32 %v1059, 7
    %v1061 = vsub.s32 0, %v1060
    %v1062 = vrot.slane %v773, %v1061
    %v1064 = vadd.f32 %v1056, %v1062
    %v1065 = vadd.f32 %v1057, %v1062
    %v1066 = vadd.f32 %v963, %v1064
    %v1067 = vadd.f32 %v964, %v1065
    %v1068 = vmul.f32 %v1066, 0.5
    %v1069 = vmul.f32 %v1067, 0.5
    %v1070 = vpack.c.bf16 %v867, %v866
    %v1071 = vpack.c.bf16 %v714, %v713
    %v1072 = vpack.c.bf16 %v716, %v715
    %v1074 = vlaneseq
    %v1075 = vshrl.u32 %v1074, 7
    %v1076 = vsub.s32 0, %v1075
    %v1077 = vrot.slane %v712, %v1076
    %v1080 = vsel %vm824, %v1070, 0
    %1082 = vmatprep.subr.bf16.mxu0 0
    %1083 = vmatpush1.bf16.msra.mxu0 %v1071
    %1084 = vmatprep.subr.bf16.mxu0 0
    %1085 = vmatpush1.bf16.msra.mxu0 %v1072
    %1086 = vmatprep.subr.bf16.mxu0 0
    %1087 = vmatpush1.bf16.msra.mxu0 0
    %1088 = vmatprep.subr.bf16.mxu0 0
    %1089 = vmatpush1.bf16.msra.mxu0 0
    %1090 = vmatprep.subr.bf16.mxu0 0
    %1091 = vmatpush1.bf16.msra.mxu0 0
    %1092 = vmatprep.subr.bf16.mxu0 0
    %1093 = vmatpush1.bf16.msra.mxu0 0
    %1094 = vmatprep.subr.bf16.mxu0 0
    %1095 = vmatpush1.bf16.msra.mxu0 0
    %1096 = vmatprep.subr.bf16.mxu0 0
    %1097 = vmatpush1.bf16.msra.mxu0 0
    %1098 = vmatprep.subr.bf16.mxu0 0
    %1099 = vmatpush1.bf16.msra.mxu0 0
    %1100 = vmatprep.subr.bf16.mxu0 0
    %1101 = vmatpush1.bf16.msra.mxu0 0
    %1102 = vmatprep.subr.bf16.mxu0 0
    %1103 = vmatpush1.bf16.msra.mxu0 0
    %1104 = vmatprep.subr.bf16.mxu0 0
    %1105 = vmatpush1.bf16.msra.mxu0 0
    %1106 = vmatprep.subr.bf16.mxu0 0
    %1107 = vmatpush1.bf16.msra.mxu0 0
    %1108 = vmatprep.subr.bf16.mxu0 0
    %1109 = vmatpush1.bf16.msra.mxu0 0
    %1110 = vmatprep.subr.bf16.mxu0 0
    %1111 = vmatpush1.bf16.msra.mxu0 0
    %1112 = vmatprep.subr.bf16.mxu0 0
    %1113 = vmatpush1.bf16.msra.mxu0 0
    %1114 = vmatprep.mubr.bf16.mxu0 0
    %1115 = vmatmul.mubr.bf16.gmra.mrb[0].mxu0 %v1080
    %v1116 = vpop.f32.mrb[0].mxu0
    %v1117 = vadd.f32 %v1077, %v1116
    %v1118 = vpop.f32.mrb[0].mxu0
    %v1119 = vpop.f32.mrb[0].mxu0
    %v1120 = vadd.f32 %v1077, %v1119
    %v1121 = vpop.f32.mrb[0].mxu0
    %1122 = vdwg.mxu0
    %v1123 = vpack.c.bf16 %v1117, %v1117
    %1125 = vrot.lane.b32.xlu0 %v1123, 96
    %v1126 = vpop.permute.xlu0 %1125
    %v1128 = vsel %vm878, %v1123, 0
    %v1131 = vsel %vm878, %v1126, 0
    %1133 = vmatprep.subr.bf16.mxu0 0
    %1134 = vmatpush1.bf16.xpose.msra.mxu0 %v1131
    %1135 = vmatprep.subr.bf16.mxu0 0
    %1136 = vmatpush1.bf16.xpose.msra.mxu0 0
    %1137 = vmatprep.subr.bf16.mxu0 0
    %1138 = vmatpush1.bf16.xpose.msra.mxu0 0
    %1139 = vmatprep.subr.bf16.mxu0 0
    %1140 = vmatpush1.bf16.xpose.msra.mxu0 0
    %1141 = vmatprep.subr.bf16.mxu0 0
    %1142 = vmatpush1.bf16.xpose.msra.mxu0 0
    %1143 = vmatprep.subr.bf16.mxu0 0
    %1144 = vmatpush1.bf16.xpose.msra.mxu0 0
    %1145 = vmatprep.subr.bf16.mxu0 0
    %1146 = vmatpush1.bf16.xpose.msra.mxu0 0
    %1147 = vmatprep.subr.bf16.mxu0 0
    %1148 = vmatpush1.bf16.xpose.msra.mxu0 0
    %1149 = vmatprep.subr.bf16.mxu0 0
    %1150 = vmatpush1.bf16.xpose.msra.mxu0 0
    %1151 = vmatprep.subr.bf16.mxu0 0
    %1152 = vmatpush1.bf16.xpose.msra.mxu0 0
    %1153 = vmatprep.subr.bf16.mxu0 0
    %1154 = vmatpush1.bf16.xpose.msra.mxu0 0
    %1155 = vmatprep.subr.bf16.mxu0 0
    %1156 = vmatpush1.bf16.xpose.msra.mxu0 0
    %1157 = vmatprep.subr.bf16.mxu0 0
    %1158 = vmatpush1.bf16.xpose.msra.mxu0 0
    %1159 = vmatprep.subr.bf16.mxu0 0
    %1160 = vmatpush1.bf16.xpose.msra.mxu0 0
    %1161 = vmatprep.subr.bf16.mxu0 0
    %1162 = vmatpush1.bf16.xpose.msra.mxu0 0
    %1163 = vmatprep.subr.bf16.mxu0 0
    %1164 = vmatpush1.bf16.xpose.msra.mxu0 0
    %1165 = vmatprep.mubr.bf16.mxu0 0
    %1166 = vmatmul.mubr.bf16.gmra.mrb[0].mxu0 %v1128
    %v1167 = vpop.f32.mrb[0].mxu0
    %v1168 = vadd.f32 0.0, %v1167
    %v1169 = vpop.f32.mrb[0].mxu0
    %v1170 = vpop.f32.mrb[0].mxu0
    %v1171 = vpop.f32.mrb[0].mxu0
    %1172 = vdwg.mxu0
    %v1173 = vmul.f32 %v1168, 0.25
    %v1174 = vlaneseq
    %v1175 = vshrl.u32 %v1174, 7
    %v1176 = vsub.s32 0, %v1175
    %v1177 = vrot.slane %v820, %v1176
    %v1178 = vadd.f32 %v1173, %v1177
    %vm1179 = vcmask 64512
    %v1180 = vsel %vm1179, %v1178, -inf
    %1181 = vmax.xlane.f32.xlu0 %v1180
    %v1182 = vpop.xlane.xlu0 %1181
    %v1183 = vsub.f32 %v1178, %v1182
    %v1184 = vmul.f32 %v1183, 1.442695
    %v1185 = vpow.pop %v1184
    %v1186 = vsel %vm1179, %v1185, 0.0
    %1187 = vadd.xlane.f32.xlu0 %v1186
    %v1188 = vpop.xlane.xlu0 %1187
    %v1189 = vrcp.pop %v1188
    %v1190 = vmul.f32 %v1185, %v1189
    %v1191 = vpack.c.bf16 %v1190, %v1190
    %1192 = vrot.lane.b32.xlu0 %v1123, 64
    %v1193 = vpop.permute.xlu0 %1192
    %v1195 = vsel %vm1179, %v1191, 0
    %vm1197 = vcmask 1043456
    %v1199 = vsel %vm1197, %v1193, 0
    %1201 = vmatprep.subr.bf16.mxu0 0
    %1202 = vmatpush1.bf16.msra.mxu0 %v1199
    %1203 = vmatprep.subr.bf16.mxu0 0
    %1204 = vmatpush1.bf16.msra.mxu0 0
    %1205 = vmatprep.subr.bf16.mxu0 0
    %1206 = vmatpush1.bf16.msra.mxu0 0
    %1207 = vmatprep.subr.bf16.mxu0 0
    %1208 = vmatpush1.bf16.msra.mxu0 0
    %1209 = vmatprep.subr.bf16.mxu0 0
    %1210 = vmatpush1.bf16.msra.mxu0 0
    %1211 = vmatprep.subr.bf16.mxu0 0
    %1212 = vmatpush1.bf16.msra.mxu0 0
    %1213 = vmatprep.subr.bf16.mxu0 0
    %1214 = vmatpush1.bf16.msra.mxu0 0
    %1215 = vmatprep.subr.bf16.mxu0 0
    %1216 = vmatpush1.bf16.msra.mxu0 0
    %1217 = vmatprep.subr.bf16.mxu0 0
    %1218 = vmatpush1.bf16.msra.mxu0 0
    %1219 = vmatprep.subr.bf16.mxu0 0
    %1220 = vmatpush1.bf16.msra.mxu0 0
    %1221 = vmatprep.subr.bf16.mxu0 0
    %1222 = vmatpush1.bf16.msra.mxu0 0
    %1223 = vmatprep.subr.bf16.mxu0 0
    %1224 = vmatpush1.bf16.msra.mxu0 0
    %1225 = vmatprep.subr.bf16.mxu0 0
    %1226 = vmatpush1.bf16.msra.mxu0 0
    %1227 = vmatprep.subr.bf16.mxu0 0
    %1228 = vmatpush1.bf16.msra.mxu0 0
    %1229 = vmatprep.subr.bf16.mxu0 0
    %1230 = vmatpush1.bf16.msra.mxu0 0
    %1231 = vmatprep.subr.bf16.mxu0 0
    %1232 = vmatpush1.bf16.msra.mxu0 0
    %1233 = vmatprep.mubr.bf16.mxu0 0
    %1234 = vmatmul.mubr.bf16.gmra.mrb[0].mxu0 %v1195
    %v1235 = vpop.f32.mrb[0].mxu0
    %v1236 = vadd.f32 0.0, %v1235
    %v1237 = vpop.f32.mrb[0].mxu0
    %v1238 = vpop.f32.mrb[0].mxu0
    %v1239 = vpop.f32.mrb[0].mxu0
    %1240 = vdwg.mxu0
    %1241 = vrot.lane.b32.xlu0 %v1123, 112
    %v1242 = vpop.permute.xlu0 %1241
    %1243 = vrot.lane.b32.xlu0 %v1123, 80
    %v1244 = vpop.permute.xlu0 %1243
    %v1246 = vsel %vm878, %v1242, 0
    %v1249 = vsel %vm878, %v1244, 0
    %1251 = vmatprep.subr.bf16.mxu0 0
    %1252 = vmatpush1.bf16.xpose.msra.mxu0 %v1249
    %1253 = vmatprep.subr.bf16.mxu0 0
    %1254 = vmatpush1.bf16.xpose.msra.mxu0 0
    %1255 = vmatprep.subr.bf16.mxu0 0
    %1256 = vmatpush1.bf16.xpose.msra.mxu0 0
    %1257 = vmatprep.subr.bf16.mxu0 0
    %1258 = vmatpush1.bf16.xpose.msra.mxu0 0
    %1259 = vmatprep.subr.bf16.mxu0 0
    %1260 = vmatpush1.bf16.xpose.msra.mxu0 0
    %1261 = vmatprep.subr.bf16.mxu0 0
    %1262 = vmatpush1.bf16.xpose.msra.mxu0 0
    %1263 = vmatprep.subr.bf16.mxu0 0
    %1264 = vmatpush1.bf16.xpose.msra.mxu0 0
    %1265 = vmatprep.subr.bf16.mxu0 0
    %1266 = vmatpush1.bf16.xpose.msra.mxu0 0
    %1267 = vmatprep.subr.bf16.mxu0 0
    %1268 = vmatpush1.bf16.xpose.msra.mxu0 0
    %1269 = vmatprep.subr.bf16.mxu0 0
    %1270 = vmatpush1.bf16.xpose.msra.mxu0 0
    %1271 = vmatprep.subr.bf16.mxu0 0
    %1272 = vmatpush1.bf16.xpose.msra.mxu0 0
    %1273 = vmatprep.subr.bf16.mxu0 0
    %1274 = vmatpush1.bf16.xpose.msra.mxu0 0
    %1275 = vmatprep.subr.bf16.mxu0 0
    %1276 = vmatpush1.bf16.xpose.msra.mxu0 0
    %1277 = vmatprep.subr.bf16.mxu0 0
    %1278 = vmatpush1.bf16.xpose.msra.mxu0 0
    %1279 = vmatprep.subr.bf16.mxu0 0
    %1280 = vmatpush1.bf16.xpose.msra.mxu0 0
    %1281 = vmatprep.subr.bf16.mxu0 0
    %1282 = vmatpush1.bf16.xpose.msra.mxu0 0
    %1283 = vmatprep.mubr.bf16.mxu0 0
    %1284 = vmatmul.mubr.bf16.gmra.mrb[0].mxu0 %v1246
    %v1285 = vpop.f32.mrb[0].mxu0
    %v1286 = vadd.f32 0.0, %v1285
    %v1287 = vpop.f32.mrb[0].mxu0
    %v1288 = vpop.f32.mrb[0].mxu0
    %v1289 = vpop.f32.mrb[0].mxu0
    %1290 = vdwg.mxu0
    %v1291 = vmul.f32 %v1286, 0.25
    %v1292 = vadd.f32 %v1291, %v1177
    %v1293 = vsel %vm1179, %v1292, -inf
    %1294 = vmax.xlane.f32.xlu0 %v1293
    %v1295 = vpop.xlane.xlu0 %1294
    %v1296 = vsub.f32 %v1292, %v1295
    %v1297 = vmul.f32 %v1296, 1.442695
    %v1298 = vpow.pop %v1297
    %v1299 = vsel %vm1179, %v1298, 0.0
    %1300 = vadd.xlane.f32.xlu0 %v1299
    %v1301 = vpop.xlane.xlu0 %1300
    %v1302 = vrcp.pop %v1301
    %v1303 = vmul.f32 %v1298, %v1302
    %v1304 = vpack.c.bf16 %v1303, %v1303
    %1305 = vrot.lane.b32.xlu0 %v1123, 48
    %v1306 = vpop.permute.xlu0 %1305
    %v1308 = vsel %vm1179, %v1304, 0
    %v1311 = vsel %vm1197, %v1306, 0
    %1313 = vmatprep.subr.bf16.mxu0 0
    %1314 = vmatpush1.bf16.msra.mxu0 %v1311
    %1315 = vmatprep.subr.bf16.mxu0 0
    %1316 = vmatpush1.bf16.msra.mxu0 0
    %1317 = vmatprep.subr.bf16.mxu0 0
    %1318 = vmatpush1.bf16.msra.mxu0 0
    %1319 = vmatprep.subr.bf16.mxu0 0
    %1320 = vmatpush1.bf16.msra.mxu0 0
    %1321 = vmatprep.subr.bf16.mxu0 0
    %1322 = vmatpush1.bf16.msra.mxu0 0
    %1323 = vmatprep.subr.bf16.mxu0 0
    %1324 = vmatpush1.bf16.msra.mxu0 0
    %1325 = vmatprep.subr.bf16.mxu0 0
    %1326 = vmatpush1.bf16.msra.mxu0 0
    %1327 = vmatprep.subr.bf16.mxu0 0
    %1328 = vmatpush1.bf16.msra.mxu0 0
    %1329 = vmatprep.subr.bf16.mxu0 0
    %1330 = vmatpush1.bf16.msra.mxu0 0
    %1331 = vmatprep.subr.bf16.mxu0 0
    %1332 = vmatpush1.bf16.msra.mxu0 0
    %1333 = vmatprep.subr.bf16.mxu0 0
    %1334 = vmatpush1.bf16.msra.mxu0 0
    %1335 = vmatprep.subr.bf16.mxu0 0
    %1336 = vmatpush1.bf16.msra.mxu0 0
    %1337 = vmatprep.subr.bf16.mxu0 0
    %1338 = vmatpush1.bf16.msra.mxu0 0
    %1339 = vmatprep.subr.bf16.mxu0 0
    %1340 = vmatpush1.bf16.msra.mxu0 0
    %1341 = vmatprep.subr.bf16.mxu0 0
    %1342 = vmatpush1.bf16.msra.mxu0 0
    %1343 = vmatprep.subr.bf16.mxu0 0
    %1344 = vmatpush1.bf16.msra.mxu0 0
    %1345 = vmatprep.mubr.bf16.mxu0 0
    %1346 = vmatmul.mubr.bf16.gmra.mrb[0].mxu0 %v1308
    %v1347 = vpop.f32.mrb[0].mxu0
    %v1348 = vadd.f32 0.0, %v1347
    %v1349 = vpop.f32.mrb[0].mxu0
    %v1350 = vpop.f32.mrb[0].mxu0
    %v1351 = vpop.f32.mrb[0].mxu0
    %1352 = vdwg.mxu0
    %1354 = vrot.lane.b32.xlu0 %v1348, 16
    %v1355 = vpop.permute.xlu0 %1354
    %v1357 = vsel %vm878, %v1236, %v1355
    %v1358 = vpack.c.bf16 %v1120, %v1120
    %1360 = vrot.lane.b32.xlu0 %v1358, 96
    %v1361 = vpop.permute.xlu0 %1360
    %v1363 = vsel %vm878, %v1358, 0
    %v1366 = vsel %vm878, %v1361, 0
    %1368 = vmatprep.subr.bf16.mxu0 0
    %1369 = vmatpush1.bf16.xpose.msra.mxu0 %v1366
    %1370 = vmatprep.subr.bf16.mxu0 0
    %1371 = vmatpush1.bf16.xpose.msra.mxu0 0
    %1372 = vmatprep.subr.bf16.mxu0 0
    %1373 = vmatpush1.bf16.xpose.msra.mxu0 0
    %1374 = vmatprep.subr.bf16.mxu0 0
    %1375 = vmatpush1.bf16.xpose.msra.mxu0 0
    %1376 = vmatprep.subr.bf16.mxu0 0
    %1377 = vmatpush1.bf16.xpose.msra.mxu0 0
    %1378 = vmatprep.subr.bf16.mxu0 0
    %1379 = vmatpush1.bf16.xpose.msra.mxu0 0
    %1380 = vmatprep.subr.bf16.mxu0 0
    %1381 = vmatpush1.bf16.xpose.msra.mxu0 0
    %1382 = vmatprep.subr.bf16.mxu0 0
    %1383 = vmatpush1.bf16.xpose.msra.mxu0 0
    %1384 = vmatprep.subr.bf16.mxu0 0
    %1385 = vmatpush1.bf16.xpose.msra.mxu0 0
    %1386 = vmatprep.subr.bf16.mxu0 0
    %1387 = vmatpush1.bf16.xpose.msra.mxu0 0
    %1388 = vmatprep.subr.bf16.mxu0 0
    %1389 = vmatpush1.bf16.xpose.msra.mxu0 0
    %1390 = vmatprep.subr.bf16.mxu0 0
    %1391 = vmatpush1.bf16.xpose.msra.mxu0 0
    %1392 = vmatprep.subr.bf16.mxu0 0
    %1393 = vmatpush1.bf16.xpose.msra.mxu0 0
    %1394 = vmatprep.subr.bf16.mxu0 0
    %1395 = vmatpush1.bf16.xpose.msra.mxu0 0
    %1396 = vmatprep.subr.bf16.mxu0 0
    %1397 = vmatpush1.bf16.xpose.msra.mxu0 0
    %1398 = vmatprep.subr.bf16.mxu0 0
    %1399 = vmatpush1.bf16.xpose.msra.mxu0 0
    %1400 = vmatprep.mubr.bf16.mxu0 0
    %1401 = vmatmul.mubr.bf16.gmra.mrb[0].mxu0 %v1363
    %v1402 = vpop.f32.mrb[0].mxu0
    %v1403 = vadd.f32 0.0, %v1402
    %v1404 = vpop.f32.mrb[0].mxu0
    %v1405 = vpop.f32.mrb[0].mxu0
    %v1406 = vpop.f32.mrb[0].mxu0
    %1407 = vdwg.mxu0
    %v1408 = vmul.f32 %v1403, 0.25
    %v1409 = vlaneseq
    %v1410 = vshrl.u32 %v1409, 7
    %v1411 = vsub.s32 1, %v1410
    %v1412 = vrot.slane %v820, %v1411
    %v1413 = vadd.f32 %v1408, %v1412
    %v1414 = vsel %vm1179, %v1413, -inf
    %1415 = vmax.xlane.f32.xlu0 %v1414
    %v1416 = vpop.xlane.xlu0 %1415
    %v1417 = vsub.f32 %v1413, %v1416
    %v1418 = vmul.f32 %v1417, 1.442695
    %v1419 = vpow.pop %v1418
    %v1420 = vsel %vm1179, %v1419, 0.0
    %1421 = vadd.xlane.f32.xlu0 %v1420
    %v1422 = vpop.xlane.xlu0 %1421
    %v1423 = vrcp.pop %v1422
    %v1424 = vmul.f32 %v1419, %v1423
    %v1425 = vpack.c.bf16 %v1424, %v1424
    %1426 = vrot.lane.b32.xlu0 %v1358, 64
    %v1427 = vpop.permute.xlu0 %1426
    %v1429 = vsel %vm1179, %v1425, 0
    %v1432 = vsel %vm1197, %v1427, 0
    %1434 = vmatprep.subr.bf16.mxu0 0
    %1435 = vmatpush1.bf16.msra.mxu0 %v1432
    %1436 = vmatprep.subr.bf16.mxu0 0
    %1437 = vmatpush1.bf16.msra.mxu0 0
    %1438 = vmatprep.subr.bf16.mxu0 0
    %1439 = vmatpush1.bf16.msra.mxu0 0
    %1440 = vmatprep.subr.bf16.mxu0 0
    %1441 = vmatpush1.bf16.msra.mxu0 0
    %1442 = vmatprep.subr.bf16.mxu0 0
    %1443 = vmatpush1.bf16.msra.mxu0 0
    %1444 = vmatprep.subr.bf16.mxu0 0
    %1445 = vmatpush1.bf16.msra.mxu0 0
    %1446 = vmatprep.subr.bf16.mxu0 0
    %1447 = vmatpush1.bf16.msra.mxu0 0
    %1448 = vmatprep.subr.bf16.mxu0 0
    %1449 = vmatpush1.bf16.msra.mxu0 0
    %1450 = vmatprep.subr.bf16.mxu0 0
    %1451 = vmatpush1.bf16.msra.mxu0 0
    %1452 = vmatprep.subr.bf16.mxu0 0
    %1453 = vmatpush1.bf16.msra.mxu0 0
    %1454 = vmatprep.subr.bf16.mxu0 0
    %1455 = vmatpush1.bf16.msra.mxu0 0
    %1456 = vmatprep.subr.bf16.mxu0 0
    %1457 = vmatpush1.bf16.msra.mxu0 0
    %1458 = vmatprep.subr.bf16.mxu0 0
    %1459 = vmatpush1.bf16.msra.mxu0 0
    %1460 = vmatprep.subr.bf16.mxu0 0
    %1461 = vmatpush1.bf16.msra.mxu0 0
    %1462 = vmatprep.subr.bf16.mxu0 0
    %1463 = vmatpush1.bf16.msra.mxu0 0
    %1464 = vmatprep.subr.bf16.mxu0 0
    %1465 = vmatpush1.bf16.msra.mxu0 0
    %1466 = vmatprep.mubr.bf16.mxu0 0
    %1467 = vmatmul.mubr.bf16.gmra.mrb[0].mxu0 %v1429
    %v1468 = vpop.f32.mrb[0].mxu0
    %v1469 = vadd.f32 0.0, %v1468
    %v1470 = vpop.f32.mrb[0].mxu0
    %v1471 = vpop.f32.mrb[0].mxu0
    %v1472 = vpop.f32.mrb[0].mxu0
    %1473 = vdwg.mxu0
    %1474 = vrot.lane.b32.xlu0 %v1358, 112
    %v1475 = vpop.permute.xlu0 %1474
    %1476 = vrot.lane.b32.xlu0 %v1358, 80
    %v1477 = vpop.permute.xlu0 %1476
    %v1479 = vsel %vm878, %v1475, 0
    %v1482 = vsel %vm878, %v1477, 0
    %1484 = vmatprep.subr.bf16.mxu0 0
    %1485 = vmatpush1.bf16.xpose.msra.mxu0 %v1482
    %1486 = vmatprep.subr.bf16.mxu0 0
    %1487 = vmatpush1.bf16.xpose.msra.mxu0 0
    %1488 = vmatprep.subr.bf16.mxu0 0
    %1489 = vmatpush1.bf16.xpose.msra.mxu0 0
    %1490 = vmatprep.subr.bf16.mxu0 0
    %1491 = vmatpush1.bf16.xpose.msra.mxu0 0
    %1492 = vmatprep.subr.bf16.mxu0 0
    %1493 = vmatpush1.bf16.xpose.msra.mxu0 0
    %1494 = vmatprep.subr.bf16.mxu0 0
    %1495 = vmatpush1.bf16.xpose.msra.mxu0 0
    %1496 = vmatprep.subr.bf16.mxu0 0
    %1497 = vmatpush1.bf16.xpose.msra.mxu0 0
    %1498 = vmatprep.subr.bf16.mxu0 0
    %1499 = vmatpush1.bf16.xpose.msra.mxu0 0
    %1500 = vmatprep.subr.bf16.mxu0 0
    %1501 = vmatpush1.bf16.xpose.msra.mxu0 0
    %1502 = vmatprep.subr.bf16.mxu0 0
    %1503 = vmatpush1.bf16.xpose.msra.mxu0 0
    %1504 = vmatprep.subr.bf16.mxu0 0
    %1505 = vmatpush1.bf16.xpose.msra.mxu0 0
    %1506 = vmatprep.subr.bf16.mxu0 0
    %1507 = vmatpush1.bf16.xpose.msra.mxu0 0
    %1508 = vmatprep.subr.bf16.mxu0 0
    %1509 = vmatpush1.bf16.xpose.msra.mxu0 0
    %1510 = vmatprep.subr.bf16.mxu0 0
    %1511 = vmatpush1.bf16.xpose.msra.mxu0 0
    %1512 = vmatprep.subr.bf16.mxu0 0
    %1513 = vmatpush1.bf16.xpose.msra.mxu0 0
    %1514 = vmatprep.subr.bf16.mxu0 0
    %1515 = vmatpush1.bf16.xpose.msra.mxu0 0
    %1516 = vmatprep.mubr.bf16.mxu0 0
    %1517 = vmatmul.mubr.bf16.gmra.mrb[0].mxu0 %v1479
    %v1518 = vpop.f32.mrb[0].mxu0
    %v1519 = vadd.f32 0.0, %v1518
    %v1520 = vpop.f32.mrb[0].mxu0
    %v1521 = vpop.f32.mrb[0].mxu0
    %v1522 = vpop.f32.mrb[0].mxu0
    %1523 = vdwg.mxu0
    %v1524 = vmul.f32 %v1519, 0.25
    %v1525 = vadd.f32 %v1524, %v1412
    %v1526 = vsel %vm1179, %v1525, -inf
    %1527 = vmax.xlane.f32.xlu0 %v1526
    %v1528 = vpop.xlane.xlu0 %1527
    %v1529 = vsub.f32 %v1525, %v1528
    %v1530 = vmul.f32 %v1529, 1.442695
    %v1531 = vpow.pop %v1530
    %v1532 = vsel %vm1179, %v1531, 0.0
    %1533 = vadd.xlane.f32.xlu0 %v1532
    %v1534 = vpop.xlane.xlu0 %1533
    %v1535 = vrcp.pop %v1534
    %v1536 = vmul.f32 %v1531, %v1535
    %v1537 = vpack.c.bf16 %v1536, %v1536
    %1538 = vrot.lane.b32.xlu0 %v1358, 48
    %v1539 = vpop.permute.xlu0 %1538
    %v1541 = vsel %vm1179, %v1537, 0
    %v1544 = vsel %vm1197, %v1539, 0
    %1546 = vmatprep.subr.bf16.mxu0 0
    %1547 = vmatpush1.bf16.msra.mxu0 %v1544
    %1548 = vmatprep.subr.bf16.mxu0 0
    %1549 = vmatpush1.bf16.msra.mxu0 0
    %1550 = vmatprep.subr.bf16.mxu0 0
    %1551 = vmatpush1.bf16.msra.mxu0 0
    %1552 = vmatprep.subr.bf16.mxu0 0
    %1553 = vmatpush1.bf16.msra.mxu0 0
    %1554 = vmatprep.subr.bf16.mxu0 0
    %1555 = vmatpush1.bf16.msra.mxu0 0
    %1556 = vmatprep.subr.bf16.mxu0 0
    %1557 = vmatpush1.bf16.msra.mxu0 0
    %1558 = vmatprep.subr.bf16.mxu0 0
    %1559 = vmatpush1.bf16.msra.mxu0 0
    %1560 = vmatprep.subr.bf16.mxu0 0
    %1561 = vmatpush1.bf16.msra.mxu0 0
    %1562 = vmatprep.subr.bf16.mxu0 0
    %1563 = vmatpush1.bf16.msra.mxu0 0
    %1564 = vmatprep.subr.bf16.mxu0 0
    %1565 = vmatpush1.bf16.msra.mxu0 0
    %1566 = vmatprep.subr.bf16.mxu0 0
    %1567 = vmatpush1.bf16.msra.mxu0 0
    %1568 = vmatprep.subr.bf16.mxu0 0
    %1569 = vmatpush1.bf16.msra.mxu0 0
    %1570 = vmatprep.subr.bf16.mxu0 0
    %1571 = vmatpush1.bf16.msra.mxu0 0
    %1572 = vmatprep.subr.bf16.mxu0 0
    %1573 = vmatpush1.bf16.msra.mxu0 0
    %1574 = vmatprep.subr.bf16.mxu0 0
    %1575 = vmatpush1.bf16.msra.mxu0 0
    %1576 = vmatprep.subr.bf16.mxu0 0
    %1577 = vmatpush1.bf16.msra.mxu0 0
    %1578 = vmatprep.mubr.bf16.mxu0 0
    %1579 = vmatmul.mubr.bf16.gmra.mrb[0].mxu0 %v1541
    %v1580 = vpop.f32.mrb[0].mxu0
    %v1581 = vadd.f32 0.0, %v1580
    %v1582 = vpop.f32.mrb[0].mxu0
    %v1583 = vpop.f32.mrb[0].mxu0
    %v1584 = vpop.f32.mrb[0].mxu0
    %1585 = vdwg.mxu0
    %1587 = vrot.lane.b32.xlu0 %v1581, 16
    %v1588 = vpop.permute.xlu0 %1587
    %v1590 = vsel %vm878, %v1469, %v1588
    %v1591 = vpack.c.bf16 %v1590, %v1357
    %v1592 = vpack.c.bf16 %v709, %v708
    %v1593 = vpack.c.bf16 %v711, %v710
    %v1595 = vlaneseq
    %v1596 = vshrl.u32 %v1595, 7
    %v1597 = vsub.s32 0, %v1596
    %v1598 = vrot.slane %v707, %v1597
    %v1601 = vsel %vm824, %v1591, 0
    %1603 = vmatprep.subr.bf16.mxu0 0
    %1604 = vmatpush1.bf16.msra.mxu0 %v1592
    %1605 = vmatprep.subr.bf16.mxu0 0
    %1606 = vmatpush1.bf16.msra.mxu0 %v1593
    %1607 = vmatprep.subr.bf16.mxu0 0
    %1608 = vmatpush1.bf16.msra.mxu0 0
    %1609 = vmatprep.subr.bf16.mxu0 0
    %1610 = vmatpush1.bf16.msra.mxu0 0
    %1611 = vmatprep.subr.bf16.mxu0 0
    %1612 = vmatpush1.bf16.msra.mxu0 0
    %1613 = vmatprep.subr.bf16.mxu0 0
    %1614 = vmatpush1.bf16.msra.mxu0 0
    %1615 = vmatprep.subr.bf16.mxu0 0
    %1616 = vmatpush1.bf16.msra.mxu0 0
    %1617 = vmatprep.subr.bf16.mxu0 0
    %1618 = vmatpush1.bf16.msra.mxu0 0
    %1619 = vmatprep.subr.bf16.mxu0 0
    %1620 = vmatpush1.bf16.msra.mxu0 0
    %1621 = vmatprep.subr.bf16.mxu0 0
    %1622 = vmatpush1.bf16.msra.mxu0 0
    %1623 = vmatprep.subr.bf16.mxu0 0
    %1624 = vmatpush1.bf16.msra.mxu0 0
    %1625 = vmatprep.subr.bf16.mxu0 0
    %1626 = vmatpush1.bf16.msra.mxu0 0
    %1627 = vmatprep.subr.bf16.mxu0 0
    %1628 = vmatpush1.bf16.msra.mxu0 0
    %1629 = vmatprep.subr.bf16.mxu0 0
    %1630 = vmatpush1.bf16.msra.mxu0 0
    %1631 = vmatprep.subr.bf16.mxu0 0
    %1632 = vmatpush1.bf16.msra.mxu0 0
    %1633 = vmatprep.subr.bf16.mxu0 0
    %1634 = vmatpush1.bf16.msra.mxu0 0
    %1635 = vmatprep.mubr.bf16.mxu0 0
    %1636 = vmatmul.mubr.bf16.gmra.mrb[0].mxu0 %v1601
    %v1637 = vpop.f32.mrb[0].mxu0
    %v1638 = vadd.f32 %v1598, %v1637
    %v1639 = vpop.f32.mrb[0].mxu0
    %v1640 = vpop.f32.mrb[0].mxu0
    %v1641 = vadd.f32 %v1598, %v1640
    %v1642 = vpop.f32.mrb[0].mxu0
    %1643 = vdwg.mxu0
    %v1644 = vadd.f32 %v1638, %v866
    %v1645 = vadd.f32 %v1641, %v867
    %v1646 = vsel %vm824, %v1644, 0.0
    %1647 = vadd.xlane.f32.xlu0 %v1646
    %v1648 = vpop.xlane.xlu0 %1647
    %v1649 = vsel %vm824, %v1645, 0.0
    %1650 = vadd.xlane.f32.xlu0 %v1649
    %v1651 = vpop.xlane.xlu0 %1650
    %v1652 = vmul.f32 %v1648, %v831
    %v1653 = vmul.f32 %v1651, %v831
    %v1654 = vsub.f32 %v1644, %v1652
    %v1655 = vsub.f32 %v1645, %v1653
    %v1656 = vmul.f32 %v1654, %v1654
    %v1657 = vmul.f32 %v1655, %v1655
    %v1658 = vsel %vm824, %v1656, 0.0
    %1659 = vadd.xlane.f32.xlu0 %v1658
    %v1660 = vpop.xlane.xlu0 %1659
    %v1661 = vsel %vm824, %v1657, 0.0
    %1662 = vadd.xlane.f32.xlu0 %v1661
    %v1663 = vpop.xlane.xlu0 %1662
    %v1664 = vmul.f32 %v1660, %v831
    %v1665 = vmul.f32 %v1663, %v831
    %v1666 = vadd.f32 %v1664, 1e-12
    %v1667 = vadd.f32 %v1665, 1e-12
    %v1668 = vrsqrt.pop %v1666
    %v1669 = vrsqrt.pop %v1667
    %v1670 = vmul.f32 %v1654, %v1668
    %v1671 = vmul.f32 %v1655, %v1669
    %v1673 = vlaneseq
    %v1674 = vshrl.u32 %v1673, 7
    %v1675 = vsub.s32 0, %v1674
    %v1676 = vrot.slane %v706, %v1675
    %v1678 = vmul.f32 %v1670, %v1676
    %v1679 = vmul.f32 %v1671, %v1676
    %v1681 = vlaneseq
    %v1682 = vshrl.u32 %v1681, 7
    %v1683 = vsub.s32 0, %v1682
    %v1684 = vrot.slane %v705, %v1683
    %v1686 = vadd.f32 %v1678, %v1684
    %v1687 = vadd.f32 %v1679, %v1684
    %v1688 = vpack.c.bf16 %v1687, %v1686
    %v1689 = vpack.c.bf16 %v719, %v718
    %v1690 = vpack.c.bf16 %v721, %v720
    %v1692 = vlaneseq
    %v1693 = vshrl.u32 %v1692, 7
    %v1694 = vsub.s32 0, %v1693
    %v1695 = vrot.slane %v717, %v1694
    %v1698 = vsel %vm824, %v1688, 0
    %1700 = vmatprep.subr.bf16.mxu0 0
    %1701 = vmatpush1.bf16.msra.mxu0 %v1689
    %1702 = vmatprep.subr.bf16.mxu0 0
    %1703 = vmatpush1.bf16.msra.mxu0 %v1690
    %1704 = vmatprep.subr.bf16.mxu0 0
    %1705 = vmatpush1.bf16.msra.mxu0 0
    %1706 = vmatprep.subr.bf16.mxu0 0
    %1707 = vmatpush1.bf16.msra.mxu0 0
    %1708 = vmatprep.subr.bf16.mxu0 0
    %1709 = vmatpush1.bf16.msra.mxu0 0
    %1710 = vmatprep.subr.bf16.mxu0 0
    %1711 = vmatpush1.bf16.msra.mxu0 0
    %1712 = vmatprep.subr.bf16.mxu0 0
    %1713 = vmatpush1.bf16.msra.mxu0 0
    %1714 = vmatprep.subr.bf16.mxu0 0
    %1715 = vmatpush1.bf16.msra.mxu0 0
    %1716 = vmatprep.subr.bf16.mxu0 0
    %1717 = vmatpush1.bf16.msra.mxu0 0
    %1718 = vmatprep.subr.bf16.mxu0 0
    %1719 = vmatpush1.bf16.msra.mxu0 0
    %1720 = vmatprep.subr.bf16.mxu0 0
    %1721 = vmatpush1.bf16.msra.mxu0 0
    %1722 = vmatprep.subr.bf16.mxu0 0
    %1723 = vmatpush1.bf16.msra.mxu0 0
    %1724 = vmatprep.subr.bf16.mxu0 0
    %1725 = vmatpush1.bf16.msra.mxu0 0
    %1726 = vmatprep.subr.bf16.mxu0 0
    %1727 = vmatpush1.bf16.msra.mxu0 0
    %1728 = vmatprep.subr.bf16.mxu0 0
    %1729 = vmatpush1.bf16.msra.mxu0 0
    %1730 = vmatprep.subr.bf16.mxu0 0
    %1731 = vmatpush1.bf16.msra.mxu0 0
    %1732 = vmatprep.mubr.bf16.mxu0 0
    %1733 = vmatmul.mubr.bf16.gmra.mrb[0].mxu0 %v1698
    %v1734 = vpop.f32.mrb[0].mxu0
    %v1735 = vadd.f32 %v1695, %v1734
    %v1736 = vpop.f32.mrb[0].mxu0
    %v1737 = vpop.f32.mrb[0].mxu0
    %v1738 = vadd.f32 %v1695, %v1737
    %v1739 = vpop.f32.mrb[0].mxu0
    %1740 = vdwg.mxu0
    %v1741 = vmul.f32 %v1735, 0.5
    %v1742 = vmul.f32 %v1738, 0.5
    %v1743 = vmul.f32 %v1735, 0.044715
    %v1744 = vmul.f32 %v1738, 0.044715
    %v1745 = vmul.f32 %v1743, %v1735
    %v1746 = vmul.f32 %v1744, %v1738
    %v1747 = vmul.f32 %v1745, %v1735
    %v1748 = vmul.f32 %v1746, %v1738
    %v1749 = vadd.f32 %v1735, %v1747
    %v1750 = vadd.f32 %v1738, %v1748
    %v1751 = vmul.f32 %v1749, 0.7978846
    %v1752 = vmul.f32 %v1750, 0.7978846
    %v1753 = vtanh.pop %v1751
    %v1754 = vtanh.pop %v1752
    %v1755 = vadd.f32 %v1753, 1.0
    %v1756 = vadd.f32 %v1754, 1.0
    %v1757 = vmul.f32 %v1741, %v1755
    %v1758 = vmul.f32 %v1742, %v1756
    %v1759 = vpack.c.bf16 %v1758, %v1757
    %v1760 = vpack.c.bf16 %v724, %v723
    %v1761 = vpack.c.bf16 %v726, %v725
    %v1762 = vpack.c.bf16 %v728, %v727
    %v1763 = vpack.c.bf16 %v730, %v729
    %v1765 = vlaneseq
    %v1766 = vshrl.u32 %v1765, 7
    %v1767 = vsub.s32 0, %v1766
    %v1768 = vrot.slane %v722, %v1767
    %vm1770 = vcmask 523264
    %v1772 = vsel %vm1770, %v1759, 0
    %1774 = vmatprep.subr.bf16.mxu0 0
    %1775 = vmatpush1.bf16.msra.mxu0 %v1760
    %1776 = vmatprep.subr.bf16.mxu0 0
    %1777 = vmatpush1.bf16.msra.mxu0 %v1761
    %1778 = vmatprep.subr.bf16.mxu0 0
    %1779 = vmatpush1.bf16.msra.mxu0 %v1762
    %1780 = vmatprep.subr.bf16.mxu0 0
    %1781 = vmatpush1.bf16.msra.mxu0 %v1763
    %1782 = vmatprep.subr.bf16.mxu0 0
    %1783 = vmatpush1.bf16.msra.mxu0 0
    %1784 = vmatprep.subr.bf16.mxu0 0
    %1785 = vmatpush1.bf16.msra.mxu0 0
    %1786 = vmatprep.subr.bf16.mxu0 0
    %1787 = vmatpush1.bf16.msra.mxu0 0
    %1788 = vmatprep.subr.bf16.mxu0 0
    %1789 = vmatpush1.bf16.msra.mxu0 0
    %1790 = vmatprep.subr.bf16.mxu0 0
    %1791 = vmatpush1.bf16.msra.mxu0 0
    %1792 = vmatprep.subr.bf16.mxu0 0
    %1793 = vmatpush1.bf16.msra.mxu0 0
    %1794 = vmatprep.subr.bf16.mxu0 0
    %1795 = vmatpush1.bf16.msra.mxu0 0
    %1796 = vmatprep.subr.bf16.mxu0 0
    %1797 = vmatpush1.bf16.msra.mxu0 0
    %1798 = vmatprep.subr.bf16.mxu0 0
    %1799 = vmatpush1.bf16.msra.mxu0 0
    %1800 = vmatprep.subr.bf16.mxu0 0
    %1801 = vmatpush1.bf16.msra.mxu0 0
    %1802 = vmatprep.subr.bf16.mxu0 0
    %1803 = vmatpush1.bf16.msra.mxu0 0
    %1804 = vmatprep.subr.bf16.mxu0 0
    %1805 = vmatpush1.bf16.msra.mxu0 0
    %1806 = vmatprep.mubr.bf16.mxu0 0
    %1807 = vmatmul.mubr.bf16.gmra.mrb[0].mxu0 %v1772
    %v1808 = vpop.f32.mrb[0].mxu0
    %v1809 = vadd.f32 %v1768, %v1808
    %v1810 = vpop.f32.mrb[0].mxu0
    %v1811 = vpop.f32.mrb[0].mxu0
    %v1812 = vadd.f32 %v1768, %v1811
    %v1813 = vpop.f32.mrb[0].mxu0
    %1814 = vdwg.mxu0
    %v1815 = vadd.f32 %v1809, %v1686
    %v1816 = vadd.f32 %v1812, %v1687
    %v1817 = vsel %vm824, %v1815, 0.0
    %1818 = vadd.xlane.f32.xlu0 %v1817
    %v1819 = vpop.xlane.xlu0 %1818
    %v1820 = vsel %vm824, %v1816, 0.0
    %1821 = vadd.xlane.f32.xlu0 %v1820
    %v1822 = vpop.xlane.xlu0 %1821
    %v1823 = vmul.f32 %v1819, %v831
    %v1824 = vmul.f32 %v1822, %v831
    %v1825 = vsub.f32 %v1815, %v1823
    %v1826 = vsub.f32 %v1816, %v1824
    %v1827 = vmul.f32 %v1825, %v1825
    %v1828 = vmul.f32 %v1826, %v1826
    %v1829 = vsel %vm824, %v1827, 0.0
    %1830 = vadd.xlane.f32.xlu0 %v1829
    %v1831 = vpop.xlane.xlu0 %1830
    %v1832 = vsel %vm824, %v1828, 0.0
    %1833 = vadd.xlane.f32.xlu0 %v1832
    %v1834 = vpop.xlane.xlu0 %1833
    %v1835 = vmul.f32 %v1831, %v831
    %v1836 = vmul.f32 %v1834, %v831
    %v1837 = vadd.f32 %v1835, 1e-12
    %v1838 = vadd.f32 %v1836, 1e-12
    %v1839 = vrsqrt.pop %v1837
    %v1840 = vrsqrt.pop %v1838
    %v1841 = vmul.f32 %v1825, %v1839
    %v1842 = vmul.f32 %v1826, %v1840
    %v1844 = vlaneseq
    %v1845 = vshrl.u32 %v1844, 7
    %v1846 = vsub.s32 0, %v1845
    %v1847 = vrot.slane %v732, %v1846
    %v1849 = vmul.f32 %v1841, %v1847
    %v1850 = vmul.f32 %v1842, %v1847
    %v1852 = vlaneseq
    %v1853 = vshrl.u32 %v1852, 7
    %v1854 = vsub.s32 0, %v1853
    %v1855 = vrot.slane %v731, %v1854
    %v1857 = vadd.f32 %v1849, %v1855
    %v1858 = vadd.f32 %v1850, %v1855
    %v1859 = vpack.c.bf16 %v1069, %v1068
    %v1860 = vpack.c.bf16 %v752, %v751
    %v1861 = vpack.c.bf16 %v754, %v753
    %v1863 = vlaneseq
    %v1864 = vshrl.u32 %v1863, 7
    %v1865 = vsub.s32 0, %v1864
    %v1866 = vrot.slane %v750, %v1865
    %v1869 = vsel %vm824, %v1859, 0
    %1871 = vmatprep.subr.bf16.mxu0 0
    %1872 = vmatpush1.bf16.msra.mxu0 %v1860
    %1873 = vmatprep.subr.bf16.mxu0 0
    %1874 = vmatpush1.bf16.msra.mxu0 %v1861
    %1875 = vmatprep.subr.bf16.mxu0 0
    %1876 = vmatpush1.bf16.msra.mxu0 0
    %1877 = vmatprep.subr.bf16.mxu0 0
    %1878 = vmatpush1.bf16.msra.mxu0 0
    %1879 = vmatprep.subr.bf16.mxu0 0
    %1880 = vmatpush1.bf16.msra.mxu0 0
    %1881 = vmatprep.subr.bf16.mxu0 0
    %1882 = vmatpush1.bf16.msra.mxu0 0
    %1883 = vmatprep.subr.bf16.mxu0 0
    %1884 = vmatpush1.bf16.msra.mxu0 0
    %1885 = vmatprep.subr.bf16.mxu0 0
    %1886 = vmatpush1.bf16.msra.mxu0 0
    %1887 = vmatprep.subr.bf16.mxu0 0
    %1888 = vmatpush1.bf16.msra.mxu0 0
    %1889 = vmatprep.subr.bf16.mxu0 0
    %1890 = vmatpush1.bf16.msra.mxu0 0
    %1891 = vmatprep.subr.bf16.mxu0 0
    %1892 = vmatpush1.bf16.msra.mxu0 0
    %1893 = vmatprep.subr.bf16.mxu0 0
    %1894 = vmatpush1.bf16.msra.mxu0 0
    %1895 = vmatprep.subr.bf16.mxu0 0
    %1896 = vmatpush1.bf16.msra.mxu0 0
    %1897 = vmatprep.subr.bf16.mxu0 0
    %1898 = vmatpush1.bf16.msra.mxu0 0
    %1899 = vmatprep.subr.bf16.mxu0 0
    %1900 = vmatpush1.bf16.msra.mxu0 0
    %1901 = vmatprep.subr.bf16.mxu0 0
    %1902 = vmatpush1.bf16.msra.mxu0 0
    %1903 = vmatprep.mubr.bf16.mxu0 0
    %1904 = vmatmul.mubr.bf16.gmra.mrb[0].mxu0 %v1869
    %v1905 = vpop.f32.mrb[0].mxu0
    %v1906 = vadd.f32 %v1866, %v1905
    %v1907 = vpop.f32.mrb[0].mxu0
    %v1908 = vpop.f32.mrb[0].mxu0
    %v1909 = vadd.f32 %v1866, %v1908
    %v1910 = vpop.f32.mrb[0].mxu0
    %1911 = vdwg.mxu0
    %v1912 = vpack.c.bf16 %v1906, %v1906
    %1914 = vrot.lane.b32.xlu0 %v1912, 96
    %v1915 = vpop.permute.xlu0 %1914
    %v1917 = vsel %vm878, %v1912, 0
    %v1920 = vsel %vm878, %v1915, 0
    %1922 = vmatprep.subr.bf16.mxu0 0
    %1923 = vmatpush1.bf16.xpose.msra.mxu0 %v1920
    %1924 = vmatprep.subr.bf16.mxu0 0
    %1925 = vmatpush1.bf16.xpose.msra.mxu0 0
    %1926 = vmatprep.subr.bf16.mxu0 0
    %1927 = vmatpush1.bf16.xpose.msra.mxu0 0
    %1928 = vmatprep.subr.bf16.mxu0 0
    %1929 = vmatpush1.bf16.xpose.msra.mxu0 0
    %1930 = vmatprep.subr.bf16.mxu0 0
    %1931 = vmatpush1.bf16.xpose.msra.mxu0 0
    %1932 = vmatprep.subr.bf16.mxu0 0
    %1933 = vmatpush1.bf16.xpose.msra.mxu0 0
    %1934 = vmatprep.subr.bf16.mxu0 0
    %1935 = vmatpush1.bf16.xpose.msra.mxu0 0
    %1936 = vmatprep.subr.bf16.mxu0 0
    %1937 = vmatpush1.bf16.xpose.msra.mxu0 0
    %1938 = vmatprep.subr.bf16.mxu0 0
    %1939 = vmatpush1.bf16.xpose.msra.mxu0 0
    %1940 = vmatprep.subr.bf16.mxu0 0
    %1941 = vmatpush1.bf16.xpose.msra.mxu0 0
    %1942 = vmatprep.subr.bf16.mxu0 0
    %1943 = vmatpush1.bf16.xpose.msra.mxu0 0
    %1944 = vmatprep.subr.bf16.mxu0 0
    %1945 = vmatpush1.bf16.xpose.msra.mxu0 0
    %1946 = vmatprep.subr.bf16.mxu0 0
    %1947 = vmatpush1.bf16.xpose.msra.mxu0 0
    %1948 = vmatprep.subr.bf16.mxu0 0
    %1949 = vmatpush1.bf16.xpose.msra.mxu0 0
    %1950 = vmatprep.subr.bf16.mxu0 0
    %1951 = vmatpush1.bf16.xpose.msra.mxu0 0
    %1952 = vmatprep.subr.bf16.mxu0 0
    %1953 = vmatpush1.bf16.xpose.msra.mxu0 0
    %1954 = vmatprep.mubr.bf16.mxu0 0
    %1955 = vmatmul.mubr.bf16.gmra.mrb[0].mxu0 %v1917
    %v1956 = vpop.f32.mrb[0].mxu0
    %v1957 = vadd.f32 0.0, %v1956
    %v1958 = vpop.f32.mrb[0].mxu0
    %v1959 = vpop.f32.mrb[0].mxu0
    %v1960 = vpop.f32.mrb[0].mxu0
    %1961 = vdwg.mxu0
    %v1962 = vmul.f32 %v1957, 0.25
    %v1963 = vlaneseq
    %v1964 = vshrl.u32 %v1963, 7
    %v1965 = vsub.s32 0, %v1964
    %v1966 = vrot.slane %v821, %v1965
    %v1967 = vadd.f32 %v1962, %v1966
    %v1968 = vsel %vm1179, %v1967, -inf
    %1969 = vmax.xlane.f32.xlu0 %v1968
    %v1970 = vpop.xlane.xlu0 %1969
    %v1971 = vsub.f32 %v1967, %v1970
    %v1972 = vmul.f32 %v1971, 1.442695
    %v1973 = vpow.pop %v1972
    %v1974 = vsel %vm1179, %v1973, 0.0
    %1975 = vadd.xlane.f32.xlu0 %v1974
    %v1976 = vpop.xlane.xlu0 %1975
    %v1977 = vrcp.pop %v1976
    %v1978 = vmul.f32 %v1973, %v1977
    %v1979 = vpack.c.bf16 %v1978, %v1978
    %1980 = vrot.lane.b32.xlu0 %v1912, 64
    %v1981 = vpop.permute.xlu0 %1980
    %v1983 = vsel %vm1179, %v1979, 0
    %v1986 = vsel %vm1197, %v1981, 0
    %1988 = vmatprep.subr.bf16.mxu0 0
    %1989 = vmatpush1.bf16.msra.mxu0 %v1986
    %1990 = vmatprep.subr.bf16.mxu0 0
    %1991 = vmatpush1.bf16.msra.mxu0 0
    %1992 = vmatprep.subr.bf16.mxu0 0
    %1993 = vmatpush1.bf16.msra.mxu0 0
    %1994 = vmatprep.subr.bf16.mxu0 0
    %1995 = vmatpush1.bf16.msra.mxu0 0
    %1996 = vmatprep.subr.bf16.mxu0 0
    %1997 = vmatpush1.bf16.msra.mxu0 0
    %1998 = vmatprep.subr.bf16.mxu0 0
    %1999 = vmatpush1.bf16.msra.mxu0 0
    %2000 = vmatprep.subr.bf16.mxu0 0
    %2001 = vmatpush1.bf16.msra.mxu0 0
    %2002 = vmatprep.subr.bf16.mxu0 0
    %2003 = vmatpush1.bf16.msra.mxu0 0
    %2004 = vmatprep.subr.bf16.mxu0 0
    %2005 = vmatpush1.bf16.msra.mxu0 0
    %2006 = vmatprep.subr.bf16.mxu0 0
    %2007 = vmatpush1.bf16.msra.mxu0 0
    %2008 = vmatprep.subr.bf16.mxu0 0
    %2009 = vmatpush1.bf16.msra.mxu0 0
    %2010 = vmatprep.subr.bf16.mxu0 0
    %2011 = vmatpush1.bf16.msra.mxu0 0
    %2012 = vmatprep.subr.bf16.mxu0 0
    %2013 = vmatpush1.bf16.msra.mxu0 0
    %2014 = vmatprep.subr.bf16.mxu0 0
    %2015 = vmatpush1.bf16.msra.mxu0 0
    %2016 = vmatprep.subr.bf16.mxu0 0
    %2017 = vmatpush1.bf16.msra.mxu0 0
    %2018 = vmatprep.subr.bf16.mxu0 0
    %2019 = vmatpush1.bf16.msra.mxu0 0
    %2020 = vmatprep.mubr.bf16.mxu0 0
    %2021 = vmatmul.mubr.bf16.gmra.mrb[0].mxu0 %v1983
    %v2022 = vpop.f32.mrb[0].mxu0
    %v2023 = vadd.f32 0.0, %v2022
    %v2024 = vpop.f32.mrb[0].mxu0
    %v2025 = vpop.f32.mrb[0].mxu0
    %v2026 = vpop.f32.mrb[0].mxu0
    %2027 = vdwg.mxu0
    %2028 = vrot.lane.b32.xlu0 %v1912, 112
    %v2029 = vpop.permute.xlu0 %2028
    %2030 = vrot.lane.b32.xlu0 %v1912, 80
    %v2031 = vpop.permute.xlu0 %2030
    %v2033 = vsel %vm878, %v2029, 0
    %v2036 = vsel %vm878, %v2031, 0
    %2038 = vmatprep.subr.bf16.mxu0 0
    %2039 = vmatpush1.bf16.xpose.msra.mxu0 %v2036
    %2040 = vmatprep.subr.bf16.mxu0 0
    %2041 = vmatpush1.bf16.xpose.msra.mxu0 0
    %2042 = vmatprep.subr.bf16.mxu0 0
    %2043 = vmatpush1.bf16.xpose.msra.mxu0 0
    %2044 = vmatprep.subr.bf16.mxu0 0
    %2045 = vmatpush1.bf16.xpose.msra.mxu0 0
    %2046 = vmatprep.subr.bf16.mxu0 0
    %2047 = vmatpush1.bf16.xpose.msra.mxu0 0
    %2048 = vmatprep.subr.bf16.mxu0 0
    %2049 = vmatpush1.bf16.xpose.msra.mxu0 0
    %2050 = vmatprep.subr.bf16.mxu0 0
    %2051 = vmatpush1.bf16.xpose.msra.mxu0 0
    %2052 = vmatprep.subr.bf16.mxu0 0
    %2053 = vmatpush1.bf16.xpose.msra.mxu0 0
    %2054 = vmatprep.subr.bf16.mxu0 0
    %2055 = vmatpush1.bf16.xpose.msra.mxu0 0
    %2056 = vmatprep.subr.bf16.mxu0 0
    %2057 = vmatpush1.bf16.xpose.msra.mxu0 0
    %2058 = vmatprep.subr.bf16.mxu0 0
    %2059 = vmatpush1.bf16.xpose.msra.mxu0 0
    %2060 = vmatprep.subr.bf16.mxu0 0
    %2061 = vmatpush1.bf16.xpose.msra.mxu0 0
    %2062 = vmatprep.subr.bf16.mxu0 0
    %2063 = vmatpush1.bf16.xpose.msra.mxu0 0
    %2064 = vmatprep.subr.bf16.mxu0 0
    %2065 = vmatpush1.bf16.xpose.msra.mxu0 0
    %2066 = vmatprep.subr.bf16.mxu0 0
    %2067 = vmatpush1.bf16.xpose.msra.mxu0 0
    %2068 = vmatprep.subr.bf16.mxu0 0
    %2069 = vmatpush1.bf16.xpose.msra.mxu0 0
    %2070 = vmatprep.mubr.bf16.mxu0 0
    %2071 = vmatmul.mubr.bf16.gmra.mrb[0].mxu0 %v2033
    %v2072 = vpop.f32.mrb[0].mxu0
    %v2073 = vadd.f32 0.0, %v2072
    %v2074 = vpop.f32.mrb[0].mxu0
    %v2075 = vpop.f32.mrb[0].mxu0
    %v2076 = vpop.f32.mrb[0].mxu0
    %2077 = vdwg.mxu0
    %v2078 = vmul.f32 %v2073, 0.25
    %v2079 = vadd.f32 %v2078, %v1966
    %v2080 = vsel %vm1179, %v2079, -inf
    %2081 = vmax.xlane.f32.xlu0 %v2080
    %v2082 = vpop.xlane.xlu0 %2081
    %v2083 = vsub.f32 %v2079, %v2082
    %v2084 = vmul.f32 %v2083, 1.442695
    %v2085 = vpow.pop %v2084
    %v2086 = vsel %vm1179, %v2085, 0.0
    %2087 = vadd.xlane.f32.xlu0 %v2086
    %v2088 = vpop.xlane.xlu0 %2087
    %v2089 = vrcp.pop %v2088
    %v2090 = vmul.f32 %v2085, %v2089
    %v2091 = vpack.c.bf16 %v2090, %v2090
    %2092 = vrot.lane.b32.xlu0 %v1912, 48
    %v2093 = vpop.permute.xlu0 %2092
    %v2095 = vsel %vm1179, %v2091, 0
    %v2098 = vsel %vm1197, %v2093, 0
    %2100 = vmatprep.subr.bf16.mxu0 0
    %2101 = vmatpush1.bf16.msra.mxu0 %v2098
    %2102 = vmatprep.subr.bf16.mxu0 0
    %2103 = vmatpush1.bf16.msra.mxu0 0
    %2104 = vmatprep.subr.bf16.mxu0 0
    %2105 = vmatpush1.bf16.msra.mxu0 0
    %2106 = vmatprep.subr.bf16.mxu0 0
    %2107 = vmatpush1.bf16.msra.mxu0 0
    %2108 = vmatprep.subr.bf16.mxu0 0
    %2109 = vmatpush1.bf16.msra.mxu0 0
    %2110 = vmatprep.subr.bf16.mxu0 0
    %2111 = vmatpush1.bf16.msra.mxu0 0
    %2112 = vmatprep.subr.bf16.mxu0 0
    %2113 = vmatpush1.bf16.msra.mxu0 0
    %2114 = vmatprep.subr.bf16.mxu0 0
    %2115 = vmatpush1.bf16.msra.mxu0 0
    %2116 = vmatprep.subr.bf16.mxu0 0
    %2117 = vmatpush1.bf16.msra.mxu0 0
    %2118 = vmatprep.subr.bf16.mxu0 0
    %2119 = vmatpush1.bf16.msra.mxu0 0
    %2120 = vmatprep.subr.bf16.mxu0 0
    %2121 = vmatpush1.bf16.msra.mxu0 0
    %2122 = vmatprep.subr.bf16.mxu0 0
    %2123 = vmatpush1.bf16.msra.mxu0 0
    %2124 = vmatprep.subr.bf16.mxu0 0
    %2125 = vmatpush1.bf16.msra.mxu0 0
    %2126 = vmatprep.subr.bf16.mxu0 0
    %2127 = vmatpush1.bf16.msra.mxu0 0
    %2128 = vmatprep.subr.bf16.mxu0 0
    %2129 = vmatpush1.bf16.msra.mxu0 0
    %2130 = vmatprep.subr.bf16.mxu0 0
    %2131 = vmatpush1.bf16.msra.mxu0 0
    %2132 = vmatprep.mubr.bf16.mxu0 0
    %2133 = vmatmul.mubr.bf16.gmra.mrb[0].mxu0 %v2095
    %v2134 = vpop.f32.mrb[0].mxu0
    %v2135 = vadd.f32 0.0, %v2134
    %v2136 = vpop.f32.mrb[0].mxu0
    %v2137 = vpop.f32.mrb[0].mxu0
    %v2138 = vpop.f32.mrb[0].mxu0
    %2139 = vdwg.mxu0
    %2141 = vrot.lane.b32.xlu0 %v2135, 16
    %v2142 = vpop.permute.xlu0 %2141
    %v2144 = vsel %vm878, %v2023, %v2142
    %v2145 = vpack.c.bf16 %v1909, %v1909
    %2147 = vrot.lane.b32.xlu0 %v2145, 96
    %v2148 = vpop.permute.xlu0 %2147
    %v2150 = vsel %vm878, %v2145, 0
    %v2153 = vsel %vm878, %v2148, 0
    %2155 = vmatprep.subr.bf16.mxu0 0
    %2156 = vmatpush1.bf16.xpose.msra.mxu0 %v2153
    %2157 = vmatprep.subr.bf16.mxu0 0
    %2158 = vmatpush1.bf16.xpose.msra.mxu0 0
    %2159 = vmatprep.subr.bf16.mxu0 0
    %2160 = vmatpush1.bf16.xpose.msra.mxu0 0
    %2161 = vmatprep.subr.bf16.mxu0 0
    %2162 = vmatpush1.bf16.xpose.msra.mxu0 0
    %2163 = vmatprep.subr.bf16.mxu0 0
    %2164 = vmatpush1.bf16.xpose.msra.mxu0 0
    %2165 = vmatprep.subr.bf16.mxu0 0
    %2166 = vmatpush1.bf16.xpose.msra.mxu0 0
    %2167 = vmatprep.subr.bf16.mxu0 0
    %2168 = vmatpush1.bf16.xpose.msra.mxu0 0
    %2169 = vmatprep.subr.bf16.mxu0 0
    %2170 = vmatpush1.bf16.xpose.msra.mxu0 0
    %2171 = vmatprep.subr.bf16.mxu0 0
    %2172 = vmatpush1.bf16.xpose.msra.mxu0 0
    %2173 = vmatprep.subr.bf16.mxu0 0
    %2174 = vmatpush1.bf16.xpose.msra.mxu0 0
    %2175 = vmatprep.subr.bf16.mxu0 0
    %2176 = vmatpush1.bf16.xpose.msra.mxu0 0
    %2177 = vmatprep.subr.bf16.mxu0 0
    %2178 = vmatpush1.bf16.xpose.msra.mxu0 0
    %2179 = vmatprep.subr.bf16.mxu0 0
    %2180 = vmatpush1.bf16.xpose.msra.mxu0 0
    %2181 = vmatprep.subr.bf16.mxu0 0
    %2182 = vmatpush1.bf16.xpose.msra.mxu0 0
    %2183 = vmatprep.subr.bf16.mxu0 0
    %2184 = vmatpush1.bf16.xpose.msra.mxu0 0
    %2185 = vmatprep.subr.bf16.mxu0 0
    %2186 = vmatpush1.bf16.xpose.msra.mxu0 0
    %2187 = vmatprep.mubr.bf16.mxu0 0
    %2188 = vmatmul.mubr.bf16.gmra.mrb[0].mxu0 %v2150
    %v2189 = vpop.f32.mrb[0].mxu0
    %v2190 = vadd.f32 0.0, %v2189
    %v2191 = vpop.f32.mrb[0].mxu0
    %v2192 = vpop.f32.mrb[0].mxu0
    %v2193 = vpop.f32.mrb[0].mxu0
    %2194 = vdwg.mxu0
    %v2195 = vmul.f32 %v2190, 0.25
    %v2196 = vlaneseq
    %v2197 = vshrl.u32 %v2196, 7
    %v2198 = vsub.s32 1, %v2197
    %v2199 = vrot.slane %v821, %v2198
    %v2200 = vadd.f32 %v2195, %v2199
    %v2201 = vsel %vm1179, %v2200, -inf
    %2202 = vmax.xlane.f32.xlu0 %v2201
    %v2203 = vpop.xlane.xlu0 %2202
    %v2204 = vsub.f32 %v2200, %v2203
    %v2205 = vmul.f32 %v2204, 1.442695
    %v2206 = vpow.pop %v2205
    %v2207 = vsel %vm1179, %v2206, 0.0
    %2208 = vadd.xlane.f32.xlu0 %v2207
    %v2209 = vpop.xlane.xlu0 %2208
    %v2210 = vrcp.pop %v2209
    %v2211 = vmul.f32 %v2206, %v2210
    %v2212 = vpack.c.bf16 %v2211, %v2211
    %2213 = vrot.lane.b32.xlu0 %v2145, 64
    %v2214 = vpop.permute.xlu0 %2213
    %v2216 = vsel %vm1179, %v2212, 0
    %v2219 = vsel %vm1197, %v2214, 0
    %2221 = vmatprep.subr.bf16.mxu0 0
    %2222 = vmatpush1.bf16.msra.mxu0 %v2219
    %2223 = vmatprep.subr.bf16.mxu0 0
    %2224 = vmatpush1.bf16.msra.mxu0 0
    %2225 = vmatprep.subr.bf16.mxu0 0
    %2226 = vmatpush1.bf16.msra.mxu0 0
    %2227 = vmatprep.subr.bf16.mxu0 0
    %2228 = vmatpush1.bf16.msra.mxu0 0
    %2229 = vmatprep.subr.bf16.mxu0 0
    %2230 = vmatpush1.bf16.msra.mxu0 0
    %2231 = vmatprep.subr.bf16.mxu0 0
    %2232 = vmatpush1.bf16.msra.mxu0 0
    %2233 = vmatprep.subr.bf16.mxu0 0
    %2234 = vmatpush1.bf16.msra.mxu0 0
    %2235 = vmatprep.subr.bf16.mxu0 0
    %2236 = vmatpush1.bf16.msra.mxu0 0
    %2237 = vmatprep.subr.bf16.mxu0 0
    %2238 = vmatpush1.bf16.msra.mxu0 0
    %2239 = vmatprep.subr.bf16.mxu0 0
    %2240 = vmatpush1.bf16.msra.mxu0 0
    %2241 = vmatprep.subr.bf16.mxu0 0
    %2242 = vmatpush1.bf16.msra.mxu0 0
    %2243 = vmatprep.subr.bf16.mxu0 0
    %2244 = vmatpush1.bf16.msra.mxu0 0
    %2245 = vmatprep.subr.bf16.mxu0 0
    %2246 = vmatpush1.bf16.msra.mxu0 0
    %2247 = vmatprep.subr.bf16.mxu0 0
    %2248 = vmatpush1.bf16.msra.mxu0 0
    %2249 = vmatprep.subr.bf16.mxu0 0
    %2250 = vmatpush1.bf16.msra.mxu0 0
    %2251 = vmatprep.subr.bf16.mxu0 0
    %2252 = vmatpush1.bf16.msra.mxu0 0
    %2253 = vmatprep.mubr.bf16.mxu0 0
    %2254 = vmatmul.mubr.bf16.gmra.mrb[0].mxu0 %v2216
    %v2255 = vpop.f32.mrb[0].mxu0
    %v2256 = vadd.f32 0.0, %v2255
    %v2257 = vpop.f32.mrb[0].mxu0
    %v2258 = vpop.f32.mrb[0].mxu0
    %v2259 = vpop.f32.mrb[0].mxu0
    %2260 = vdwg.mxu0
    %2261 = vrot.lane.b32.xlu0 %v2145, 112
    %v2262 = vpop.permute.xlu0 %2261
    %2263 = vrot.lane.b32.xlu0 %v2145, 80
    %v2264 = vpop.permute.xlu0 %2263
    %v2266 = vsel %vm878, %v2262, 0
    %v2269 = vsel %vm878, %v2264, 0
    %2271 = vmatprep.subr.bf16.mxu0 0
    %2272 = vmatpush1.bf16.xpose.msra.mxu0 %v2269
    %2273 = vmatprep.subr.bf16.mxu0 0
    %2274 = vmatpush1.bf16.xpose.msra.mxu0 0
    %2275 = vmatprep.subr.bf16.mxu0 0
    %2276 = vmatpush1.bf16.xpose.msra.mxu0 0
    %2277 = vmatprep.subr.bf16.mxu0 0
    %2278 = vmatpush1.bf16.xpose.msra.mxu0 0
    %2279 = vmatprep.subr.bf16.mxu0 0
    %2280 = vmatpush1.bf16.xpose.msra.mxu0 0
    %2281 = vmatprep.subr.bf16.mxu0 0
    %2282 = vmatpush1.bf16.xpose.msra.mxu0 0
    %2283 = vmatprep.subr.bf16.mxu0 0
    %2284 = vmatpush1.bf16.xpose.msra.mxu0 0
    %2285 = vmatprep.subr.bf16.mxu0 0
    %2286 = vmatpush1.bf16.xpose.msra.mxu0 0
    %2287 = vmatprep.subr.bf16.mxu0 0
    %2288 = vmatpush1.bf16.xpose.msra.mxu0 0
    %2289 = vmatprep.subr.bf16.mxu0 0
    %2290 = vmatpush1.bf16.xpose.msra.mxu0 0
    %2291 = vmatprep.subr.bf16.mxu0 0
    %2292 = vmatpush1.bf16.xpose.msra.mxu0 0
    %2293 = vmatprep.subr.bf16.mxu0 0
    %2294 = vmatpush1.bf16.xpose.msra.mxu0 0
    %2295 = vmatprep.subr.bf16.mxu0 0
    %2296 = vmatpush1.bf16.xpose.msra.mxu0 0
    %2297 = vmatprep.subr.bf16.mxu0 0
    %2298 = vmatpush1.bf16.xpose.msra.mxu0 0
    %2299 = vmatprep.subr.bf16.mxu0 0
    %2300 = vmatpush1.bf16.xpose.msra.mxu0 0
    %2301 = vmatprep.subr.bf16.mxu0 0
    %2302 = vmatpush1.bf16.xpose.msra.mxu0 0
    %2303 = vmatprep.mubr.bf16.mxu0 0
    %2304 = vmatmul.mubr.bf16.gmra.mrb[0].mxu0 %v2266
    %v2305 = vpop.f32.mrb[0].mxu0
    %v2306 = vadd.f32 0.0, %v2305
    %v2307 = vpop.f32.mrb[0].mxu0
    %v2308 = vpop.f32.mrb[0].mxu0
    %v2309 = vpop.f32.mrb[0].mxu0
    %2310 = vdwg.mxu0
    %v2311 = vmul.f32 %v2306, 0.25
    %v2312 = vadd.f32 %v2311, %v2199
    %v2313 = vsel %vm1179, %v2312, -inf
    %2314 = vmax.xlane.f32.xlu0 %v2313
    %v2315 = vpop.xlane.xlu0 %2314
    %v2316 = vsub.f32 %v2312, %v2315
    %v2317 = vmul.f32 %v2316, 1.442695
    %v2318 = vpow.pop %v2317
    %v2319 = vsel %vm1179, %v2318, 0.0
    %2320 = vadd.xlane.f32.xlu0 %v2319
    %v2321 = vpop.xlane.xlu0 %2320
    %v2322 = vrcp.pop %v2321
    %v2323 = vmul.f32 %v2318, %v2322
    %v2324 = vpack.c.bf16 %v2323, %v2323
    %2325 = vrot.lane.b32.xlu0 %v2145, 48
    %v2326 = vpop.permute.xlu0 %2325
    %v2328 = vsel %vm1179, %v2324, 0
    %v2331 = vsel %vm1197, %v2326, 0
    %2333 = vmatprep.subr.bf16.mxu0 0
    %2334 = vmatpush1.bf16.msra.mxu0 %v2331
    %2335 = vmatprep.subr.bf16.mxu0 0
    %2336 = vmatpush1.bf16.msra.mxu0 0
    %2337 = vmatprep.subr.bf16.mxu0 0
    %2338 = vmatpush1.bf16.msra.mxu0 0
    %2339 = vmatprep.subr.bf16.mxu0 0
    %2340 = vmatpush1.bf16.msra.mxu0 0
    %2341 = vmatprep.subr.bf16.mxu0 0
    %2342 = vmatpush1.bf16.msra.mxu0 0
    %2343 = vmatprep.subr.bf16.mxu0 0
    %2344 = vmatpush1.bf16.msra.mxu0 0
    %2345 = vmatprep.subr.bf16.mxu0 0
    %2346 = vmatpush1.bf16.msra.mxu0 0
    %2347 = vmatprep.subr.bf16.mxu0 0
    %2348 = vmatpush1.bf16.msra.mxu0 0
    %2349 = vmatprep.subr.bf16.mxu0 0
    %2350 = vmatpush1.bf16.msra.mxu0 0
    %2351 = vmatprep.subr.bf16.mxu0 0
    %2352 = vmatpush1.bf16.msra.mxu0 0
    %2353 = vmatprep.subr.bf16.mxu0 0
    %2354 = vmatpush1.bf16.msra.mxu0 0
    %2355 = vmatprep.subr.bf16.mxu0 0
    %2356 = vmatpush1.bf16.msra.mxu0 0
    %2357 = vmatprep.subr.bf16.mxu0 0
    %2358 = vmatpush1.bf16.msra.mxu0 0
    %2359 = vmatprep.subr.bf16.mxu0 0
    %2360 = vmatpush1.bf16.msra.mxu0 0
    %2361 = vmatprep.subr.bf16.mxu0 0
    %2362 = vmatpush1.bf16.msra.mxu0 0
    %2363 = vmatprep.subr.bf16.mxu0 0
    %2364 = vmatpush1.bf16.msra.mxu0 0
    %2365 = vmatprep.mubr.bf16.mxu0 0
    %2366 = vmatmul.mubr.bf16.gmra.mrb[0].mxu0 %v2328
    %v2367 = vpop.f32.mrb[0].mxu0
    %v2368 = vadd.f32 0.0, %v2367
    %v2369 = vpop.f32.mrb[0].mxu0
    %v2370 = vpop.f32.mrb[0].mxu0
    %v2371 = vpop.f32.mrb[0].mxu0
    %2372 = vdwg.mxu0
    %2374 = vrot.lane.b32.xlu0 %v2368, 16
    %v2375 = vpop.permute.xlu0 %2374
    %v2377 = vsel %vm878, %v2256, %v2375
    %v2378 = vpack.c.bf16 %v2377, %v2144
    %v2379 = vpack.c.bf16 %v747, %v746
    %v2380 = vpack.c.bf16 %v749, %v748
    %v2382 = vlaneseq
    %v2383 = vshrl.u32 %v2382, 7
    %v2384 = vsub.s32 0, %v2383
    %v2385 = vrot.slane %v745, %v2384
    %v2388 = vsel %vm824, %v2378, 0
    %2390 = vmatprep.subr.bf16.mxu0 0
    %2391 = vmatpush1.bf16.msra.mxu0 %v2379
    %2392 = vmatprep.subr.bf16.mxu0 0
    %2393 = vmatpush1.bf16.msra.mxu0 %v2380
    %2394 = vmatprep.subr.bf16.mxu0 0
    %2395 = vmatpush1.bf16.msra.mxu0 0
    %2396 = vmatprep.subr.bf16.mxu0 0
    %2397 = vmatpush1.bf16.msra.mxu0 0
    %2398 = vmatprep.subr.bf16.mxu0 0
    %2399 = vmatpush1.bf16.msra.mxu0 0
    %2400 = vmatprep.subr.bf16.mxu0 0
    %2401 = vmatpush1.bf16.msra.mxu0 0
    %2402 = vmatprep.subr.bf16.mxu0 0
    %2403 = vmatpush1.bf16.msra.mxu0 0
    %2404 = vmatprep.subr.bf16.mxu0 0
    %2405 = vmatpush1.bf16.msra.mxu0 0
    %2406 = vmatprep.subr.bf16.mxu0 0
    %2407 = vmatpush1.bf16.msra.mxu0 0
    %2408 = vmatprep.subr.bf16.mxu0 0
    %2409 = vmatpush1.bf16.msra.mxu0 0
    %2410 = vmatprep.subr.bf16.mxu0 0
    %2411 = vmatpush1.bf16.msra.mxu0 0
    %2412 = vmatprep.subr.bf16.mxu0 0
    %2413 = vmatpush1.bf16.msra.mxu0 0
    %2414 = vmatprep.subr.bf16.mxu0 0
    %2415 = vmatpush1.bf16.msra.mxu0 0
    %2416 = vmatprep.subr.bf16.mxu0 0
    %2417 = vmatpush1.bf16.msra.mxu0 0
    %2418 = vmatprep.subr.bf16.mxu0 0
    %2419 = vmatpush1.bf16.msra.mxu0 0
    %2420 = vmatprep.subr.bf16.mxu0 0
    %2421 = vmatpush1.bf16.msra.mxu0 0
    %2422 = vmatprep.mubr.bf16.mxu0 0
    %2423 = vmatmul.mubr.bf16.gmra.mrb[0].mxu0 %v2388
    %v2424 = vpop.f32.mrb[0].mxu0
    %v2425 = vadd.f32 %v2385, %v2424
    %v2426 = vpop.f32.mrb[0].mxu0
    %v2427 = vpop.f32.mrb[0].mxu0
    %v2428 = vadd.f32 %v2385, %v2427
    %v2429 = vpop.f32.mrb[0].mxu0
    %2430 = vdwg.mxu0
    %v2431 = vadd.f32 %v2425, %v1068
    %v2432 = vadd.f32 %v2428, %v1069
    %v2433 = vsel %vm824, %v2431, 0.0
    %2434 = vadd.xlane.f32.xlu0 %v2433
    %v2435 = vpop.xlane.xlu0 %2434
    %v2436 = vsel %vm824, %v2432, 0.0
    %2437 = vadd.xlane.f32.xlu0 %v2436
    %v2438 = vpop.xlane.xlu0 %2437
    %v2439 = vmul.f32 %v2435, %v831
    %v2440 = vmul.f32 %v2438, %v831
    %v2441 = vsub.f32 %v2431, %v2439
    %v2442 = vsub.f32 %v2432, %v2440
    %v2443 = vmul.f32 %v2441, %v2441
    %v2444 = vmul.f32 %v2442, %v2442
    %v2445 = vsel %vm824, %v2443, 0.0
    %2446 = vadd.xlane.f32.xlu0 %v2445
    %v2447 = vpop.xlane.xlu0 %2446
    %v2448 = vsel %vm824, %v2444, 0.0
    %2449 = vadd.xlane.f32.xlu0 %v2448
    %v2450 = vpop.xlane.xlu0 %2449
    %v2451 = vmul.f32 %v2447, %v831
    %v2452 = vmul.f32 %v2450, %v831
    %v2453 = vadd.f32 %v2451, 1e-12
    %v2454 = vadd.f32 %v2452, 1e-12
    %v2455 = vrsqrt.pop %v2453
    %v2456 = vrsqrt.pop %v2454
    %v2457 = vmul.f32 %v2441, %v2455
    %v2458 = vmul.f32 %v2442, %v2456
    %v2460 = vlaneseq
    %v2461 = vshrl.u32 %v2460, 7
    %v2462 = vsub.s32 0, %v2461
    %v2463 = vrot.slane %v744, %v2462
    %v2465 = vmul.f32 %v2457, %v2463
    %v2466 = vmul.f32 %v2458, %v2463
    %v2468 = vlaneseq
    %v2469 = vshrl.u32 %v2468, 7
    %v2470 = vsub.s32 0, %v2469
    %v2471 = vrot.slane %v743, %v2470
    %v2473 = vadd.f32 %v2465, %v2471
    %v2474 = vadd.f32 %v2466, %v2471
    %v2475 = vpack.c.bf16 %v2474, %v2473
    %v2476 = vpack.c.bf16 %v757, %v756
    %v2477 = vpack.c.bf16 %v759, %v758
    %v2479 = vlaneseq
    %v2480 = vshrl.u32 %v2479, 7
    %v2481 = vsub.s32 0, %v2480
    %v2482 = vrot.slane %v755, %v2481
    %v2485 = vsel %vm824, %v2475, 0
    %2487 = vmatprep.subr.bf16.mxu0 0
    %2488 = vmatpush1.bf16.msra.mxu0 %v2476
    %2489 = vmatprep.subr.bf16.mxu0 0
    %2490 = vmatpush1.bf16.msra.mxu0 %v2477
    %2491 = vmatprep.subr.bf16.mxu0 0
    %2492 = vmatpush1.bf16.msra.mxu0 0
    %2493 = vmatprep.subr.bf16.mxu0 0
    %2494 = vmatpush1.bf16.msra.mxu0 0
    %2495 = vmatprep.subr.bf16.mxu0 0
    %2496 = vmatpush1.bf16.msra.mxu0 0
    %2497 = vmatprep.subr.bf16.mxu0 0
    %2498 = vmatpush1.bf16.msra.mxu0 0
    %2499 = vmatprep.subr.bf16.mxu0 0
    %2500 = vmatpush1.bf16.msra.mxu0 0
    %2501 = vmatprep.subr.bf16.mxu0 0
    %2502 = vmatpush1.bf16.msra.mxu0 0
    %2503 = vmatprep.subr.bf16.mxu0 0
    %2504 = vmatpush1.bf16.msra.mxu0 0
    %2505 = vmatprep.subr.bf16.mxu0 0
    %2506 = vmatpush1.bf16.msra.mxu0 0
    %2507 = vmatprep.subr.bf16.mxu0 0
    %2508 = vmatpush1.bf16.msra.mxu0 0
    %2509 = vmatprep.subr.bf16.mxu0 0
    %2510 = vmatpush1.bf16.msra.mxu0 0
    %2511 = vmatprep.subr.bf16.mxu0 0
    %2512 = vmatpush1.bf16.msra.mxu0 0
    %2513 = vmatprep.subr.bf16.mxu0 0
    %2514 = vmatpush1.bf16.msra.mxu0 0
    %2515 = vmatprep.subr.bf16.mxu0 0
    %2516 = vmatpush1.bf16.msra.mxu0 0
    %2517 = vmatprep.subr.bf16.mxu0 0
    %2518 = vmatpush1.bf16.msra.mxu0 0
    %2519 = vmatprep.mubr.bf16.mxu0 0
    %2520 = vmatmul.mubr.bf16.gmra.mrb[0].mxu0 %v2485
    %v2521 = vpop.f32.mrb[0].mxu0
    %v2522 = vadd.f32 %v2482, %v2521
    %v2523 = vpop.f32.mrb[0].mxu0
    %v2524 = vpop.f32.mrb[0].mxu0
    %v2525 = vadd.f32 %v2482, %v2524
    %v2526 = vpop.f32.mrb[0].mxu0
    %2527 = vdwg.mxu0
    %v2528 = vmul.f32 %v2522, 0.5
    %v2529 = vmul.f32 %v2525, 0.5
    %v2530 = vmul.f32 %v2522, 0.044715
    %v2531 = vmul.f32 %v2525, 0.044715
    %v2532 = vmul.f32 %v2530, %v2522
    %v2533 = vmul.f32 %v2531, %v2525
    %v2534 = vmul.f32 %v2532, %v2522
    %v2535 = vmul.f32 %v2533, %v2525
    %v2536 = vadd.f32 %v2522, %v2534
    %v2537 = vadd.f32 %v2525, %v2535
    %v2538 = vmul.f32 %v2536, 0.7978846
    %v2539 = vmul.f32 %v2537, 0.7978846
    %v2540 = vtanh.pop %v2538
    %v2541 = vtanh.pop %v2539
    %v2542 = vadd.f32 %v2540, 1.0
    %v2543 = vadd.f32 %v2541, 1.0
    %v2544 = vmul.f32 %v2528, %v2542
    %v2545 = vmul.f32 %v2529, %v2543
    %v2546 = vpack.c.bf16 %v2545, %v2544
    %v2547 = vpack.c.bf16 %v762, %v761
    %v2548 = vpack.c.bf16 %v764, %v763
    %v2549 = vpack.c.bf16 %v766, %v765
    %v2550 = vpack.c.bf16 %v768, %v767
    %v2552 = vlaneseq
    %v2553 = vshrl.u32 %v2552, 7
    %v2554 = vsub.s32 0, %v2553
    %v2555 = vrot.slane %v760, %v2554
    %v2558 = vsel %vm1770, %v2546, 0
    %2560 = vmatprep.subr.bf16.mxu0 0
    %2561 = vmatpush1.bf16.msra.mxu0 %v2547
    %2562 = vmatprep.subr.bf16.mxu0 0
    %2563 = vmatpush1.bf16.msra.mxu0 %v2548
    %2564 = vmatprep.subr.bf16.mxu0 0
    %2565 = vmatpush1.bf16.msra.mxu0 %v2549
    %2566 = vmatprep.subr.bf16.mxu0 0
    %2567 = vmatpush1.bf16.msra.mxu0 %v2550
    %2568 = vmatprep.subr.bf16.mxu0 0
    %2569 = vmatpush1.bf16.msra.mxu0 0
    %2570 = vmatprep.subr.bf16.mxu0 0
    %2571 = vmatpush1.bf16.msra.mxu0 0
    %2572 = vmatprep.subr.bf16.mxu0 0
    %2573 = vmatpush1.bf16.msra.mxu0 0
    %2574 = vmatprep.subr.bf16.mxu0 0
    %2575 = vmatpush1.bf16.msra.mxu0 0
    %2576 = vmatprep.subr.bf16.mxu0 0
    %2577 = vmatpush1.bf16.msra.mxu0 0
    %2578 = vmatprep.subr.bf16.mxu0 0
    %2579 = vmatpush1.bf16.msra.mxu0 0
    %2580 = vmatprep.subr.bf16.mxu0 0
    %2581 = vmatpush1.bf16.msra.mxu0 0
    %2582 = vmatprep.subr.bf16.mxu0 0
    %2583 = vmatpush1.bf16.msra.mxu0 0
    %2584 = vmatprep.subr.bf16.mxu0 0
    %2585 = vmatpush1.bf16.msra.mxu0 0
    %2586 = vmatprep.subr.bf16.mxu0 0
    %2587 = vmatpush1.bf16.msra.mxu0 0
    %2588 = vmatprep.subr.bf16.mxu0 0
    %2589 = vmatpush1.bf16.msra.mxu0 0
    %2590 = vmatprep.subr.bf16.mxu0 0
    %2591 = vmatpush1.bf16.msra.mxu0 0
    %2592 = vmatprep.mubr.bf16.mxu0 0
    %2593 = vmatmul.mubr.bf16.gmra.mrb[0].mxu0 %v2558
    %v2594 = vpop.f32.mrb[0].mxu0
    %v2595 = vadd.f32 %v2555, %v2594
    %v2596 = vpop.f32.mrb[0].mxu0
    %v2597 = vpop.f32.mrb[0].mxu0
    %v2598 = vadd.f32 %v2555, %v2597
    %v2599 = vpop.f32.mrb[0].mxu0
    %2600 = vdwg.mxu0
    %v2601 = vadd.f32 %v2595, %v2473
    %v2602 = vadd.f32 %v2598, %v2474
    %v2603 = vsel %vm824, %v2601, 0.0
    %2604 = vadd.xlane.f32.xlu0 %v2603
    %v2605 = vpop.xlane.xlu0 %2604
    %v2606 = vsel %vm824, %v2602, 0.0
    %2607 = vadd.xlane.f32.xlu0 %v2606
    %v2608 = vpop.xlane.xlu0 %2607
    %v2609 = vmul.f32 %v2605, %v831
    %v2610 = vmul.f32 %v2608, %v831
    %v2611 = vsub.f32 %v2601, %v2609
    %v2612 = vsub.f32 %v2602, %v2610
    %v2613 = vmul.f32 %v2611, %v2611
    %v2614 = vmul.f32 %v2612, %v2612
    %v2615 = vsel %vm824, %v2613, 0.0
    %2616 = vadd.xlane.f32.xlu0 %v2615
    %v2617 = vpop.xlane.xlu0 %2616
    %v2618 = vsel %vm824, %v2614, 0.0
    %2619 = vadd.xlane.f32.xlu0 %v2618
    %v2620 = vpop.xlane.xlu0 %2619
    %v2621 = vmul.f32 %v2617, %v831
    %v2622 = vmul.f32 %v2620, %v831
    %v2623 = vadd.f32 %v2621, 1e-12
    %v2624 = vadd.f32 %v2622, 1e-12
    %v2625 = vrsqrt.pop %v2623
    %v2626 = vrsqrt.pop %v2624
    %v2627 = vmul.f32 %v2611, %v2625
    %v2628 = vmul.f32 %v2612, %v2626
    %v2630 = vlaneseq
    %v2631 = vshrl.u32 %v2630, 7
    %v2632 = vsub.s32 0, %v2631
    %v2633 = vrot.slane %v770, %v2632
    %v2635 = vmul.f32 %v2627, %v2633
    %v2636 = vmul.f32 %v2628, %v2633
    %v2638 = vlaneseq
    %v2639 = vshrl.u32 %v2638, 7
    %v2640 = vsub.s32 0, %v2639
    %v2641 = vrot.slane %v769, %v2640
    %v2643 = vadd.f32 %v2635, %v2641
    %v2644 = vadd.f32 %v2636, %v2641
    %v2645 = vpack.c.bf16 %v1858, %v1857
    %v2646 = vpack.c.bf16 %v2644, %v2643
    %v2647 = vpack.c.bf16 %v789, %v788
    %v2648 = vpack.c.bf16 %v791, %v790
    %v2650 = vlaneseq
    %v2651 = vshrl.u32 %v2650, 7
    %v2652 = vsub.s32 0, %v2651
    %v2653 = vrot.slane %v787, %v2652
    %v2656 = vsel %vm824, %v2645, 0
    %v2659 = vsel %vm824, %v2646, 0
    %2661 = vmatprep.subr.bf16.mxu0 0
    %2662 = vmatpush1.bf16.msra.mxu0 %v2647
    %2663 = vmatprep.subr.bf16.mxu0 0
    %2664 = vmatpush1.bf16.msra.mxu0 %v2648
    %2665 = vmatprep.subr.bf16.mxu0 0
    %2666 = vmatpush1.bf16.msra.mxu0 0
    %2667 = vmatprep.subr.bf16.mxu0 0
    %2668 = vmatpush1.bf16.msra.mxu0 0
    %2669 = vmatprep.subr.bf16.mxu0 0
    %2670 = vmatpush1.bf16.msra.mxu0 0
    %2671 = vmatprep.subr.bf16.mxu0 0
    %2672 = vmatpush1.bf16.msra.mxu0 0
    %2673 = vmatprep.subr.bf16.mxu0 0
    %2674 = vmatpush1.bf16.msra.mxu0 0
    %2675 = vmatprep.subr.bf16.mxu0 0
    %2676 = vmatpush1.bf16.msra.mxu0 0
    %2677 = vmatprep.subr.bf16.mxu0 0
    %2678 = vmatpush1.bf16.msra.mxu0 0
    %2679 = vmatprep.subr.bf16.mxu0 0
    %2680 = vmatpush1.bf16.msra.mxu0 0
    %2681 = vmatprep.subr.bf16.mxu0 0
    %2682 = vmatpush1.bf16.msra.mxu0 0
    %2683 = vmatprep.subr.bf16.mxu0 0
    %2684 = vmatpush1.bf16.msra.mxu0 0
    %2685 = vmatprep.subr.bf16.mxu0 0
    %2686 = vmatpush1.bf16.msra.mxu0 0
    %2687 = vmatprep.subr.bf16.mxu0 0
    %2688 = vmatpush1.bf16.msra.mxu0 0
    %2689 = vmatprep.subr.bf16.mxu0 0
    %2690 = vmatpush1.bf16.msra.mxu0 0
    %2691 = vmatprep.subr.bf16.mxu0 0
    %2692 = vmatpush1.bf16.msra.mxu0 0
    %2693 = vmatprep.mubr.bf16.mxu0 0
    %2694 = vmatmul.mubr.bf16.gmra.mrb[0].mxu0 %v2656
    %v2695 = vpop.f32.mrb[0].mxu0
    %v2696 = vadd.f32 %v2653, %v2695
    %v2697 = vpop.f32.mrb[0].mxu0
    %v2698 = vpop.f32.mrb[0].mxu0
    %v2699 = vadd.f32 %v2653, %v2698
    %v2700 = vpop.f32.mrb[0].mxu0
    %2701 = vmatprep.mubr.bf16.mxu0 0
    %2702 = vmatmul.mubr.bf16.gmra.mrb[0].mxu0 %v2659
    %v2703 = vpop.f32.mrb[0].mxu0
    %v2704 = vadd.f32 %v2653, %v2703
    %v2705 = vpop.f32.mrb[0].mxu0
    %v2706 = vpop.f32.mrb[0].mxu0
    %v2707 = vadd.f32 %v2653, %v2706
    %v2708 = vpop.f32.mrb[0].mxu0
    %2709 = vdwg.mxu0
    %v2710 = vpack.c.bf16 %v2696, %v2696
    %v2711 = vpack.c.bf16 %v2704, %v2704
    %2713 = vrot.lane.b32.xlu0 %v2711, 96
    %v2714 = vpop.permute.xlu0 %2713
    %v2716 = vsel %vm878, %v2710, 0
    %v2719 = vsel %vm878, %v2714, 0
    %2721 = vmatprep.subr.bf16.mxu0 0
    %2722 = vmatpush1.bf16.xpose.msra.mxu0 %v2719
    %2723 = vmatprep.subr.bf16.mxu0 0
    %2724 = vmatpush1.bf16.xpose.msra.mxu0 0
    %2725 = vmatprep.subr.bf16.mxu0 0
    %2726 = vmatpush1.bf16.xpose.msra.mxu0 0
    %2727 = vmatprep.subr.bf16.mxu0 0
    %2728 = vmatpush1.bf16.xpose.msra.mxu0 0
    %2729 = vmatprep.subr.bf16.mxu0 0
    %2730 = vmatpush1.bf16.xpose.msra.mxu0 0
    %2731 = vmatprep.subr.bf16.mxu0 0
    %2732 = vmatpush1.bf16.xpose.msra.mxu0 0
    %2733 = vmatprep.subr.bf16.mxu0 0
    %2734 = vmatpush1.bf16.xpose.msra.mxu0 0
    %2735 = vmatprep.subr.bf16.mxu0 0
    %2736 = vmatpush1.bf16.xpose.msra.mxu0 0
    %2737 = vmatprep.subr.bf16.mxu0 0
    %2738 = vmatpush1.bf16.xpose.msra.mxu0 0
    %2739 = vmatprep.subr.bf16.mxu0 0
    %2740 = vmatpush1.bf16.xpose.msra.mxu0 0
    %2741 = vmatprep.subr.bf16.mxu0 0
    %2742 = vmatpush1.bf16.xpose.msra.mxu0 0
    %2743 = vmatprep.subr.bf16.mxu0 0
    %2744 = vmatpush1.bf16.xpose.msra.mxu0 0
    %2745 = vmatprep.subr.bf16.mxu0 0
    %2746 = vmatpush1.bf16.xpose.msra.mxu0 0
    %2747 = vmatprep.subr.bf16.mxu0 0
    %2748 = vmatpush1.bf16.xpose.msra.mxu0 0
    %2749 = vmatprep.subr.bf16.mxu0 0
    %2750 = vmatpush1.bf16.xpose.msra.mxu0 0
    %2751 = vmatprep.subr.bf16.mxu0 0
    %2752 = vmatpush1.bf16.xpose.msra.mxu0 0
    %2753 = vmatprep.mubr.bf16.mxu0 0
    %2754 = vmatmul.mubr.bf16.gmra.mrb[0].mxu0 %v2716
    %v2755 = vpop.f32.mrb[0].mxu0
    %v2756 = vadd.f32 0.0, %v2755
    %v2757 = vpop.f32.mrb[0].mxu0
    %v2758 = vpop.f32.mrb[0].mxu0
    %v2759 = vpop.f32.mrb[0].mxu0
    %2760 = vdwg.mxu0
    %v2761 = vmul.f32 %v2756, 0.25
    %v2762 = vadd.f32 %v2761, %v1966
    %v2763 = vsel %vm1179, %v2762, -inf
    %2764 = vmax.xlane.f32.xlu0 %v2763
    %v2765 = vpop.xlane.xlu0 %2764
    %v2766 = vsub.f32 %v2762, %v2765
    %v2767 = vmul.f32 %v2766, 1.442695
    %v2768 = vpow.pop %v2767
    %v2769 = vsel %vm1179, %v2768, 0.0
    %2770 = vadd.xlane.f32.xlu0 %v2769
    %v2771 = vpop.xlane.xlu0 %2770
    %v2772 = vrcp.pop %v2771
    %v2773 = vmul.f32 %v2768, %v2772
    %v2774 = vpack.c.bf16 %v2773, %v2773
    %2775 = vrot.lane.b32.xlu0 %v2711, 64
    %v2776 = vpop.permute.xlu0 %2775
    %v2778 = vsel %vm1179, %v2774, 0
    %v2781 = vsel %vm1197, %v2776, 0
    %2783 = vmatprep.subr.bf16.mxu0 0
    %2784 = vmatpush1.bf16.msra.mxu0 %v2781
    %2785 = vmatprep.subr.bf16.mxu0 0
    %2786 = vmatpush1.bf16.msra.mxu0 0
    %2787 = vmatprep.subr.bf16.mxu0 0
    %2788 = vmatpush1.bf16.msra.mxu0 0
    %2789 = vmatprep.subr.bf16.mxu0 0
    %2790 = vmatpush1.bf16.msra.mxu0 0
    %2791 = vmatprep.subr.bf16.mxu0 0
    %2792 = vmatpush1.bf16.msra.mxu0 0
    %2793 = vmatprep.subr.bf16.mxu0 0
    %2794 = vmatpush1.bf16.msra.mxu0 0
    %2795 = vmatprep.subr.bf16.mxu0 0
    %2796 = vmatpush1.bf16.msra.mxu0 0
    %2797 = vmatprep.subr.bf16.mxu0 0
    %2798 = vmatpush1.bf16.msra.mxu0 0
    %2799 = vmatprep.subr.bf16.mxu0 0
    %2800 = vmatpush1.bf16.msra.mxu0 0
    %2801 = vmatprep.subr.bf16.mxu0 0
    %2802 = vmatpush1.bf16.msra.mxu0 0
    %2803 = vmatprep.subr.bf16.mxu0 0
    %2804 = vmatpush1.bf16.msra.mxu0 0
    %2805 = vmatprep.subr.bf16.mxu0 0
    %2806 = vmatpush1.bf16.msra.mxu0 0
    %2807 = vmatprep.subr.bf16.mxu0 0
    %2808 = vmatpush1.bf16.msra.mxu0 0
    %2809 = vmatprep.subr.bf16.mxu0 0
    %2810 = vmatpush1.bf16.msra.mxu0 0
    %2811 = vmatprep.subr.bf16.mxu0 0
    %2812 = vmatpush1.bf16.msra.mxu0 0
    %2813 = vmatprep.subr.bf16.mxu0 0
    %2814 = vmatpush1.bf16.msra.mxu0 0
    %2815 = vmatprep.mubr.bf16.mxu0 0
    %2816 = vmatmul.mubr.bf16.gmra.mrb[0].mxu0 %v2778
    %v2817 = vpop.f32.mrb[0].mxu0
    %v2818 = vadd.f32 0.0, %v2817
    %v2819 = vpop.f32.mrb[0].mxu0
    %v2820 = vpop.f32.mrb[0].mxu0
    %v2821 = vpop.f32.mrb[0].mxu0
    %2822 = vdwg.mxu0
    %2824 = vrot.lane.b32.xlu0 %v2710, 112
    %v2825 = vpop.permute.xlu0 %2824
    %2826 = vrot.lane.b32.xlu0 %v2711, 80
    %v2827 = vpop.permute.xlu0 %2826
    %v2829 = vsel %vm878, %v2825, 0
    %v2832 = vsel %vm878, %v2827, 0
    %2834 = vmatprep.subr.bf16.mxu0 0
    %2835 = vmatpush1.bf16.xpose.msra.mxu0 %v2832
    %2836 = vmatprep.subr.bf16.mxu0 0
    %2837 = vmatpush1.bf16.xpose.msra.mxu0 0
    %2838 = vmatprep.subr.bf16.mxu0 0
    %2839 = vmatpush1.bf16.xpose.msra.mxu0 0
    %2840 = vmatprep.subr.bf16.mxu0 0
    %2841 = vmatpush1.bf16.xpose.msra.mxu0 0
    %2842 = vmatprep.subr.bf16.mxu0 0
    %2843 = vmatpush1.bf16.xpose.msra.mxu0 0
    %2844 = vmatprep.subr.bf16.mxu0 0
    %2845 = vmatpush1.bf16.xpose.msra.mxu0 0
    %2846 = vmatprep.subr.bf16.mxu0 0
    %2847 = vmatpush1.bf16.xpose.msra.mxu0 0
    %2848 = vmatprep.subr.bf16.mxu0 0
    %2849 = vmatpush1.bf16.xpose.msra.mxu0 0
    %2850 = vmatprep.subr.bf16.mxu0 0
    %2851 = vmatpush1.bf16.xpose.msra.mxu0 0
    %2852 = vmatprep.subr.bf16.mxu0 0
    %2853 = vmatpush1.bf16.xpose.msra.mxu0 0
    %2854 = vmatprep.subr.bf16.mxu0 0
    %2855 = vmatpush1.bf16.xpose.msra.mxu0 0
    %2856 = vmatprep.subr.bf16.mxu0 0
    %2857 = vmatpush1.bf16.xpose.msra.mxu0 0
    %2858 = vmatprep.subr.bf16.mxu0 0
    %2859 = vmatpush1.bf16.xpose.msra.mxu0 0
    %2860 = vmatprep.subr.bf16.mxu0 0
    %2861 = vmatpush1.bf16.xpose.msra.mxu0 0
    %2862 = vmatprep.subr.bf16.mxu0 0
    %2863 = vmatpush1.bf16.xpose.msra.mxu0 0
    %2864 = vmatprep.subr.bf16.mxu0 0
    %2865 = vmatpush1.bf16.xpose.msra.mxu0 0
    %2866 = vmatprep.mubr.bf16.mxu0 0
    %2867 = vmatmul.mubr.bf16.gmra.mrb[0].mxu0 %v2829
    %v2868 = vpop.f32.mrb[0].mxu0
    %v2869 = vadd.f32 0.0, %v2868
    %v2870 = vpop.f32.mrb[0].mxu0
    %v2871 = vpop.f32.mrb[0].mxu0
    %v2872 = vpop.f32.mrb[0].mxu0
    %2873 = vdwg.mxu0
    %v2874 = vmul.f32 %v2869, 0.25
    %v2875 = vadd.f32 %v2874, %v1966
    %v2876 = vsel %vm1179, %v2875, -inf
    %2877 = vmax.xlane.f32.xlu0 %v2876
    %v2878 = vpop.xlane.xlu0 %2877
    %v2879 = vsub.f32 %v2875, %v2878
    %v2880 = vmul.f32 %v2879, 1.442695
    %v2881 = vpow.pop %v2880
    %v2882 = vsel %vm1179, %v2881, 0.0
    %2883 = vadd.xlane.f32.xlu0 %v2882
    %v2884 = vpop.xlane.xlu0 %2883
    %v2885 = vrcp.pop %v2884
    %v2886 = vmul.f32 %v2881, %v2885
    %v2887 = vpack.c.bf16 %v2886, %v2886
    %2888 = vrot.lane.b32.xlu0 %v2711, 48
    %v2889 = vpop.permute.xlu0 %2888
    %v2891 = vsel %vm1179, %v2887, 0
    %v2894 = vsel %vm1197, %v2889, 0
    %2896 = vmatprep.subr.bf16.mxu0 0
    %2897 = vmatpush1.bf16.msra.mxu0 %v2894
    %2898 = vmatprep.subr.bf16.mxu0 0
    %2899 = vmatpush1.bf16.msra.mxu0 0
    %2900 = vmatprep.subr.bf16.mxu0 0
    %2901 = vmatpush1.bf16.msra.mxu0 0
    %2902 = vmatprep.subr.bf16.mxu0 0
    %2903 = vmatpush1.bf16.msra.mxu0 0
    %2904 = vmatprep.subr.bf16.mxu0 0
    %2905 = vmatpush1.bf16.msra.mxu0 0
    %2906 = vmatprep.subr.bf16.mxu0 0
    %2907 = vmatpush1.bf16.msra.mxu0 0
    %2908 = vmatprep.subr.bf16.mxu0 0
    %2909 = vmatpush1.bf16.msra.mxu0 0
    %2910 = vmatprep.subr.bf16.mxu0 0
    %2911 = vmatpush1.bf16.msra.mxu0 0
    %2912 = vmatprep.subr.bf16.mxu0 0
    %2913 = vmatpush1.bf16.msra.mxu0 0
    %2914 = vmatprep.subr.bf16.mxu0 0
    %2915 = vmatpush1.bf16.msra.mxu0 0
    %2916 = vmatprep.subr.bf16.mxu0 0
    %2917 = vmatpush1.bf16.msra.mxu0 0
    %2918 = vmatprep.subr.bf16.mxu0 0
    %2919 = vmatpush1.bf16.msra.mxu0 0
    %2920 = vmatprep.subr.bf16.mxu0 0
    %2921 = vmatpush1.bf16.msra.mxu0 0
    %2922 = vmatprep.subr.bf16.mxu0 0
    %2923 = vmatpush1.bf16.msra.mxu0 0
    %2924 = vmatprep.subr.bf16.mxu0 0
    %2925 = vmatpush1.bf16.msra.mxu0 0
    %2926 = vmatprep.subr.bf16.mxu0 0
    %2927 = vmatpush1.bf16.msra.mxu0 0
    %2928 = vmatprep.mubr.bf16.mxu0 0
    %2929 = vmatmul.mubr.bf16.gmra.mrb[0].mxu0 %v2891
    %v2930 = vpop.f32.mrb[0].mxu0
    %v2931 = vadd.f32 0.0, %v2930
    %v2932 = vpop.f32.mrb[0].mxu0
    %v2933 = vpop.f32.mrb[0].mxu0
    %v2934 = vpop.f32.mrb[0].mxu0
    %2935 = vdwg.mxu0
    %2937 = vrot.lane.b32.xlu0 %v2931, 16
    %v2938 = vpop.permute.xlu0 %2937
    %v2940 = vsel %vm878, %v2818, %v2938
    %v2941 = vpack.c.bf16 %v2699, %v2699
    %v2942 = vpack.c.bf16 %v2707, %v2707
    %2944 = vrot.lane.b32.xlu0 %v2942, 96
    %v2945 = vpop.permute.xlu0 %2944
    %v2947 = vsel %vm878, %v2941, 0
    %v2950 = vsel %vm878, %v2945, 0
    %2952 = vmatprep.subr.bf16.mxu0 0
    %2953 = vmatpush1.bf16.xpose.msra.mxu0 %v2950
    %2954 = vmatprep.subr.bf16.mxu0 0
    %2955 = vmatpush1.bf16.xpose.msra.mxu0 0
    %2956 = vmatprep.subr.bf16.mxu0 0
    %2957 = vmatpush1.bf16.xpose.msra.mxu0 0
    %2958 = vmatprep.subr.bf16.mxu0 0
    %2959 = vmatpush1.bf16.xpose.msra.mxu0 0
    %2960 = vmatprep.subr.bf16.mxu0 0
    %2961 = vmatpush1.bf16.xpose.msra.mxu0 0
    %2962 = vmatprep.subr.bf16.mxu0 0
    %2963 = vmatpush1.bf16.xpose.msra.mxu0 0
    %2964 = vmatprep.subr.bf16.mxu0 0
    %2965 = vmatpush1.bf16.xpose.msra.mxu0 0
    %2966 = vmatprep.subr.bf16.mxu0 0
    %2967 = vmatpush1.bf16.xpose.msra.mxu0 0
    %2968 = vmatprep.subr.bf16.mxu0 0
    %2969 = vmatpush1.bf16.xpose.msra.mxu0 0
    %2970 = vmatprep.subr.bf16.mxu0 0
    %2971 = vmatpush1.bf16.xpose.msra.mxu0 0
    %2972 = vmatprep.subr.bf16.mxu0 0
    %2973 = vmatpush1.bf16.xpose.msra.mxu0 0
    %2974 = vmatprep.subr.bf16.mxu0 0
    %2975 = vmatpush1.bf16.xpose.msra.mxu0 0
    %2976 = vmatprep.subr.bf16.mxu0 0
    %2977 = vmatpush1.bf16.xpose.msra.mxu0 0
    %2978 = vmatprep.subr.bf16.mxu0 0
    %2979 = vmatpush1.bf16.xpose.msra.mxu0 0
    %2980 = vmatprep.subr.bf16.mxu0 0
    %2981 = vmatpush1.bf16.xpose.msra.mxu0 0
    %2982 = vmatprep.subr.bf16.mxu0 0
    %2983 = vmatpush1.bf16.xpose.msra.mxu0 0
    %2984 = vmatprep.mubr.bf16.mxu0 0
    %2985 = vmatmul.mubr.bf16.gmra.mrb[0].mxu0 %v2947
    %v2986 = vpop.f32.mrb[0].mxu0
    %v2987 = vadd.f32 0.0, %v2986
    %v2988 = vpop.f32.mrb[0].mxu0
    %v2989 = vpop.f32.mrb[0].mxu0
    %v2990 = vpop.f32.mrb[0].mxu0
    %2991 = vdwg.mxu0
    %v2992 = vmul.f32 %v2987, 0.25
    %v2993 = vadd.f32 %v2992, %v2199
    %v2994 = vsel %vm1179, %v2993, -inf
    %2995 = vmax.xlane.f32.xlu0 %v2994
    %v2996 = vpop.xlane.xlu0 %2995
    %v2997 = vsub.f32 %v2993, %v2996
    %v2998 = vmul.f32 %v2997, 1.442695
    %v2999 = vpow.pop %v2998
    %v3000 = vsel %vm1179, %v2999, 0.0
    %3001 = vadd.xlane.f32.xlu0 %v3000
    %v3002 = vpop.xlane.xlu0 %3001
    %v3003 = vrcp.pop %v3002
    %v3004 = vmul.f32 %v2999, %v3003
    %v3005 = vpack.c.bf16 %v3004, %v3004
    %3006 = vrot.lane.b32.xlu0 %v2942, 64
    %v3007 = vpop.permute.xlu0 %3006
    %v3009 = vsel %vm1179, %v3005, 0
    %v3012 = vsel %vm1197, %v3007, 0
    %3014 = vmatprep.subr.bf16.mxu0 0
    %3015 = vmatpush1.bf16.msra.mxu0 %v3012
    %3016 = vmatprep.subr.bf16.mxu0 0
    %3017 = vmatpush1.bf16.msra.mxu0 0
    %3018 = vmatprep.subr.bf16.mxu0 0
    %3019 = vmatpush1.bf16.msra.mxu0 0
    %3020 = vmatprep.subr.bf16.mxu0 0
    %3021 = vmatpush1.bf16.msra.mxu0 0
    %3022 = vmatprep.subr.bf16.mxu0 0
    %3023 = vmatpush1.bf16.msra.mxu0 0
    %3024 = vmatprep.subr.bf16.mxu0 0
    %3025 = vmatpush1.bf16.msra.mxu0 0
    %3026 = vmatprep.subr.bf16.mxu0 0
    %3027 = vmatpush1.bf16.msra.mxu0 0
    %3028 = vmatprep.subr.bf16.mxu0 0
    %3029 = vmatpush1.bf16.msra.mxu0 0
    %3030 = vmatprep.subr.bf16.mxu0 0
    %3031 = vmatpush1.bf16.msra.mxu0 0
    %3032 = vmatprep.subr.bf16.mxu0 0
    %3033 = vmatpush1.bf16.msra.mxu0 0
    %3034 = vmatprep.subr.bf16.mxu0 0
    %3035 = vmatpush1.bf16.msra.mxu0 0
    %3036 = vmatprep.subr.bf16.mxu0 0
    %3037 = vmatpush1.bf16.msra.mxu0 0
    %3038 = vmatprep.subr.bf16.mxu0 0
    %3039 = vmatpush1.bf16.msra.mxu0 0
    %3040 = vmatprep.subr.bf16.mxu0 0
    %3041 = vmatpush1.bf16.msra.mxu0 0
    %3042 = vmatprep.subr.bf16.mxu0 0
    %3043 = vmatpush1.bf16.msra.mxu0 0
    %3044 = vmatprep.subr.bf16.mxu0 0
    %3045 = vmatpush1.bf16.msra.mxu0 0
    %3046 = vmatprep.mubr.bf16.mxu0 0
    %3047 = vmatmul.mubr.bf16.gmra.mrb[0].mxu0 %v3009
    %v3048 = vpop.f32.mrb[0].mxu0
    %v3049 = vadd.f32 0.0, %v3048
    %v3050 = vpop.f32.mrb[0].mxu0
    %v3051 = vpop.f32.mrb[0].mxu0
    %v3052 = vpop.f32.mrb[0].mxu0
    %3053 = vdwg.mxu0
    %3055 = vrot.lane.b32.xlu0 %v2941, 112
    %v3056 = vpop.permute.xlu0 %3055
    %3057 = vrot.lane.b32.xlu0 %v2942, 80
    %v3058 = vpop.permute.xlu0 %3057
    %v3060 = vsel %vm878, %v3056, 0
    %v3063 = vsel %vm878, %v3058, 0
    %3065 = vmatprep.subr.bf16.mxu0 0
    %3066 = vmatpush1.bf16.xpose.msra.mxu0 %v3063
    %3067 = vmatprep.subr.bf16.mxu0 0
    %3068 = vmatpush1.bf16.xpose.msra.mxu0 0
    %3069 = vmatprep.subr.bf16.mxu0 0
    %3070 = vmatpush1.bf16.xpose.msra.mxu0 0
    %3071 = vmatprep.subr.bf16.mxu0 0
    %3072 = vmatpush1.bf16.xpose.msra.mxu0 0
    %3073 = vmatprep.subr.bf16.mxu0 0
    %3074 = vmatpush1.bf16.xpose.msra.mxu0 0
    %3075 = vmatprep.subr.bf16.mxu0 0
    %3076 = vmatpush1.bf16.xpose.msra.mxu0 0
    %3077 = vmatprep.subr.bf16.mxu0 0
    %3078 = vmatpush1.bf16.xpose.msra.mxu0 0
    %3079 = vmatprep.subr.bf16.mxu0 0
    %3080 = vmatpush1.bf16.xpose.msra.mxu0 0
    %3081 = vmatprep.subr.bf16.mxu0 0
    %3082 = vmatpush1.bf16.xpose.msra.mxu0 0
    %3083 = vmatprep.subr.bf16.mxu0 0
    %3084 = vmatpush1.bf16.xpose.msra.mxu0 0
    %3085 = vmatprep.subr.bf16.mxu0 0
    %3086 = vmatpush1.bf16.xpose.msra.mxu0 0
    %3087 = vmatprep.subr.bf16.mxu0 0
    %3088 = vmatpush1.bf16.xpose.msra.mxu0 0
    %3089 = vmatprep.subr.bf16.mxu0 0
    %3090 = vmatpush1.bf16.xpose.msra.mxu0 0
    %3091 = vmatprep.subr.bf16.mxu0 0
    %3092 = vmatpush1.bf16.xpose.msra.mxu0 0
    %3093 = vmatprep.subr.bf16.mxu0 0
    %3094 = vmatpush1.bf16.xpose.msra.mxu0 0
    %3095 = vmatprep.subr.bf16.mxu0 0
    %3096 = vmatpush1.bf16.xpose.msra.mxu0 0
    %3097 = vmatprep.mubr.bf16.mxu0 0
    %3098 = vmatmul.mubr.bf16.gmra.mrb[0].mxu0 %v3060
    %v3099 = vpop.f32.mrb[0].mxu0
    %v3100 = vadd.f32 0.0, %v3099
    %v3101 = vpop.f32.mrb[0].mxu0
    %v3102 = vpop.f32.mrb[0].mxu0
    %v3103 = vpop.f32.mrb[0].mxu0
    %3104 = vdwg.mxu0
    %v3105 = vmul.f32 %v3100, 0.25
    %v3106 = vadd.f32 %v3105, %v2199
    %v3107 = vsel %vm1179, %v3106, -inf
    %3108 = vmax.xlane.f32.xlu0 %v3107
    %v3109 = vpop.xlane.xlu0 %3108
    %v3110 = vsub.f32 %v3106, %v3109
    %v3111 = vmul.f32 %v3110, 1.442695
    %v3112 = vpow.pop %v3111
    %v3113 = vsel %vm1179, %v3112, 0.0
    %3114 = vadd.xlane.f32.xlu0 %v3113
    %v3115 = vpop.xlane.xlu0 %3114
    %v3116 = vrcp.pop %v3115
    %v3117 = vmul.f32 %v3112, %v3116
    %v3118 = vpack.c.bf16 %v3117, %v3117
    %3119 = vrot.lane.b32.xlu0 %v2942, 48
    %v3120 = vpop.permute.xlu0 %3119
    %v3122 = vsel %vm1179, %v3118, 0
    %v3125 = vsel %vm1197, %v3120, 0
    %3127 = vmatprep.subr.bf16.mxu0 0
    %3128 = vmatpush1.bf16.msra.mxu0 %v3125
    %3129 = vmatprep.subr.bf16.mxu0 0
    %3130 = vmatpush1.bf16.msra.mxu0 0
    %3131 = vmatprep.subr.bf16.mxu0 0
    %3132 = vmatpush1.bf16.msra.mxu0 0
    %3133 = vmatprep.subr.bf16.mxu0 0
    %3134 = vmatpush1.bf16.msra.mxu0 0
    %3135 = vmatprep.subr.bf16.mxu0 0
    %3136 = vmatpush1.bf16.msra.mxu0 0
    %3137 = vmatprep.subr.bf16.mxu0 0
    %3138 = vmatpush1.bf16.msra.mxu0 0
    %3139 = vmatprep.subr.bf16.mxu0 0
    %3140 = vmatpush1.bf16.msra.mxu0 0
    %3141 = vmatprep.subr.bf16.mxu0 0
    %3142 = vmatpush1.bf16.msra.mxu0 0
    %3143 = vmatprep.subr.bf16.mxu0 0
    %3144 = vmatpush1.bf16.msra.mxu0 0
    %3145 = vmatprep.subr.bf16.mxu0 0
    %3146 = vmatpush1.bf16.msra.mxu0 0
    %3147 = vmatprep.subr.bf16.mxu0 0
    %3148 = vmatpush1.bf16.msra.mxu0 0
    %3149 = vmatprep.subr.bf16.mxu0 0
    %3150 = vmatpush1.bf16.msra.mxu0 0
    %3151 = vmatprep.subr.bf16.mxu0 0
    %3152 = vmatpush1.bf16.msra.mxu0 0
    %3153 = vmatprep.subr.bf16.mxu0 0
    %3154 = vmatpush1.bf16.msra.mxu0 0
    %3155 = vmatprep.subr.bf16.mxu0 0
    %3156 = vmatpush1.bf16.msra.mxu0 0
    %3157 = vmatprep.subr.bf16.mxu0 0
    %3158 = vmatpush1.bf16.msra.mxu0 0
    %3159 = vmatprep.mubr.bf16.mxu0 0
    %3160 = vmatmul.mubr.bf16.gmra.mrb[0].mxu0 %v3122
    %v3161 = vpop.f32.mrb[0].mxu0
    %v3162 = vadd.f32 0.0, %v3161
    %v3163 = vpop.f32.mrb[0].mxu0
    %v3164 = vpop.f32.mrb[0].mxu0
    %v3165 = vpop.f32.mrb[0].mxu0
    %3166 = vdwg.mxu0
    %3168 = vrot.lane.b32.xlu0 %v3162, 16
    %v3169 = vpop.permute.xlu0 %3168
    %v3171 = vsel %vm878, %v3049, %v3169
    %3172 = vrot.lane.b32.xlu0 %v2710, 96
    %v3173 = vpop.permute.xlu0 %3172
    %v3175 = vsel %vm878, %v2711, 0
    %v3178 = vsel %vm878, %v3173, 0
    %3180 = vmatprep.subr.bf16.mxu0 0
    %3181 = vmatpush1.bf16.xpose.msra.mxu0 %v3178
    %3182 = vmatprep.subr.bf16.mxu0 0
    %3183 = vmatpush1.bf16.xpose.msra.mxu0 0
    %3184 = vmatprep.subr.bf16.mxu0 0
    %3185 = vmatpush1.bf16.xpose.msra.mxu0 0
    %3186 = vmatprep.subr.bf16.mxu0 0
    %3187 = vmatpush1.bf16.xpose.msra.mxu0 0
    %3188 = vmatprep.subr.bf16.mxu0 0
    %3189 = vmatpush1.bf16.xpose.msra.mxu0 0
    %3190 = vmatprep.subr.bf16.mxu0 0
    %3191 = vmatpush1.bf16.xpose.msra.mxu0 0
    %3192 = vmatprep.subr.bf16.mxu0 0
    %3193 = vmatpush1.bf16.xpose.msra.mxu0 0
    %3194 = vmatprep.subr.bf16.mxu0 0
    %3195 = vmatpush1.bf16.xpose.msra.mxu0 0
    %3196 = vmatprep.subr.bf16.mxu0 0
    %3197 = vmatpush1.bf16.xpose.msra.mxu0 0
    %3198 = vmatprep.subr.bf16.mxu0 0
    %3199 = vmatpush1.bf16.xpose.msra.mxu0 0
    %3200 = vmatprep.subr.bf16.mxu0 0
    %3201 = vmatpush1.bf16.xpose.msra.mxu0 0
    %3202 = vmatprep.subr.bf16.mxu0 0
    %3203 = vmatpush1.bf16.xpose.msra.mxu0 0
    %3204 = vmatprep.subr.bf16.mxu0 0
    %3205 = vmatpush1.bf16.xpose.msra.mxu0 0
    %3206 = vmatprep.subr.bf16.mxu0 0
    %3207 = vmatpush1.bf16.xpose.msra.mxu0 0
    %3208 = vmatprep.subr.bf16.mxu0 0
    %3209 = vmatpush1.bf16.xpose.msra.mxu0 0
    %3210 = vmatprep.subr.bf16.mxu0 0
    %3211 = vmatpush1.bf16.xpose.msra.mxu0 0
    %3212 = vmatprep.mubr.bf16.mxu0 0
    %3213 = vmatmul.mubr.bf16.gmra.mrb[0].mxu0 %v3175
    %v3214 = vpop.f32.mrb[0].mxu0
    %v3215 = vadd.f32 0.0, %v3214
    %v3216 = vpop.f32.mrb[0].mxu0
    %v3217 = vpop.f32.mrb[0].mxu0
    %v3218 = vpop.f32.mrb[0].mxu0
    %3219 = vdwg.mxu0
    %v3220 = vmul.f32 %v3215, 0.25
    %v3221 = vadd.f32 %v3220, %v1177
    %v3222 = vsel %vm1179, %v3221, -inf
    %3223 = vmax.xlane.f32.xlu0 %v3222
    %v3224 = vpop.xlane.xlu0 %3223
    %v3225 = vsub.f32 %v3221, %v3224
    %v3226 = vmul.f32 %v3225, 1.442695
    %v3227 = vpow.pop %v3226
    %v3228 = vsel %vm1179, %v3227, 0.0
    %3229 = vadd.xlane.f32.xlu0 %v3228
    %v3230 = vpop.xlane.xlu0 %3229
    %v3231 = vrcp.pop %v3230
    %v3232 = vmul.f32 %v3227, %v3231
    %v3233 = vpack.c.bf16 %v3232, %v3232
    %3234 = vrot.lane.b32.xlu0 %v2710, 64
    %v3235 = vpop.permute.xlu0 %3234
    %v3237 = vsel %vm1179, %v3233, 0
    %v3240 = vsel %vm1197, %v3235, 0
    %3242 = vmatprep.subr.bf16.mxu0 0
    %3243 = vmatpush1.bf16.msra.mxu0 %v3240
    %3244 = vmatprep.subr.bf16.mxu0 0
    %3245 = vmatpush1.bf16.msra.mxu0 0
    %3246 = vmatprep.subr.bf16.mxu0 0
    %3247 = vmatpush1.bf16.msra.mxu0 0
    %3248 = vmatprep.subr.bf16.mxu0 0
    %3249 = vmatpush1.bf16.msra.mxu0 0
    %3250 = vmatprep.subr.bf16.mxu0 0
    %3251 = vmatpush1.bf16.msra.mxu0 0
    %3252 = vmatprep.subr.bf16.mxu0 0
    %3253 = vmatpush1.bf16.msra.mxu0 0
    %3254 = vmatprep.subr.bf16.mxu0 0
    %3255 = vmatpush1.bf16.msra.mxu0 0
    %3256 = vmatprep.subr.bf16.mxu0 0
    %3257 = vmatpush1.bf16.msra.mxu0 0
    %3258 = vmatprep.subr.bf16.mxu0 0
    %3259 = vmatpush1.bf16.msra.mxu0 0
    %3260 = vmatprep.subr.bf16.mxu0 0
    %3261 = vmatpush1.bf16.msra.mxu0 0
    %3262 = vmatprep.subr.bf16.mxu0 0
    %3263 = vmatpush1.bf16.msra.mxu0 0
    %3264 = vmatprep.subr.bf16.mxu0 0
    %3265 = vmatpush1.bf16.msra.mxu0 0
    %3266 = vmatprep.subr.bf16.mxu0 0
    %3267 = vmatpush1.bf16.msra.mxu0 0
    %3268 = vmatprep.subr.bf16.mxu0 0
    %3269 = vmatpush1.bf16.msra.mxu0 0
    %3270 = vmatprep.subr.bf16.mxu0 0
    %3271 = vmatpush1.bf16.msra.mxu0 0
    %3272 = vmatprep.subr.bf16.mxu0 0
    %3273 = vmatpush1.bf16.msra.mxu0 0
    %3274 = vmatprep.mubr.bf16.mxu0 0
    %3275 = vmatmul.mubr.bf16.gmra.mrb[0].mxu0 %v3237
    %v3276 = vpop.f32.mrb[0].mxu0
    %v3277 = vadd.f32 0.0, %v3276
    %v3278 = vpop.f32.mrb[0].mxu0
    %v3279 = vpop.f32.mrb[0].mxu0
    %v3280 = vpop.f32.mrb[0].mxu0
    %3281 = vdwg.mxu0
    %3282 = vrot.lane.b32.xlu0 %v2711, 112
    %v3283 = vpop.permute.xlu0 %3282
    %3284 = vrot.lane.b32.xlu0 %v2710, 80
    %v3285 = vpop.permute.xlu0 %3284
    %v3287 = vsel %vm878, %v3283, 0
    %v3290 = vsel %vm878, %v3285, 0
    %3292 = vmatprep.subr.bf16.mxu0 0
    %3293 = vmatpush1.bf16.xpose.msra.mxu0 %v3290
    %3294 = vmatprep.subr.bf16.mxu0 0
    %3295 = vmatpush1.bf16.xpose.msra.mxu0 0
    %3296 = vmatprep.subr.bf16.mxu0 0
    %3297 = vmatpush1.bf16.xpose.msra.mxu0 0
    %3298 = vmatprep.subr.bf16.mxu0 0
    %3299 = vmatpush1.bf16.xpose.msra.mxu0 0
    %3300 = vmatprep.subr.bf16.mxu0 0
    %3301 = vmatpush1.bf16.xpose.msra.mxu0 0
    %3302 = vmatprep.subr.bf16.mxu0 0
    %3303 = vmatpush1.bf16.xpose.msra.mxu0 0
    %3304 = vmatprep.subr.bf16.mxu0 0
    %3305 = vmatpush1.bf16.xpose.msra.mxu0 0
    %3306 = vmatprep.subr.bf16.mxu0 0
    %3307 = vmatpush1.bf16.xpose.msra.mxu0 0
    %3308 = vmatprep.subr.bf16.mxu0 0
    %3309 = vmatpush1.bf16.xpose.msra.mxu0 0
    %3310 = vmatprep.subr.bf16.mxu0 0
    %3311 = vmatpush1.bf16.xpose.msra.mxu0 0
    %3312 = vmatprep.subr.bf16.mxu0 0
    %3313 = vmatpush1.bf16.xpose.msra.mxu0 0
    %3314 = vmatprep.subr.bf16.mxu0 0
    %3315 = vmatpush1.bf16.xpose.msra.mxu0 0
    %3316 = vmatprep.subr.bf16.mxu0 0
    %3317 = vmatpush1.bf16.xpose.msra.mxu0 0
    %3318 = vmatprep.subr.bf16.mxu0 0
    %3319 = vmatpush1.bf16.xpose.msra.mxu0 0
    %3320 = vmatprep.subr.bf16.mxu0 0
    %3321 = vmatpush1.bf16.xpose.msra.mxu0 0
    %3322 = vmatprep.subr.bf16.mxu0 0
    %3323 = vmatpush1.bf16.xpose.msra.mxu0 0
    %3324 = vmatprep.mubr.bf16.mxu0 0
    %3325 = vmatmul.mubr.bf16.gmra.mrb[0].mxu0 %v3287
    %v3326 = vpop.f32.mrb[0].mxu0
    %v3327 = vadd.f32 0.0, %v3326
    %v3328 = vpop.f32.mrb[0].mxu0
    %v3329 = vpop.f32.mrb[0].mxu0
    %v3330 = vpop.f32.mrb[0].mxu0
    %3331 = vdwg.mxu0
    %v3332 = vmul.f32 %v3327, 0.25
    %v3333 = vadd.f32 %v3332, %v1177
    %v3334 = vsel %vm1179, %v3333, -inf
    %3335 = vmax.xlane.f32.xlu0 %v3334
    %v3336 = vpop.xlane.xlu0 %3335
    %v3337 = vsub.f32 %v3333, %v3336
    %v3338 = vmul.f32 %v3337, 1.442695
    %v3339 = vpow.pop %v3338
    %v3340 = vsel %vm1179, %v3339, 0.0
    %3341 = vadd.xlane.f32.xlu0 %v3340
    %v3342 = vpop.xlane.xlu0 %3341
    %v3343 = vrcp.pop %v3342
    %v3344 = vmul.f32 %v3339, %v3343
    %v3345 = vpack.c.bf16 %v3344, %v3344
    %3346 = vrot.lane.b32.xlu0 %v2710, 48
    %v3347 = vpop.permute.xlu0 %3346
    %v3349 = vsel %vm1179, %v3345, 0
    %v3352 = vsel %vm1197, %v3347, 0
    %3354 = vmatprep.subr.bf16.mxu0 0
    %3355 = vmatpush1.bf16.msra.mxu0 %v3352
    %3356 = vmatprep.subr.bf16.mxu0 0
    %3357 = vmatpush1.bf16.msra.mxu0 0
    %3358 = vmatprep.subr.bf16.mxu0 0
    %3359 = vmatpush1.bf16.msra.mxu0 0
    %3360 = vmatprep.subr.bf16.mxu0 0
    %3361 = vmatpush1.bf16.msra.mxu0 0
    %3362 = vmatprep.subr.bf16.mxu0 0
    %3363 = vmatpush1.bf16.msra.mxu0 0
    %3364 = vmatprep.subr.bf16.mxu0 0
    %3365 = vmatpush1.bf16.msra.mxu0 0
    %3366 = vmatprep.subr.bf16.mxu0 0
    %3367 = vmatpush1.bf16.msra.mxu0 0
    %3368 = vmatprep.subr.bf16.mxu0 0
    %3369 = vmatpush1.bf16.msra.mxu0 0
    %3370 = vmatprep.subr.bf16.mxu0 0
    %3371 = vmatpush1.bf16.msra.mxu0 0
    %3372 = vmatprep.subr.bf16.mxu0 0
    %3373 = vmatpush1.bf16.msra.mxu0 0
    %3374 = vmatprep.subr.bf16.mxu0 0
    %3375 = vmatpush1.bf16.msra.mxu0 0
    %3376 = vmatprep.subr.bf16.mxu0 0
    %3377 = vmatpush1.bf16.msra.mxu0 0
    %3378 = vmatprep.subr.bf16.mxu0 0
    %3379 = vmatpush1.bf16.msra.mxu0 0
    %3380 = vmatprep.subr.bf16.mxu0 0
    %3381 = vmatpush1.bf16.msra.mxu0 0
    %3382 = vmatprep.subr.bf16.mxu0 0
    %3383 = vmatpush1.bf16.msra.mxu0 0
    %3384 = vmatprep.subr.bf16.mxu0 0
    %3385 = vmatpush1.bf16.msra.mxu0 0
    %3386 = vmatprep.mubr.bf16.mxu0 0
    %3387 = vmatmul.mubr.bf16.gmra.mrb[0].mxu0 %v3349
    %v3388 = vpop.f32.mrb[0].mxu0
    %v3389 = vadd.f32 0.0, %v3388
    %v3390 = vpop.f32.mrb[0].mxu0
    %v3391 = vpop.f32.mrb[0].mxu0
    %v3392 = vpop.f32.mrb[0].mxu0
    %3393 = vdwg.mxu0
    %3395 = vrot.lane.b32.xlu0 %v3389, 16
    %v3396 = vpop.permute.xlu0 %3395
    %v3398 = vsel %vm878, %v3277, %v3396
    %3399 = vrot.lane.b32.xlu0 %v2941, 96
    %v3400 = vpop.permute.xlu0 %3399
    %v3402 = vsel %vm878, %v2942, 0
    %v3405 = vsel %vm878, %v3400, 0
    %3407 = vmatprep.subr.bf16.mxu0 0
    %3408 = vmatpush1.bf16.xpose.msra.mxu0 %v3405
    %3409 = vmatprep.subr.bf16.mxu0 0
    %3410 = vmatpush1.bf16.xpose.msra.mxu0 0
    %3411 = vmatprep.subr.bf16.mxu0 0
    %3412 = vmatpush1.bf16.xpose.msra.mxu0 0
    %3413 = vmatprep.subr.bf16.mxu0 0
    %3414 = vmatpush1.bf16.xpose.msra.mxu0 0
    %3415 = vmatprep.subr.bf16.mxu0 0
    %3416 = vmatpush1.bf16.xpose.msra.mxu0 0
    %3417 = vmatprep.subr.bf16.mxu0 0
    %3418 = vmatpush1.bf16.xpose.msra.mxu0 0
    %3419 = vmatprep.subr.bf16.mxu0 0
    %3420 = vmatpush1.bf16.xpose.msra.mxu0 0
    %3421 = vmatprep.subr.bf16.mxu0 0
    %3422 = vmatpush1.bf16.xpose.msra.mxu0 0
    %3423 = vmatprep.subr.bf16.mxu0 0
    %3424 = vmatpush1.bf16.xpose.msra.mxu0 0
    %3425 = vmatprep.subr.bf16.mxu0 0
    %3426 = vmatpush1.bf16.xpose.msra.mxu0 0
    %3427 = vmatprep.subr.bf16.mxu0 0
    %3428 = vmatpush1.bf16.xpose.msra.mxu0 0
    %3429 = vmatprep.subr.bf16.mxu0 0
    %3430 = vmatpush1.bf16.xpose.msra.mxu0 0
    %3431 = vmatprep.subr.bf16.mxu0 0
    %3432 = vmatpush1.bf16.xpose.msra.mxu0 0
    %3433 = vmatprep.subr.bf16.mxu0 0
    %3434 = vmatpush1.bf16.xpose.msra.mxu0 0
    %3435 = vmatprep.subr.bf16.mxu0 0
    %3436 = vmatpush1.bf16.xpose.msra.mxu0 0
    %3437 = vmatprep.subr.bf16.mxu0 0
    %3438 = vmatpush1.bf16.xpose.msra.mxu0 0
    %3439 = vmatprep.mubr.bf16.mxu0 0
    %3440 = vmatmul.mubr.bf16.gmra.mrb[0].mxu0 %v3402
    %v3441 = vpop.f32.mrb[0].mxu0
    %v3442 = vadd.f32 0.0, %v3441
    %v3443 = vpop.f32.mrb[0].mxu0
    %v3444 = vpop.f32.mrb[0].mxu0
    %v3445 = vpop.f32.mrb[0].mxu0
    %3446 = vdwg.mxu0
    %v3447 = vmul.f32 %v3442, 0.25
    %v3448 = vadd.f32 %v3447, %v1412
    %v3449 = vsel %vm1179, %v3448, -inf
    %3450 = vmax.xlane.f32.xlu0 %v3449
    %v3451 = vpop.xlane.xlu0 %3450
    %v3452 = vsub.f32 %v3448, %v3451
    %v3453 = vmul.f32 %v3452, 1.442695
    %v3454 = vpow.pop %v3453
    %v3455 = vsel %vm1179, %v3454, 0.0
    %3456 = vadd.xlane.f32.xlu0 %v3455
    %v3457 = vpop.xlane.xlu0 %3456
    %v3458 = vrcp.pop %v3457
    %v3459 = vmul.f32 %v3454, %v3458
    %v3460 = vpack.c.bf16 %v3459, %v3459
    %3461 = vrot.lane.b32.xlu0 %v2941, 64
    %v3462 = vpop.permute.xlu0 %3461
    %v3464 = vsel %vm1179, %v3460, 0
    %v3467 = vsel %vm1197, %v3462, 0
    %3469 = vmatprep.subr.bf16.mxu0 0
    %3470 = vmatpush1.bf16.msra.mxu0 %v3467
    %3471 = vmatprep.subr.bf16.mxu0 0
    %3472 = vmatpush1.bf16.msra.mxu0 0
    %3473 = vmatprep.subr.bf16.mxu0 0
    %3474 = vmatpush1.bf16.msra.mxu0 0
    %3475 = vmatprep.subr.bf16.mxu0 0
    %3476 = vmatpush1.bf16.msra.mxu0 0
    %3477 = vmatprep.subr.bf16.mxu0 0
    %3478 = vmatpush1.bf16.msra.mxu0 0
    %3479 = vmatprep.subr.bf16.mxu0 0
    %3480 = vmatpush1.bf16.msra.mxu0 0
    %3481 = vmatprep.subr.bf16.mxu0 0
    %3482 = vmatpush1.bf16.msra.mxu0 0
    %3483 = vmatprep.subr.bf16.mxu0 0
    %3484 = vmatpush1.bf16.msra.mxu0 0
    %3485 = vmatprep.subr.bf16.mxu0 0
    %3486 = vmatpush1.bf16.msra.mxu0 0
    %3487 = vmatprep.subr.bf16.mxu0 0
    %3488 = vmatpush1.bf16.msra.mxu0 0
    %3489 = vmatprep.subr.bf16.mxu0 0
    %3490 = vmatpush1.bf16.msra.mxu0 0
    %3491 = vmatprep.subr.bf16.mxu0 0
    %3492 = vmatpush1.bf16.msra.mxu0 0
    %3493 = vmatprep.subr.bf16.mxu0 0
    %3494 = vmatpush1.bf16.msra.mxu0 0
    %3495 = vmatprep.subr.bf16.mxu0 0
    %3496 = vmatpush1.bf16.msra.mxu0 0
    %3497 = vmatprep.subr.bf16.mxu0 0
    %3498 = vmatpush1.bf16.msra.mxu0 0
    %3499 = vmatprep.subr.bf16.mxu0 0
    %3500 = vmatpush1.bf16.msra.mxu0 0
    %3501 = vmatprep.mubr.bf16.mxu0 0
    %3502 = vmatmul.mubr.bf16.gmra.mrb[0].mxu0 %v3464
    %v3503 = vpop.f32.mrb[0].mxu0
    %v3504 = vadd.f32 0.0, %v3503
    %v3505 = vpop.f32.mrb[0].mxu0
    %v3506 = vpop.f32.mrb[0].mxu0
    %v3507 = vpop.f32.mrb[0].mxu0
    %3508 = vdwg.mxu0
    %3509 = vrot.lane.b32.xlu0 %v2942, 112
    %v3510 = vpop.permute.xlu0 %3509
    %3511 = vrot.lane.b32.xlu0 %v2941, 80
    %v3512 = vpop.permute.xlu0 %3511
    %v3514 = vsel %vm878, %v3510, 0
    %v3517 = vsel %vm878, %v3512, 0
    %3519 = vmatprep.subr.bf16.mxu0 0
    %3520 = vmatpush1.bf16.xpose.msra.mxu0 %v3517
    %3521 = vmatprep.subr.bf16.mxu0 0
    %3522 = vmatpush1.bf16.xpose.msra.mxu0 0
    %3523 = vmatprep.subr.bf16.mxu0 0
    %3524 = vmatpush1.bf16.xpose.msra.mxu0 0
    %3525 = vmatprep.subr.bf16.mxu0 0
    %3526 = vmatpush1.bf16.xpose.msra.mxu0 0
    %3527 = vmatprep.subr.bf16.mxu0 0
    %3528 = vmatpush1.bf16.xpose.msra.mxu0 0
    %3529 = vmatprep.subr.bf16.mxu0 0
    %3530 = vmatpush1.bf16.xpose.msra.mxu0 0
    %3531 = vmatprep.subr.bf16.mxu0 0
    %3532 = vmatpush1.bf16.xpose.msra.mxu0 0
    %3533 = vmatprep.subr.bf16.mxu0 0
    %3534 = vmatpush1.bf16.xpose.msra.mxu0 0
    %3535 = vmatprep.subr.bf16.mxu0 0
    %3536 = vmatpush1.bf16.xpose.msra.mxu0 0
    %3537 = vmatprep.subr.bf16.mxu0 0
    %3538 = vmatpush1.bf16.xpose.msra.mxu0 0
    %3539 = vmatprep.subr.bf16.mxu0 0
    %3540 = vmatpush1.bf16.xpose.msra.mxu0 0
    %3541 = vmatprep.subr.bf16.mxu0 0
    %3542 = vmatpush1.bf16.xpose.msra.mxu0 0
    %3543 = vmatprep.subr.bf16.mxu0 0
    %3544 = vmatpush1.bf16.xpose.msra.mxu0 0
    %3545 = vmatprep.subr.bf16.mxu0 0
    %3546 = vmatpush1.bf16.xpose.msra.mxu0 0
    %3547 = vmatprep.subr.bf16.mxu0 0
    %3548 = vmatpush1.bf16.xpose.msra.mxu0 0
    %3549 = vmatprep.subr.bf16.mxu0 0
    %3550 = vmatpush1.bf16.xpose.msra.mxu0 0
    %3551 = vmatprep.mubr.bf16.mxu0 0
    %3552 = vmatmul.mubr.bf16.gmra.mrb[0].mxu0 %v3514
    %v3553 = vpop.f32.mrb[0].mxu0
    %v3554 = vadd.f32 0.0, %v3553
    %v3555 = vpop.f32.mrb[0].mxu0
    %v3556 = vpop.f32.mrb[0].mxu0
    %v3557 = vpop.f32.mrb[0].mxu0
    %3558 = vdwg.mxu0
    %v3559 = vmul.f32 %v3554, 0.25
    %v3560 = vadd.f32 %v3559, %v1412
    %v3561 = vsel %vm1179, %v3560, -inf
    %3562 = vmax.xlane.f32.xlu0 %v3561
    %v3563 = vpop.xlane.xlu0 %3562
    %v3564 = vsub.f32 %v3560, %v3563
    %v3565 = vmul.f32 %v3564, 1.442695
    %v3566 = vpow.pop %v3565
    %v3567 = vsel %vm1179, %v3566, 0.0
    %3568 = vadd.xlane.f32.xlu0 %v3567
    %v3569 = vpop.xlane.xlu0 %3568
    %v3570 = vrcp.pop %v3569
    %v3571 = vmul.f32 %v3566, %v3570
    %v3572 = vpack.c.bf16 %v3571, %v3571
    %3573 = vrot.lane.b32.xlu0 %v2941, 48
    %v3574 = vpop.permute.xlu0 %3573
    %v3576 = vsel %vm1179, %v3572, 0
    %v3579 = vsel %vm1197, %v3574, 0
    %3581 = vmatprep.subr.bf16.mxu0 0
    %3582 = vmatpush1.bf16.msra.mxu0 %v3579
    %3583 = vmatprep.subr.bf16.mxu0 0
    %3584 = vmatpush1.bf16.msra.mxu0 0
    %3585 = vmatprep.subr.bf16.mxu0 0
    %3586 = vmatpush1.bf16.msra.mxu0 0
    %3587 = vmatprep.subr.bf16.mxu0 0
    %3588 = vmatpush1.bf16.msra.mxu0 0
    %3589 = vmatprep.subr.bf16.mxu0 0
    %3590 = vmatpush1.bf16.msra.mxu0 0
    %3591 = vmatprep.subr.bf16.mxu0 0
    %3592 = vmatpush1.bf16.msra.mxu0 0
    %3593 = vmatprep.subr.bf16.mxu0 0
    %3594 = vmatpush1.bf16.msra.mxu0 0
    %3595 = vmatprep.subr.bf16.mxu0 0
    %3596 = vmatpush1.bf16.msra.mxu0 0
    %3597 = vmatprep.subr.bf16.mxu0 0
    %3598 = vmatpush1.bf16.msra.mxu0 0
    %3599 = vmatprep.subr.bf16.mxu0 0
    %3600 = vmatpush1.bf16.msra.mxu0 0
    %3601 = vmatprep.subr.bf16.mxu0 0
    %3602 = vmatpush1.bf16.msra.mxu0 0
    %3603 = vmatprep.subr.bf16.mxu0 0
    %3604 = vmatpush1.bf16.msra.mxu0 0
    %3605 = vmatprep.subr.bf16.mxu0 0
    %3606 = vmatpush1.bf16.msra.mxu0 0
    %3607 = vmatprep.subr.bf16.mxu0 0
    %3608 = vmatpush1.bf16.msra.mxu0 0
    %3609 = vmatprep.subr.bf16.mxu0 0
    %3610 = vmatpush1.bf16.msra.mxu0 0
    %3611 = vmatprep.subr.bf16.mxu0 0
    %3612 = vmatpush1.bf16.msra.mxu0 0
    %3613 = vmatprep.mubr.bf16.mxu0 0
    %3614 = vmatmul.mubr.bf16.gmra.mrb[0].mxu0 %v3576
    %v3615 = vpop.f32.mrb[0].mxu0
    %v3616 = vadd.f32 0.0, %v3615
    %v3617 = vpop.f32.mrb[0].mxu0
    %v3618 = vpop.f32.mrb[0].mxu0
    %v3619 = vpop.f32.mrb[0].mxu0
    %3620 = vdwg.mxu0
    %3622 = vrot.lane.b32.xlu0 %v3616, 16
    %v3623 = vpop.permute.xlu0 %3622
    %v3625 = vsel %vm878, %v3504, %v3623
    %v3626 = vpack.c.bf16 %v3171, %v2940
    %v3627 = vpack.c.bf16 %v3625, %v3398
    %v3628 = vpack.c.bf16 %v784, %v783
    %v3629 = vpack.c.bf16 %v786, %v785
    %v3631 = vlaneseq
    %v3632 = vshrl.u32 %v3631, 7
    %v3633 = vsub.s32 0, %v3632
    %v3634 = vrot.slane %v782, %v3633
    %v3637 = vsel %vm824, %v3626, 0
    %v3640 = vsel %vm824, %v3627, 0
    %3642 = vmatprep.subr.bf16.mxu0 0
    %3643 = vmatpush1.bf16.msra.mxu0 %v3628
    %3644 = vmatprep.subr.bf16.mxu0 0
    %3645 = vmatpush1.bf16.msra.mxu0 %v3629
    %3646 = vmatprep.subr.bf16.mxu0 0
    %3647 = vmatpush1.bf16.msra.mxu0 0
    %3648 = vmatprep.subr.bf16.mxu0 0
    %3649 = vmatpush1.bf16.msra.mxu0 0
    %3650 = vmatprep.subr.bf16.mxu0 0
    %3651 = vmatpush1.bf16.msra.mxu0 0
    %3652 = vmatprep.subr.bf16.mxu0 0
    %3653 = vmatpush1.bf16.msra.mxu0 0
    %3654 = vmatprep.subr.bf16.mxu0 0
    %3655 = vmatpush1.bf16.msra.mxu0 0
    %3656 = vmatprep.subr.bf16.mxu0 0
    %3657 = vmatpush1.bf16.msra.mxu0 0
    %3658 = vmatprep.subr.bf16.mxu0 0
    %3659 = vmatpush1.bf16.msra.mxu0 0
    %3660 = vmatprep.subr.bf16.mxu0 0
    %3661 = vmatpush1.bf16.msra.mxu0 0
    %3662 = vmatprep.subr.bf16.mxu0 0
    %3663 = vmatpush1.bf16.msra.mxu0 0
    %3664 = vmatprep.subr.bf16.mxu0 0
    %3665 = vmatpush1.bf16.msra.mxu0 0
    %3666 = vmatprep.subr.bf16.mxu0 0
    %3667 = vmatpush1.bf16.msra.mxu0 0
    %3668 = vmatprep.subr.bf16.mxu0 0
    %3669 = vmatpush1.bf16.msra.mxu0 0
    %3670 = vmatprep.subr.bf16.mxu0 0
    %3671 = vmatpush1.bf16.msra.mxu0 0
    %3672 = vmatprep.subr.bf16.mxu0 0
    %3673 = vmatpush1.bf16.msra.mxu0 0
    %3674 = vmatprep.mubr.bf16.mxu0 0
    %3675 = vmatmul.mubr.bf16.gmra.mrb[0].mxu0 %v3637
    %v3676 = vpop.f32.mrb[0].mxu0
    %v3677 = vadd.f32 %v3634, %v3676
    %v3678 = vpop.f32.mrb[0].mxu0
    %v3679 = vpop.f32.mrb[0].mxu0
    %v3680 = vadd.f32 %v3634, %v3679
    %v3681 = vpop.f32.mrb[0].mxu0
    %3682 = vmatprep.mubr.bf16.mxu0 0
    %3683 = vmatmul.mubr.bf16.gmra.mrb[0].mxu0 %v3640
    %v3684 = vpop.f32.mrb[0].mxu0
    %v3685 = vpop.f32.mrb[0].mxu0
    %v3686 = vpop.f32.mrb[0].mxu0
    %v3687 = vpop.f32.mrb[0].mxu0
    %3688 = vdwg.mxu0
    %v3689 = vadd.f32 %v3677, %v1857
    %v3690 = vadd.f32 %v3680, %v1858
    %v3691 = vsel %vm824, %v3689, 0.0
    %3692 = vadd.xlane.f32.xlu0 %v3691
    %v3693 = vpop.xlane.xlu0 %3692
    %v3694 = vsel %vm824, %v3690, 0.0
    %3695 = vadd.xlane.f32.xlu0 %v3694
    %v3696 = vpop.xlane.xlu0 %3695
    %v3697 = vmul.f32 %v3693, %v831
    %v3698 = vmul.f32 %v3696, %v831
    %v3699 = vsub.f32 %v3689, %v3697
    %v3700 = vsub.f32 %v3690, %v3698
    %v3701 = vmul.f32 %v3699, %v3699
    %v3702 = vmul.f32 %v3700, %v3700
    %v3703 = vsel %vm824, %v3701, 0.0
    %3704 = vadd.xlane.f32.xlu0 %v3703
    %v3705 = vpop.xlane.xlu0 %3704
    %v3706 = vsel %vm824, %v3702, 0.0
    %3707 = vadd.xlane.f32.xlu0 %v3706
    %v3708 = vpop.xlane.xlu0 %3707
    %v3709 = vmul.f32 %v3705, %v831
    %v3710 = vmul.f32 %v3708, %v831
    %v3711 = vadd.f32 %v3709, 1e-12
    %v3712 = vadd.f32 %v3710, 1e-12
    %v3713 = vrsqrt.pop %v3711
    %v3714 = vrsqrt.pop %v3712
    %v3715 = vmul.f32 %v3699, %v3713
    %v3716 = vmul.f32 %v3700, %v3714
    %v3718 = vlaneseq
    %v3719 = vshrl.u32 %v3718, 7
    %v3720 = vsub.s32 0, %v3719
    %v3721 = vrot.slane %v781, %v3720
    %v3723 = vmul.f32 %v3715, %v3721
    %v3724 = vmul.f32 %v3716, %v3721
    %v3726 = vlaneseq
    %v3727 = vshrl.u32 %v3726, 7
    %v3728 = vsub.s32 0, %v3727
    %v3729 = vrot.slane %v780, %v3728
    %v3731 = vadd.f32 %v3723, %v3729
    %v3732 = vadd.f32 %v3724, %v3729
    %v3733 = vpack.c.bf16 %v3732, %v3731
    %v3734 = vpack.c.bf16 %v817, %v816
    %v3735 = vpack.c.bf16 %v819, %v818
    %v3737 = vlaneseq
    %v3738 = vshrl.u32 %v3737, 7
    %v3739 = vsub.s32 0, %v3738
    %v3740 = vrot.slane %v815, %v3739
    %v3743 = vsel %vm824, %v3733, 0
    %3745 = vmatprep.subr.bf16.mxu0 0
    %3746 = vmatpush1.bf16.msra.mxu0 %v3734
    %3747 = vmatprep.subr.bf16.mxu0 0
    %3748 = vmatpush1.bf16.msra.mxu0 %v3735
    %3749 = vmatprep.subr.bf16.mxu0 0
    %3750 = vmatpush1.bf16.msra.mxu0 0
    %3751 = vmatprep.subr.bf16.mxu0 0
    %3752 = vmatpush1.bf16.msra.mxu0 0
    %3753 = vmatprep.subr.bf16.mxu0 0
    %3754 = vmatpush1.bf16.msra.mxu0 0
    %3755 = vmatprep.subr.bf16.mxu0 0
    %3756 = vmatpush1.bf16.msra.mxu0 0
    %3757 = vmatprep.subr.bf16.mxu0 0
    %3758 = vmatpush1.bf16.msra.mxu0 0
    %3759 = vmatprep.subr.bf16.mxu0 0
    %3760 = vmatpush1.bf16.msra.mxu0 0
    %3761 = vmatprep.subr.bf16.mxu0 0
    %3762 = vmatpush1.bf16.msra.mxu0 0
    %3763 = vmatprep.subr.bf16.mxu0 0
    %3764 = vmatpush1.bf16.msra.mxu0 0
    %3765 = vmatprep.subr.bf16.mxu0 0
    %3766 = vmatpush1.bf16.msra.mxu0 0
    %3767 = vmatprep.subr.bf16.mxu0 0
    %3768 = vmatpush1.bf16.msra.mxu0 0
    %3769 = vmatprep.subr.bf16.mxu0 0
    %3770 = vmatpush1.bf16.msra.mxu0 0
    %3771 = vmatprep.subr.bf16.mxu0 0
    %3772 = vmatpush1.bf16.msra.mxu0 0
    %3773 = vmatprep.subr.bf16.mxu0 0
    %3774 = vmatpush1.bf16.msra.mxu0 0
    %3775 = vmatprep.subr.bf16.mxu0 0
    %3776 = vmatpush1.bf16.msra.mxu0 0
    %3777 = vmatprep.mubr.bf16.mxu0 0
    %3778 = vmatmul.mubr.bf16.gmra.mrb[0].mxu0 %v3743
    %v3779 = vpop.f32.mrb[0].mxu0
    %v3780 = vadd.f32 %v3740, %v3779
    %v3781 = vpop.f32.mrb[0].mxu0
    %v3782 = vpop.f32.mrb[0].mxu0
    %v3783 = vadd.f32 %v3740, %v3782
    %v3784 = vpop.f32.mrb[0].mxu0
    %3785 = vdwg.mxu0
    %v3786 = vpack.c.bf16 %v3780, %v3780
    %3788 = vrot.lane.b32.xlu0 %v3786, 96
    %v3789 = vpop.permute.xlu0 %3788
    %v3791 = vsel %vm878, %v3786, 0
    %v3794 = vsel %vm878, %v3789, 0
    %3796 = vmatprep.subr.bf16.mxu0 0
    %3797 = vmatpush1.bf16.xpose.msra.mxu0 %v3794
    %3798 = vmatprep.subr.bf16.mxu0 0
    %3799 = vmatpush1.bf16.xpose.msra.mxu0 0
    %3800 = vmatprep.subr.bf16.mxu0 0
    %3801 = vmatpush1.bf16.xpose.msra.mxu0 0
    %3802 = vmatprep.subr.bf16.mxu0 0
    %3803 = vmatpush1.bf16.xpose.msra.mxu0 0
    %3804 = vmatprep.subr.bf16.mxu0 0
    %3805 = vmatpush1.bf16.xpose.msra.mxu0 0
    %3806 = vmatprep.subr.bf16.mxu0 0
    %3807 = vmatpush1.bf16.xpose.msra.mxu0 0
    %3808 = vmatprep.subr.bf16.mxu0 0
    %3809 = vmatpush1.bf16.xpose.msra.mxu0 0
    %3810 = vmatprep.subr.bf16.mxu0 0
    %3811 = vmatpush1.bf16.xpose.msra.mxu0 0
    %3812 = vmatprep.subr.bf16.mxu0 0
    %3813 = vmatpush1.bf16.xpose.msra.mxu0 0
    %3814 = vmatprep.subr.bf16.mxu0 0
    %3815 = vmatpush1.bf16.xpose.msra.mxu0 0
    %3816 = vmatprep.subr.bf16.mxu0 0
    %3817 = vmatpush1.bf16.xpose.msra.mxu0 0
    %3818 = vmatprep.subr.bf16.mxu0 0
    %3819 = vmatpush1.bf16.xpose.msra.mxu0 0
    %3820 = vmatprep.subr.bf16.mxu0 0
    %3821 = vmatpush1.bf16.xpose.msra.mxu0 0
    %3822 = vmatprep.subr.bf16.mxu0 0
    %3823 = vmatpush1.bf16.xpose.msra.mxu0 0
    %3824 = vmatprep.subr.bf16.mxu0 0
    %3825 = vmatpush1.bf16.xpose.msra.mxu0 0
    %3826 = vmatprep.subr.bf16.mxu0 0
    %3827 = vmatpush1.bf16.xpose.msra.mxu0 0
    %3828 = vmatprep.mubr.bf16.mxu0 0
    %3829 = vmatmul.mubr.bf16.gmra.mrb[0].mxu0 %v3791
    %v3830 = vpop.f32.mrb[0].mxu0
    %v3831 = vadd.f32 0.0, %v3830
    %v3832 = vpop.f32.mrb[0].mxu0
    %v3833 = vpop.f32.mrb[0].mxu0
    %v3834 = vpop.f32.mrb[0].mxu0
    %3835 = vdwg.mxu0
    %v3836 = vmul.f32 %v3831, 0.25
    %v3837 = vadd.f32 %v3836, %v1177
    %v3838 = vsel %vm1179, %v3837, -inf
    %3839 = vmax.xlane.f32.xlu0 %v3838
    %v3840 = vpop.xlane.xlu0 %3839
    %v3841 = vsub.f32 %v3837, %v3840
    %v3842 = vmul.f32 %v3841, 1.442695
    %v3843 = vpow.pop %v3842
    %v3844 = vsel %vm1179, %v3843, 0.0
    %3845 = vadd.xlane.f32.xlu0 %v3844
    %v3846 = vpop.xlane.xlu0 %3845
    %v3847 = vrcp.pop %v3846
    %v3848 = vmul.f32 %v3843, %v3847
    %v3849 = vpack.c.bf16 %v3848, %v3848
    %3850 = vrot.lane.b32.xlu0 %v3786, 64
    %v3851 = vpop.permute.xlu0 %3850
    %v3853 = vsel %vm1179, %v3849, 0
    %v3856 = vsel %vm1197, %v3851, 0
    %3858 = vmatprep.subr.bf16.mxu0 0
    %3859 = vmatpush1.bf16.msra.mxu0 %v3856
    %3860 = vmatprep.subr.bf16.mxu0 0
    %3861 = vmatpush1.bf16.msra.mxu0 0
    %3862 = vmatprep.subr.bf16.mxu0 0
    %3863 = vmatpush1.bf16.msra.mxu0 0
    %3864 = vmatprep.subr.bf16.mxu0 0
    %3865 = vmatpush1.bf16.msra.mxu0 0
    %3866 = vmatprep.subr.bf16.mxu0 0
    %3867 = vmatpush1.bf16.msra.mxu0 0
    %3868 = vmatprep.subr.bf16.mxu0 0
    %3869 = vmatpush1.bf16.msra.mxu0 0
    %3870 = vmatprep.subr.bf16.mxu0 0
    %3871 = vmatpush1.bf16.msra.mxu0 0
    %3872 = vmatprep.subr.bf16.mxu0 0
    %3873 = vmatpush1.bf16.msra.mxu0 0
    %3874 = vmatprep.subr.bf16.mxu0 0
    %3875 = vmatpush1.bf16.msra.mxu0 0
    %3876 = vmatprep.subr.bf16.mxu0 0
    %3877 = vmatpush1.bf16.msra.mxu0 0
    %3878 = vmatprep.subr.bf16.mxu0 0
    %3879 = vmatpush1.bf16.msra.mxu0 0
    %3880 = vmatprep.subr.bf16.mxu0 0
    %3881 = vmatpush1.bf16.msra.mxu0 0
    %3882 = vmatprep.subr.bf16.mxu0 0
    %3883 = vmatpush1.bf16.msra.mxu0 0
    %3884 = vmatprep.subr.bf16.mxu0 0
    %3885 = vmatpush1.bf16.msra.mxu0 0
    %3886 = vmatprep.subr.bf16.mxu0 0
    %3887 = vmatpush1.bf16.msra.mxu0 0
    %3888 = vmatprep.subr.bf16.mxu0 0
    %3889 = vmatpush1.bf16.msra.mxu0 0
    %3890 = vmatprep.mubr.bf16.mxu0 0
    %3891 = vmatmul.mubr.bf16.gmra.mrb[0].mxu0 %v3853
    %v3892 = vpop.f32.mrb[0].mxu0
    %v3893 = vadd.f32 0.0, %v3892
    %v3894 = vpop.f32.mrb[0].mxu0
    %v3895 = vpop.f32.mrb[0].mxu0
    %v3896 = vpop.f32.mrb[0].mxu0
    %3897 = vdwg.mxu0
    %3898 = vrot.lane.b32.xlu0 %v3786, 112
    %v3899 = vpop.permute.xlu0 %3898
    %3900 = vrot.lane.b32.xlu0 %v3786, 80
    %v3901 = vpop.permute.xlu0 %3900
    %v3903 = vsel %vm878, %v3899, 0
    %v3906 = vsel %vm878, %v3901, 0
    %3908 = vmatprep.subr.bf16.mxu0 0
    %3909 = vmatpush1.bf16.xpose.msra.mxu0 %v3906
    %3910 = vmatprep.subr.bf16.mxu0 0
    %3911 = vmatpush1.bf16.xpose.msra.mxu0 0
    %3912 = vmatprep.subr.bf16.mxu0 0
    %3913 = vmatpush1.bf16.xpose.msra.mxu0 0
    %3914 = vmatprep.subr.bf16.mxu0 0
    %3915 = vmatpush1.bf16.xpose.msra.mxu0 0
    %3916 = vmatprep.subr.bf16.mxu0 0
    %3917 = vmatpush1.bf16.xpose.msra.mxu0 0
    %3918 = vmatprep.subr.bf16.mxu0 0
    %3919 = vmatpush1.bf16.xpose.msra.mxu0 0
    %3920 = vmatprep.subr.bf16.mxu0 0
    %3921 = vmatpush1.bf16.xpose.msra.mxu0 0
    %3922 = vmatprep.subr.bf16.mxu0 0
    %3923 = vmatpush1.bf16.xpose.msra.mxu0 0
    %3924 = vmatprep.subr.bf16.mxu0 0
    %3925 = vmatpush1.bf16.xpose.msra.mxu0 0
    %3926 = vmatprep.subr.bf16.mxu0 0
    %3927 = vmatpush1.bf16.xpose.msra.mxu0 0
    %3928 = vmatprep.subr.bf16.mxu0 0
    %3929 = vmatpush1.bf16.xpose.msra.mxu0 0
    %3930 = vmatprep.subr.bf16.mxu0 0
    %3931 = vmatpush1.bf16.xpose.msra.mxu0 0
    %3932 = vmatprep.subr.bf16.mxu0 0
    %3933 = vmatpush1.bf16.xpose.msra.mxu0 0
    %3934 = vmatprep.subr.bf16.mxu0 0
    %3935 = vmatpush1.bf16.xpose.msra.mxu0 0
    %3936 = vmatprep.subr.bf16.mxu0 0
    %3937 = vmatpush1.bf16.xpose.msra.mxu0 0
    %3938 = vmatprep.subr.bf16.mxu0 0
    %3939 = vmatpush1.bf16.xpose.msra.mxu0 0
    %3940 = vmatprep.mubr.bf16.mxu0 0
    %3941 = vmatmul.mubr.bf16.gmra.mrb[0].mxu0 %v3903
    %v3942 = vpop.f32.mrb[0].mxu0
    %v3943 = vadd.f32 0.0, %v3942
    %v3944 = vpop.f32.mrb[0].mxu0
    %v3945 = vpop.f32.mrb[0].mxu0
    %v3946 = vpop.f32.mrb[0].mxu0
    %3947 = vdwg.mxu0
    %v3948 = vmul.f32 %v3943, 0.25
    %v3949 = vadd.f32 %v3948, %v1177
    %v3950 = vsel %vm1179, %v3949, -inf
    %3951 = vmax.xlane.f32.xlu0 %v3950
    %v3952 = vpop.xlane.xlu0 %3951
    %v3953 = vsub.f32 %v3949, %v3952
    %v3954 = vmul.f32 %v3953, 1.442695
    %v3955 = vpow.pop %v3954
    %v3956 = vsel %vm1179, %v3955, 0.0
    %3957 = vadd.xlane.f32.xlu0 %v3956
    %v3958 = vpop.xlane.xlu0 %3957
    %v3959 = vrcp.pop %v3958
    %v3960 = vmul.f32 %v3955, %v3959
    %v3961 = vpack.c.bf16 %v3960, %v3960
    %3962 = vrot.lane.b32.xlu0 %v3786, 48
    %v3963 = vpop.permute.xlu0 %3962
    %v3965 = vsel %vm1179, %v3961, 0
    %v3968 = vsel %vm1197, %v3963, 0
    %3970 = vmatprep.subr.bf16.mxu0 0
    %3971 = vmatpush1.bf16.msra.mxu0 %v3968
    %3972 = vmatprep.subr.bf16.mxu0 0
    %3973 = vmatpush1.bf16.msra.mxu0 0
    %3974 = vmatprep.subr.bf16.mxu0 0
    %3975 = vmatpush1.bf16.msra.mxu0 0
    %3976 = vmatprep.subr.bf16.mxu0 0
    %3977 = vmatpush1.bf16.msra.mxu0 0
    %3978 = vmatprep.subr.bf16.mxu0 0
    %3979 = vmatpush1.bf16.msra.mxu0 0
    %3980 = vmatprep.subr.bf16.mxu0 0
    %3981 = vmatpush1.bf16.msra.mxu0 0
    %3982 = vmatprep.subr.bf16.mxu0 0
    %3983 = vmatpush1.bf16.msra.mxu0 0
    %3984 = vmatprep.subr.bf16.mxu0 0
    %3985 = vmatpush1.bf16.msra.mxu0 0
    %3986 = vmatprep.subr.bf16.mxu0 0
    %3987 = vmatpush1.bf16.msra.mxu0 0
    %3988 = vmatprep.subr.bf16.mxu0 0
    %3989 = vmatpush1.bf16.msra.mxu0 0
    %3990 = vmatprep.subr.bf16.mxu0 0
    %3991 = vmatpush1.bf16.msra.mxu0 0
    %3992 = vmatprep.subr.bf16.mxu0 0
    %3993 = vmatpush1.bf16.msra.mxu0 0
    %3994 = vmatprep.subr.bf16.mxu0 0
    %3995 = vmatpush1.bf16.msra.mxu0 0
    %3996 = vmatprep.subr.bf16.mxu0 0
    %3997 = vmatpush1.bf16.msra.mxu0 0
    %3998 = vmatprep.subr.bf16.mxu0 0
    %3999 = vmatpush1.bf16.msra.mxu0 0
    %4000 = vmatprep.subr.bf16.mxu0 0
    %4001 = vmatpush1.bf16.msra.mxu0 0
    %4002 = vmatprep.mubr.bf16.mxu0 0
    %4003 = vmatmul.mubr.bf16.gmra.mrb[0].mxu0 %v3965
    %v4004 = vpop.f32.mrb[0].mxu0
    %v4005 = vadd.f32 0.0, %v4004
    %v4006 = vpop.f32.mrb[0].mxu0
    %v4007 = vpop.f32.mrb[0].mxu0
    %v4008 = vpop.f32.mrb[0].mxu0
    %4009 = vdwg.mxu0
    %4011 = vrot.lane.b32.xlu0 %v4005, 16
    %v4012 = vpop.permute.xlu0 %4011
    %v4014 = vsel %vm878, %v3893, %v4012
    %v4015 = vpack.c.bf16 %v3783, %v3783
    %4017 = vrot.lane.b32.xlu0 %v4015, 96
    %v4018 = vpop.permute.xlu0 %4017
    %v4020 = vsel %vm878, %v4015, 0
    %v4023 = vsel %vm878, %v4018, 0
    %4025 = vmatprep.subr.bf16.mxu0 0
    %4026 = vmatpush1.bf16.xpose.msra.mxu0 %v4023
    %4027 = vmatprep.subr.bf16.mxu0 0
    %4028 = vmatpush1.bf16.xpose.msra.mxu0 0
    %4029 = vmatprep.subr.bf16.mxu0 0
    %4030 = vmatpush1.bf16.xpose.msra.mxu0 0
    %4031 = vmatprep.subr.bf16.mxu0 0
    %4032 = vmatpush1.bf16.xpose.msra.mxu0 0
    %4033 = vmatprep.subr.bf16.mxu0 0
    %4034 = vmatpush1.bf16.xpose.msra.mxu0 0
    %4035 = vmatprep.subr.bf16.mxu0 0
    %4036 = vmatpush1.bf16.xpose.msra.mxu0 0
    %4037 = vmatprep.subr.bf16.mxu0 0
    %4038 = vmatpush1.bf16.xpose.msra.mxu0 0
    %4039 = vmatprep.subr.bf16.mxu0 0
    %4040 = vmatpush1.bf16.xpose.msra.mxu0 0
    %4041 = vmatprep.subr.bf16.mxu0 0
    %4042 = vmatpush1.bf16.xpose.msra.mxu0 0
    %4043 = vmatprep.subr.bf16.mxu0 0
    %4044 = vmatpush1.bf16.xpose.msra.mxu0 0
    %4045 = vmatprep.subr.bf16.mxu0 0
    %4046 = vmatpush1.bf16.xpose.msra.mxu0 0
    %4047 = vmatprep.subr.bf16.mxu0 0
    %4048 = vmatpush1.bf16.xpose.msra.mxu0 0
    %4049 = vmatprep.subr.bf16.mxu0 0
    %4050 = vmatpush1.bf16.xpose.msra.mxu0 0
    %4051 = vmatprep.subr.bf16.mxu0 0
    %4052 = vmatpush1.bf16.xpose.msra.mxu0 0
    %4053 = vmatprep.subr.bf16.mxu0 0
    %4054 = vmatpush1.bf16.xpose.msra.mxu0 0
    %4055 = vmatprep.subr.bf16.mxu0 0
    %4056 = vmatpush1.bf16.xpose.msra.mxu0 0
    %4057 = vmatprep.mubr.bf16.mxu0 0
    %4058 = vmatmul.mubr.bf16.gmra.mrb[0].mxu0 %v4020
    %v4059 = vpop.f32.mrb[0].mxu0
    %v4060 = vadd.f32 0.0, %v4059
    %v4061 = vpop.f32.mrb[0].mxu0
    %v4062 = vpop.f32.mrb[0].mxu0
    %v4063 = vpop.f32.mrb[0].mxu0
    %4064 = vdwg.mxu0
    %v4065 = vmul.f32 %v4060, 0.25
    %v4066 = vadd.f32 %v4065, %v1412
    %v4067 = vsel %vm1179, %v4066, -inf
    %4068 = vmax.xlane.f32.xlu0 %v4067
    %v4069 = vpop.xlane.xlu0 %4068
    %v4070 = vsub.f32 %v4066, %v4069
    %v4071 = vmul.f32 %v4070, 1.442695
    %v4072 = vpow.pop %v4071
    %v4073 = vsel %vm1179, %v4072, 0.0
    %4074 = vadd.xlane.f32.xlu0 %v4073
    %v4075 = vpop.xlane.xlu0 %4074
    %v4076 = vrcp.pop %v4075
    %v4077 = vmul.f32 %v4072, %v4076
    %v4078 = vpack.c.bf16 %v4077, %v4077
    %4079 = vrot.lane.b32.xlu0 %v4015, 64
    %v4080 = vpop.permute.xlu0 %4079
    %v4082 = vsel %vm1179, %v4078, 0
    %v4085 = vsel %vm1197, %v4080, 0
    %4087 = vmatprep.subr.bf16.mxu0 0
    %4088 = vmatpush1.bf16.msra.mxu0 %v4085
    %4089 = vmatprep.subr.bf16.mxu0 0
    %4090 = vmatpush1.bf16.msra.mxu0 0
    %4091 = vmatprep.subr.bf16.mxu0 0
    %4092 = vmatpush1.bf16.msra.mxu0 0
    %4093 = vmatprep.subr.bf16.mxu0 0
    %4094 = vmatpush1.bf16.msra.mxu0 0
    %4095 = vmatprep.subr.bf16.mxu0 0
    %4096 = vmatpush1.bf16.msra.mxu0 0
    %4097 = vmatprep.subr.bf16.mxu0 0
    %4098 = vmatpush1.bf16.msra.mxu0 0
    %4099 = vmatprep.subr.bf16.mxu0 0
    %4100 = vmatpush1.bf16.msra.mxu0 0
    %4101 = vmatprep.subr.bf16.mxu0 0
    %4102 = vmatpush1.bf16.msra.mxu0 0
    %4103 = vmatprep.subr.bf16.mxu0 0
    %4104 = vmatpush1.bf16.msra.mxu0 0
    %4105 = vmatprep.subr.bf16.mxu0 0
    %4106 = vmatpush1.bf16.msra.mxu0 0
    %4107 = vmatprep.subr.bf16.mxu0 0
    %4108 = vmatpush1.bf16.msra.mxu0 0
    %4109 = vmatprep.subr.bf16.mxu0 0
    %4110 = vmatpush1.bf16.msra.mxu0 0
    %4111 = vmatprep.subr.bf16.mxu0 0
    %4112 = vmatpush1.bf16.msra.mxu0 0
    %4113 = vmatprep.subr.bf16.mxu0 0
    %4114 = vmatpush1.bf16.msra.mxu0 0
    %4115 = vmatprep.subr.bf16.mxu0 0
    %4116 = vmatpush1.bf16.msra.mxu0 0
    %4117 = vmatprep.subr.bf16.mxu0 0
    %4118 = vmatpush1.bf16.msra.mxu0 0
    %4119 = vmatprep.mubr.bf16.mxu0 0
    %4120 = vmatmul.mubr.bf16.gmra.mrb[0].mxu0 %v4082
    %v4121 = vpop.f32.mrb[0].mxu0
    %v4122 = vadd.f32 0.0, %v4121
    %v4123 = vpop.f32.mrb[0].mxu0
    %v4124 = vpop.f32.mrb[0].mxu0
    %v4125 = vpop.f32.mrb[0].mxu0
    %4126 = vdwg.mxu0
    %4127 = vrot.lane.b32.xlu0 %v4015, 112
    %v4128 = vpop.permute.xlu0 %4127
    %4129 = vrot.lane.b32.xlu0 %v4015, 80
    %v4130 = vpop.permute.xlu0 %4129
    %v4132 = vsel %vm878, %v4128, 0
    %v4135 = vsel %vm878, %v4130, 0
    %4137 = vmatprep.subr.bf16.mxu0 0
    %4138 = vmatpush1.bf16.xpose.msra.mxu0 %v4135
    %4139 = vmatprep.subr.bf16.mxu0 0
    %4140 = vmatpush1.bf16.xpose.msra.mxu0 0
    %4141 = vmatprep.subr.bf16.mxu0 0
    %4142 = vmatpush1.bf16.xpose.msra.mxu0 0
    %4143 = vmatprep.subr.bf16.mxu0 0
    %4144 = vmatpush1.bf16.xpose.msra.mxu0 0
    %4145 = vmatprep.subr.bf16.mxu0 0
    %4146 = vmatpush1.bf16.xpose.msra.mxu0 0
    %4147 = vmatprep.subr.bf16.mxu0 0
    %4148 = vmatpush1.bf16.xpose.msra.mxu0 0
    %4149 = vmatprep.subr.bf16.mxu0 0
    %4150 = vmatpush1.bf16.xpose.msra.mxu0 0
    %4151 = vmatprep.subr.bf16.mxu0 0
    %4152 = vmatpush1.bf16.xpose.msra.mxu0 0
    %4153 = vmatprep.subr.bf16.mxu0 0
    %4154 = vmatpush1.bf16.xpose.msra.mxu0 0
    %4155 = vmatprep.subr.bf16.mxu0 0
    %4156 = vmatpush1.bf16.xpose.msra.mxu0 0
    %4157 = vmatprep.subr.bf16.mxu0 0
    %4158 = vmatpush1.bf16.xpose.msra.mxu0 0
    %4159 = vmatprep.subr.bf16.mxu0 0
    %4160 = vmatpush1.bf16.xpose.msra.mxu0 0
    %4161 = vmatprep.subr.bf16.mxu0 0
    %4162 = vmatpush1.bf16.xpose.msra.mxu0 0
    %4163 = vmatprep.subr.bf16.mxu0 0
    %4164 = vmatpush1.bf16.xpose.msra.mxu0 0
    %4165 = vmatprep.subr.bf16.mxu0 0
    %4166 = vmatpush1.bf16.xpose.msra.mxu0 0
    %4167 = vmatprep.subr.bf16.mxu0 0
    %4168 = vmatpush1.bf16.xpose.msra.mxu0 0
    %4169 = vmatprep.mubr.bf16.mxu0 0
    %4170 = vmatmul.mubr.bf16.gmra.mrb[0].mxu0 %v4132
    %v4171 = vpop.f32.mrb[0].mxu0
    %v4172 = vadd.f32 0.0, %v4171
    %v4173 = vpop.f32.mrb[0].mxu0
    %v4174 = vpop.f32.mrb[0].mxu0
    %v4175 = vpop.f32.mrb[0].mxu0
    %4176 = vdwg.mxu0
    %v4177 = vmul.f32 %v4172, 0.25
    %v4178 = vadd.f32 %v4177, %v1412
    %v4179 = vsel %vm1179, %v4178, -inf
    %4180 = vmax.xlane.f32.xlu0 %v4179
    %v4181 = vpop.xlane.xlu0 %4180
    %v4182 = vsub.f32 %v4178, %v4181
    %v4183 = vmul.f32 %v4182, 1.442695
    %v4184 = vpow.pop %v4183
    %v4185 = vsel %vm1179, %v4184, 0.0
    %4186 = vadd.xlane.f32.xlu0 %v4185
    %v4187 = vpop.xlane.xlu0 %4186
    %v4188 = vrcp.pop %v4187
    %v4189 = vmul.f32 %v4184, %v4188
    %v4190 = vpack.c.bf16 %v4189, %v4189
    %4191 = vrot.lane.b32.xlu0 %v4015, 48
    %v4192 = vpop.permute.xlu0 %4191
    %v4194 = vsel %vm1179, %v4190, 0
    %v4197 = vsel %vm1197, %v4192, 0
    %4199 = vmatprep.subr.bf16.mxu0 0
    %4200 = vmatpush1.bf16.msra.mxu0 %v4197
    %4201 = vmatprep.subr.bf16.mxu0 0
    %4202 = vmatpush1.bf16.msra.mxu0 0
    %4203 = vmatprep.subr.bf16.mxu0 0
    %4204 = vmatpush1.bf16.msra.mxu0 0
    %4205 = vmatprep.subr.bf16.mxu0 0
    %4206 = vmatpush1.bf16.msra.mxu0 0
    %4207 = vmatprep.subr.bf16.mxu0 0
    %4208 = vmatpush1.bf16.msra.mxu0 0
    %4209 = vmatprep.subr.bf16.mxu0 0
    %4210 = vmatpush1.bf16.msra.mxu0 0
    %4211 = vmatprep.subr.bf16.mxu0 0
    %4212 = vmatpush1.bf16.msra.mxu0 0
    %4213 = vmatprep.subr.bf16.mxu0 0
    %4214 = vmatpush1.bf16.msra.mxu0 0
    %4215 = vmatprep.subr.bf16.mxu0 0
    %4216 = vmatpush1.bf16.msra.mxu0 0
    %4217 = vmatprep.subr.bf16.mxu0 0
    %4218 = vmatpush1.bf16.msra.mxu0 0
    %4219 = vmatprep.subr.bf16.mxu0 0
    %4220 = vmatpush1.bf16.msra.mxu0 0
    %4221 = vmatprep.subr.bf16.mxu0 0
    %4222 = vmatpush1.bf16.msra.mxu0 0
    %4223 = vmatprep.subr.bf16.mxu0 0
    %4224 = vmatpush1.bf16.msra.mxu0 0
    %4225 = vmatprep.subr.bf16.mxu0 0
    %4226 = vmatpush1.bf16.msra.mxu0 0
    %4227 = vmatprep.subr.bf16.mxu0 0
    %4228 = vmatpush1.bf16.msra.mxu0 0
    %4229 = vmatprep.subr.bf16.mxu0 0
    %4230 = vmatpush1.bf16.msra.mxu0 0
    %4231 = vmatprep.mubr.bf16.mxu0 0
    %4232 = vmatmul.mubr.bf16.gmra.mrb[0].mxu0 %v4194
    %v4233 = vpop.f32.mrb[0].mxu0
    %v4234 = vadd.f32 0.0, %v4233
    %v4235 = vpop.f32.mrb[0].mxu0
    %v4236 = vpop.f32.mrb[0].mxu0
    %v4237 = vpop.f32.mrb[0].mxu0
    %4238 = vdwg.mxu0
    %4240 = vrot.lane.b32.xlu0 %v4234, 16
    %v4241 = vpop.permute.xlu0 %4240
    %v4243 = vsel %vm878, %v4122, %v4241
    %v4244 = vpack.c.bf16 %v4243, %v4014
    %v4245 = vpack.c.bf16 %v812, %v811
    %v4246 = vpack.c.bf16 %v814, %v813
    %v4248 = vlaneseq
    %v4249 = vshrl.u32 %v4248, 7
    %v4250 = vsub.s32 0, %v4249
    %v4251 = vrot.slane %v810, %v4250
    %v4254 = vsel %vm824, %v4244, 0
    %4256 = vmatprep.subr.bf16.mxu0 0
    %4257 = vmatpush1.bf16.msra.mxu0 %v4245
    %4258 = vmatprep.subr.bf16.mxu0 0
    %4259 = vmatpush1.bf16.msra.mxu0 %v4246
    %4260 = vmatprep.subr.bf16.mxu0 0
    %4261 = vmatpush1.bf16.msra.mxu0 0
    %4262 = vmatprep.subr.bf16.mxu0 0
    %4263 = vmatpush1.bf16.msra.mxu0 0
    %4264 = vmatprep.subr.bf16.mxu0 0
    %4265 = vmatpush1.bf16.msra.mxu0 0
    %4266 = vmatprep.subr.bf16.mxu0 0
    %4267 = vmatpush1.bf16.msra.mxu0 0
    %4268 = vmatprep.subr.bf16.mxu0 0
    %4269 = vmatpush1.bf16.msra.mxu0 0
    %4270 = vmatprep.subr.bf16.mxu0 0
    %4271 = vmatpush1.bf16.msra.mxu0 0
    %4272 = vmatprep.subr.bf16.mxu0 0
    %4273 = vmatpush1.bf16.msra.mxu0 0
    %4274 = vmatprep.subr.bf16.mxu0 0
    %4275 = vmatpush1.bf16.msra.mxu0 0
    %4276 = vmatprep.subr.bf16.mxu0 0
    %4277 = vmatpush1.bf16.msra.mxu0 0
    %4278 = vmatprep.subr.bf16.mxu0 0
    %4279 = vmatpush1.bf16.msra.mxu0 0
    %4280 = vmatprep.subr.bf16.mxu0 0
    %4281 = vmatpush1.bf16.msra.mxu0 0
    %4282 = vmatprep.subr.bf16.mxu0 0
    %4283 = vmatpush1.bf16.msra.mxu0 0
    %4284 = vmatprep.subr.bf16.mxu0 0
    %4285 = vmatpush1.bf16.msra.mxu0 0
    %4286 = vmatprep.subr.bf16.mxu0 0
    %4287 = vmatpush1.bf16.msra.mxu0 0
    %4288 = vmatprep.mubr.bf16.mxu0 0
    %4289 = vmatmul.mubr.bf16.gmra.mrb[0].mxu0 %v4254
    %v4290 = vpop.f32.mrb[0].mxu0
    %v4291 = vadd.f32 %v4251, %v4290
    %v4292 = vpop.f32.mrb[0].mxu0
    %v4293 = vpop.f32.mrb[0].mxu0
    %v4294 = vadd.f32 %v4251, %v4293
    %v4295 = vpop.f32.mrb[0].mxu0
    %4296 = vdwg.mxu0
    %v4297 = vadd.f32 %v4291, %v3731
    %v4298 = vadd.f32 %v4294, %v3732
    %v4299 = vsel %vm824, %v4297, 0.0
    %4300 = vadd.xlane.f32.xlu0 %v4299
    %v4301 = vpop.xlane.xlu0 %4300
    %v4302 = vsel %vm824, %v4298, 0.0
    %4303 = vadd.xlane.f32.xlu0 %v4302
    %v4304 = vpop.xlane.xlu0 %4303
    %v4305 = vmul.f32 %v4301, %v831
    %v4306 = vmul.f32 %v4304, %v831
    %v4307 = vsub.f32 %v4297, %v4305
    %v4308 = vsub.f32 %v4298, %v4306
    %v4309 = vmul.f32 %v4307, %v4307
    %v4310 = vmul.f32 %v4308, %v4308
    %v4311 = vsel %vm824, %v4309, 0.0
    %4312 = vadd.xlane.f32.xlu0 %v4311
    %v4313 = vpop.xlane.xlu0 %4312
    %v4314 = vsel %vm824, %v4310, 0.0
    %4315 = vadd.xlane.f32.xlu0 %v4314
    %v4316 = vpop.xlane.xlu0 %4315
    %v4317 = vmul.f32 %v4313, %v831
    %v4318 = vmul.f32 %v4316, %v831
    %v4319 = vadd.f32 %v4317, 1e-12
    %v4320 = vadd.f32 %v4318, 1e-12
    %v4321 = vrsqrt.pop %v4319
    %v4322 = vrsqrt.pop %v4320
    %v4323 = vmul.f32 %v4307, %v4321
    %v4324 = vmul.f32 %v4308, %v4322
    %v4326 = vlaneseq
    %v4327 = vshrl.u32 %v4326, 7
    %v4328 = vsub.s32 0, %v4327
    %v4329 = vrot.slane %v809, %v4328
    %v4331 = vmul.f32 %v4323, %v4329
    %v4332 = vmul.f32 %v4324, %v4329
    %v4334 = vlaneseq
    %v4335 = vshrl.u32 %v4334, 7
    %v4336 = vsub.s32 0, %v4335
    %v4337 = vrot.slane %v808, %v4336
    %v4339 = vadd.f32 %v4331, %v4337
    %v4340 = vadd.f32 %v4332, %v4337
    %v4341 = vpack.c.bf16 %v4340, %v4339
    %v4342 = vpack.c.bf16 %v794, %v793
    %v4343 = vpack.c.bf16 %v796, %v795
    %v4345 = vlaneseq
    %v4346 = vshrl.u32 %v4345, 7
    %v4347 = vsub.s32 0, %v4346
    %v4348 = vrot.slane %v792, %v4347
    %v4351 = vsel %vm824, %v4341, 0
    %4353 = vmatprep.subr.bf16.mxu0 0
    %4354 = vmatpush1.bf16.msra.mxu0 %v4342
    %4355 = vmatprep.subr.bf16.mxu0 0
    %4356 = vmatpush1.bf16.msra.mxu0 %v4343
    %4357 = vmatprep.subr.bf16.mxu0 0
    %4358 = vmatpush1.bf16.msra.mxu0 0
    %4359 = vmatprep.subr.bf16.mxu0 0
    %4360 = vmatpush1.bf16.msra.mxu0 0
    %4361 = vmatprep.subr.bf16.mxu0 0
    %4362 = vmatpush1.bf16.msra.mxu0 0
    %4363 = vmatprep.subr.bf16.mxu0 0
    %4364 = vmatpush1.bf16.msra.mxu0 0
    %4365 = vmatprep.subr.bf16.mxu0 0
    %4366 = vmatpush1.bf16.msra.mxu0 0
    %4367 = vmatprep.subr.bf16.mxu0 0
    %4368 = vmatpush1.bf16.msra.mxu0 0
    %4369 = vmatprep.subr.bf16.mxu0 0
    %4370 = vmatpush1.bf16.msra.mxu0 0
    %4371 = vmatprep.subr.bf16.mxu0 0
    %4372 = vmatpush1.bf16.msra.mxu0 0
    %4373 = vmatprep.subr.bf16.mxu0 0
    %4374 = vmatpush1.bf16.msra.mxu0 0
    %4375 = vmatprep.subr.bf16.mxu0 0
    %4376 = vmatpush1.bf16.msra.mxu0 0
    %4377 = vmatprep.subr.bf16.mxu0 0
    %4378 = vmatpush1.bf16.msra.mxu0 0
    %4379 = vmatprep.subr.bf16.mxu0 0
    %4380 = vmatpush1.bf16.msra.mxu0 0
    %4381 = vmatprep.subr.bf16.mxu0 0
    %4382 = vmatpush1.bf16.msra.mxu0 0
    %4383 = vmatprep.subr.bf16.mxu0 0
    %4384 = vmatpush1.bf16.msra.mxu0 0
    %4385 = vmatprep.mubr.bf16.mxu0 0
    %4386 = vmatmul.mubr.bf16.gmra.mrb[0].mxu0 %v4351
    %v4387 = vpop.f32.mrb[0].mxu0
    %v4388 = vadd.f32 %v4348, %v4387
    %v4389 = vpop.f32.mrb[0].mxu0
    %v4390 = vpop.f32.mrb[0].mxu0
    %v4391 = vadd.f32 %v4348, %v4390
    %v4392 = vpop.f32.mrb[0].mxu0
    %4393 = vdwg.mxu0
    %v4394 = vmul.f32 %v4388, 0.5
    %v4395 = vmul.f32 %v4391, 0.5
    %v4396 = vmul.f32 %v4388, 0.044715
    %v4397 = vmul.f32 %v4391, 0.044715
    %v4398 = vmul.f32 %v4396, %v4388
    %v4399 = vmul.f32 %v4397, %v4391
    %v4400 = vmul.f32 %v4398, %v4388
    %v4401 = vmul.f32 %v4399, %v4391
    %v4402 = vadd.f32 %v4388, %v4400
    %v4403 = vadd.f32 %v4391, %v4401
    %v4404 = vmul.f32 %v4402, 0.7978846
    %v4405 = vmul.f32 %v4403, 0.7978846
    %v4406 = vtanh.pop %v4404
    %v4407 = vtanh.pop %v4405
    %v4408 = vadd.f32 %v4406, 1.0
    %v4409 = vadd.f32 %v4407, 1.0
    %v4410 = vmul.f32 %v4394, %v4408
    %v4411 = vmul.f32 %v4395, %v4409
    %v4412 = vpack.c.bf16 %v4411, %v4410
    %v4413 = vpack.c.bf16 %v799, %v798
    %v4414 = vpack.c.bf16 %v801, %v800
    %v4415 = vpack.c.bf16 %v803, %v802
    %v4416 = vpack.c.bf16 %v805, %v804
    %v4418 = vlaneseq
    %v4419 = vshrl.u32 %v4418, 7
    %v4420 = vsub.s32 0, %v4419
    %v4421 = vrot.slane %v797, %v4420
    %v4424 = vsel %vm1770, %v4412, 0
    %4426 = vmatprep.subr.bf16.mxu0 0
    %4427 = vmatpush1.bf16.msra.mxu0 %v4413
    %4428 = vmatprep.subr.bf16.mxu0 0
    %4429 = vmatpush1.bf16.msra.mxu0 %v4414
    %4430 = vmatprep.subr.bf16.mxu0 0
    %4431 = vmatpush1.bf16.msra.mxu0 %v4415
    %4432 = vmatprep.subr.bf16.mxu0 0
    %4433 = vmatpush1.bf16.msra.mxu0 %v4416
    %4434 = vmatprep.subr.bf16.mxu0 0
    %4435 = vmatpush1.bf16.msra.mxu0 0
    %4436 = vmatprep.subr.bf16.mxu0 0
    %4437 = vmatpush1.bf16.msra.mxu0 0
    %4438 = vmatprep.subr.bf16.mxu0 0
    %4439 = vmatpush1.bf16.msra.mxu0 0
    %4440 = vmatprep.subr.bf16.mxu0 0
    %4441 = vmatpush1.bf16.msra.mxu0 0
    %4442 = vmatprep.subr.bf16.mxu0 0
    %4443 = vmatpush1.bf16.msra.mxu0 0
    %4444 = vmatprep.subr.bf16.mxu0 0
    %4445 = vmatpush1.bf16.msra.mxu0 0
    %4446 = vmatprep.subr.bf16.mxu0 0
    %4447 = vmatpush1.bf16.msra.mxu0 0
    %4448 = vmatprep.subr.bf16.mxu0 0
    %4449 = vmatpush1.bf16.msra.mxu0 0
    %4450 = vmatprep.subr.bf16.mxu0 0
    %4451 = vmatpush1.bf16.msra.mxu0 0
    %4452 = vmatprep.subr.bf16.mxu0 0
    %4453 = vmatpush1.bf16.msra.mxu0 0
    %4454 = vmatprep.subr.bf16.mxu0 0
    %4455 = vmatpush1.bf16.msra.mxu0 0
    %4456 = vmatprep.subr.bf16.mxu0 0
    %4457 = vmatpush1.bf16.msra.mxu0 0
    %4458 = vmatprep.mubr.bf16.mxu0 0
    %4459 = vmatmul.mubr.bf16.gmra.mrb[0].mxu0 %v4424
    %v4460 = vpop.f32.mrb[0].mxu0
    %v4461 = vadd.f32 %v4421, %v4460
    %v4462 = vpop.f32.mrb[0].mxu0
    %v4463 = vpop.f32.mrb[0].mxu0
    %v4464 = vadd.f32 %v4421, %v4463
    %v4465 = vpop.f32.mrb[0].mxu0
    %4466 = vdwg.mxu0
    %v4467 = vadd.f32 %v4461, %v4339
    %v4468 = vadd.f32 %v4464, %v4340
    %v4469 = vsel %vm824, %v4467, 0.0
    %4470 = vadd.xlane.f32.xlu0 %v4469
    %v4471 = vpop.xlane.xlu0 %4470
    %v4472 = vsel %vm824, %v4468, 0.0
    %4473 = vadd.xlane.f32.xlu0 %v4472
    %v4474 = vpop.xlane.xlu0 %4473
    %v4475 = vmul.f32 %v4471, %v831
    %v4476 = vmul.f32 %v4474, %v831
    %v4477 = vsub.f32 %v4467, %v4475
    %v4478 = vsub.f32 %v4468, %v4476
    %v4479 = vmul.f32 %v4477, %v4477
    %v4480 = vmul.f32 %v4478, %v4478
    %v4481 = vsel %vm824, %v4479, 0.0
    %4482 = vadd.xlane.f32.xlu0 %v4481
    %v4483 = vpop.xlane.xlu0 %4482
    %v4484 = vsel %vm824, %v4480, 0.0
    %4485 = vadd.xlane.f32.xlu0 %v4484
    %v4486 = vpop.xlane.xlu0 %4485
    %v4487 = vmul.f32 %v4483, %v831
    %v4488 = vmul.f32 %v4486, %v831
    %v4489 = vadd.f32 %v4487, 1e-12
    %v4490 = vadd.f32 %v4488, 1e-12
    %v4491 = vrsqrt.pop %v4489
    %v4492 = vrsqrt.pop %v4490
    %v4493 = vmul.f32 %v4477, %v4491
    %v4494 = vmul.f32 %v4478, %v4492
    %v4496 = vlaneseq
    %v4497 = vshrl.u32 %v4496, 7
    %v4498 = vsub.s32 0, %v4497
    %v4499 = vrot.slane %v807, %v4498
    %v4501 = vmul.f32 %v4493, %v4499
    %v4502 = vmul.f32 %v4494, %v4499
    %v4504 = vlaneseq
    %v4505 = vshrl.u32 %v4504, 7
    %v4506 = vsub.s32 0, %v4505
    %v4507 = vrot.slane %v806, %v4506
    %v4509 = vadd.f32 %v4501, %v4507
    %v4510 = vadd.f32 %v4502, %v4507
    %v4512 = vrot.slane %v4510, 7
    %vm4514 = vcmask 1040384
    %v4515 = vsel %vm4514, %v4509, %v4512
    %v4516 = vpack.c.bf16 %v4515, %v4515
    %v4517 = vpack.c.bf16 %v740, %v739
    %v4518 = vpack.c.bf16 %v742, %v741
    %v4520 = vlaneseq
    %v4521 = vshrl.u32 %v4520, 7
    %v4522 = vsub.s32 0, %v4521
    %v4523 = vrot.slane %v738, %v4522
    %v4526 = vsel %vm824, %v4516, 0
    %4528 = vmatprep.subr.bf16.mxu0 0
    %4529 = vmatpush1.bf16.msra.mxu0 %v4517
    %4530 = vmatprep.subr.bf16.mxu0 0
    %4531 = vmatpush1.bf16.msra.mxu0 %v4518
    %4532 = vmatprep.subr.bf16.mxu0 0
    %4533 = vmatpush1.bf16.msra.mxu0 0
    %4534 = vmatprep.subr.bf16.mxu0 0
    %4535 = vmatpush1.bf16.msra.mxu0 0
    %4536 = vmatprep.subr.bf16.mxu0 0
    %4537 = vmatpush1.bf16.msra.mxu0 0
    %4538 = vmatprep.subr.bf16.mxu0 0
    %4539 = vmatpush1.bf16.msra.mxu0 0
    %4540 = vmatprep.subr.bf16.mxu0 0
    %4541 = vmatpush1.bf16.msra.mxu0 0
    %4542 = vmatprep.subr.bf16.mxu0 0
    %4543 = vmatpush1.bf16.msra.mxu0 0
    %4544 = vmatprep.subr.bf16.mxu0 0
    %4545 = vmatpush1.bf16.msra.mxu0 0
    %4546 = vmatprep.subr.bf16.mxu0 0
    %4547 = vmatpush1.bf16.msra.mxu0 0
    %4548 = vmatprep.subr.bf16.mxu0 0
    %4549 = vmatpush1.bf16.msra.mxu0 0
    %4550 = vmatprep.subr.bf16.mxu0 0
    %4551 = vmatpush1.bf16.msra.mxu0 0
    %4552 = vmatprep.subr.bf16.mxu0 0
    %4553 = vmatpush1.bf16.msra.mxu0 0
    %4554 = vmatprep.subr.bf16.mxu0 0
    %4555 = vmatpush1.bf16.msra.mxu0 0
    %4556 = vmatprep.subr.bf16.mxu0 0
    %4557 = vmatpush1.bf16.msra.mxu0 0
    %4558 = vmatprep.subr.bf16.mxu0 0
    %4559 = vmatpush1.bf16.msra.mxu0 0
    %4560 = vmatprep.mubr.bf16.mxu0 0
    %4561 = vmatmul.mubr.bf16.gmra.mrb[0].mxu0 %v4526
    %v4562 = vpop.f32.mrb[0].mxu0
    %v4563 = vadd.f32 %v4523, %v4562
    %v4564 = vpop.f32.mrb[0].mxu0
    %v4565 = vpop.f32.mrb[0].mxu0
    %v4566 = vpop.f32.mrb[0].mxu0
    %4567 = vdwg.mxu0
    %v4568 = vtanh.pop %v4563
    %v4569 = vpack.c.bf16 %v4568, %v4568
    %v4570 = vpack.c.bf16 %v735, %v734
    %v4571 = vpack.c.bf16 %v737, %v736
    %v4573 = vlaneseq
    %v4574 = vshrl.u32 %v4573, 7
    %v4575 = vsub.s32 0, %v4574
    %v4576 = vrot.slane %v733, %v4575
    %v4579 = vsel %vm824, %v4569, 0
    %4581 = vmatprep.subr.bf16.mxu0 0
    %4582 = vmatpush1.bf16.msra.mxu0 %v4570
    %4583 = vmatprep.subr.bf16.mxu0 0
    %4584 = vmatpush1.bf16.msra.mxu0 %v4571
    %4585 = vmatprep.subr.bf16.mxu0 0
    %4586 = vmatpush1.bf16.msra.mxu0 0
    %4587 = vmatprep.subr.bf16.mxu0 0
    %4588 = vmatpush1.bf16.msra.mxu0 0
    %4589 = vmatprep.subr.bf16.mxu0 0
    %4590 = vmatpush1.bf16.msra.mxu0 0
    %4591 = vmatprep.subr.bf16.mxu0 0
    %4592 = vmatpush1.bf16.msra.mxu0 0
    %4593 = vmatprep.subr.bf16.mxu0 0
    %4594 = vmatpush1.bf16.msra.mxu0 0
    %4595 = vmatprep.subr.bf16.mxu0 0
    %4596 = vmatpush1.bf16.msra.mxu0 0
    %4597 = vmatprep.subr.bf16.mxu0 0
    %4598 = vmatpush1.bf16.msra.mxu0 0
    %4599 = vmatprep.subr.bf16.mxu0 0
    %4600 = vmatpush1.bf16.msra.mxu0 0
    %4601 = vmatprep.subr.bf16.mxu0 0
    %4602 = vmatpush1.bf16.msra.mxu0 0
    %4603 = vmatprep.subr.bf16.mxu0 0
    %4604 = vmatpush1.bf16.msra.mxu0 0
    %4605 = vmatprep.subr.bf16.mxu0 0
    %4606 = vmatpush1.bf16.msra.mxu0 0
    %4607 = vmatprep.subr.bf16.mxu0 0
    %4608 = vmatpush1.bf16.msra.mxu0 0
    %4609 = vmatprep.subr.bf16.mxu0 0
    %4610 = vmatpush1.bf16.msra.mxu0 0
    %4611 = vmatprep.subr.bf16.mxu0 0
    %4612 = vmatpush1.bf16.msra.mxu0 0
    %4613 = vmatprep.mubr.bf16.mxu0 0
    %4614 = vmatmul.mubr.bf16.gmra.mrb[0].mxu0 %v4579
    %v4615 = vpop.f32.mrb[0].mxu0
    %v4616 = vadd.f32 %v4576, %v4615
    %v4617 = vpop.f32.mrb[0].mxu0
    %v4618 = vpop.f32.mrb[0].mxu0
    %v4619 = vpop.f32.mrb[0].mxu0
    %4620 = vdwg.mxu0
    %vm4621 = vcmask 9216
    %4622 = vst.msk [vmem:[#allocation56] sm:$0x3] %vm4621, %v4616
    // Predicated region
    $region434: #{_forward_core.1} parent=1 // pred_check
      _
    $region435: #{_forward_core.1} parent=1 // pred_check_branch
      %4624 = sbr.rel (0) target = $region437
    $region436: #{_forward_core.1} parent=1 // pred_region
      %s4626 = ssub.s32 32, 32
      %4627 = vsyncadd [#allocation4], %s4626
      %s4629 = sshll.u32 [#allocation56], 4
      %s4630 = int_to_ptr.vmem [resolvable:$true] %s4629
      %4632 = dma.vmem_to_hbm [thread:$0]  %s4630, 32, %s147, [#allocation4]
    $region437: #{_forward_core.1} parent=1 // pred_fallthru
      _
    // Predicated region
    $region438: #{_forward_core.1} parent=1 // pred_check
      _
    $region439: #{_forward_core.1} parent=1 // pred_check_branch
      %4634 = sbr.rel (0) target = $region441
    $region440: #{_forward_core.1} parent=1 // pred_region
      %4635 = dma.done [#allocation4], 32
    $region441: #{_forward_core.1} parent=1 // pred_fallthru
      _
    %4636 = vsyncpa [#allocation3], 1
    %4637 = vsyncpa [#allocation6], 1
    %4638 = vsyncpa [#allocation9], 1
    %4639 = vsyncpa [#allocation12], 1
    %4640 = vsyncpa [#allocation15], 1
    %4641 = vsyncpa [#allocation18], 1
    %4642 = vsyncpa [#allocation21], 1
    %4643 = vsyncpa [#allocation24], 1
    %4644 = vsyncpa [#allocation27], 1
    %4645 = vsyncpa [#allocation30], 1
    %4646 = vsyncpa [#allocation33], 1
    %4647 = vsyncpa [#allocation36], 1
    %4648 = vsyncpa [#allocation39], 1
    %4649 = vsyncpa [#allocation42], 1
    %4650 = vsyncpa [#allocation45], 1
    %4651 = vsyncpa [#allocation48], 1
    %4652 = vsyncpa [#allocation51], 1
    %4653 = vsyncpa [#allocation54], 1
    %4654 = vsyncpa [#allocation4], 1

</llo_original>
